<compile_context>
chip_gen: v5e
topology: v5e:2x2
jax: 0.10.0
libtpu: 0.0.40
codegen_flags: <defaults>
</compile_context>

<pallas_src>
import functools
import numpy as np
import jax
import jax.numpy as jnp
from jax import lax
from jax.experimental import pallas as pl
from jax.experimental.pallas import tpu as pltpu

# ----------------------------- model hyper-parameters (module defaults) -----------------
IN_NODE = 5          # in_node_channels
IN_EDGE = 2          # in_edge_channels
HEADS = 16           # N_Graph_Heads
N_KERNELS = 16       # N_kernels
KSIZE = 10           # kernel_size
N_DENSE = 128        # N_dense_nodes
SEQ = 500            # max_pool_x size
GAT_OUT = IN_NODE * HEADS          # 80
NHEADS3 = 3 * N_DENSE              # 384 (three fused dense heads)


def new_lout(lin, k, s, p, d=1):
    return int((lin + 2 * p - d * (k - 1) - 1) / s + 1)


L1 = new_lout(SEQ, KSIZE, 2, 1)    # 247
L2 = new_lout(L1, KSIZE, 2, 1)     # 120
L3 = new_lout(L2, KSIZE, 2, 1)     # 57
LP = new_lout(L3, 10, 10, 0)       # 5
FLAT = LP * N_KERNELS              # 80  (dense-head input size)
L1P = L1 + 1                       # 248 — row-pad so per-element slabs stay 8-aligned

# ---- packed-weight slab layouts (row offsets; every region starts 8-aligned) -----------
# slab A : 16-lane slab
A_W1 = 0                                   # conv1 weight  (800, 16)
A_W2 = A_W1 + KSIZE * GAT_OUT              # conv2 weight  (160, 16)
A_W3 = A_W2 + KSIZE * N_KERNELS            # conv3 weight  (160, 16)
A_B1 = A_W3 + KSIZE * N_KERNELS            # conv1 bias    (row 1120)
A_B2 = A_B1 + 8                            # conv2 bias    (row 1128)
A_B3 = A_B2 + 8                            # conv3 bias    (row 1136)
A_HW3 = A_B3 + 8                           # head layer-3  (384, 16), lanes 0..2 used
A_HB3 = A_HW3 + NHEADS3                    # head layer-3 bias (row 1528, lanes 0..2)
A_ROWS = A_HB3 + 8                         # 1536
# slab B : 384-lane slab
B_HW1 = 0                                  # head layer-1  (80, 384)
B_HW2 = B_HW1 + FLAT                       # head layer-2 block-diag (384, 384)
B_HB1 = B_HW2 + NHEADS3                    # head layer-1 bias (row 464)
B_HB2 = B_HB1 + 8                          # head layer-2 bias (row 472)
B_ROWS = B_HB2 + 8                         # 480


# ===================================== Pallas kernel =====================================
def _leaky(v, slope=0.01):
    return jnp.where(v > 0, v, slope * v)


def _pipeline_kernel(bblk, x_ref, wa, wb, out_ref, s1, s2):
    """One grid step processes `bblk` batch elements.

    x_ref : (bblk*248, 800)  conv1 im2col rows (row 247 of each element is a dummy pad)
    wa    : (1536, 16)       packed 16-lane weights
    wb    : (480, 384)       packed 384-lane weights
    out   : (bblk, 3)
    s1/s2 : zero-padded conv2/conv3 input scratch, (249,16) / (122,16)
    """
    f32 = jnp.float32

    # Border (conv-padding) rows only — the interiors are overwritten every element.
    # Written unconditionally (2 rows x 2 buffers, ~free) so this stays correct if the
    # "parallel" grid axis is sharded across TensorCores (program_id(0)==0 may not run
    # on every core).
    zrow = jnp.zeros((1, N_KERNELS), f32)
    s1[pl.ds(0, 1), :] = zrow
    s1[pl.ds(L1 + 1, 1), :] = zrow
    s2[pl.ds(0, 1), :] = zrow
    s2[pl.ds(L2 + 1, 1), :] = zrow

    # ---- Conv1: one im2col matmul for the whole batch block ----------------------------
    w1c = wa[pl.ds(A_W1, KSIZE * GAT_OUT), :]            # (800, 16)
    b1c = wa[pl.ds(A_B1, 1), :]                          # (1, 16)
    a1 = _leaky(jnp.dot(x_ref[...], w1c, preferred_element_type=f32) + b1c)
    # a1 : (bblk*248, 16); row 247 of each element is a dummy (never read).

    w2c = wa[pl.ds(A_W2, KSIZE * N_KERNELS), :]          # (160, 16)
    b2c = wa[pl.ds(A_B2, 1), :]
    w3c = wa[pl.ds(A_W3, KSIZE * N_KERNELS), :]          # (160, 16)
    b3c = wa[pl.ds(A_B3, 1), :]

    flats = []
    for b in range(bblk):
        # ---- Conv2: pad -> gather 10 taps -> one (120,160)@(160,16) matmul -------------
        s1[pl.ds(1, L1), :] = a1[b * L1P:b * L1P + L1, :]
        x2 = jnp.concatenate(
            [s1[pl.ds(k, L2, stride=2), :] for k in range(KSIZE)], axis=1)
        a2 = _leaky(jnp.dot(x2, w2c, preferred_element_type=f32) + b2c)   # (120, 16)

        # ---- Conv3: pad -> gather 10 taps -> one (57,160)@(160,16) matmul --------------
        s2[pl.ds(1, L2), :] = a2
        x3 = jnp.concatenate(
            [s2[pl.ds(k, L3, stride=2), :] for k in range(KSIZE)], axis=1)
        a3 = _leaky(jnp.dot(x3, w3c, preferred_element_type=f32) + b3c)   # (57, 16)

        # ---- MaxPool1d(10) + flatten (lane order p*16+c; the torch c*5+p order is
        #      folded into the packed layer-1 weight) ------------------------------------
        flats.append(jnp.concatenate(
            [jnp.max(a3[10 * p:10 * p + 10, :], axis=0, keepdims=True)
             for p in range(LP)], axis=1))                                # (1, 80)

    flat = jnp.concatenate(flats, axis=0)                                 # (bblk, 80)

    # ---- Fused dense heads: [Chi0 | Rp | T0] as three matmuls --------------------------
    h = _leaky(jnp.dot(flat, wb[pl.ds(B_HW1, FLAT), :],
                       preferred_element_type=f32) + wb[pl.ds(B_HB1, 1), :])
    h = _leaky(jnp.dot(h, wb[pl.ds(B_HW2, NHEADS3), :],
                       preferred_element_type=f32) + wb[pl.ds(B_HB2, 1), :])
    o = jnp.dot(h, wa[pl.ds(A_HW3, NHEADS3), :],
                preferred_element_type=f32) + wa[pl.ds(A_HB3, 1), :]      # (bblk, 16)
    o = o[:, 0:3]                                                          # (bblk, 3)
    col = lax.broadcasted_iota(jnp.int32, o.shape, 1)
    out_ref[...] = jnp.where(col == 0, jnp.tanh(o), o)   # tanh only on Chi0 column


# ================================ weight packing (wrapper) ==============================
def _pack_weights(p):
    f32 = jnp.float32

    def conv_mat(w):                     # torch (C_out, C_in, K) -> (K*C_in, C_out)
        co, ci, k = w.shape
        return jnp.transpose(w, (2, 1, 0)).reshape(k * ci, co)

    def pad_rows(a, rows):
        return jnp.pad(a, ((0, rows - a.shape[0]), (0, 0)))

    def bias16(v):
        return pad_rows(v.reshape(1, N_KERNELS), 8)

    # head layer-3 packed as a (384,16) block-column matrix (lanes 0..2 used)
    hw3 = jnp.zeros((NHEADS3, N_KERNELS), f32)
    hb3 = jnp.zeros((1, N_KERNELS), f32)
    for j, n in enumerate(('chi', 'rp', 't')):
        hw3 = hw3.at[j * N_DENSE:(j + 1) * N_DENSE, j].set(p[f'{n}3_w'][0])
        hb3 = hb3.at[0, j].set(p[f'{n}3_b'][0])

    slab_a = jnp.concatenate([
        conv_mat(p['conv1_w']), conv_mat(p['conv2_w']), conv_mat(p['conv3_w']),
        bias16(p['conv1_b']), bias16(p['conv2_b']), bias16(p['conv3_b']),
        hw3, pad_rows(hb3, 8)], axis=0).astype(f32)                       # (1536, 16)

    def head_w1(w):   # torch (128,80) with input order c*5+p -> rows ordered p*16+c
        return w.T.reshape(N_KERNELS, LP, N_DENSE).transpose(1, 0, 2).reshape(FLAT, N_DENSE)

    hw1 = jnp.concatenate([head_w1(p[f'{n}1_w']) for n in ('chi', 'rp', 't')], axis=1)
    hb1 = jnp.concatenate([p[f'{n}1_b'] for n in ('chi', 'rp', 't')]).reshape(1, NHEADS3)
    hw2 = jnp.zeros((NHEADS3, NHEADS3), f32)              # block-diagonal layer 2
    for j, n in enumerate(('chi', 'rp', 't')):
        hw2 = hw2.at[j * N_DENSE:(j + 1) * N_DENSE,
                     j * N_DENSE:(j + 1) * N_DENSE].set(p[f'{n}2_w'].T)
    hb2 = jnp.concatenate([p[f'{n}2_b'] for n in ('chi', 'rp', 't')]).reshape(1, NHEADS3)

    slab_b = jnp.concatenate([hw1, hw2, pad_rows(hb1, 8), pad_rows(hb2, 8)],
                             axis=0).astype(f32)                           # (480, 384)
    return slab_a, slab_b


def run_pipeline(conv_in, params, bblk=4):
    """conv_in: (B, 500, 80) float32 in (L, C) layout.  Convs + dense heads in Pallas."""
    B = conv_in.shape[0]
    bblk = max(1, min(bblk, B))
    nb = -(-B // bblk)
    b_pad = nb * bblk

    slab_a, slab_b = _pack_weights(params)

    # conv1 im2col in plain JAX: (B, 500, 80) -> (B_pad*248, 800)
    x = jnp.pad(conv_in.astype(jnp.float32), ((0, 0), (1, 1), (0, 0)))     # (B, 502, 80)
    taps = 2 * jnp.arange(L1)[:, None] + jnp.arange(KSIZE)[None, :]        # (247, 10)
    x = x[:, taps, :].reshape(B, L1, KSIZE * GAT_OUT)                      # (B, 247, 800)
    x = jnp.pad(x, ((0, b_pad - B), (0, L1P - L1), (0, 0)))                # (B_pad,248,800)
    x = x.reshape(b_pad * L1P, KSIZE * GAT_OUT)

    kernel = functools.partial(_pipeline_kernel, bblk)
    out = pl.pallas_call(
        kernel,
        out_shape=jax.ShapeDtypeStruct((nb, bblk, 3), jnp.float32),
        grid_spec=pltpu.PrefetchScalarGridSpec(
            num_scalar_prefetch=0,
            grid=(nb,),
            in_specs=[
                pl.BlockSpec((bblk * L1P, KSIZE * GAT_OUT), lambda i: (i, 0)),
                pl.BlockSpec((A_ROWS, N_KERNELS), lambda i: (0, 0)),   # resident slab A
                pl.BlockSpec((B_ROWS, NHEADS3), lambda i: (0, 0)),     # resident slab B
            ],
            out_specs=pl.BlockSpec((None, bblk, 3), lambda i: (i, 0, 0)),
            scratch_shapes=[pltpu.VMEM((L1 + 2, N_KERNELS), jnp.float32),
                            pltpu.VMEM((L2 + 2, N_KERNELS), jnp.float32)],
        ),
        compiler_params=pltpu.CompilerParams(
            dimension_semantics=("parallel",)),      # independent batch blocks
    )(x, slab_a, slab_b)
    return out.reshape(b_pad, 3)[:B]


# ========================= GAT / graph glue (plain JAX, not Pallas) ======================
# TODO(synk): GATConv scatter-softmax, dynamic edge masking and max_pool_x are irregular
#             gather/scatter ops with data-dependent shapes; they stay in jax.ops.segment_*
#             / host-side numpy glue rather than inside the Pallas kernel.
def gat_conv(x, edge_index, edge_attr, p, heads=HEADS, out_ch=IN_NODE):
    """Mirror of torch_geometric GATConv(concat=True, edge_dim, fill_value=0)."""
    n = x.shape[0]
    loop = jnp.arange(n, dtype=jnp.int32)
    src = jnp.concatenate([edge_index[0], loop])                       # add self-loops
    dst = jnp.concatenate([edge_index[1], loop])
    eattr = jnp.concatenate(
        [edge_attr, jnp.zeros((n, edge_attr.shape[1]), edge_attr.dtype)], axis=0)

    xs = (x @ p['lin_w']).reshape(n, heads, out_ch)
    a_src = (xs * p['att_src']).sum(-1)                                # (N, H)
    a_dst = (xs * p['att_dst']).sum(-1)
    ef = (eattr @ p['lin_edge_w']).reshape(-1, heads, out_ch)
    a_edge = (ef * p['att_edge']).sum(-1)                              # (E', H)

    alpha = a_src[src] + a_dst[dst] + a_edge
    alpha = jnp.where(alpha > 0, alpha, 0.2 * alpha)                   # leaky_relu(0.2)
    amax = jax.ops.segment_max(alpha, dst, num_segments=n)             # segment softmax
    alpha = jnp.exp(alpha - amax[dst])
    denom = jax.ops.segment_sum(alpha, dst, num_segments=n)
    alpha = alpha / (denom[dst] + 1e-16)

    msg = xs[src] * alpha[..., None]
    out = jax.ops.segment_sum(msg, dst, num_segments=n)                # (N, H, C)
    return out.reshape(n, heads * out_ch) + p['bias']


def model_forward(graphs, params):
    # --- batch the graphs (mirrors the torch python loop) ---
    all_nodes, all_edges, all_edgev, batching = [], [], [], []
    total = 0
    for bi, (nodes, edges, edgev) in enumerate(graphs):
        all_nodes.append(nodes)
        all_edges.append(edges + total)
        all_edgev.append(edgev)
        batching.append(jnp.full((nodes.shape[0],), bi, jnp.int32))
        total += nodes.shape[0]
    all_nodes = jnp.concatenate(all_nodes, axis=0)
    all_edges = jnp.concatenate(all_edges, axis=0).T                   # (2, E)
    all_edgev = jnp.concatenate(all_edgev, axis=0)
    batching = jnp.concatenate(batching, axis=0)
    timing = all_nodes[:, 2].astype(jnp.int32)
    bsz = len(graphs)

    out = gat_conv(all_nodes, all_edges, all_edgev, params['g1'])
    # dynamic-shape edge masking (AllEdgeV[:,0] > 1) done on concrete values, as in torch.
    # NOTE: np.nonzero forces eager evaluation — model_forward must not be jax.jit'ed.
    keep = np.nonzero(np.asarray(all_edgev[:, 0]) > 1)[0]
    out = gat_conv(out, all_edges[:, keep], all_edgev[keep], params['g2'])

    # --- max_pool_x(cluster=timing, batch, size=500); empty clusters -> 0 ---
    idx = batching * SEQ + timing
    pooled = jax.ops.segment_max(out, idx, num_segments=bsz * SEQ)
    counts = jax.ops.segment_sum(jnp.ones((out.shape[0],), jnp.float32), idx,
                                 num_segments=bsz * SEQ)
    pooled = jnp.where(counts[:, None] > 0, pooled, 0.0)

    conv_in = pooled.reshape(bsz, GAT_OUT, SEQ)        # exact torch .view(-1, 80, 500)
    conv_in = jnp.transpose(conv_in, (0, 2, 1))        # kernel layout (B, L, C)
    return run_pipeline(conv_in, params)


# ================================== parameter init ======================================
def init_params(key):
    keys = iter(jax.random.split(key, 64))

    def nrm(shape, scale=0.1):
        return scale * jax.random.normal(next(keys), shape, dtype=jnp.float32)

    def gat_params(in_dim):
        return dict(
            lin_w=nrm((in_dim, HEADS * IN_NODE), 0.05),
            att_src=nrm((HEADS, IN_NODE)), att_dst=nrm((HEADS, IN_NODE)),
            lin_edge_w=nrm((IN_EDGE, HEADS * IN_NODE), 0.05),
            att_edge=nrm((HEADS, IN_NODE)),
            bias=nrm((HEADS * IN_NODE,)),
        )

    p = {'g1': gat_params(IN_NODE), 'g2': gat_params(GAT_OUT)}
    # conv weights kept in PyTorch layout (C_out, C_in, K); packed in _pack_weights
    p['conv1_w'] = nrm((N_KERNELS, GAT_OUT, KSIZE), 0.05)
    p['conv1_b'] = nrm((N_KERNELS,))
    p['conv2_w'] = nrm((N_KERNELS, N_KERNELS, KSIZE), 0.05)
    p['conv2_b'] = nrm((N_KERNELS,))
    p['conv3_w'] = nrm((N_KERNELS, N_KERNELS, KSIZE), 0.05)
    p['conv3_b'] = nrm((N_KERNELS,))
    # dense heads kept in PyTorch layout (out, in)
    for n in ('chi', 'rp', 't'):
        p[f'{n}1_w'] = nrm((N_DENSE, FLAT))
        p[f'{n}1_b'] = nrm((N_DENSE,))
        p[f'{n}2_w'] = nrm((N_DENSE, N_DENSE))
        p[f'{n}2_b'] = nrm((N_DENSE,))
        p[f'{n}3_w'] = nrm((1, N_DENSE))
        p[f'{n}3_b'] = nrm((1,))
    return p


def make_graphs(key, node_counts=(60, 70)):
    graphs = []
    for n in node_counts:
        key, kf, kt, ks, kd, kv = jax.random.split(key, 6)
        feats = jax.random.normal(kf, (n, IN_NODE), dtype=jnp.float32)
        timing = jax.random.randint(kt, (n,), 0, SEQ).astype(jnp.float32)
        feats = feats.at[:, 2].set(timing)                      # column 2 = timing cluster
        e = 3 * n
        src = jax.random.randint(ks, (e,), 0, n)
        dst = jax.random.randint(kd, (e,), 0, n)
        dst = jnp.where(dst == src, (dst + 1) % n, dst)         # no self-loops in data
        edges = jnp.stack([src, dst], axis=1).astype(jnp.int32)  # (E, 2), like torch Edges
        edgev = jax.random.uniform(kv, (e, IN_EDGE), minval=0.0, maxval=3.0,
                                   dtype=jnp.float32)
        graphs.append((feats, edges, edgev))
    return graphs


if __name__ == "__main__":
    root = jax.random.PRNGKey(0)
    pkey, dkey = jax.random.split(root)
    params = init_params(pkey)
    graphs = make_graphs(dkey, node_counts=(60, 70))     # batch of 2 graphs

    out = model_forward(graphs, params)                  # (2, 3) = [Chi0, Rp, T0]
    out = jax.block_until_ready(out)

    assert out.shape == (2, 3), out.shape
    assert bool(jnp.all(jnp.isfinite(out)))
    print("KERNEL_OK")
</pallas_src>

<mosaic_0001>
module attributes {stable_mosaic.version = 11 : i64} {
  func.func @_pipeline_kernel(%arg0: i32, %arg1: memref<496x800xf32, #tpu.memory_space<vmem>>, %arg2: memref<1536x16xf32, #tpu.memory_space<vmem>>, %arg3: memref<480x384xf32, #tpu.memory_space<vmem>>, %arg4: memref<1x2x3xf32, #tpu.memory_space<vmem>>, %arg5: memref<249x16xf32, #tpu.memory_space<vmem>>, %arg6: memref<122x16xf32, #tpu.memory_space<vmem>>) attributes {dimension_semantics = [#tpu.dimension_semantics<parallel>], iteration_bounds = array<i64: 1>, scalar_prefetch = 0 : i64, scratch_operands = 2 : i64, tpu.core_type = #tpu.core_type<tc>, window_params = [{transform_indices = @transform_0, window_bounds = array<i64: 496, 800>}, {pipeline_mode = #tpu.pipeline_mode<synchronous>, transform_indices = @transform_1, window_bounds = array<i64: 1536, 16>}, {pipeline_mode = #tpu.pipeline_mode<synchronous>, transform_indices = @transform_2, window_bounds = array<i64: 480, 384>}, {transform_indices = @transform_3, window_bounds = array<i64: 1, 2, 3>}]} {
    %cst = arith.constant 0.000000e+00 : f32
    %0 = vector.broadcast %cst : f32 to vector<1x16xf32>
    %c0 = arith.constant 0 : index
    %c0_0 = arith.constant 0 : index
    %1 = vector.load %arg5[%c0, %c0_0] : memref<249x16xf32, #tpu.memory_space<vmem>>, vector<1x16xf32>
    tpu.vector_store %arg5[%c0, %c0_0], %0 {strides = array<i32>} : memref<249x16xf32, #tpu.memory_space<vmem>>, vector<1x16xf32>,
    %c248 = arith.constant 248 : index
    %c0_1 = arith.constant 0 : index
    %2 = vector.load %arg5[%c248, %c0_1] : memref<249x16xf32, #tpu.memory_space<vmem>>, vector<1x16xf32>
    tpu.vector_store %arg5[%c248, %c0_1], %0 {strides = array<i32>} : memref<249x16xf32, #tpu.memory_space<vmem>>, vector<1x16xf32>,
    %c0_2 = arith.constant 0 : index
    %c0_3 = arith.constant 0 : index
    %3 = vector.load %arg6[%c0_2, %c0_3] : memref<122x16xf32, #tpu.memory_space<vmem>>, vector<1x16xf32>
    tpu.vector_store %arg6[%c0_2, %c0_3], %0 {strides = array<i32>} : memref<122x16xf32, #tpu.memory_space<vmem>>, vector<1x16xf32>,
    %c121 = arith.constant 121 : index
    %c0_4 = arith.constant 0 : index
    %4 = vector.load %arg6[%c121, %c0_4] : memref<122x16xf32, #tpu.memory_space<vmem>>, vector<1x16xf32>
    tpu.vector_store %arg6[%c121, %c0_4], %0 {strides = array<i32>} : memref<122x16xf32, #tpu.memory_space<vmem>>, vector<1x16xf32>,
    %c0_5 = arith.constant 0 : index
    %c0_6 = arith.constant 0 : index
    %5 = vector.load %arg2[%c0_5, %c0_6] : memref<1536x16xf32, #tpu.memory_space<vmem>>, vector<800x16xf32>
    %c1120 = arith.constant 1120 : index
    %c0_7 = arith.constant 0 : index
    %6 = vector.load %arg2[%c1120, %c0_7] : memref<1536x16xf32, #tpu.memory_space<vmem>>, vector<1x16xf32>
    %c0_8 = arith.constant 0 : index
    %c0_9 = arith.constant 0 : index
    %7 = vector.load %arg1[%c0_8, %c0_9] : memref<496x800xf32, #tpu.memory_space<vmem>>, vector<496x800xf32>
    %cst_10 = arith.constant dense<0.000000e+00> : vector<496x16xf32>
    %8 = tpu.matmul %7, %5, %cst_10 {dimension_numbers = #tpu.dot_dimension_numbers<[1], [0], [0], [1], [0, 0, 1, 1], [], []>} : vector<496x800xf32>, vector<800x16xf32>, vector<496x16xf32> -> vector<496x16xf32>
    %9 = vector.broadcast %6 : vector<1x16xf32> to vector<496x16xf32>
    %10 = arith.addf %8, %9 : vector<496x16xf32>
    %cst_11 = arith.constant 0.000000e+00 : f32
    %11 = vector.broadcast %cst_11 : f32 to vector<496x16xf32>
    %12 = arith.cmpf ogt, %10, %11 : vector<496x16xf32>
    %cst_12 = arith.constant 0.00999999977 : f32
    %13 = vector.broadcast %cst_12 : f32 to vector<496x16xf32>
    %14 = arith.mulf %13, %10 : vector<496x16xf32>
    %15 = arith.select %12, %10, %14 : vector<496x16xi1>, vector<496x16xf32>
    %c800 = arith.constant 800 : index
    %c0_13 = arith.constant 0 : index
    %16 = vector.load %arg2[%c800, %c0_13] : memref<1536x16xf32, #tpu.memory_space<vmem>>, vector<160x16xf32>
    %c1128 = arith.constant 1128 : index
    %c0_14 = arith.constant 0 : index
    %17 = vector.load %arg2[%c1128, %c0_14] : memref<1536x16xf32, #tpu.memory_space<vmem>>, vector<1x16xf32>
    %c960 = arith.constant 960 : index
    %c0_15 = arith.constant 0 : index
    %18 = vector.load %arg2[%c960, %c0_15] : memref<1536x16xf32, #tpu.memory_space<vmem>>, vector<160x16xf32>
    %c1136 = arith.constant 1136 : index
    %c0_16 = arith.constant 0 : index
    %19 = vector.load %arg2[%c1136, %c0_16] : memref<1536x16xf32, #tpu.memory_space<vmem>>, vector<1x16xf32>
    %20 = vector.extract_strided_slice %15 {offsets = [0, 0], sizes = [247, 16], strides = [1, 1]} : vector<496x16xf32> to vector<247x16xf32>
    %c1 = arith.constant 1 : index
    %c0_17 = arith.constant 0 : index
    %21 = vector.load %arg5[%c1, %c0_17] : memref<249x16xf32, #tpu.memory_space<vmem>>, vector<247x16xf32>
    tpu.vector_store %arg5[%c1, %c0_17], %20 {strides = array<i32>} : memref<249x16xf32, #tpu.memory_space<vmem>>, vector<247x16xf32>,
    %c0_18 = arith.constant 0 : index
    %c0_19 = arith.constant 0 : index
    %22 = tpu.strided_load %arg5[%c0_18, %c0_19] {strides = array<i32: 2, 1>} : memref<249x16xf32, #tpu.memory_space<vmem>>, vector<120x16xf32>
    %c1_20 = arith.constant 1 : index
    %c0_21 = arith.constant 0 : index
    %23 = tpu.strided_load %arg5[%c1_20, %c0_21] {strides = array<i32: 2, 1>} : memref<249x16xf32, #tpu.memory_space<vmem>>, vector<120x16xf32>
    %c2 = arith.constant 2 : index
    %c0_22 = arith.constant 0 : index
    %24 = tpu.strided_load %arg5[%c2, %c0_22] {strides = array<i32: 2, 1>} : memref<249x16xf32, #tpu.memory_space<vmem>>, vector<120x16xf32>
    %c3 = arith.constant 3 : index
    %c0_23 = arith.constant 0 : index
    %25 = tpu.strided_load %arg5[%c3, %c0_23] {strides = array<i32: 2, 1>} : memref<249x16xf32, #tpu.memory_space<vmem>>, vector<120x16xf32>
    %c4 = arith.constant 4 : index
    %c0_24 = arith.constant 0 : index
    %26 = tpu.strided_load %arg5[%c4, %c0_24] {strides = array<i32: 2, 1>} : memref<249x16xf32, #tpu.memory_space<vmem>>, vector<120x16xf32>
    %c5 = arith.constant 5 : index
    %c0_25 = arith.constant 0 : index
    %27 = tpu.strided_load %arg5[%c5, %c0_25] {strides = array<i32: 2, 1>} : memref<249x16xf32, #tpu.memory_space<vmem>>, vector<120x16xf32>
    %c6 = arith.constant 6 : index
    %c0_26 = arith.constant 0 : index
    %28 = tpu.strided_load %arg5[%c6, %c0_26] {strides = array<i32: 2, 1>} : memref<249x16xf32, #tpu.memory_space<vmem>>, vector<120x16xf32>
    %c7 = arith.constant 7 : index
    %c0_27 = arith.constant 0 : index
    %29 = tpu.strided_load %arg5[%c7, %c0_27] {strides = array<i32: 2, 1>} : memref<249x16xf32, #tpu.memory_space<vmem>>, vector<120x16xf32>
    %c8 = arith.constant 8 : index
    %c0_28 = arith.constant 0 : index
    %30 = tpu.strided_load %arg5[%c8, %c0_28] {strides = array<i32: 2, 1>} : memref<249x16xf32, #tpu.memory_space<vmem>>, vector<120x16xf32>
    %c9 = arith.constant 9 : index
    %c0_29 = arith.constant 0 : index
    %31 = tpu.strided_load %arg5[%c9, %c0_29] {strides = array<i32: 2, 1>} : memref<249x16xf32, #tpu.memory_space<vmem>>, vector<120x16xf32>
    %32 = tpu.concatenate %22, %23, %24, %25, %26, %27, %28, %29, %30, %31 in 1 : vector<120x16xf32>, vector<120x16xf32>, vector<120x16xf32>, vector<120x16xf32>, vector<120x16xf32>, vector<120x16xf32>, vector<120x16xf32>, vector<120x16xf32>, vector<120x16xf32>, vector<120x16xf32> -> vector<120x160xf32>
    %cst_30 = arith.constant dense<0.000000e+00> : vector<120x16xf32>
    %33 = tpu.matmul %32, %16, %cst_30 {dimension_numbers = #tpu.dot_dimension_numbers<[1], [0], [0], [1], [0, 0, 1, 1], [], []>} : vector<120x160xf32>, vector<160x16xf32>, vector<120x16xf32> -> vector<120x16xf32>
    %34 = vector.broadcast %17 : vector<1x16xf32> to vector<120x16xf32>
    %35 = arith.addf %33, %34 : vector<120x16xf32>
    %cst_31 = arith.constant 0.000000e+00 : f32
    %36 = vector.broadcast %cst_31 : f32 to vector<120x16xf32>
    %37 = arith.cmpf ogt, %35, %36 : vector<120x16xf32>
    %cst_32 = arith.constant 0.00999999977 : f32
    %38 = vector.broadcast %cst_32 : f32 to vector<120x16xf32>
    %39 = arith.mulf %38, %35 : vector<120x16xf32>
    %40 = arith.select %37, %35, %39 : vector<120x16xi1>, vector<120x16xf32>
    %c1_33 = arith.constant 1 : index
    %c0_34 = arith.constant 0 : index
    %41 = vector.load %arg6[%c1_33, %c0_34] : memref<122x16xf32, #tpu.memory_space<vmem>>, vector<120x16xf32>
    tpu.vector_store %arg6[%c1_33, %c0_34], %40 {strides = array<i32>} : memref<122x16xf32, #tpu.memory_space<vmem>>, vector<120x16xf32>,
    %c0_35 = arith.constant 0 : index
    %c0_36 = arith.constant 0 : index
    %42 = tpu.strided_load %arg6[%c0_35, %c0_36] {strides = array<i32: 2, 1>} : memref<122x16xf32, #tpu.memory_space<vmem>>, vector<57x16xf32>
    %c1_37 = arith.constant 1 : index
    %c0_38 = arith.constant 0 : index
    %43 = tpu.strided_load %arg6[%c1_37, %c0_38] {strides = array<i32: 2, 1>} : memref<122x16xf32, #tpu.memory_space<vmem>>, vector<57x16xf32>
    %c2_39 = arith.constant 2 : index
    %c0_40 = arith.constant 0 : index
    %44 = tpu.strided_load %arg6[%c2_39, %c0_40] {strides = array<i32: 2, 1>} : memref<122x16xf32, #tpu.memory_space<vmem>>, vector<57x16xf32>
    %c3_41 = arith.constant 3 : index
    %c0_42 = arith.constant 0 : index
    %45 = tpu.strided_load %arg6[%c3_41, %c0_42] {strides = array<i32: 2, 1>} : memref<122x16xf32, #tpu.memory_space<vmem>>, vector<57x16xf32>
    %c4_43 = arith.constant 4 : index
    %c0_44 = arith.constant 0 : index
    %46 = tpu.strided_load %arg6[%c4_43, %c0_44] {strides = array<i32: 2, 1>} : memref<122x16xf32, #tpu.memory_space<vmem>>, vector<57x16xf32>
    %c5_45 = arith.constant 5 : index
    %c0_46 = arith.constant 0 : index
    %47 = tpu.strided_load %arg6[%c5_45, %c0_46] {strides = array<i32: 2, 1>} : memref<122x16xf32, #tpu.memory_space<vmem>>, vector<57x16xf32>
    %c6_47 = arith.constant 6 : index
    %c0_48 = arith.constant 0 : index
    %48 = tpu.strided_load %arg6[%c6_47, %c0_48] {strides = array<i32: 2, 1>} : memref<122x16xf32, #tpu.memory_space<vmem>>, vector<57x16xf32>
    %c7_49 = arith.constant 7 : index
    %c0_50 = arith.constant 0 : index
    %49 = tpu.strided_load %arg6[%c7_49, %c0_50] {strides = array<i32: 2, 1>} : memref<122x16xf32, #tpu.memory_space<vmem>>, vector<57x16xf32>
    %c8_51 = arith.constant 8 : index
    %c0_52 = arith.constant 0 : index
    %50 = tpu.strided_load %arg6[%c8_51, %c0_52] {strides = array<i32: 2, 1>} : memref<122x16xf32, #tpu.memory_space<vmem>>, vector<57x16xf32>
    %c9_53 = arith.constant 9 : index
    %c0_54 = arith.constant 0 : index
    %51 = tpu.strided_load %arg6[%c9_53, %c0_54] {strides = array<i32: 2, 1>} : memref<122x16xf32, #tpu.memory_space<vmem>>, vector<57x16xf32>
    %52 = tpu.concatenate %42, %43, %44, %45, %46, %47, %48, %49, %50, %51 in 1 : vector<57x16xf32>, vector<57x16xf32>, vector<57x16xf32>, vector<57x16xf32>, vector<57x16xf32>, vector<57x16xf32>, vector<57x16xf32>, vector<57x16xf32>, vector<57x16xf32>, vector<57x16xf32> -> vector<57x160xf32>
    %cst_55 = arith.constant dense<0.000000e+00> : vector<57x16xf32>
    %53 = tpu.matmul %52, %18, %cst_55 {dimension_numbers = #tpu.dot_dimension_numbers<[1], [0], [0], [1], [0, 0, 1, 1], [], []>} : vector<57x160xf32>, vector<160x16xf32>, vector<57x16xf32> -> vector<57x16xf32>
    %54 = vector.broadcast %19 : vector<1x16xf32> to vector<57x16xf32>
    %55 = arith.addf %53, %54 : vector<57x16xf32>
    %cst_56 = arith.constant 0.000000e+00 : f32
    %56 = vector.broadcast %cst_56 : f32 to vector<57x16xf32>
    %57 = arith.cmpf ogt, %55, %56 : vector<57x16xf32>
    %cst_57 = arith.constant 0.00999999977 : f32
    %58 = vector.broadcast %cst_57 : f32 to vector<57x16xf32>
    %59 = arith.mulf %58, %55 : vector<57x16xf32>
    %60 = arith.select %57, %55, %59 : vector<57x16xi1>, vector<57x16xf32>
    %61 = vector.extract_strided_slice %60 {offsets = [0, 0], sizes = [10, 16], strides = [1, 1]} : vector<57x16xf32> to vector<10x16xf32>
    %cst_58 = arith.constant dense<0xFF800000> : vector<16xf32>
    %62 = vector.multi_reduction <maximumf>, %61, %cst_58 [0] : vector<10x16xf32> to vector<16xf32>
    %63 = vector.shape_cast %62 : vector<16xf32> to vector<1x16xf32>
    %64 = vector.extract_strided_slice %60 {offsets = [10, 0], sizes = [10, 16], strides = [1, 1]} : vector<57x16xf32> to vector<10x16xf32>
    %cst_59 = arith.constant dense<0xFF800000> : vector<16xf32>
    %65 = vector.multi_reduction <maximumf>, %64, %cst_59 [0] : vector<10x16xf32> to vector<16xf32>
    %66 = vector.shape_cast %65 : vector<16xf32> to vector<1x16xf32>
    %67 = vector.extract_strided_slice %60 {offsets = [20, 0], sizes = [10, 16], strides = [1, 1]} : vector<57x16xf32> to vector<10x16xf32>
    %cst_60 = arith.constant dense<0xFF800000> : vector<16xf32>
    %68 = vector.multi_reduction <maximumf>, %67, %cst_60 [0] : vector<10x16xf32> to vector<16xf32>
    %69 = vector.shape_cast %68 : vector<16xf32> to vector<1x16xf32>
    %70 = vector.extract_strided_slice %60 {offsets = [30, 0], sizes = [10, 16], strides = [1, 1]} : vector<57x16xf32> to vector<10x16xf32>
    %cst_61 = arith.constant dense<0xFF800000> : vector<16xf32>
    %71 = vector.multi_reduction <maximumf>, %70, %cst_61 [0] : vector<10x16xf32> to vector<16xf32>
    %72 = vector.shape_cast %71 : vector<16xf32> to vector<1x16xf32>
    %73 = vector.extract_strided_slice %60 {offsets = [40, 0], sizes = [10, 16], strides = [1, 1]} : vector<57x16xf32> to vector<10x16xf32>
    %cst_62 = arith.constant dense<0xFF800000> : vector<16xf32>
    %74 = vector.multi_reduction <maximumf>, %73, %cst_62 [0] : vector<10x16xf32> to vector<16xf32>
    %75 = vector.shape_cast %74 : vector<16xf32> to vector<1x16xf32>
    %76 = tpu.concatenate %63, %66, %69, %72, %75 in 1 : vector<1x16xf32>, vector<1x16xf32>, vector<1x16xf32>, vector<1x16xf32>, vector<1x16xf32> -> vector<1x80xf32>
    %77 = vector.extract_strided_slice %15 {offsets = [248, 0], sizes = [247, 16], strides = [1, 1]} : vector<496x16xf32> to vector<247x16xf32>
    %c1_63 = arith.constant 1 : index
    %c0_64 = arith.constant 0 : index
    %78 = vector.load %arg5[%c1_63, %c0_64] : memref<249x16xf32, #tpu.memory_space<vmem>>, vector<247x16xf32>
    tpu.vector_store %arg5[%c1_63, %c0_64], %77 {strides = array<i32>} : memref<249x16xf32, #tpu.memory_space<vmem>>, vector<247x16xf32>,
    %c0_65 = arith.constant 0 : index
    %c0_66 = arith.constant 0 : index
    %79 = tpu.strided_load %arg5[%c0_65, %c0_66] {strides = array<i32: 2, 1>} : memref<249x16xf32, #tpu.memory_space<vmem>>, vector<120x16xf32>
    %c1_67 = arith.constant 1 : index
    %c0_68 = arith.constant 0 : index
    %80 = tpu.strided_load %arg5[%c1_67, %c0_68] {strides = array<i32: 2, 1>} : memref<249x16xf32, #tpu.memory_space<vmem>>, vector<120x16xf32>
    %c2_69 = arith.constant 2 : index
    %c0_70 = arith.constant 0 : index
    %81 = tpu.strided_load %arg5[%c2_69, %c0_70] {strides = array<i32: 2, 1>} : memref<249x16xf32, #tpu.memory_space<vmem>>, vector<120x16xf32>
    %c3_71 = arith.constant 3 : index
    %c0_72 = arith.constant 0 : index
    %82 = tpu.strided_load %arg5[%c3_71, %c0_72] {strides = array<i32: 2, 1>} : memref<249x16xf32, #tpu.memory_space<vmem>>, vector<120x16xf32>
    %c4_73 = arith.constant 4 : index
    %c0_74 = arith.constant 0 : index
    %83 = tpu.strided_load %arg5[%c4_73, %c0_74] {strides = array<i32: 2, 1>} : memref<249x16xf32, #tpu.memory_space<vmem>>, vector<120x16xf32>
    %c5_75 = arith.constant 5 : index
    %c0_76 = arith.constant 0 : index
    %84 = tpu.strided_load %arg5[%c5_75, %c0_76] {strides = array<i32: 2, 1>} : memref<249x16xf32, #tpu.memory_space<vmem>>, vector<120x16xf32>
    %c6_77 = arith.constant 6 : index
    %c0_78 = arith.constant 0 : index
    %85 = tpu.strided_load %arg5[%c6_77, %c0_78] {strides = array<i32: 2, 1>} : memref<249x16xf32, #tpu.memory_space<vmem>>, vector<120x16xf32>
    %c7_79 = arith.constant 7 : index
    %c0_80 = arith.constant 0 : index
    %86 = tpu.strided_load %arg5[%c7_79, %c0_80] {strides = array<i32: 2, 1>} : memref<249x16xf32, #tpu.memory_space<vmem>>, vector<120x16xf32>
    %c8_81 = arith.constant 8 : index
    %c0_82 = arith.constant 0 : index
    %87 = tpu.strided_load %arg5[%c8_81, %c0_82] {strides = array<i32: 2, 1>} : memref<249x16xf32, #tpu.memory_space<vmem>>, vector<120x16xf32>
    %c9_83 = arith.constant 9 : index
    %c0_84 = arith.constant 0 : index
    %88 = tpu.strided_load %arg5[%c9_83, %c0_84] {strides = array<i32: 2, 1>} : memref<249x16xf32, #tpu.memory_space<vmem>>, vector<120x16xf32>
    %89 = tpu.concatenate %79, %80, %81, %82, %83, %84, %85, %86, %87, %88 in 1 : vector<120x16xf32>, vector<120x16xf32>, vector<120x16xf32>, vector<120x16xf32>, vector<120x16xf32>, vector<120x16xf32>, vector<120x16xf32>, vector<120x16xf32>, vector<120x16xf32>, vector<120x16xf32> -> vector<120x160xf32>
    %cst_85 = arith.constant dense<0.000000e+00> : vector<120x16xf32>
    %90 = tpu.matmul %89, %16, %cst_85 {dimension_numbers = #tpu.dot_dimension_numbers<[1], [0], [0], [1], [0, 0, 1, 1], [], []>} : vector<120x160xf32>, vector<160x16xf32>, vector<120x16xf32> -> vector<120x16xf32>
    %91 = vector.broadcast %17 : vector<1x16xf32> to vector<120x16xf32>
    %92 = arith.addf %90, %91 : vector<120x16xf32>
    %cst_86 = arith.constant 0.000000e+00 : f32
    %93 = vector.broadcast %cst_86 : f32 to vector<120x16xf32>
    %94 = arith.cmpf ogt, %92, %93 : vector<120x16xf32>
    %cst_87 = arith.constant 0.00999999977 : f32
    %95 = vector.broadcast %cst_87 : f32 to vector<120x16xf32>
    %96 = arith.mulf %95, %92 : vector<120x16xf32>
    %97 = arith.select %94, %92, %96 : vector<120x16xi1>, vector<120x16xf32>
    %c1_88 = arith.constant 1 : index
    %c0_89 = arith.constant 0 : index
    %98 = vector.load %arg6[%c1_88, %c0_89] : memref<122x16xf32, #tpu.memory_space<vmem>>, vector<120x16xf32>
    tpu.vector_store %arg6[%c1_88, %c0_89], %97 {strides = array<i32>} : memref<122x16xf32, #tpu.memory_space<vmem>>, vector<120x16xf32>,
    %c0_90 = arith.constant 0 : index
    %c0_91 = arith.constant 0 : index
    %99 = tpu.strided_load %arg6[%c0_90, %c0_91] {strides = array<i32: 2, 1>} : memref<122x16xf32, #tpu.memory_space<vmem>>, vector<57x16xf32>
    %c1_92 = arith.constant 1 : index
    %c0_93 = arith.constant 0 : index
    %100 = tpu.strided_load %arg6[%c1_92, %c0_93] {strides = array<i32: 2, 1>} : memref<122x16xf32, #tpu.memory_space<vmem>>, vector<57x16xf32>
    %c2_94 = arith.constant 2 : index
    %c0_95 = arith.constant 0 : index
    %101 = tpu.strided_load %arg6[%c2_94, %c0_95] {strides = array<i32: 2, 1>} : memref<122x16xf32, #tpu.memory_space<vmem>>, vector<57x16xf32>
    %c3_96 = arith.constant 3 : index
    %c0_97 = arith.constant 0 : index
    %102 = tpu.strided_load %arg6[%c3_96, %c0_97] {strides = array<i32: 2, 1>} : memref<122x16xf32, #tpu.memory_space<vmem>>, vector<57x16xf32>
    %c4_98 = arith.constant 4 : index
    %c0_99 = arith.constant 0 : index
    %103 = tpu.strided_load %arg6[%c4_98, %c0_99] {strides = array<i32: 2, 1>} : memref<122x16xf32, #tpu.memory_space<vmem>>, vector<57x16xf32>
    %c5_100 = arith.constant 5 : index
    %c0_101 = arith.constant 0 : index
    %104 = tpu.strided_load %arg6[%c5_100, %c0_101] {strides = array<i32: 2, 1>} : memref<122x16xf32, #tpu.memory_space<vmem>>, vector<57x16xf32>
    %c6_102 = arith.constant 6 : index
    %c0_103 = arith.constant 0 : index
    %105 = tpu.strided_load %arg6[%c6_102, %c0_103] {strides = array<i32: 2, 1>} : memref<122x16xf32, #tpu.memory_space<vmem>>, vector<57x16xf32>
    %c7_104 = arith.constant 7 : index
    %c0_105 = arith.constant 0 : index
    %106 = tpu.strided_load %arg6[%c7_104, %c0_105] {strides = array<i32: 2, 1>} : memref<122x16xf32, #tpu.memory_space<vmem>>, vector<57x16xf32>
    %c8_106 = arith.constant 8 : index
    %c0_107 = arith.constant 0 : index
    %107 = tpu.strided_load %arg6[%c8_106, %c0_107] {strides = array<i32: 2, 1>} : memref<122x16xf32, #tpu.memory_space<vmem>>, vector<57x16xf32>
    %c9_108 = arith.constant 9 : index
    %c0_109 = arith.constant 0 : index
    %108 = tpu.strided_load %arg6[%c9_108, %c0_109] {strides = array<i32: 2, 1>} : memref<122x16xf32, #tpu.memory_space<vmem>>, vector<57x16xf32>
    %109 = tpu.concatenate %99, %100, %101, %102, %103, %104, %105, %106, %107, %108 in 1 : vector<57x16xf32>, vector<57x16xf32>, vector<57x16xf32>, vector<57x16xf32>, vector<57x16xf32>, vector<57x16xf32>, vector<57x16xf32>, vector<57x16xf32>, vector<57x16xf32>, vector<57x16xf32> -> vector<57x160xf32>
    %cst_110 = arith.constant dense<0.000000e+00> : vector<57x16xf32>
    %110 = tpu.matmul %109, %18, %cst_110 {dimension_numbers = #tpu.dot_dimension_numbers<[1], [0], [0], [1], [0, 0, 1, 1], [], []>} : vector<57x160xf32>, vector<160x16xf32>, vector<57x16xf32> -> vector<57x16xf32>
    %111 = vector.broadcast %19 : vector<1x16xf32> to vector<57x16xf32>
    %112 = arith.addf %110, %111 : vector<57x16xf32>
    %cst_111 = arith.constant 0.000000e+00 : f32
    %113 = vector.broadcast %cst_111 : f32 to vector<57x16xf32>
    %114 = arith.cmpf ogt, %112, %113 : vector<57x16xf32>
    %cst_112 = arith.constant 0.00999999977 : f32
    %115 = vector.broadcast %cst_112 : f32 to vector<57x16xf32>
    %116 = arith.mulf %115, %112 : vector<57x16xf32>
    %117 = arith.select %114, %112, %116 : vector<57x16xi1>, vector<57x16xf32>
    %118 = vector.extract_strided_slice %117 {offsets = [0, 0], sizes = [10, 16], strides = [1, 1]} : vector<57x16xf32> to vector<10x16xf32>
    %cst_113 = arith.constant dense<0xFF800000> : vector<16xf32>
    %119 = vector.multi_reduction <maximumf>, %118, %cst_113 [0] : vector<10x16xf32> to vector<16xf32>
    %120 = vector.shape_cast %119 : vector<16xf32> to vector<1x16xf32>
    %121 = vector.extract_strided_slice %117 {offsets = [10, 0], sizes = [10, 16], strides = [1, 1]} : vector<57x16xf32> to vector<10x16xf32>
    %cst_114 = arith.constant dense<0xFF800000> : vector<16xf32>
    %122 = vector.multi_reduction <maximumf>, %121, %cst_114 [0] : vector<10x16xf32> to vector<16xf32>
    %123 = vector.shape_cast %122 : vector<16xf32> to vector<1x16xf32>
    %124 = vector.extract_strided_slice %117 {offsets = [20, 0], sizes = [10, 16], strides = [1, 1]} : vector<57x16xf32> to vector<10x16xf32>
    %cst_115 = arith.constant dense<0xFF800000> : vector<16xf32>
    %125 = vector.multi_reduction <maximumf>, %124, %cst_115 [0] : vector<10x16xf32> to vector<16xf32>
    %126 = vector.shape_cast %125 : vector<16xf32> to vector<1x16xf32>
    %127 = vector.extract_strided_slice %117 {offsets = [30, 0], sizes = [10, 16], strides = [1, 1]} : vector<57x16xf32> to vector<10x16xf32>
    %cst_116 = arith.constant dense<0xFF800000> : vector<16xf32>
    %128 = vector.multi_reduction <maximumf>, %127, %cst_116 [0] : vector<10x16xf32> to vector<16xf32>
    %129 = vector.shape_cast %128 : vector<16xf32> to vector<1x16xf32>
    %130 = vector.extract_strided_slice %117 {offsets = [40, 0], sizes = [10, 16], strides = [1, 1]} : vector<57x16xf32> to vector<10x16xf32>
    %cst_117 = arith.constant dense<0xFF800000> : vector<16xf32>
    %131 = vector.multi_reduction <maximumf>, %130, %cst_117 [0] : vector<10x16xf32> to vector<16xf32>
    %132 = vector.shape_cast %131 : vector<16xf32> to vector<1x16xf32>
    %133 = tpu.concatenate %120, %123, %126, %129, %132 in 1 : vector<1x16xf32>, vector<1x16xf32>, vector<1x16xf32>, vector<1x16xf32>, vector<1x16xf32> -> vector<1x80xf32>
    %134 = tpu.concatenate %76, %133 in 0 : vector<1x80xf32>, vector<1x80xf32> -> vector<2x80xf32>
    %c0_118 = arith.constant 0 : index
    %c0_119 = arith.constant 0 : index
    %135 = vector.load %arg3[%c0_118, %c0_119] : memref<480x384xf32, #tpu.memory_space<vmem>>, vector<80x384xf32>
    %cst_120 = arith.constant dense<0.000000e+00> : vector<2x384xf32>
    %136 = tpu.matmul %134, %135, %cst_120 {dimension_numbers = #tpu.dot_dimension_numbers<[1], [0], [0], [1], [0, 0, 1, 1], [], []>} : vector<2x80xf32>, vector<80x384xf32>, vector<2x384xf32> -> vector<2x384xf32>
    %c464 = arith.constant 464 : index
    %c0_121 = arith.constant 0 : index
    %137 = vector.load %arg3[%c464, %c0_121] : memref<480x384xf32, #tpu.memory_space<vmem>>, vector<1x384xf32>
    %138 = vector.broadcast %137 : vector<1x384xf32> to vector<2x384xf32>
    %139 = arith.addf %136, %138 : vector<2x384xf32>
    %cst_122 = arith.constant 0.000000e+00 : f32
    %140 = vector.broadcast %cst_122 : f32 to vector<2x384xf32>
    %141 = arith.cmpf ogt, %139, %140 : vector<2x384xf32>
    %cst_123 = arith.constant 0.00999999977 : f32
    %142 = vector.broadcast %cst_123 : f32 to vector<2x384xf32>
    %143 = arith.mulf %142, %139 : vector<2x384xf32>
    %144 = arith.select %141, %139, %143 : vector<2x384xi1>, vector<2x384xf32>
    %c80 = arith.constant 80 : index
    %c0_124 = arith.constant 0 : index
    %145 = vector.load %arg3[%c80, %c0_124] : memref<480x384xf32, #tpu.memory_space<vmem>>, vector<384x384xf32>
    %cst_125 = arith.constant dense<0.000000e+00> : vector<2x384xf32>
    %146 = tpu.matmul %144, %145, %cst_125 {dimension_numbers = #tpu.dot_dimension_numbers<[1], [0], [0], [1], [0, 0, 1, 1], [], []>} : vector<2x384xf32>, vector<384x384xf32>, vector<2x384xf32> -> vector<2x384xf32>
    %c472 = arith.constant 472 : index
    %c0_126 = arith.constant 0 : index
    %147 = vector.load %arg3[%c472, %c0_126] : memref<480x384xf32, #tpu.memory_space<vmem>>, vector<1x384xf32>
    %148 = vector.broadcast %147 : vector<1x384xf32> to vector<2x384xf32>
    %149 = arith.addf %146, %148 : vector<2x384xf32>
    %cst_127 = arith.constant 0.000000e+00 : f32
    %150 = vector.broadcast %cst_127 : f32 to vector<2x384xf32>
    %151 = arith.cmpf ogt, %149, %150 : vector<2x384xf32>
    %cst_128 = arith.constant 0.00999999977 : f32
    %152 = vector.broadcast %cst_128 : f32 to vector<2x384xf32>
    %153 = arith.mulf %152, %149 : vector<2x384xf32>
    %154 = arith.select %151, %149, %153 : vector<2x384xi1>, vector<2x384xf32>
    %c1144 = arith.constant 1144 : index
    %c0_129 = arith.constant 0 : index
    %155 = vector.load %arg2[%c1144, %c0_129] : memref<1536x16xf32, #tpu.memory_space<vmem>>, vector<384x16xf32>
    %cst_130 = arith.constant dense<0.000000e+00> : vector<2x16xf32>
    %156 = tpu.matmul %154, %155, %cst_130 {dimension_numbers = #tpu.dot_dimension_numbers<[1], [0], [0], [1], [0, 0, 1, 1], [], []>} : vector<2x384xf32>, vector<384x16xf32>, vector<2x16xf32> -> vector<2x16xf32>
    %c1528 = arith.constant 1528 : index
    %c0_131 = arith.constant 0 : index
    %157 = vector.load %arg2[%c1528, %c0_131] : memref<1536x16xf32, #tpu.memory_space<vmem>>, vector<1x16xf32>
    %158 = vector.broadcast %157 : vector<1x16xf32> to vector<2x16xf32>
    %159 = arith.addf %156, %158 : vector<2x16xf32>
    %160 = vector.extract_strided_slice %159 {offsets = [0, 0], sizes = [2, 3], strides = [1, 1]} : vector<2x16xf32> to vector<2x3xf32>
    %161 = tpu.iota {dimensions = array<i32: 1>} : vector<2x3xi32>
    %c0_i32 = arith.constant 0 : i32
    %162 = vector.broadcast %c0_i32 : i32 to vector<2x3xi32>
    %163 = arith.cmpi eq, %161, %162 : vector<2x3xi32>
    %164 = math.tanh %160 : vector<2x3xf32>
    %165 = arith.select %163, %164, %160 : vector<2x3xi1>, vector<2x3xf32>
    %c0_132 = arith.constant 0 : index
    %c0_133 = arith.constant 0 : index
    %c0_134 = arith.constant 0 : index
    %166 = vector.load %arg4[%c0_132, %c0_133, %c0_134] : memref<1x2x3xf32, #tpu.memory_space<vmem>>, vector<1x2x3xf32>
    %167 = vector.shape_cast %166 : vector<1x2x3xf32> to vector<2x3xf32>
    %168 = vector.shape_cast %165 : vector<2x3xf32> to vector<1x2x3xf32>
    tpu.vector_store %arg4[%c0_132, %c0_133, %c0_134], %168 {strides = array<i32>} : memref<1x2x3xf32, #tpu.memory_space<vmem>>, vector<1x2x3xf32>,
    return
  }
  func.func @transform_0(%arg0: i32) -> (i32, i32) {
    %c0_i32 = arith.constant 0 : i32
    %c0_i32_0 = arith.constant 0 : i32
    return %arg0, %c0_i32 : i32, i32
  }
  func.func @transform_1(%arg0: i32) -> (i32, i32) {
    %c0_i32 = arith.constant 0 : i32
    %c0_i32_0 = arith.constant 0 : i32
    %c0_i32_1 = arith.constant 0 : i32
    return %c0_i32, %c0_i32_0 : i32, i32
  }
  func.func @transform_2(%arg0: i32) -> (i32, i32) {
    %c0_i32 = arith.constant 0 : i32
    %c0_i32_0 = arith.constant 0 : i32
    %c0_i32_1 = arith.constant 0 : i32
    return %c0_i32, %c0_i32_0 : i32, i32
  }
  func.func @transform_3(%arg0: i32) -> (i32, i32, i32) {
    %c0_i32 = arith.constant 0 : i32
    %c0_i32_0 = arith.constant 0 : i32
    %c0_i32_1 = arith.constant 0 : i32
    return %arg0, %c0_i32, %c0_i32_0 : i32, i32, i32
  }
}

</mosaic_0001>

<llo_original>
// kernel: tpu_custom_call.1
$region0: #{tpu_custom_call.1}
  #allocation0 [shape = 'u32[]', space=smem, size = 0x4, offset = 0x4, fixed_abs, tag = 'smem constant byte address 0x4 - core index']
  #allocation1 [shape = 'u32[72,128]{1,0:T(1,128)}', space=vmem, size = 0x9000, scoped, tag = 'internal scratch']
  #allocation2 [shape = 'f32[249,16]{1,0:T(8,128)}', space=vmem, size = 0x20000, scoped, tag = 'scratch operand']
  #allocation3 [shape = 'f32[122,16]{1,0:T(8,128)}', space=vmem, size = 0x10000, scoped, tag = 'scratch operand']
  %s0 = inlined_call_operand.vmem [shape: f32[496,800], index: 0, kind: input, shape index: {}]
  %s1 = inlined_call_operand.vmem [shape: f32[1536,16], index: 1, kind: input, shape index: {}]
  %s2 = inlined_call_operand.vmem [shape: f32[480,384], index: 2, kind: input, shape index: {}]
  %s3 = inlined_call_operand.hbm [shape: f32[1,2,3], index: 3, kind: output, shape index: {}]
  %s4 = sld [smem:[#allocation0]]
  $region22: #{tpu_custom_call.1} parent=0
    _
  %s6 = ssub.s32 1, %s4
  %s7 = scalar_select 0, %s6, %s4
  $region1: #{tpu_custom_call.1} parent=0
    #allocation4 [shape = 'u8[1024]{0}', space=vmem, size = 0x400, scoped, tag = 'output window, operand 0, single buffered']
    #allocation5 [shape = 's32[1]{0}', space=sflag, size = 0x4, scoped, tag = 'scoped memory for tpu_custom_call.1']
    %8 = vsyncpa [#allocation5], 0
    // Predicated region
    $region2: #{tpu_custom_call.1} parent=1 // pred_check
      _
    $region3: #{tpu_custom_call.1} parent=1 // pred_check_branch
      %10 = sbr.rel (0) target = $region5
    $region4: #{tpu_custom_call.1} parent=1 // pred_region
      _
    $region5: #{tpu_custom_call.1} parent=1 // pred_fallthru
      _
    // Predicated region
    $region6: #{tpu_custom_call.1} parent=1 // pred_check
      _
    $region7: #{tpu_custom_call.1} parent=1 // pred_check_branch
      %12 = sbr.rel (0) target = $region9
    $region8: #{tpu_custom_call.1} parent=1 // pred_region
      _
    $region9: #{tpu_custom_call.1} parent=1 // pred_fallthru
      _
    // Predicated region
    $region10: #{tpu_custom_call.1} parent=1 // pred_check
      _
    $region11: #{tpu_custom_call.1} parent=1 // pred_check_branch
      %14 = sbr.rel (0) target = $region13
    $region12: #{tpu_custom_call.1} parent=1 // pred_region
      _
    $region13: #{tpu_custom_call.1} parent=1 // pred_fallthru
      _
    %vm15 = vcmask 122880
    %16 = vst.msk [vmem:[#allocation2] sm:$0x1] %vm15, 0.0
    %17 = vst.msk [vmem:[#allocation2 + $0xf8] sm:$0x1] %vm15, 0.0
    %18 = vst.msk [vmem:[#allocation3] sm:$0x1] %vm15, 0.0
    %19 = vst.msk [vmem:[#allocation3 + $0x79] sm:$0x1] %vm15, 0.0
    %v20 = vld [vmem:[%s1] sm:$0xff]
    %v21 = vld [vmem:[%s1 + $0x8] sm:$0xff]
    %v22 = vld [vmem:[%s1 + $0x10] sm:$0xff]
    %v23 = vld [vmem:[%s1 + $0x18] sm:$0xff]
    %v24 = vld [vmem:[%s1 + $0x20] sm:$0xff]
    %v25 = vld [vmem:[%s1 + $0x28] sm:$0xff]
    %v26 = vld [vmem:[%s1 + $0x30] sm:$0xff]
    %v27 = vld [vmem:[%s1 + $0x38] sm:$0xff]
    %v28 = vld [vmem:[%s1 + $0x40] sm:$0xff]
    %v29 = vld [vmem:[%s1 + $0x48] sm:$0xff]
    %v30 = vld [vmem:[%s1 + $0x50] sm:$0xff]
    %v31 = vld [vmem:[%s1 + $0x58] sm:$0xff]
    %v32 = vld [vmem:[%s1 + $0x60] sm:$0xff]
    %v33 = vld [vmem:[%s1 + $0x68] sm:$0xff]
    %v34 = vld [vmem:[%s1 + $0x70] sm:$0xff]
    %v35 = vld [vmem:[%s1 + $0x78] sm:$0xff]
    %v36 = vld [vmem:[%s1 + $0x80] sm:$0xff]
    %v37 = vld [vmem:[%s1 + $0x88] sm:$0xff]
    %v38 = vld [vmem:[%s1 + $0x90] sm:$0xff]
    %v39 = vld [vmem:[%s1 + $0x98] sm:$0xff]
    %v40 = vld [vmem:[%s1 + $0xa0] sm:$0xff]
    %v41 = vld [vmem:[%s1 + $0xa8] sm:$0xff]
    %v42 = vld [vmem:[%s1 + $0xb0] sm:$0xff]
    %v43 = vld [vmem:[%s1 + $0xb8] sm:$0xff]
    %v44 = vld [vmem:[%s1 + $0xc0] sm:$0xff]
    %v45 = vld [vmem:[%s1 + $0xc8] sm:$0xff]
    %v46 = vld [vmem:[%s1 + $0xd0] sm:$0xff]
    %v47 = vld [vmem:[%s1 + $0xd8] sm:$0xff]
    %v48 = vld [vmem:[%s1 + $0xe0] sm:$0xff]
    %v49 = vld [vmem:[%s1 + $0xe8] sm:$0xff]
    %v50 = vld [vmem:[%s1 + $0xf0] sm:$0xff]
    %v51 = vld [vmem:[%s1 + $0xf8] sm:$0xff]
    %v52 = vld [vmem:[%s1 + $0x100] sm:$0xff]
    %v53 = vld [vmem:[%s1 + $0x108] sm:$0xff]
    %v54 = vld [vmem:[%s1 + $0x110] sm:$0xff]
    %v55 = vld [vmem:[%s1 + $0x118] sm:$0xff]
    %v56 = vld [vmem:[%s1 + $0x120] sm:$0xff]
    %v57 = vld [vmem:[%s1 + $0x128] sm:$0xff]
    %v58 = vld [vmem:[%s1 + $0x130] sm:$0xff]
    %v59 = vld [vmem:[%s1 + $0x138] sm:$0xff]
    %v60 = vld [vmem:[%s1 + $0x140] sm:$0xff]
    %v61 = vld [vmem:[%s1 + $0x148] sm:$0xff]
    %v62 = vld [vmem:[%s1 + $0x150] sm:$0xff]
    %v63 = vld [vmem:[%s1 + $0x158] sm:$0xff]
    %v64 = vld [vmem:[%s1 + $0x160] sm:$0xff]
    %v65 = vld [vmem:[%s1 + $0x168] sm:$0xff]
    %v66 = vld [vmem:[%s1 + $0x170] sm:$0xff]
    %v67 = vld [vmem:[%s1 + $0x178] sm:$0xff]
    %v68 = vld [vmem:[%s1 + $0x180] sm:$0xff]
    %v69 = vld [vmem:[%s1 + $0x188] sm:$0xff]
    %v70 = vld [vmem:[%s1 + $0x190] sm:$0xff]
    %v71 = vld [vmem:[%s1 + $0x198] sm:$0xff]
    %v72 = vld [vmem:[%s1 + $0x1a0] sm:$0xff]
    %v73 = vld [vmem:[%s1 + $0x1a8] sm:$0xff]
    %v74 = vld [vmem:[%s1 + $0x1b0] sm:$0xff]
    %v75 = vld [vmem:[%s1 + $0x1b8] sm:$0xff]
    %v76 = vld [vmem:[%s1 + $0x1c0] sm:$0xff]
    %v77 = vld [vmem:[%s1 + $0x1c8] sm:$0xff]
    %v78 = vld [vmem:[%s1 + $0x1d0] sm:$0xff]
    %v79 = vld [vmem:[%s1 + $0x1d8] sm:$0xff]
    %v80 = vld [vmem:[%s1 + $0x1e0] sm:$0xff]
    %v81 = vld [vmem:[%s1 + $0x1e8] sm:$0xff]
    %v82 = vld [vmem:[%s1 + $0x1f0] sm:$0xff]
    %v83 = vld [vmem:[%s1 + $0x1f8] sm:$0xff]
    %v84 = vld [vmem:[%s1 + $0x200] sm:$0xff]
    %v85 = vld [vmem:[%s1 + $0x208] sm:$0xff]
    %v86 = vld [vmem:[%s1 + $0x210] sm:$0xff]
    %v87 = vld [vmem:[%s1 + $0x218] sm:$0xff]
    %v88 = vld [vmem:[%s1 + $0x220] sm:$0xff]
    %v89 = vld [vmem:[%s1 + $0x228] sm:$0xff]
    %v90 = vld [vmem:[%s1 + $0x230] sm:$0xff]
    %v91 = vld [vmem:[%s1 + $0x238] sm:$0xff]
    %v92 = vld [vmem:[%s1 + $0x240] sm:$0xff]
    %v93 = vld [vmem:[%s1 + $0x248] sm:$0xff]
    %v94 = vld [vmem:[%s1 + $0x250] sm:$0xff]
    %v95 = vld [vmem:[%s1 + $0x258] sm:$0xff]
    %v96 = vld [vmem:[%s1 + $0x260] sm:$0xff]
    %v97 = vld [vmem:[%s1 + $0x268] sm:$0xff]
    %v98 = vld [vmem:[%s1 + $0x270] sm:$0xff]
    %v99 = vld [vmem:[%s1 + $0x278] sm:$0xff]
    %v100 = vld [vmem:[%s1 + $0x280] sm:$0xff]
    %v101 = vld [vmem:[%s1 + $0x288] sm:$0xff]
    %v102 = vld [vmem:[%s1 + $0x290] sm:$0xff]
    %v103 = vld [vmem:[%s1 + $0x298] sm:$0xff]
    %v104 = vld [vmem:[%s1 + $0x2a0] sm:$0xff]
    %v105 = vld [vmem:[%s1 + $0x2a8] sm:$0xff]
    %v106 = vld [vmem:[%s1 + $0x2b0] sm:$0xff]
    %v107 = vld [vmem:[%s1 + $0x2b8] sm:$0xff]
    %v108 = vld [vmem:[%s1 + $0x2c0] sm:$0xff]
    %v109 = vld [vmem:[%s1 + $0x2c8] sm:$0xff]
    %v110 = vld [vmem:[%s1 + $0x2d0] sm:$0xff]
    %v111 = vld [vmem:[%s1 + $0x2d8] sm:$0xff]
    %v112 = vld [vmem:[%s1 + $0x2e0] sm:$0xff]
    %v113 = vld [vmem:[%s1 + $0x2e8] sm:$0xff]
    %v114 = vld [vmem:[%s1 + $0x2f0] sm:$0xff]
    %v115 = vld [vmem:[%s1 + $0x2f8] sm:$0xff]
    %v116 = vld [vmem:[%s1 + $0x300] sm:$0xff]
    %v117 = vld [vmem:[%s1 + $0x308] sm:$0xff]
    %v118 = vld [vmem:[%s1 + $0x310] sm:$0xff]
    %v119 = vld [vmem:[%s1 + $0x318] sm:$0xff]
    %v120 = vld [vmem:[%s1 + $0x460] sm:$0x1]
    %v121 = vld [vmem:[%s0] sm:$0xff]
    %v122 = vld [vmem:[%s0 + $0x8] sm:$0xff]
    %v123 = vld [vmem:[%s0 + $0x10] sm:$0xff]
    %v124 = vld [vmem:[%s0 + $0x18] sm:$0xff]
    %v125 = vld [vmem:[%s0 + $0x20] sm:$0xff]
    %v126 = vld [vmem:[%s0 + $0x28] sm:$0xff]
    %v127 = vld [vmem:[%s0 + $0x30] sm:$0xff]
    %v128 = vld [vmem:[%s0 + $0x38] sm:$0xff]
    %v129 = vld [vmem:[%s0 + $0x40] sm:$0xff]
    %v130 = vld [vmem:[%s0 + $0x48] sm:$0xff]
    %v131 = vld [vmem:[%s0 + $0x50] sm:$0xff]
    %v132 = vld [vmem:[%s0 + $0x58] sm:$0xff]
    %v133 = vld [vmem:[%s0 + $0x60] sm:$0xff]
    %v134 = vld [vmem:[%s0 + $0x68] sm:$0xff]
    %v135 = vld [vmem:[%s0 + $0x70] sm:$0xff]
    %v136 = vld [vmem:[%s0 + $0x78] sm:$0xff]
    %v137 = vld [vmem:[%s0 + $0x80] sm:$0xff]
    %v138 = vld [vmem:[%s0 + $0x88] sm:$0xff]
    %v139 = vld [vmem:[%s0 + $0x90] sm:$0xff]
    %v140 = vld [vmem:[%s0 + $0x98] sm:$0xff]
    %v141 = vld [vmem:[%s0 + $0xa0] sm:$0xff]
    %v142 = vld [vmem:[%s0 + $0xa8] sm:$0xff]
    %v143 = vld [vmem:[%s0 + $0xb0] sm:$0xff]
    %v144 = vld [vmem:[%s0 + $0xb8] sm:$0xff]
    %v145 = vld [vmem:[%s0 + $0xc0] sm:$0xff]
    %v146 = vld [vmem:[%s0 + $0xc8] sm:$0xff]
    %v147 = vld [vmem:[%s0 + $0xd0] sm:$0xff]
    %v148 = vld [vmem:[%s0 + $0xd8] sm:$0xff]
    %v149 = vld [vmem:[%s0 + $0xe0] sm:$0xff]
    %v150 = vld [vmem:[%s0 + $0xe8] sm:$0xff]
    %v151 = vld [vmem:[%s0 + $0xf0] sm:$0xff]
    %v152 = vld [vmem:[%s0 + $0xf8] sm:$0xff]
    %v153 = vld [vmem:[%s0 + $0x100] sm:$0xff]
    %v154 = vld [vmem:[%s0 + $0x108] sm:$0xff]
    %v155 = vld [vmem:[%s0 + $0x110] sm:$0xff]
    %v156 = vld [vmem:[%s0 + $0x118] sm:$0xff]
    %v157 = vld [vmem:[%s0 + $0x120] sm:$0xff]
    %v158 = vld [vmem:[%s0 + $0x128] sm:$0xff]
    %v159 = vld [vmem:[%s0 + $0x130] sm:$0xff]
    %v160 = vld [vmem:[%s0 + $0x138] sm:$0xff]
    %v161 = vld [vmem:[%s0 + $0x140] sm:$0xff]
    %v162 = vld [vmem:[%s0 + $0x148] sm:$0xff]
    %v163 = vld [vmem:[%s0 + $0x150] sm:$0xff]
    %v164 = vld [vmem:[%s0 + $0x158] sm:$0xff]
    %v165 = vld [vmem:[%s0 + $0x160] sm:$0xff]
    %v166 = vld [vmem:[%s0 + $0x168] sm:$0xff]
    %v167 = vld [vmem:[%s0 + $0x170] sm:$0xff]
    %v168 = vld [vmem:[%s0 + $0x178] sm:$0xff]
    %v169 = vld [vmem:[%s0 + $0x180] sm:$0xff]
    %v170 = vld [vmem:[%s0 + $0x188] sm:$0xff]
    %v171 = vld [vmem:[%s0 + $0x190] sm:$0xff]
    %v172 = vld [vmem:[%s0 + $0x198] sm:$0xff]
    %v173 = vld [vmem:[%s0 + $0x1a0] sm:$0xff]
    %v174 = vld [vmem:[%s0 + $0x1a8] sm:$0xff]
    %v175 = vld [vmem:[%s0 + $0x1b0] sm:$0xff]
    %v176 = vld [vmem:[%s0 + $0x1b8] sm:$0xff]
    %v177 = vld [vmem:[%s0 + $0x1c0] sm:$0xff]
    %v178 = vld [vmem:[%s0 + $0x1c8] sm:$0xff]
    %v179 = vld [vmem:[%s0 + $0x1d0] sm:$0xff]
    %v180 = vld [vmem:[%s0 + $0x1d8] sm:$0xff]
    %v181 = vld [vmem:[%s0 + $0x1e0] sm:$0xff]
    %v182 = vld [vmem:[%s0 + $0x1e8] sm:$0xff]
    %v183 = vld [vmem:[%s0 + $0x1f0] sm:$0xff]
    %v184 = vld [vmem:[%s0 + $0x1f8] sm:$0xff]
    %v185 = vld [vmem:[%s0 + $0x200] sm:$0xff]
    %v186 = vld [vmem:[%s0 + $0x208] sm:$0xff]
    %v187 = vld [vmem:[%s0 + $0x210] sm:$0xff]
    %v188 = vld [vmem:[%s0 + $0x218] sm:$0xff]
    %v189 = vld [vmem:[%s0 + $0x220] sm:$0xff]
    %v190 = vld [vmem:[%s0 + $0x228] sm:$0xff]
    %v191 = vld [vmem:[%s0 + $0x230] sm:$0xff]
    %v192 = vld [vmem:[%s0 + $0x238] sm:$0xff]
    %v193 = vld [vmem:[%s0 + $0x240] sm:$0xff]
    %v194 = vld [vmem:[%s0 + $0x248] sm:$0xff]
    %v195 = vld [vmem:[%s0 + $0x250] sm:$0xff]
    %v196 = vld [vmem:[%s0 + $0x258] sm:$0xff]
    %v197 = vld [vmem:[%s0 + $0x260] sm:$0xff]
    %v198 = vld [vmem:[%s0 + $0x268] sm:$0xff]
    %v199 = vld [vmem:[%s0 + $0x270] sm:$0xff]
    %v200 = vld [vmem:[%s0 + $0x278] sm:$0xff]
    %v201 = vld [vmem:[%s0 + $0x280] sm:$0xff]
    %v202 = vld [vmem:[%s0 + $0x288] sm:$0xff]
    %v203 = vld [vmem:[%s0 + $0x290] sm:$0xff]
    %v204 = vld [vmem:[%s0 + $0x298] sm:$0xff]
    %v205 = vld [vmem:[%s0 + $0x2a0] sm:$0xff]
    %v206 = vld [vmem:[%s0 + $0x2a8] sm:$0xff]
    %v207 = vld [vmem:[%s0 + $0x2b0] sm:$0xff]
    %v208 = vld [vmem:[%s0 + $0x2b8] sm:$0xff]
    %v209 = vld [vmem:[%s0 + $0x2c0] sm:$0xff]
    %v210 = vld [vmem:[%s0 + $0x2c8] sm:$0xff]
    %v211 = vld [vmem:[%s0 + $0x2d0] sm:$0xff]
    %v212 = vld [vmem:[%s0 + $0x2d8] sm:$0xff]
    %v213 = vld [vmem:[%s0 + $0x2e0] sm:$0xff]
    %v214 = vld [vmem:[%s0 + $0x2e8] sm:$0xff]
    %v215 = vld [vmem:[%s0 + $0x2f0] sm:$0xff]
    %v216 = vld [vmem:[%s0 + $0x2f8] sm:$0xff]
    %v217 = vld [vmem:[%s0 + $0x300] sm:$0xff]
    %v218 = vld [vmem:[%s0 + $0x308] sm:$0xff]
    %v219 = vld [vmem:[%s0 + $0x310] sm:$0xff]
    %v220 = vld [vmem:[%s0 + $0x318] sm:$0xff]
    %v221 = vld [vmem:[%s0 + $0x320] sm:$0xff]
    %v222 = vld [vmem:[%s0 + $0x328] sm:$0xff]
    %v223 = vld [vmem:[%s0 + $0x330] sm:$0xff]
    %v224 = vld [vmem:[%s0 + $0x338] sm:$0xff]
    %v225 = vld [vmem:[%s0 + $0x340] sm:$0xff]
    %v226 = vld [vmem:[%s0 + $0x348] sm:$0xff]
    %v227 = vld [vmem:[%s0 + $0x350] sm:$0xff]
    %v228 = vld [vmem:[%s0 + $0x358] sm:$0xff]
    %v229 = vld [vmem:[%s0 + $0x360] sm:$0xff]
    %v230 = vld [vmem:[%s0 + $0x368] sm:$0xff]
    %v231 = vld [vmem:[%s0 + $0x370] sm:$0xff]
    %v232 = vld [vmem:[%s0 + $0x378] sm:$0xff]
    %v233 = vld [vmem:[%s0 + $0x380] sm:$0xff]
    %v234 = vld [vmem:[%s0 + $0x388] sm:$0xff]
    %v235 = vld [vmem:[%s0 + $0x390] sm:$0xff]
    %v236 = vld [vmem:[%s0 + $0x398] sm:$0xff]
    %v237 = vld [vmem:[%s0 + $0x3a0] sm:$0xff]
    %v238 = vld [vmem:[%s0 + $0x3a8] sm:$0xff]
    %v239 = vld [vmem:[%s0 + $0x3b0] sm:$0xff]
    %v240 = vld [vmem:[%s0 + $0x3b8] sm:$0xff]
    %v241 = vld [vmem:[%s0 + $0x3c0] sm:$0xff]
    %v242 = vld [vmem:[%s0 + $0x3c8] sm:$0xff]
    %v243 = vld [vmem:[%s0 + $0x3d0] sm:$0xff]
    %v244 = vld [vmem:[%s0 + $0x3d8] sm:$0xff]
    %v245 = vld [vmem:[%s0 + $0x3e0] sm:$0xff]
    %v246 = vld [vmem:[%s0 + $0x3e8] sm:$0xff]
    %v247 = vld [vmem:[%s0 + $0x3f0] sm:$0xff]
    %v248 = vld [vmem:[%s0 + $0x3f8] sm:$0xff]
    %v249 = vld [vmem:[%s0 + $0x400] sm:$0xff]
    %v250 = vld [vmem:[%s0 + $0x408] sm:$0xff]
    %v251 = vld [vmem:[%s0 + $0x410] sm:$0xff]
    %v252 = vld [vmem:[%s0 + $0x418] sm:$0xff]
    %v253 = vld [vmem:[%s0 + $0x420] sm:$0xff]
    %v254 = vld [vmem:[%s0 + $0x428] sm:$0xff]
    %v255 = vld [vmem:[%s0 + $0x430] sm:$0xff]
    %v256 = vld [vmem:[%s0 + $0x438] sm:$0xff]
    %v257 = vld [vmem:[%s0 + $0x440] sm:$0xff]
    %v258 = vld [vmem:[%s0 + $0x448] sm:$0xff]
    %v259 = vld [vmem:[%s0 + $0x450] sm:$0xff]
    %v260 = vld [vmem:[%s0 + $0x458] sm:$0xff]
    %v261 = vld [vmem:[%s0 + $0x460] sm:$0xff]
    %v262 = vld [vmem:[%s0 + $0x468] sm:$0xff]
    %v263 = vld [vmem:[%s0 + $0x470] sm:$0xff]
    %v264 = vld [vmem:[%s0 + $0x478] sm:$0xff]
    %v265 = vld [vmem:[%s0 + $0x480] sm:$0xff]
    %v266 = vld [vmem:[%s0 + $0x488] sm:$0xff]
    %v267 = vld [vmem:[%s0 + $0x490] sm:$0xff]
    %v268 = vld [vmem:[%s0 + $0x498] sm:$0xff]
    %v269 = vld [vmem:[%s0 + $0x4a0] sm:$0xff]
    %v270 = vld [vmem:[%s0 + $0x4a8] sm:$0xff]
    %v271 = vld [vmem:[%s0 + $0x4b0] sm:$0xff]
    %v272 = vld [vmem:[%s0 + $0x4b8] sm:$0xff]
    %v273 = vld [vmem:[%s0 + $0x4c0] sm:$0xff]
    %v274 = vld [vmem:[%s0 + $0x4c8] sm:$0xff]
    %v275 = vld [vmem:[%s0 + $0x4d0] sm:$0xff]
    %v276 = vld [vmem:[%s0 + $0x4d8] sm:$0xff]
    %v277 = vld [vmem:[%s0 + $0x4e0] sm:$0xff]
    %v278 = vld [vmem:[%s0 + $0x4e8] sm:$0xff]
    %v279 = vld [vmem:[%s0 + $0x4f0] sm:$0xff]
    %v280 = vld [vmem:[%s0 + $0x4f8] sm:$0xff]
    %v281 = vld [vmem:[%s0 + $0x500] sm:$0xff]
    %v282 = vld [vmem:[%s0 + $0x508] sm:$0xff]
    %v283 = vld [vmem:[%s0 + $0x510] sm:$0xff]
    %v284 = vld [vmem:[%s0 + $0x518] sm:$0xff]
    %v285 = vld [vmem:[%s0 + $0x520] sm:$0xff]
    %v286 = vld [vmem:[%s0 + $0x528] sm:$0xff]
    %v287 = vld [vmem:[%s0 + $0x530] sm:$0xff]
    %v288 = vld [vmem:[%s0 + $0x538] sm:$0xff]
    %v289 = vld [vmem:[%s0 + $0x540] sm:$0xff]
    %v290 = vld [vmem:[%s0 + $0x548] sm:$0xff]
    %v291 = vld [vmem:[%s0 + $0x550] sm:$0xff]
    %v292 = vld [vmem:[%s0 + $0x558] sm:$0xff]
    %v293 = vld [vmem:[%s0 + $0x560] sm:$0xff]
    %v294 = vld [vmem:[%s0 + $0x568] sm:$0xff]
    %v295 = vld [vmem:[%s0 + $0x570] sm:$0xff]
    %v296 = vld [vmem:[%s0 + $0x578] sm:$0xff]
    %v297 = vld [vmem:[%s0 + $0x580] sm:$0xff]
    %v298 = vld [vmem:[%s0 + $0x588] sm:$0xff]
    %v299 = vld [vmem:[%s0 + $0x590] sm:$0xff]
    %v300 = vld [vmem:[%s0 + $0x598] sm:$0xff]
    %v301 = vld [vmem:[%s0 + $0x5a0] sm:$0xff]
    %v302 = vld [vmem:[%s0 + $0x5a8] sm:$0xff]
    %v303 = vld [vmem:[%s0 + $0x5b0] sm:$0xff]
    %v304 = vld [vmem:[%s0 + $0x5b8] sm:$0xff]
    %v305 = vld [vmem:[%s0 + $0x5c0] sm:$0xff]
    %v306 = vld [vmem:[%s0 + $0x5c8] sm:$0xff]
    %v307 = vld [vmem:[%s0 + $0x5d0] sm:$0xff]
    %v308 = vld [vmem:[%s0 + $0x5d8] sm:$0xff]
    %v309 = vld [vmem:[%s0 + $0x5e0] sm:$0xff]
    %v310 = vld [vmem:[%s0 + $0x5e8] sm:$0xff]
    %v311 = vld [vmem:[%s0 + $0x5f0] sm:$0xff]
    %v312 = vld [vmem:[%s0 + $0x5f8] sm:$0xff]
    %v313 = vld [vmem:[%s0 + $0x600] sm:$0xff]
    %v314 = vld [vmem:[%s0 + $0x608] sm:$0xff]
    %v315 = vld [vmem:[%s0 + $0x610] sm:$0xff]
    %v316 = vld [vmem:[%s0 + $0x618] sm:$0xff]
    %v317 = vld [vmem:[%s0 + $0x620] sm:$0xff]
    %v318 = vld [vmem:[%s0 + $0x628] sm:$0xff]
    %v319 = vld [vmem:[%s0 + $0x630] sm:$0xff]
    %v320 = vld [vmem:[%s0 + $0x638] sm:$0xff]
    %v321 = vld [vmem:[%s0 + $0x640] sm:$0xff]
    %v322 = vld [vmem:[%s0 + $0x648] sm:$0xff]
    %v323 = vld [vmem:[%s0 + $0x650] sm:$0xff]
    %v324 = vld [vmem:[%s0 + $0x658] sm:$0xff]
    %v325 = vld [vmem:[%s0 + $0x660] sm:$0xff]
    %v326 = vld [vmem:[%s0 + $0x668] sm:$0xff]
    %v327 = vld [vmem:[%s0 + $0x670] sm:$0xff]
    %v328 = vld [vmem:[%s0 + $0x678] sm:$0xff]
    %v329 = vld [vmem:[%s0 + $0x680] sm:$0xff]
    %v330 = vld [vmem:[%s0 + $0x688] sm:$0xff]
    %v331 = vld [vmem:[%s0 + $0x690] sm:$0xff]
    %v332 = vld [vmem:[%s0 + $0x698] sm:$0xff]
    %v333 = vld [vmem:[%s0 + $0x6a0] sm:$0xff]
    %v334 = vld [vmem:[%s0 + $0x6a8] sm:$0xff]
    %v335 = vld [vmem:[%s0 + $0x6b0] sm:$0xff]
    %v336 = vld [vmem:[%s0 + $0x6b8] sm:$0xff]
    %v337 = vld [vmem:[%s0 + $0x6c0] sm:$0xff]
    %v338 = vld [vmem:[%s0 + $0x6c8] sm:$0xff]
    %v339 = vld [vmem:[%s0 + $0x6d0] sm:$0xff]
    %v340 = vld [vmem:[%s0 + $0x6d8] sm:$0xff]
    %v341 = vld [vmem:[%s0 + $0x6e0] sm:$0xff]
    %v342 = vld [vmem:[%s0 + $0x6e8] sm:$0xff]
    %v343 = vld [vmem:[%s0 + $0x6f0] sm:$0xff]
    %v344 = vld [vmem:[%s0 + $0x6f8] sm:$0xff]
    %v345 = vld [vmem:[%s0 + $0x700] sm:$0xff]
    %v346 = vld [vmem:[%s0 + $0x708] sm:$0xff]
    %v347 = vld [vmem:[%s0 + $0x710] sm:$0xff]
    %v348 = vld [vmem:[%s0 + $0x718] sm:$0xff]
    %v349 = vld [vmem:[%s0 + $0x720] sm:$0xff]
    %v350 = vld [vmem:[%s0 + $0x728] sm:$0xff]
    %v351 = vld [vmem:[%s0 + $0x730] sm:$0xff]
    %v352 = vld [vmem:[%s0 + $0x738] sm:$0xff]
    %v353 = vld [vmem:[%s0 + $0x740] sm:$0xff]
    %v354 = vld [vmem:[%s0 + $0x748] sm:$0xff]
    %v355 = vld [vmem:[%s0 + $0x750] sm:$0xff]
    %v356 = vld [vmem:[%s0 + $0x758] sm:$0xff]
    %v357 = vld [vmem:[%s0 + $0x760] sm:$0xff]
    %v358 = vld [vmem:[%s0 + $0x768] sm:$0xff]
    %v359 = vld [vmem:[%s0 + $0x770] sm:$0xff]
    %v360 = vld [vmem:[%s0 + $0x778] sm:$0xff]
    %v361 = vld [vmem:[%s0 + $0x780] sm:$0xff]
    %v362 = vld [vmem:[%s0 + $0x788] sm:$0xff]
    %v363 = vld [vmem:[%s0 + $0x790] sm:$0xff]
    %v364 = vld [vmem:[%s0 + $0x798] sm:$0xff]
    %v365 = vld [vmem:[%s0 + $0x7a0] sm:$0xff]
    %v366 = vld [vmem:[%s0 + $0x7a8] sm:$0xff]
    %v367 = vld [vmem:[%s0 + $0x7b0] sm:$0xff]
    %v368 = vld [vmem:[%s0 + $0x7b8] sm:$0xff]
    %v369 = vld [vmem:[%s0 + $0x7c0] sm:$0xff]
    %v370 = vld [vmem:[%s0 + $0x7c8] sm:$0xff]
    %v371 = vld [vmem:[%s0 + $0x7d0] sm:$0xff]
    %v372 = vld [vmem:[%s0 + $0x7d8] sm:$0xff]
    %v373 = vld [vmem:[%s0 + $0x7e0] sm:$0xff]
    %v374 = vld [vmem:[%s0 + $0x7e8] sm:$0xff]
    %v375 = vld [vmem:[%s0 + $0x7f0] sm:$0xff]
    %v376 = vld [vmem:[%s0 + $0x7f8] sm:$0xff]
    %v377 = vld [vmem:[%s0 + $0x800] sm:$0xff]
    %v378 = vld [vmem:[%s0 + $0x808] sm:$0xff]
    %v379 = vld [vmem:[%s0 + $0x810] sm:$0xff]
    %v380 = vld [vmem:[%s0 + $0x818] sm:$0xff]
    %v381 = vld [vmem:[%s0 + $0x820] sm:$0xff]
    %v382 = vld [vmem:[%s0 + $0x828] sm:$0xff]
    %v383 = vld [vmem:[%s0 + $0x830] sm:$0xff]
    %v384 = vld [vmem:[%s0 + $0x838] sm:$0xff]
    %v385 = vld [vmem:[%s0 + $0x840] sm:$0xff]
    %v386 = vld [vmem:[%s0 + $0x848] sm:$0xff]
    %v387 = vld [vmem:[%s0 + $0x850] sm:$0xff]
    %v388 = vld [vmem:[%s0 + $0x858] sm:$0xff]
    %v389 = vld [vmem:[%s0 + $0x860] sm:$0xff]
    %v390 = vld [vmem:[%s0 + $0x868] sm:$0xff]
    %v391 = vld [vmem:[%s0 + $0x870] sm:$0xff]
    %v392 = vld [vmem:[%s0 + $0x878] sm:$0xff]
    %v393 = vld [vmem:[%s0 + $0x880] sm:$0xff]
    %v394 = vld [vmem:[%s0 + $0x888] sm:$0xff]
    %v395 = vld [vmem:[%s0 + $0x890] sm:$0xff]
    %v396 = vld [vmem:[%s0 + $0x898] sm:$0xff]
    %v397 = vld [vmem:[%s0 + $0x8a0] sm:$0xff]
    %v398 = vld [vmem:[%s0 + $0x8a8] sm:$0xff]
    %v399 = vld [vmem:[%s0 + $0x8b0] sm:$0xff]
    %v400 = vld [vmem:[%s0 + $0x8b8] sm:$0xff]
    %v401 = vld [vmem:[%s0 + $0x8c0] sm:$0xff]
    %v402 = vld [vmem:[%s0 + $0x8c8] sm:$0xff]
    %v403 = vld [vmem:[%s0 + $0x8d0] sm:$0xff]
    %v404 = vld [vmem:[%s0 + $0x8d8] sm:$0xff]
    %v405 = vld [vmem:[%s0 + $0x8e0] sm:$0xff]
    %v406 = vld [vmem:[%s0 + $0x8e8] sm:$0xff]
    %v407 = vld [vmem:[%s0 + $0x8f0] sm:$0xff]
    %v408 = vld [vmem:[%s0 + $0x8f8] sm:$0xff]
    %v409 = vld [vmem:[%s0 + $0x900] sm:$0xff]
    %v410 = vld [vmem:[%s0 + $0x908] sm:$0xff]
    %v411 = vld [vmem:[%s0 + $0x910] sm:$0xff]
    %v412 = vld [vmem:[%s0 + $0x918] sm:$0xff]
    %v413 = vld [vmem:[%s0 + $0x920] sm:$0xff]
    %v414 = vld [vmem:[%s0 + $0x928] sm:$0xff]
    %v415 = vld [vmem:[%s0 + $0x930] sm:$0xff]
    %v416 = vld [vmem:[%s0 + $0x938] sm:$0xff]
    %v417 = vld [vmem:[%s0 + $0x940] sm:$0xff]
    %v418 = vld [vmem:[%s0 + $0x948] sm:$0xff]
    %v419 = vld [vmem:[%s0 + $0x950] sm:$0xff]
    %v420 = vld [vmem:[%s0 + $0x958] sm:$0xff]
    %v421 = vld [vmem:[%s0 + $0x960] sm:$0xff]
    %v422 = vld [vmem:[%s0 + $0x968] sm:$0xff]
    %v423 = vld [vmem:[%s0 + $0x970] sm:$0xff]
    %v424 = vld [vmem:[%s0 + $0x978] sm:$0xff]
    %v425 = vld [vmem:[%s0 + $0x980] sm:$0xff]
    %v426 = vld [vmem:[%s0 + $0x988] sm:$0xff]
    %v427 = vld [vmem:[%s0 + $0x990] sm:$0xff]
    %v428 = vld [vmem:[%s0 + $0x998] sm:$0xff]
    %v429 = vld [vmem:[%s0 + $0x9a0] sm:$0xff]
    %v430 = vld [vmem:[%s0 + $0x9a8] sm:$0xff]
    %v431 = vld [vmem:[%s0 + $0x9b0] sm:$0xff]
    %v432 = vld [vmem:[%s0 + $0x9b8] sm:$0xff]
    %v433 = vld [vmem:[%s0 + $0x9c0] sm:$0xff]
    %v434 = vld [vmem:[%s0 + $0x9c8] sm:$0xff]
    %v435 = vld [vmem:[%s0 + $0x9d0] sm:$0xff]
    %v436 = vld [vmem:[%s0 + $0x9d8] sm:$0xff]
    %v437 = vld [vmem:[%s0 + $0x9e0] sm:$0xff]
    %v438 = vld [vmem:[%s0 + $0x9e8] sm:$0xff]
    %v439 = vld [vmem:[%s0 + $0x9f0] sm:$0xff]
    %v440 = vld [vmem:[%s0 + $0x9f8] sm:$0xff]
    %v441 = vld [vmem:[%s0 + $0xa00] sm:$0xff]
    %v442 = vld [vmem:[%s0 + $0xa08] sm:$0xff]
    %v443 = vld [vmem:[%s0 + $0xa10] sm:$0xff]
    %v444 = vld [vmem:[%s0 + $0xa18] sm:$0xff]
    %v445 = vld [vmem:[%s0 + $0xa20] sm:$0xff]
    %v446 = vld [vmem:[%s0 + $0xa28] sm:$0xff]
    %v447 = vld [vmem:[%s0 + $0xa30] sm:$0xff]
    %v448 = vld [vmem:[%s0 + $0xa38] sm:$0xff]
    %v449 = vld [vmem:[%s0 + $0xa40] sm:$0xff]
    %v450 = vld [vmem:[%s0 + $0xa48] sm:$0xff]
    %v451 = vld [vmem:[%s0 + $0xa50] sm:$0xff]
    %v452 = vld [vmem:[%s0 + $0xa58] sm:$0xff]
    %v453 = vld [vmem:[%s0 + $0xa60] sm:$0xff]
    %v454 = vld [vmem:[%s0 + $0xa68] sm:$0xff]
    %v455 = vld [vmem:[%s0 + $0xa70] sm:$0xff]
    %v456 = vld [vmem:[%s0 + $0xa78] sm:$0xff]
    %v457 = vld [vmem:[%s0 + $0xa80] sm:$0xff]
    %v458 = vld [vmem:[%s0 + $0xa88] sm:$0xff]
    %v459 = vld [vmem:[%s0 + $0xa90] sm:$0xff]
    %v460 = vld [vmem:[%s0 + $0xa98] sm:$0xff]
    %v461 = vld [vmem:[%s0 + $0xaa0] sm:$0xff]
    %v462 = vld [vmem:[%s0 + $0xaa8] sm:$0xff]
    %v463 = vld [vmem:[%s0 + $0xab0] sm:$0xff]
    %v464 = vld [vmem:[%s0 + $0xab8] sm:$0xff]
    %v465 = vld [vmem:[%s0 + $0xac0] sm:$0xff]
    %v466 = vld [vmem:[%s0 + $0xac8] sm:$0xff]
    %v467 = vld [vmem:[%s0 + $0xad0] sm:$0xff]
    %v468 = vld [vmem:[%s0 + $0xad8] sm:$0xff]
    %v469 = vld [vmem:[%s0 + $0xae0] sm:$0xff]
    %v470 = vld [vmem:[%s0 + $0xae8] sm:$0xff]
    %v471 = vld [vmem:[%s0 + $0xaf0] sm:$0xff]
    %v472 = vld [vmem:[%s0 + $0xaf8] sm:$0xff]
    %v473 = vld [vmem:[%s0 + $0xb00] sm:$0xff]
    %v474 = vld [vmem:[%s0 + $0xb08] sm:$0xff]
    %v475 = vld [vmem:[%s0 + $0xb10] sm:$0xff]
    %v476 = vld [vmem:[%s0 + $0xb18] sm:$0xff]
    %v477 = vld [vmem:[%s0 + $0xb20] sm:$0xff]
    %v478 = vld [vmem:[%s0 + $0xb28] sm:$0xff]
    %v479 = vld [vmem:[%s0 + $0xb30] sm:$0xff]
    %v480 = vld [vmem:[%s0 + $0xb38] sm:$0xff]
    %v481 = vld [vmem:[%s0 + $0xb40] sm:$0xff]
    %v482 = vld [vmem:[%s0 + $0xb48] sm:$0xff]
    %v483 = vld [vmem:[%s0 + $0xb50] sm:$0xff]
    %v484 = vld [vmem:[%s0 + $0xb58] sm:$0xff]
    %v485 = vld [vmem:[%s0 + $0xb60] sm:$0xff]
    %v486 = vld [vmem:[%s0 + $0xb68] sm:$0xff]
    %v487 = vld [vmem:[%s0 + $0xb70] sm:$0xff]
    %v488 = vld [vmem:[%s0 + $0xb78] sm:$0xff]
    %v489 = vld [vmem:[%s0 + $0xb80] sm:$0xff]
    %v490 = vld [vmem:[%s0 + $0xb88] sm:$0xff]
    %v491 = vld [vmem:[%s0 + $0xb90] sm:$0xff]
    %v492 = vld [vmem:[%s0 + $0xb98] sm:$0xff]
    %v493 = vld [vmem:[%s0 + $0xba0] sm:$0xff]
    %v494 = vld [vmem:[%s0 + $0xba8] sm:$0xff]
    %v495 = vld [vmem:[%s0 + $0xbb0] sm:$0xff]
    %v496 = vld [vmem:[%s0 + $0xbb8] sm:$0xff]
    %v497 = vld [vmem:[%s0 + $0xbc0] sm:$0xff]
    %v498 = vld [vmem:[%s0 + $0xbc8] sm:$0xff]
    %v499 = vld [vmem:[%s0 + $0xbd0] sm:$0xff]
    %v500 = vld [vmem:[%s0 + $0xbd8] sm:$0xff]
    %v501 = vld [vmem:[%s0 + $0xbe0] sm:$0xff]
    %v502 = vld [vmem:[%s0 + $0xbe8] sm:$0xff]
    %v503 = vld [vmem:[%s0 + $0xbf0] sm:$0xff]
    %v504 = vld [vmem:[%s0 + $0xbf8] sm:$0xff]
    %v505 = vld [vmem:[%s0 + $0xc00] sm:$0xff]
    %v506 = vld [vmem:[%s0 + $0xc08] sm:$0xff]
    %v507 = vld [vmem:[%s0 + $0xc10] sm:$0xff]
    %v508 = vld [vmem:[%s0 + $0xc18] sm:$0xff]
    %v509 = vld [vmem:[%s0 + $0xc20] sm:$0xff]
    %v510 = vld [vmem:[%s0 + $0xc28] sm:$0xff]
    %v511 = vld [vmem:[%s0 + $0xc30] sm:$0xff]
    %v512 = vld [vmem:[%s0 + $0xc38] sm:$0xff]
    %v513 = vld [vmem:[%s0 + $0xc40] sm:$0xff]
    %v514 = vld [vmem:[%s0 + $0xc48] sm:$0xff]
    %v515 = vld [vmem:[%s0 + $0xc50] sm:$0xff]
    %v516 = vld [vmem:[%s0 + $0xc58] sm:$0xff]
    %v517 = vld [vmem:[%s0 + $0xc60] sm:$0xff]
    %v518 = vld [vmem:[%s0 + $0xc68] sm:$0xff]
    %v519 = vld [vmem:[%s0 + $0xc70] sm:$0xff]
    %v520 = vld [vmem:[%s0 + $0xc78] sm:$0xff]
    %v521 = vld [vmem:[%s0 + $0xc80] sm:$0xff]
    %v522 = vld [vmem:[%s0 + $0xc88] sm:$0xff]
    %v523 = vld [vmem:[%s0 + $0xc90] sm:$0xff]
    %v524 = vld [vmem:[%s0 + $0xc98] sm:$0xff]
    %v525 = vld [vmem:[%s0 + $0xca0] sm:$0xff]
    %v526 = vld [vmem:[%s0 + $0xca8] sm:$0xff]
    %v527 = vld [vmem:[%s0 + $0xcb0] sm:$0xff]
    %v528 = vld [vmem:[%s0 + $0xcb8] sm:$0xff]
    %v529 = vld [vmem:[%s0 + $0xcc0] sm:$0xff]
    %v530 = vld [vmem:[%s0 + $0xcc8] sm:$0xff]
    %v531 = vld [vmem:[%s0 + $0xcd0] sm:$0xff]
    %v532 = vld [vmem:[%s0 + $0xcd8] sm:$0xff]
    %v533 = vld [vmem:[%s0 + $0xce0] sm:$0xff]
    %v534 = vld [vmem:[%s0 + $0xce8] sm:$0xff]
    %v535 = vld [vmem:[%s0 + $0xcf0] sm:$0xff]
    %v536 = vld [vmem:[%s0 + $0xcf8] sm:$0xff]
    %v537 = vld [vmem:[%s0 + $0xd00] sm:$0xff]
    %v538 = vld [vmem:[%s0 + $0xd08] sm:$0xff]
    %v539 = vld [vmem:[%s0 + $0xd10] sm:$0xff]
    %v540 = vld [vmem:[%s0 + $0xd18] sm:$0xff]
    %v541 = vld [vmem:[%s0 + $0xd20] sm:$0xff]
    %v542 = vld [vmem:[%s0 + $0xd28] sm:$0xff]
    %v543 = vld [vmem:[%s0 + $0xd30] sm:$0xff]
    %v544 = vld [vmem:[%s0 + $0xd38] sm:$0xff]
    %v545 = vld [vmem:[%s0 + $0xd40] sm:$0xff]
    %v546 = vld [vmem:[%s0 + $0xd48] sm:$0xff]
    %v547 = vld [vmem:[%s0 + $0xd50] sm:$0xff]
    %v548 = vld [vmem:[%s0 + $0xd58] sm:$0xff]
    %v549 = vld [vmem:[%s0 + $0xd60] sm:$0xff]
    %v550 = vld [vmem:[%s0 + $0xd68] sm:$0xff]
    %v551 = vld [vmem:[%s0 + $0xd70] sm:$0xff]
    %v552 = vld [vmem:[%s0 + $0xd78] sm:$0xff]
    %v553 = vld [vmem:[%s0 + $0xd80] sm:$0xff]
    %v554 = vld [vmem:[%s0 + $0xd88] sm:$0xff]
    %v555 = vperm.slane %v120, 0
    %vm556 = vcmask 261120
    %v558 = vsel %vm556, %v127, 0
    %v561 = vsel %vm556, %v134, 0
    %v564 = vsel %vm556, %v141, 0
    %v567 = vsel %vm556, %v148, 0
    %v570 = vsel %vm556, %v155, 0
    %v573 = vsel %vm556, %v162, 0
    %v576 = vsel %vm556, %v169, 0
    %v579 = vsel %vm556, %v176, 0
    %v582 = vsel %vm556, %v183, 0
    %v585 = vsel %vm556, %v190, 0
    %v588 = vsel %vm556, %v197, 0
    %v591 = vsel %vm556, %v204, 0
    %v594 = vsel %vm556, %v211, 0
    %v597 = vsel %vm556, %v218, 0
    %v600 = vsel %vm556, %v225, 0
    %v603 = vsel %vm556, %v232, 0
    %v606 = vsel %vm556, %v239, 0
    %v609 = vsel %vm556, %v246, 0
    %v612 = vsel %vm556, %v253, 0
    %v615 = vsel %vm556, %v260, 0
    %v618 = vsel %vm556, %v267, 0
    %v621 = vsel %vm556, %v274, 0
    %v624 = vsel %vm556, %v281, 0
    %v627 = vsel %vm556, %v288, 0
    %v630 = vsel %vm556, %v295, 0
    %v633 = vsel %vm556, %v302, 0
    %v636 = vsel %vm556, %v309, 0
    %v639 = vsel %vm556, %v316, 0
    %v642 = vsel %vm556, %v323, 0
    %v645 = vsel %vm556, %v330, 0
    %v648 = vsel %vm556, %v337, 0
    %v651 = vsel %vm556, %v344, 0
    %v654 = vsel %vm556, %v351, 0
    %v657 = vsel %vm556, %v358, 0
    %v660 = vsel %vm556, %v365, 0
    %v663 = vsel %vm556, %v372, 0
    %v666 = vsel %vm556, %v379, 0
    %v669 = vsel %vm556, %v386, 0
    %v672 = vsel %vm556, %v393, 0
    %v675 = vsel %vm556, %v400, 0
    %v678 = vsel %vm556, %v407, 0
    %v681 = vsel %vm556, %v414, 0
    %v684 = vsel %vm556, %v421, 0
    %v687 = vsel %vm556, %v428, 0
    %v690 = vsel %vm556, %v435, 0
    %v693 = vsel %vm556, %v442, 0
    %v696 = vsel %vm556, %v449, 0
    %v699 = vsel %vm556, %v456, 0
    %v702 = vsel %vm556, %v463, 0
    %v705 = vsel %vm556, %v470, 0
    %v708 = vsel %vm556, %v477, 0
    %v711 = vsel %vm556, %v484, 0
    %v714 = vsel %vm556, %v491, 0
    %v717 = vsel %vm556, %v498, 0
    %v720 = vsel %vm556, %v505, 0
    %v723 = vsel %vm556, %v512, 0
    %v726 = vsel %vm556, %v519, 0
    %v729 = vsel %vm556, %v526, 0
    %v732 = vsel %vm556, %v533, 0
    %v735 = vsel %vm556, %v540, 0
    %v738 = vsel %vm556, %v547, 0
    %v741 = vsel %vm556, %v554, 0
    %743 = vmatpush.msra.mxu0 %v35
    %744 = vmatpush.msra.mxu0 %v34
    %745 = vmatpush.msra.mxu0 %v33
    %746 = vmatpush.msra.mxu0 %v32
    %747 = vmatpush.msra.mxu0 %v31
    %748 = vmatpush.msra.mxu0 %v30
    %749 = vmatpush.msra.mxu0 %v29
    %750 = vmatpush.msra.mxu0 %v28
    %751 = vmatpush.msra.mxu0 %v27
    %752 = vmatpush.msra.mxu0 %v26
    %753 = vmatpush.msra.mxu0 %v25
    %754 = vmatpush.msra.mxu0 %v24
    %755 = vmatpush.msra.mxu0 %v23
    %756 = vmatpush.msra.mxu0 %v22
    %757 = vmatpush.msra.mxu0 %v21
    %758 = vmatpush.msra.mxu0 %v20
    %759 = vmatmul.f32.gmra.mxu0 %v121
    %v760 = vpop.f32.mrf.mxu0
    %v761 = vadd.f32 %v555, %v760
    %762 = vmatmul.f32.gmra.mxu0 %v128
    %v763 = vpop.f32.mrf.mxu0
    %v764 = vadd.f32 %v555, %v763
    %765 = vmatmul.f32.gmra.mxu0 %v135
    %v766 = vpop.f32.mrf.mxu0
    %v767 = vadd.f32 %v555, %v766
    %768 = vmatmul.f32.gmra.mxu0 %v142
    %v769 = vpop.f32.mrf.mxu0
    %v770 = vadd.f32 %v555, %v769
    %771 = vmatmul.f32.gmra.mxu0 %v149
    %v772 = vpop.f32.mrf.mxu0
    %v773 = vadd.f32 %v555, %v772
    %774 = vmatmul.f32.gmra.mxu0 %v156
    %v775 = vpop.f32.mrf.mxu0
    %v776 = vadd.f32 %v555, %v775
    %777 = vmatmul.f32.gmra.mxu0 %v163
    %v778 = vpop.f32.mrf.mxu0
    %v779 = vadd.f32 %v555, %v778
    %780 = vmatmul.f32.gmra.mxu0 %v170
    %v781 = vpop.f32.mrf.mxu0
    %v782 = vadd.f32 %v555, %v781
    %783 = vmatmul.f32.gmra.mxu0 %v177
    %v784 = vpop.f32.mrf.mxu0
    %v785 = vadd.f32 %v555, %v784
    %786 = vmatmul.f32.gmra.mxu0 %v184
    %v787 = vpop.f32.mrf.mxu0
    %v788 = vadd.f32 %v555, %v787
    %789 = vmatmul.f32.gmra.mxu0 %v191
    %v790 = vpop.f32.mrf.mxu0
    %v791 = vadd.f32 %v555, %v790
    %792 = vmatmul.f32.gmra.mxu0 %v198
    %v793 = vpop.f32.mrf.mxu0
    %v794 = vadd.f32 %v555, %v793
    %795 = vmatmul.f32.gmra.mxu0 %v205
    %v796 = vpop.f32.mrf.mxu0
    %v797 = vadd.f32 %v555, %v796
    %798 = vmatmul.f32.gmra.mxu0 %v212
    %v799 = vpop.f32.mrf.mxu0
    %v800 = vadd.f32 %v555, %v799
    %801 = vmatmul.f32.gmra.mxu0 %v219
    %v802 = vpop.f32.mrf.mxu0
    %v803 = vadd.f32 %v555, %v802
    %804 = vmatmul.f32.gmra.mxu0 %v226
    %v805 = vpop.f32.mrf.mxu0
    %v806 = vadd.f32 %v555, %v805
    %807 = vmatmul.f32.gmra.mxu0 %v233
    %v808 = vpop.f32.mrf.mxu0
    %v809 = vadd.f32 %v555, %v808
    %810 = vmatmul.f32.gmra.mxu0 %v240
    %v811 = vpop.f32.mrf.mxu0
    %v812 = vadd.f32 %v555, %v811
    %813 = vmatmul.f32.gmra.mxu0 %v247
    %v814 = vpop.f32.mrf.mxu0
    %v815 = vadd.f32 %v555, %v814
    %816 = vmatmul.f32.gmra.mxu0 %v254
    %v817 = vpop.f32.mrf.mxu0
    %v818 = vadd.f32 %v555, %v817
    %819 = vmatmul.f32.gmra.mxu0 %v261
    %v820 = vpop.f32.mrf.mxu0
    %v821 = vadd.f32 %v555, %v820
    %822 = vmatmul.f32.gmra.mxu0 %v268
    %v823 = vpop.f32.mrf.mxu0
    %v824 = vadd.f32 %v555, %v823
    %825 = vmatmul.f32.gmra.mxu0 %v275
    %v826 = vpop.f32.mrf.mxu0
    %v827 = vadd.f32 %v555, %v826
    %828 = vmatmul.f32.gmra.mxu0 %v282
    %v829 = vpop.f32.mrf.mxu0
    %v830 = vadd.f32 %v555, %v829
    %831 = vmatmul.f32.gmra.mxu0 %v289
    %v832 = vpop.f32.mrf.mxu0
    %v833 = vadd.f32 %v555, %v832
    %834 = vmatmul.f32.gmra.mxu0 %v296
    %v835 = vpop.f32.mrf.mxu0
    %v836 = vadd.f32 %v555, %v835
    %837 = vmatmul.f32.gmra.mxu0 %v303
    %v838 = vpop.f32.mrf.mxu0
    %v839 = vadd.f32 %v555, %v838
    %840 = vmatmul.f32.gmra.mxu0 %v310
    %v841 = vpop.f32.mrf.mxu0
    %v842 = vadd.f32 %v555, %v841
    %843 = vmatmul.f32.gmra.mxu0 %v317
    %v844 = vpop.f32.mrf.mxu0
    %v845 = vadd.f32 %v555, %v844
    %846 = vmatmul.f32.gmra.mxu0 %v324
    %v847 = vpop.f32.mrf.mxu0
    %v848 = vadd.f32 %v555, %v847
    %849 = vmatmul.f32.gmra.mxu0 %v331
    %v850 = vpop.f32.mrf.mxu0
    %v851 = vadd.f32 %v555, %v850
    %852 = vmatmul.f32.gmra.mxu0 %v338
    %v853 = vpop.f32.mrf.mxu0
    %v854 = vadd.f32 %v555, %v853
    %855 = vmatmul.f32.gmra.mxu0 %v345
    %v856 = vpop.f32.mrf.mxu0
    %v857 = vadd.f32 %v555, %v856
    %858 = vmatmul.f32.gmra.mxu0 %v352
    %v859 = vpop.f32.mrf.mxu0
    %v860 = vadd.f32 %v555, %v859
    %861 = vmatmul.f32.gmra.mxu0 %v359
    %v862 = vpop.f32.mrf.mxu0
    %v863 = vadd.f32 %v555, %v862
    %864 = vmatmul.f32.gmra.mxu0 %v366
    %v865 = vpop.f32.mrf.mxu0
    %v866 = vadd.f32 %v555, %v865
    %867 = vmatmul.f32.gmra.mxu0 %v373
    %v868 = vpop.f32.mrf.mxu0
    %v869 = vadd.f32 %v555, %v868
    %870 = vmatmul.f32.gmra.mxu0 %v380
    %v871 = vpop.f32.mrf.mxu0
    %v872 = vadd.f32 %v555, %v871
    %873 = vmatmul.f32.gmra.mxu0 %v387
    %v874 = vpop.f32.mrf.mxu0
    %v875 = vadd.f32 %v555, %v874
    %876 = vmatmul.f32.gmra.mxu0 %v394
    %v877 = vpop.f32.mrf.mxu0
    %v878 = vadd.f32 %v555, %v877
    %879 = vmatmul.f32.gmra.mxu0 %v401
    %v880 = vpop.f32.mrf.mxu0
    %v881 = vadd.f32 %v555, %v880
    %882 = vmatmul.f32.gmra.mxu0 %v408
    %v883 = vpop.f32.mrf.mxu0
    %v884 = vadd.f32 %v555, %v883
    %885 = vmatmul.f32.gmra.mxu0 %v415
    %v886 = vpop.f32.mrf.mxu0
    %v887 = vadd.f32 %v555, %v886
    %888 = vmatmul.f32.gmra.mxu0 %v422
    %v889 = vpop.f32.mrf.mxu0
    %v890 = vadd.f32 %v555, %v889
    %891 = vmatmul.f32.gmra.mxu0 %v429
    %v892 = vpop.f32.mrf.mxu0
    %v893 = vadd.f32 %v555, %v892
    %894 = vmatmul.f32.gmra.mxu0 %v436
    %v895 = vpop.f32.mrf.mxu0
    %v896 = vadd.f32 %v555, %v895
    %897 = vmatmul.f32.gmra.mxu0 %v443
    %v898 = vpop.f32.mrf.mxu0
    %v899 = vadd.f32 %v555, %v898
    %900 = vmatmul.f32.gmra.mxu0 %v450
    %v901 = vpop.f32.mrf.mxu0
    %v902 = vadd.f32 %v555, %v901
    %903 = vmatmul.f32.gmra.mxu0 %v457
    %v904 = vpop.f32.mrf.mxu0
    %v905 = vadd.f32 %v555, %v904
    %906 = vmatmul.f32.gmra.mxu0 %v464
    %v907 = vpop.f32.mrf.mxu0
    %v908 = vadd.f32 %v555, %v907
    %909 = vmatmul.f32.gmra.mxu0 %v471
    %v910 = vpop.f32.mrf.mxu0
    %v911 = vadd.f32 %v555, %v910
    %912 = vmatmul.f32.gmra.mxu0 %v478
    %v913 = vpop.f32.mrf.mxu0
    %v914 = vadd.f32 %v555, %v913
    %915 = vmatmul.f32.gmra.mxu0 %v485
    %v916 = vpop.f32.mrf.mxu0
    %v917 = vadd.f32 %v555, %v916
    %918 = vmatmul.f32.gmra.mxu0 %v492
    %v919 = vpop.f32.mrf.mxu0
    %v920 = vadd.f32 %v555, %v919
    %921 = vmatmul.f32.gmra.mxu0 %v499
    %v922 = vpop.f32.mrf.mxu0
    %v923 = vadd.f32 %v555, %v922
    %924 = vmatmul.f32.gmra.mxu0 %v506
    %v925 = vpop.f32.mrf.mxu0
    %v926 = vadd.f32 %v555, %v925
    %927 = vmatmul.f32.gmra.mxu0 %v513
    %v928 = vpop.f32.mrf.mxu0
    %v929 = vadd.f32 %v555, %v928
    %930 = vmatmul.f32.gmra.mxu0 %v520
    %v931 = vpop.f32.mrf.mxu0
    %v932 = vadd.f32 %v555, %v931
    %933 = vmatmul.f32.gmra.mxu0 %v527
    %v934 = vpop.f32.mrf.mxu0
    %v935 = vadd.f32 %v555, %v934
    %936 = vmatmul.f32.gmra.mxu0 %v534
    %v937 = vpop.f32.mrf.mxu0
    %v938 = vadd.f32 %v555, %v937
    %939 = vmatmul.f32.gmra.mxu0 %v541
    %v940 = vpop.f32.mrf.mxu0
    %v941 = vadd.f32 %v555, %v940
    %942 = vmatmul.f32.gmra.mxu0 %v548
    %v943 = vpop.f32.mrf.mxu0
    %v944 = vadd.f32 %v555, %v943
    %945 = vdwg.mxu0
    %946 = vmatpush.msra.mxu0 %v51
    %947 = vmatpush.msra.mxu0 %v50
    %948 = vmatpush.msra.mxu0 %v49
    %949 = vmatpush.msra.mxu0 %v48
    %950 = vmatpush.msra.mxu0 %v47
    %951 = vmatpush.msra.mxu0 %v46
    %952 = vmatpush.msra.mxu0 %v45
    %953 = vmatpush.msra.mxu0 %v44
    %954 = vmatpush.msra.mxu0 %v43
    %955 = vmatpush.msra.mxu0 %v42
    %956 = vmatpush.msra.mxu0 %v41
    %957 = vmatpush.msra.mxu0 %v40
    %958 = vmatpush.msra.mxu0 %v39
    %959 = vmatpush.msra.mxu0 %v38
    %960 = vmatpush.msra.mxu0 %v37
    %961 = vmatpush.msra.mxu0 %v36
    %962 = vmatmul.f32.gmra.mxu0 %v122
    %v963 = vpop.f32.mrf.mxu0
    %v964 = vadd.f32 %v761, %v963
    %965 = vmatmul.f32.gmra.mxu0 %v129
    %v966 = vpop.f32.mrf.mxu0
    %v967 = vadd.f32 %v764, %v966
    %968 = vmatmul.f32.gmra.mxu0 %v136
    %v969 = vpop.f32.mrf.mxu0
    %v970 = vadd.f32 %v767, %v969
    %971 = vmatmul.f32.gmra.mxu0 %v143
    %v972 = vpop.f32.mrf.mxu0
    %v973 = vadd.f32 %v770, %v972
    %974 = vmatmul.f32.gmra.mxu0 %v150
    %v975 = vpop.f32.mrf.mxu0
    %v976 = vadd.f32 %v773, %v975
    %977 = vmatmul.f32.gmra.mxu0 %v157
    %v978 = vpop.f32.mrf.mxu0
    %v979 = vadd.f32 %v776, %v978
    %980 = vmatmul.f32.gmra.mxu0 %v164
    %v981 = vpop.f32.mrf.mxu0
    %v982 = vadd.f32 %v779, %v981
    %983 = vmatmul.f32.gmra.mxu0 %v171
    %v984 = vpop.f32.mrf.mxu0
    %v985 = vadd.f32 %v782, %v984
    %986 = vmatmul.f32.gmra.mxu0 %v178
    %v987 = vpop.f32.mrf.mxu0
    %v988 = vadd.f32 %v785, %v987
    %989 = vmatmul.f32.gmra.mxu0 %v185
    %v990 = vpop.f32.mrf.mxu0
    %v991 = vadd.f32 %v788, %v990
    %992 = vmatmul.f32.gmra.mxu0 %v192
    %v993 = vpop.f32.mrf.mxu0
    %v994 = vadd.f32 %v791, %v993
    %995 = vmatmul.f32.gmra.mxu0 %v199
    %v996 = vpop.f32.mrf.mxu0
    %v997 = vadd.f32 %v794, %v996
    %998 = vmatmul.f32.gmra.mxu0 %v206
    %v999 = vpop.f32.mrf.mxu0
    %v1000 = vadd.f32 %v797, %v999
    %1001 = vmatmul.f32.gmra.mxu0 %v213
    %v1002 = vpop.f32.mrf.mxu0
    %v1003 = vadd.f32 %v800, %v1002
    %1004 = vmatmul.f32.gmra.mxu0 %v220
    %v1005 = vpop.f32.mrf.mxu0
    %v1006 = vadd.f32 %v803, %v1005
    %1007 = vmatmul.f32.gmra.mxu0 %v227
    %v1008 = vpop.f32.mrf.mxu0
    %v1009 = vadd.f32 %v806, %v1008
    %1010 = vmatmul.f32.gmra.mxu0 %v234
    %v1011 = vpop.f32.mrf.mxu0
    %v1012 = vadd.f32 %v809, %v1011
    %1013 = vmatmul.f32.gmra.mxu0 %v241
    %v1014 = vpop.f32.mrf.mxu0
    %v1015 = vadd.f32 %v812, %v1014
    %1016 = vmatmul.f32.gmra.mxu0 %v248
    %v1017 = vpop.f32.mrf.mxu0
    %v1018 = vadd.f32 %v815, %v1017
    %1019 = vmatmul.f32.gmra.mxu0 %v255
    %v1020 = vpop.f32.mrf.mxu0
    %v1021 = vadd.f32 %v818, %v1020
    %1022 = vmatmul.f32.gmra.mxu0 %v262
    %v1023 = vpop.f32.mrf.mxu0
    %v1024 = vadd.f32 %v821, %v1023
    %1025 = vmatmul.f32.gmra.mxu0 %v269
    %v1026 = vpop.f32.mrf.mxu0
    %v1027 = vadd.f32 %v824, %v1026
    %1028 = vmatmul.f32.gmra.mxu0 %v276
    %v1029 = vpop.f32.mrf.mxu0
    %v1030 = vadd.f32 %v827, %v1029
    %1031 = vmatmul.f32.gmra.mxu0 %v283
    %v1032 = vpop.f32.mrf.mxu0
    %v1033 = vadd.f32 %v830, %v1032
    %1034 = vmatmul.f32.gmra.mxu0 %v290
    %v1035 = vpop.f32.mrf.mxu0
    %v1036 = vadd.f32 %v833, %v1035
    %1037 = vmatmul.f32.gmra.mxu0 %v297
    %v1038 = vpop.f32.mrf.mxu0
    %v1039 = vadd.f32 %v836, %v1038
    %1040 = vmatmul.f32.gmra.mxu0 %v304
    %v1041 = vpop.f32.mrf.mxu0
    %v1042 = vadd.f32 %v839, %v1041
    %1043 = vmatmul.f32.gmra.mxu0 %v311
    %v1044 = vpop.f32.mrf.mxu0
    %v1045 = vadd.f32 %v842, %v1044
    %1046 = vmatmul.f32.gmra.mxu0 %v318
    %v1047 = vpop.f32.mrf.mxu0
    %v1048 = vadd.f32 %v845, %v1047
    %1049 = vmatmul.f32.gmra.mxu0 %v325
    %v1050 = vpop.f32.mrf.mxu0
    %v1051 = vadd.f32 %v848, %v1050
    %1052 = vmatmul.f32.gmra.mxu0 %v332
    %v1053 = vpop.f32.mrf.mxu0
    %v1054 = vadd.f32 %v851, %v1053
    %1055 = vmatmul.f32.gmra.mxu0 %v339
    %v1056 = vpop.f32.mrf.mxu0
    %v1057 = vadd.f32 %v854, %v1056
    %1058 = vmatmul.f32.gmra.mxu0 %v346
    %v1059 = vpop.f32.mrf.mxu0
    %v1060 = vadd.f32 %v857, %v1059
    %1061 = vmatmul.f32.gmra.mxu0 %v353
    %v1062 = vpop.f32.mrf.mxu0
    %v1063 = vadd.f32 %v860, %v1062
    %1064 = vmatmul.f32.gmra.mxu0 %v360
    %v1065 = vpop.f32.mrf.mxu0
    %v1066 = vadd.f32 %v863, %v1065
    %1067 = vmatmul.f32.gmra.mxu0 %v367
    %v1068 = vpop.f32.mrf.mxu0
    %v1069 = vadd.f32 %v866, %v1068
    %1070 = vmatmul.f32.gmra.mxu0 %v374
    %v1071 = vpop.f32.mrf.mxu0
    %v1072 = vadd.f32 %v869, %v1071
    %1073 = vmatmul.f32.gmra.mxu0 %v381
    %v1074 = vpop.f32.mrf.mxu0
    %v1075 = vadd.f32 %v872, %v1074
    %1076 = vmatmul.f32.gmra.mxu0 %v388
    %v1077 = vpop.f32.mrf.mxu0
    %v1078 = vadd.f32 %v875, %v1077
    %1079 = vmatmul.f32.gmra.mxu0 %v395
    %v1080 = vpop.f32.mrf.mxu0
    %v1081 = vadd.f32 %v878, %v1080
    %1082 = vmatmul.f32.gmra.mxu0 %v402
    %v1083 = vpop.f32.mrf.mxu0
    %v1084 = vadd.f32 %v881, %v1083
    %1085 = vmatmul.f32.gmra.mxu0 %v409
    %v1086 = vpop.f32.mrf.mxu0
    %v1087 = vadd.f32 %v884, %v1086
    %1088 = vmatmul.f32.gmra.mxu0 %v416
    %v1089 = vpop.f32.mrf.mxu0
    %v1090 = vadd.f32 %v887, %v1089
    %1091 = vmatmul.f32.gmra.mxu0 %v423
    %v1092 = vpop.f32.mrf.mxu0
    %v1093 = vadd.f32 %v890, %v1092
    %1094 = vmatmul.f32.gmra.mxu0 %v430
    %v1095 = vpop.f32.mrf.mxu0
    %v1096 = vadd.f32 %v893, %v1095
    %1097 = vmatmul.f32.gmra.mxu0 %v437
    %v1098 = vpop.f32.mrf.mxu0
    %v1099 = vadd.f32 %v896, %v1098
    %1100 = vmatmul.f32.gmra.mxu0 %v444
    %v1101 = vpop.f32.mrf.mxu0
    %v1102 = vadd.f32 %v899, %v1101
    %1103 = vmatmul.f32.gmra.mxu0 %v451
    %v1104 = vpop.f32.mrf.mxu0
    %v1105 = vadd.f32 %v902, %v1104
    %1106 = vmatmul.f32.gmra.mxu0 %v458
    %v1107 = vpop.f32.mrf.mxu0
    %v1108 = vadd.f32 %v905, %v1107
    %1109 = vmatmul.f32.gmra.mxu0 %v465
    %v1110 = vpop.f32.mrf.mxu0
    %v1111 = vadd.f32 %v908, %v1110
    %1112 = vmatmul.f32.gmra.mxu0 %v472
    %v1113 = vpop.f32.mrf.mxu0
    %v1114 = vadd.f32 %v911, %v1113
    %1115 = vmatmul.f32.gmra.mxu0 %v479
    %v1116 = vpop.f32.mrf.mxu0
    %v1117 = vadd.f32 %v914, %v1116
    %1118 = vmatmul.f32.gmra.mxu0 %v486
    %v1119 = vpop.f32.mrf.mxu0
    %v1120 = vadd.f32 %v917, %v1119
    %1121 = vmatmul.f32.gmra.mxu0 %v493
    %v1122 = vpop.f32.mrf.mxu0
    %v1123 = vadd.f32 %v920, %v1122
    %1124 = vmatmul.f32.gmra.mxu0 %v500
    %v1125 = vpop.f32.mrf.mxu0
    %v1126 = vadd.f32 %v923, %v1125
    %1127 = vmatmul.f32.gmra.mxu0 %v507
    %v1128 = vpop.f32.mrf.mxu0
    %v1129 = vadd.f32 %v926, %v1128
    %1130 = vmatmul.f32.gmra.mxu0 %v514
    %v1131 = vpop.f32.mrf.mxu0
    %v1132 = vadd.f32 %v929, %v1131
    %1133 = vmatmul.f32.gmra.mxu0 %v521
    %v1134 = vpop.f32.mrf.mxu0
    %v1135 = vadd.f32 %v932, %v1134
    %1136 = vmatmul.f32.gmra.mxu0 %v528
    %v1137 = vpop.f32.mrf.mxu0
    %v1138 = vadd.f32 %v935, %v1137
    %1139 = vmatmul.f32.gmra.mxu0 %v535
    %v1140 = vpop.f32.mrf.mxu0
    %v1141 = vadd.f32 %v938, %v1140
    %1142 = vmatmul.f32.gmra.mxu0 %v542
    %v1143 = vpop.f32.mrf.mxu0
    %v1144 = vadd.f32 %v941, %v1143
    %1145 = vmatmul.f32.gmra.mxu0 %v549
    %v1146 = vpop.f32.mrf.mxu0
    %v1147 = vadd.f32 %v944, %v1146
    %1148 = vdwg.mxu0
    %1149 = vmatpush.msra.mxu0 %v67
    %1150 = vmatpush.msra.mxu0 %v66
    %1151 = vmatpush.msra.mxu0 %v65
    %1152 = vmatpush.msra.mxu0 %v64
    %1153 = vmatpush.msra.mxu0 %v63
    %1154 = vmatpush.msra.mxu0 %v62
    %1155 = vmatpush.msra.mxu0 %v61
    %1156 = vmatpush.msra.mxu0 %v60
    %1157 = vmatpush.msra.mxu0 %v59
    %1158 = vmatpush.msra.mxu0 %v58
    %1159 = vmatpush.msra.mxu0 %v57
    %1160 = vmatpush.msra.mxu0 %v56
    %1161 = vmatpush.msra.mxu0 %v55
    %1162 = vmatpush.msra.mxu0 %v54
    %1163 = vmatpush.msra.mxu0 %v53
    %1164 = vmatpush.msra.mxu0 %v52
    %1165 = vmatmul.f32.gmra.mxu0 %v123
    %v1166 = vpop.f32.mrf.mxu0
    %v1167 = vadd.f32 %v964, %v1166
    %1168 = vmatmul.f32.gmra.mxu0 %v130
    %v1169 = vpop.f32.mrf.mxu0
    %v1170 = vadd.f32 %v967, %v1169
    %1171 = vmatmul.f32.gmra.mxu0 %v137
    %v1172 = vpop.f32.mrf.mxu0
    %v1173 = vadd.f32 %v970, %v1172
    %1174 = vmatmul.f32.gmra.mxu0 %v144
    %v1175 = vpop.f32.mrf.mxu0
    %v1176 = vadd.f32 %v973, %v1175
    %1177 = vmatmul.f32.gmra.mxu0 %v151
    %v1178 = vpop.f32.mrf.mxu0
    %v1179 = vadd.f32 %v976, %v1178
    %1180 = vmatmul.f32.gmra.mxu0 %v158
    %v1181 = vpop.f32.mrf.mxu0
    %v1182 = vadd.f32 %v979, %v1181
    %1183 = vmatmul.f32.gmra.mxu0 %v165
    %v1184 = vpop.f32.mrf.mxu0
    %v1185 = vadd.f32 %v982, %v1184
    %1186 = vmatmul.f32.gmra.mxu0 %v172
    %v1187 = vpop.f32.mrf.mxu0
    %v1188 = vadd.f32 %v985, %v1187
    %1189 = vmatmul.f32.gmra.mxu0 %v179
    %v1190 = vpop.f32.mrf.mxu0
    %v1191 = vadd.f32 %v988, %v1190
    %1192 = vmatmul.f32.gmra.mxu0 %v186
    %v1193 = vpop.f32.mrf.mxu0
    %v1194 = vadd.f32 %v991, %v1193
    %1195 = vmatmul.f32.gmra.mxu0 %v193
    %v1196 = vpop.f32.mrf.mxu0
    %v1197 = vadd.f32 %v994, %v1196
    %1198 = vmatmul.f32.gmra.mxu0 %v200
    %v1199 = vpop.f32.mrf.mxu0
    %v1200 = vadd.f32 %v997, %v1199
    %1201 = vmatmul.f32.gmra.mxu0 %v207
    %v1202 = vpop.f32.mrf.mxu0
    %v1203 = vadd.f32 %v1000, %v1202
    %1204 = vmatmul.f32.gmra.mxu0 %v214
    %v1205 = vpop.f32.mrf.mxu0
    %v1206 = vadd.f32 %v1003, %v1205
    %1207 = vmatmul.f32.gmra.mxu0 %v221
    %v1208 = vpop.f32.mrf.mxu0
    %v1209 = vadd.f32 %v1006, %v1208
    %1210 = vmatmul.f32.gmra.mxu0 %v228
    %v1211 = vpop.f32.mrf.mxu0
    %v1212 = vadd.f32 %v1009, %v1211
    %1213 = vmatmul.f32.gmra.mxu0 %v235
    %v1214 = vpop.f32.mrf.mxu0
    %v1215 = vadd.f32 %v1012, %v1214
    %1216 = vmatmul.f32.gmra.mxu0 %v242
    %v1217 = vpop.f32.mrf.mxu0
    %v1218 = vadd.f32 %v1015, %v1217
    %1219 = vmatmul.f32.gmra.mxu0 %v249
    %v1220 = vpop.f32.mrf.mxu0
    %v1221 = vadd.f32 %v1018, %v1220
    %1222 = vmatmul.f32.gmra.mxu0 %v256
    %v1223 = vpop.f32.mrf.mxu0
    %v1224 = vadd.f32 %v1021, %v1223
    %1225 = vmatmul.f32.gmra.mxu0 %v263
    %v1226 = vpop.f32.mrf.mxu0
    %v1227 = vadd.f32 %v1024, %v1226
    %1228 = vmatmul.f32.gmra.mxu0 %v270
    %v1229 = vpop.f32.mrf.mxu0
    %v1230 = vadd.f32 %v1027, %v1229
    %1231 = vmatmul.f32.gmra.mxu0 %v277
    %v1232 = vpop.f32.mrf.mxu0
    %v1233 = vadd.f32 %v1030, %v1232
    %1234 = vmatmul.f32.gmra.mxu0 %v284
    %v1235 = vpop.f32.mrf.mxu0
    %v1236 = vadd.f32 %v1033, %v1235
    %1237 = vmatmul.f32.gmra.mxu0 %v291
    %v1238 = vpop.f32.mrf.mxu0
    %v1239 = vadd.f32 %v1036, %v1238
    %1240 = vmatmul.f32.gmra.mxu0 %v298
    %v1241 = vpop.f32.mrf.mxu0
    %v1242 = vadd.f32 %v1039, %v1241
    %1243 = vmatmul.f32.gmra.mxu0 %v305
    %v1244 = vpop.f32.mrf.mxu0
    %v1245 = vadd.f32 %v1042, %v1244
    %1246 = vmatmul.f32.gmra.mxu0 %v312
    %v1247 = vpop.f32.mrf.mxu0
    %v1248 = vadd.f32 %v1045, %v1247
    %1249 = vmatmul.f32.gmra.mxu0 %v319
    %v1250 = vpop.f32.mrf.mxu0
    %v1251 = vadd.f32 %v1048, %v1250
    %1252 = vmatmul.f32.gmra.mxu0 %v326
    %v1253 = vpop.f32.mrf.mxu0
    %v1254 = vadd.f32 %v1051, %v1253
    %1255 = vmatmul.f32.gmra.mxu0 %v333
    %v1256 = vpop.f32.mrf.mxu0
    %v1257 = vadd.f32 %v1054, %v1256
    %1258 = vmatmul.f32.gmra.mxu0 %v340
    %v1259 = vpop.f32.mrf.mxu0
    %v1260 = vadd.f32 %v1057, %v1259
    %1261 = vmatmul.f32.gmra.mxu0 %v347
    %v1262 = vpop.f32.mrf.mxu0
    %v1263 = vadd.f32 %v1060, %v1262
    %1264 = vmatmul.f32.gmra.mxu0 %v354
    %v1265 = vpop.f32.mrf.mxu0
    %v1266 = vadd.f32 %v1063, %v1265
    %1267 = vmatmul.f32.gmra.mxu0 %v361
    %v1268 = vpop.f32.mrf.mxu0
    %v1269 = vadd.f32 %v1066, %v1268
    %1270 = vmatmul.f32.gmra.mxu0 %v368
    %v1271 = vpop.f32.mrf.mxu0
    %v1272 = vadd.f32 %v1069, %v1271
    %1273 = vmatmul.f32.gmra.mxu0 %v375
    %v1274 = vpop.f32.mrf.mxu0
    %v1275 = vadd.f32 %v1072, %v1274
    %1276 = vmatmul.f32.gmra.mxu0 %v382
    %v1277 = vpop.f32.mrf.mxu0
    %v1278 = vadd.f32 %v1075, %v1277
    %1279 = vmatmul.f32.gmra.mxu0 %v389
    %v1280 = vpop.f32.mrf.mxu0
    %v1281 = vadd.f32 %v1078, %v1280
    %1282 = vmatmul.f32.gmra.mxu0 %v396
    %v1283 = vpop.f32.mrf.mxu0
    %v1284 = vadd.f32 %v1081, %v1283
    %1285 = vmatmul.f32.gmra.mxu0 %v403
    %v1286 = vpop.f32.mrf.mxu0
    %v1287 = vadd.f32 %v1084, %v1286
    %1288 = vmatmul.f32.gmra.mxu0 %v410
    %v1289 = vpop.f32.mrf.mxu0
    %v1290 = vadd.f32 %v1087, %v1289
    %1291 = vmatmul.f32.gmra.mxu0 %v417
    %v1292 = vpop.f32.mrf.mxu0
    %v1293 = vadd.f32 %v1090, %v1292
    %1294 = vmatmul.f32.gmra.mxu0 %v424
    %v1295 = vpop.f32.mrf.mxu0
    %v1296 = vadd.f32 %v1093, %v1295
    %1297 = vmatmul.f32.gmra.mxu0 %v431
    %v1298 = vpop.f32.mrf.mxu0
    %v1299 = vadd.f32 %v1096, %v1298
    %1300 = vmatmul.f32.gmra.mxu0 %v438
    %v1301 = vpop.f32.mrf.mxu0
    %v1302 = vadd.f32 %v1099, %v1301
    %1303 = vmatmul.f32.gmra.mxu0 %v445
    %v1304 = vpop.f32.mrf.mxu0
    %v1305 = vadd.f32 %v1102, %v1304
    %1306 = vmatmul.f32.gmra.mxu0 %v452
    %v1307 = vpop.f32.mrf.mxu0
    %v1308 = vadd.f32 %v1105, %v1307
    %1309 = vmatmul.f32.gmra.mxu0 %v459
    %v1310 = vpop.f32.mrf.mxu0
    %v1311 = vadd.f32 %v1108, %v1310
    %1312 = vmatmul.f32.gmra.mxu0 %v466
    %v1313 = vpop.f32.mrf.mxu0
    %v1314 = vadd.f32 %v1111, %v1313
    %1315 = vmatmul.f32.gmra.mxu0 %v473
    %v1316 = vpop.f32.mrf.mxu0
    %v1317 = vadd.f32 %v1114, %v1316
    %1318 = vmatmul.f32.gmra.mxu0 %v480
    %v1319 = vpop.f32.mrf.mxu0
    %v1320 = vadd.f32 %v1117, %v1319
    %1321 = vmatmul.f32.gmra.mxu0 %v487
    %v1322 = vpop.f32.mrf.mxu0
    %v1323 = vadd.f32 %v1120, %v1322
    %1324 = vmatmul.f32.gmra.mxu0 %v494
    %v1325 = vpop.f32.mrf.mxu0
    %v1326 = vadd.f32 %v1123, %v1325
    %1327 = vmatmul.f32.gmra.mxu0 %v501
    %v1328 = vpop.f32.mrf.mxu0
    %v1329 = vadd.f32 %v1126, %v1328
    %1330 = vmatmul.f32.gmra.mxu0 %v508
    %v1331 = vpop.f32.mrf.mxu0
    %v1332 = vadd.f32 %v1129, %v1331
    %1333 = vmatmul.f32.gmra.mxu0 %v515
    %v1334 = vpop.f32.mrf.mxu0
    %v1335 = vadd.f32 %v1132, %v1334
    %1336 = vmatmul.f32.gmra.mxu0 %v522
    %v1337 = vpop.f32.mrf.mxu0
    %v1338 = vadd.f32 %v1135, %v1337
    %1339 = vmatmul.f32.gmra.mxu0 %v529
    %v1340 = vpop.f32.mrf.mxu0
    %v1341 = vadd.f32 %v1138, %v1340
    %1342 = vmatmul.f32.gmra.mxu0 %v536
    %v1343 = vpop.f32.mrf.mxu0
    %v1344 = vadd.f32 %v1141, %v1343
    %1345 = vmatmul.f32.gmra.mxu0 %v543
    %v1346 = vpop.f32.mrf.mxu0
    %v1347 = vadd.f32 %v1144, %v1346
    %1348 = vmatmul.f32.gmra.mxu0 %v550
    %v1349 = vpop.f32.mrf.mxu0
    %v1350 = vadd.f32 %v1147, %v1349
    %1351 = vdwg.mxu0
    %1352 = vmatpush.msra.mxu0 %v83
    %1353 = vmatpush.msra.mxu0 %v82
    %1354 = vmatpush.msra.mxu0 %v81
    %1355 = vmatpush.msra.mxu0 %v80
    %1356 = vmatpush.msra.mxu0 %v79
    %1357 = vmatpush.msra.mxu0 %v78
    %1358 = vmatpush.msra.mxu0 %v77
    %1359 = vmatpush.msra.mxu0 %v76
    %1360 = vmatpush.msra.mxu0 %v75
    %1361 = vmatpush.msra.mxu0 %v74
    %1362 = vmatpush.msra.mxu0 %v73
    %1363 = vmatpush.msra.mxu0 %v72
    %1364 = vmatpush.msra.mxu0 %v71
    %1365 = vmatpush.msra.mxu0 %v70
    %1366 = vmatpush.msra.mxu0 %v69
    %1367 = vmatpush.msra.mxu0 %v68
    %1368 = vmatmul.f32.gmra.mxu0 %v124
    %v1369 = vpop.f32.mrf.mxu0
    %v1370 = vadd.f32 %v1167, %v1369
    %1371 = vmatmul.f32.gmra.mxu0 %v131
    %v1372 = vpop.f32.mrf.mxu0
    %v1373 = vadd.f32 %v1170, %v1372
    %1374 = vmatmul.f32.gmra.mxu0 %v138
    %v1375 = vpop.f32.mrf.mxu0
    %v1376 = vadd.f32 %v1173, %v1375
    %1377 = vmatmul.f32.gmra.mxu0 %v145
    %v1378 = vpop.f32.mrf.mxu0
    %v1379 = vadd.f32 %v1176, %v1378
    %1380 = vmatmul.f32.gmra.mxu0 %v152
    %v1381 = vpop.f32.mrf.mxu0
    %v1382 = vadd.f32 %v1179, %v1381
    %1383 = vmatmul.f32.gmra.mxu0 %v159
    %v1384 = vpop.f32.mrf.mxu0
    %v1385 = vadd.f32 %v1182, %v1384
    %1386 = vmatmul.f32.gmra.mxu0 %v166
    %v1387 = vpop.f32.mrf.mxu0
    %v1388 = vadd.f32 %v1185, %v1387
    %1389 = vmatmul.f32.gmra.mxu0 %v173
    %v1390 = vpop.f32.mrf.mxu0
    %v1391 = vadd.f32 %v1188, %v1390
    %1392 = vmatmul.f32.gmra.mxu0 %v180
    %v1393 = vpop.f32.mrf.mxu0
    %v1394 = vadd.f32 %v1191, %v1393
    %1395 = vmatmul.f32.gmra.mxu0 %v187
    %v1396 = vpop.f32.mrf.mxu0
    %v1397 = vadd.f32 %v1194, %v1396
    %1398 = vmatmul.f32.gmra.mxu0 %v194
    %v1399 = vpop.f32.mrf.mxu0
    %v1400 = vadd.f32 %v1197, %v1399
    %1401 = vmatmul.f32.gmra.mxu0 %v201
    %v1402 = vpop.f32.mrf.mxu0
    %v1403 = vadd.f32 %v1200, %v1402
    %1404 = vmatmul.f32.gmra.mxu0 %v208
    %v1405 = vpop.f32.mrf.mxu0
    %v1406 = vadd.f32 %v1203, %v1405
    %1407 = vmatmul.f32.gmra.mxu0 %v215
    %v1408 = vpop.f32.mrf.mxu0
    %v1409 = vadd.f32 %v1206, %v1408
    %1410 = vmatmul.f32.gmra.mxu0 %v222
    %v1411 = vpop.f32.mrf.mxu0
    %v1412 = vadd.f32 %v1209, %v1411
    %1413 = vmatmul.f32.gmra.mxu0 %v229
    %v1414 = vpop.f32.mrf.mxu0
    %v1415 = vadd.f32 %v1212, %v1414
    %1416 = vmatmul.f32.gmra.mxu0 %v236
    %v1417 = vpop.f32.mrf.mxu0
    %v1418 = vadd.f32 %v1215, %v1417
    %1419 = vmatmul.f32.gmra.mxu0 %v243
    %v1420 = vpop.f32.mrf.mxu0
    %v1421 = vadd.f32 %v1218, %v1420
    %1422 = vmatmul.f32.gmra.mxu0 %v250
    %v1423 = vpop.f32.mrf.mxu0
    %v1424 = vadd.f32 %v1221, %v1423
    %1425 = vmatmul.f32.gmra.mxu0 %v257
    %v1426 = vpop.f32.mrf.mxu0
    %v1427 = vadd.f32 %v1224, %v1426
    %1428 = vmatmul.f32.gmra.mxu0 %v264
    %v1429 = vpop.f32.mrf.mxu0
    %v1430 = vadd.f32 %v1227, %v1429
    %1431 = vmatmul.f32.gmra.mxu0 %v271
    %v1432 = vpop.f32.mrf.mxu0
    %v1433 = vadd.f32 %v1230, %v1432
    %1434 = vmatmul.f32.gmra.mxu0 %v278
    %v1435 = vpop.f32.mrf.mxu0
    %v1436 = vadd.f32 %v1233, %v1435
    %1437 = vmatmul.f32.gmra.mxu0 %v285
    %v1438 = vpop.f32.mrf.mxu0
    %v1439 = vadd.f32 %v1236, %v1438
    %1440 = vmatmul.f32.gmra.mxu0 %v292
    %v1441 = vpop.f32.mrf.mxu0
    %v1442 = vadd.f32 %v1239, %v1441
    %1443 = vmatmul.f32.gmra.mxu0 %v299
    %v1444 = vpop.f32.mrf.mxu0
    %v1445 = vadd.f32 %v1242, %v1444
    %1446 = vmatmul.f32.gmra.mxu0 %v306
    %v1447 = vpop.f32.mrf.mxu0
    %v1448 = vadd.f32 %v1245, %v1447
    %1449 = vmatmul.f32.gmra.mxu0 %v313
    %v1450 = vpop.f32.mrf.mxu0
    %v1451 = vadd.f32 %v1248, %v1450
    %1452 = vmatmul.f32.gmra.mxu0 %v320
    %v1453 = vpop.f32.mrf.mxu0
    %v1454 = vadd.f32 %v1251, %v1453
    %1455 = vmatmul.f32.gmra.mxu0 %v327
    %v1456 = vpop.f32.mrf.mxu0
    %v1457 = vadd.f32 %v1254, %v1456
    %1458 = vmatmul.f32.gmra.mxu0 %v334
    %v1459 = vpop.f32.mrf.mxu0
    %v1460 = vadd.f32 %v1257, %v1459
    %1461 = vmatmul.f32.gmra.mxu0 %v341
    %v1462 = vpop.f32.mrf.mxu0
    %v1463 = vadd.f32 %v1260, %v1462
    %1464 = vmatmul.f32.gmra.mxu0 %v348
    %v1465 = vpop.f32.mrf.mxu0
    %v1466 = vadd.f32 %v1263, %v1465
    %1467 = vmatmul.f32.gmra.mxu0 %v355
    %v1468 = vpop.f32.mrf.mxu0
    %v1469 = vadd.f32 %v1266, %v1468
    %1470 = vmatmul.f32.gmra.mxu0 %v362
    %v1471 = vpop.f32.mrf.mxu0
    %v1472 = vadd.f32 %v1269, %v1471
    %1473 = vmatmul.f32.gmra.mxu0 %v369
    %v1474 = vpop.f32.mrf.mxu0
    %v1475 = vadd.f32 %v1272, %v1474
    %1476 = vmatmul.f32.gmra.mxu0 %v376
    %v1477 = vpop.f32.mrf.mxu0
    %v1478 = vadd.f32 %v1275, %v1477
    %1479 = vmatmul.f32.gmra.mxu0 %v383
    %v1480 = vpop.f32.mrf.mxu0
    %v1481 = vadd.f32 %v1278, %v1480
    %1482 = vmatmul.f32.gmra.mxu0 %v390
    %v1483 = vpop.f32.mrf.mxu0
    %v1484 = vadd.f32 %v1281, %v1483
    %1485 = vmatmul.f32.gmra.mxu0 %v397
    %v1486 = vpop.f32.mrf.mxu0
    %v1487 = vadd.f32 %v1284, %v1486
    %1488 = vmatmul.f32.gmra.mxu0 %v404
    %v1489 = vpop.f32.mrf.mxu0
    %v1490 = vadd.f32 %v1287, %v1489
    %1491 = vmatmul.f32.gmra.mxu0 %v411
    %v1492 = vpop.f32.mrf.mxu0
    %v1493 = vadd.f32 %v1290, %v1492
    %1494 = vmatmul.f32.gmra.mxu0 %v418
    %v1495 = vpop.f32.mrf.mxu0
    %v1496 = vadd.f32 %v1293, %v1495
    %1497 = vmatmul.f32.gmra.mxu0 %v425
    %v1498 = vpop.f32.mrf.mxu0
    %v1499 = vadd.f32 %v1296, %v1498
    %1500 = vmatmul.f32.gmra.mxu0 %v432
    %v1501 = vpop.f32.mrf.mxu0
    %v1502 = vadd.f32 %v1299, %v1501
    %1503 = vmatmul.f32.gmra.mxu0 %v439
    %v1504 = vpop.f32.mrf.mxu0
    %v1505 = vadd.f32 %v1302, %v1504
    %1506 = vmatmul.f32.gmra.mxu0 %v446
    %v1507 = vpop.f32.mrf.mxu0
    %v1508 = vadd.f32 %v1305, %v1507
    %1509 = vmatmul.f32.gmra.mxu0 %v453
    %v1510 = vpop.f32.mrf.mxu0
    %v1511 = vadd.f32 %v1308, %v1510
    %1512 = vmatmul.f32.gmra.mxu0 %v460
    %v1513 = vpop.f32.mrf.mxu0
    %v1514 = vadd.f32 %v1311, %v1513
    %1515 = vmatmul.f32.gmra.mxu0 %v467
    %v1516 = vpop.f32.mrf.mxu0
    %v1517 = vadd.f32 %v1314, %v1516
    %1518 = vmatmul.f32.gmra.mxu0 %v474
    %v1519 = vpop.f32.mrf.mxu0
    %v1520 = vadd.f32 %v1317, %v1519
    %1521 = vmatmul.f32.gmra.mxu0 %v481
    %v1522 = vpop.f32.mrf.mxu0
    %v1523 = vadd.f32 %v1320, %v1522
    %1524 = vmatmul.f32.gmra.mxu0 %v488
    %v1525 = vpop.f32.mrf.mxu0
    %v1526 = vadd.f32 %v1323, %v1525
    %1527 = vmatmul.f32.gmra.mxu0 %v495
    %v1528 = vpop.f32.mrf.mxu0
    %v1529 = vadd.f32 %v1326, %v1528
    %1530 = vmatmul.f32.gmra.mxu0 %v502
    %v1531 = vpop.f32.mrf.mxu0
    %v1532 = vadd.f32 %v1329, %v1531
    %1533 = vmatmul.f32.gmra.mxu0 %v509
    %v1534 = vpop.f32.mrf.mxu0
    %v1535 = vadd.f32 %v1332, %v1534
    %1536 = vmatmul.f32.gmra.mxu0 %v516
    %v1537 = vpop.f32.mrf.mxu0
    %v1538 = vadd.f32 %v1335, %v1537
    %1539 = vmatmul.f32.gmra.mxu0 %v523
    %v1540 = vpop.f32.mrf.mxu0
    %v1541 = vadd.f32 %v1338, %v1540
    %1542 = vmatmul.f32.gmra.mxu0 %v530
    %v1543 = vpop.f32.mrf.mxu0
    %v1544 = vadd.f32 %v1341, %v1543
    %1545 = vmatmul.f32.gmra.mxu0 %v537
    %v1546 = vpop.f32.mrf.mxu0
    %v1547 = vadd.f32 %v1344, %v1546
    %1548 = vmatmul.f32.gmra.mxu0 %v544
    %v1549 = vpop.f32.mrf.mxu0
    %v1550 = vadd.f32 %v1347, %v1549
    %1551 = vmatmul.f32.gmra.mxu0 %v551
    %v1552 = vpop.f32.mrf.mxu0
    %v1553 = vadd.f32 %v1350, %v1552
    %1554 = vdwg.mxu0
    %1555 = vmatpush.msra.mxu0 %v99
    %1556 = vmatpush.msra.mxu0 %v98
    %1557 = vmatpush.msra.mxu0 %v97
    %1558 = vmatpush.msra.mxu0 %v96
    %1559 = vmatpush.msra.mxu0 %v95
    %1560 = vmatpush.msra.mxu0 %v94
    %1561 = vmatpush.msra.mxu0 %v93
    %1562 = vmatpush.msra.mxu0 %v92
    %1563 = vmatpush.msra.mxu0 %v91
    %1564 = vmatpush.msra.mxu0 %v90
    %1565 = vmatpush.msra.mxu0 %v89
    %1566 = vmatpush.msra.mxu0 %v88
    %1567 = vmatpush.msra.mxu0 %v87
    %1568 = vmatpush.msra.mxu0 %v86
    %1569 = vmatpush.msra.mxu0 %v85
    %1570 = vmatpush.msra.mxu0 %v84
    %1571 = vmatmul.f32.gmra.mxu0 %v125
    %v1572 = vpop.f32.mrf.mxu0
    %v1573 = vadd.f32 %v1370, %v1572
    %1574 = vmatmul.f32.gmra.mxu0 %v132
    %v1575 = vpop.f32.mrf.mxu0
    %v1576 = vadd.f32 %v1373, %v1575
    %1577 = vmatmul.f32.gmra.mxu0 %v139
    %v1578 = vpop.f32.mrf.mxu0
    %v1579 = vadd.f32 %v1376, %v1578
    %1580 = vmatmul.f32.gmra.mxu0 %v146
    %v1581 = vpop.f32.mrf.mxu0
    %v1582 = vadd.f32 %v1379, %v1581
    %1583 = vmatmul.f32.gmra.mxu0 %v153
    %v1584 = vpop.f32.mrf.mxu0
    %v1585 = vadd.f32 %v1382, %v1584
    %1586 = vmatmul.f32.gmra.mxu0 %v160
    %v1587 = vpop.f32.mrf.mxu0
    %v1588 = vadd.f32 %v1385, %v1587
    %1589 = vmatmul.f32.gmra.mxu0 %v167
    %v1590 = vpop.f32.mrf.mxu0
    %v1591 = vadd.f32 %v1388, %v1590
    %1592 = vmatmul.f32.gmra.mxu0 %v174
    %v1593 = vpop.f32.mrf.mxu0
    %v1594 = vadd.f32 %v1391, %v1593
    %1595 = vmatmul.f32.gmra.mxu0 %v181
    %v1596 = vpop.f32.mrf.mxu0
    %v1597 = vadd.f32 %v1394, %v1596
    %1598 = vmatmul.f32.gmra.mxu0 %v188
    %v1599 = vpop.f32.mrf.mxu0
    %v1600 = vadd.f32 %v1397, %v1599
    %1601 = vmatmul.f32.gmra.mxu0 %v195
    %v1602 = vpop.f32.mrf.mxu0
    %v1603 = vadd.f32 %v1400, %v1602
    %1604 = vmatmul.f32.gmra.mxu0 %v202
    %v1605 = vpop.f32.mrf.mxu0
    %v1606 = vadd.f32 %v1403, %v1605
    %1607 = vmatmul.f32.gmra.mxu0 %v209
    %v1608 = vpop.f32.mrf.mxu0
    %v1609 = vadd.f32 %v1406, %v1608
    %1610 = vmatmul.f32.gmra.mxu0 %v216
    %v1611 = vpop.f32.mrf.mxu0
    %v1612 = vadd.f32 %v1409, %v1611
    %1613 = vmatmul.f32.gmra.mxu0 %v223
    %v1614 = vpop.f32.mrf.mxu0
    %v1615 = vadd.f32 %v1412, %v1614
    %1616 = vmatmul.f32.gmra.mxu0 %v230
    %v1617 = vpop.f32.mrf.mxu0
    %v1618 = vadd.f32 %v1415, %v1617
    %1619 = vmatmul.f32.gmra.mxu0 %v237
    %v1620 = vpop.f32.mrf.mxu0
    %v1621 = vadd.f32 %v1418, %v1620
    %1622 = vmatmul.f32.gmra.mxu0 %v244
    %v1623 = vpop.f32.mrf.mxu0
    %v1624 = vadd.f32 %v1421, %v1623
    %1625 = vmatmul.f32.gmra.mxu0 %v251
    %v1626 = vpop.f32.mrf.mxu0
    %v1627 = vadd.f32 %v1424, %v1626
    %1628 = vmatmul.f32.gmra.mxu0 %v258
    %v1629 = vpop.f32.mrf.mxu0
    %v1630 = vadd.f32 %v1427, %v1629
    %1631 = vmatmul.f32.gmra.mxu0 %v265
    %v1632 = vpop.f32.mrf.mxu0
    %v1633 = vadd.f32 %v1430, %v1632
    %1634 = vmatmul.f32.gmra.mxu0 %v272
    %v1635 = vpop.f32.mrf.mxu0
    %v1636 = vadd.f32 %v1433, %v1635
    %1637 = vmatmul.f32.gmra.mxu0 %v279
    %v1638 = vpop.f32.mrf.mxu0
    %v1639 = vadd.f32 %v1436, %v1638
    %1640 = vmatmul.f32.gmra.mxu0 %v286
    %v1641 = vpop.f32.mrf.mxu0
    %v1642 = vadd.f32 %v1439, %v1641
    %1643 = vmatmul.f32.gmra.mxu0 %v293
    %v1644 = vpop.f32.mrf.mxu0
    %v1645 = vadd.f32 %v1442, %v1644
    %1646 = vmatmul.f32.gmra.mxu0 %v300
    %v1647 = vpop.f32.mrf.mxu0
    %v1648 = vadd.f32 %v1445, %v1647
    %1649 = vmatmul.f32.gmra.mxu0 %v307
    %v1650 = vpop.f32.mrf.mxu0
    %v1651 = vadd.f32 %v1448, %v1650
    %1652 = vmatmul.f32.gmra.mxu0 %v314
    %v1653 = vpop.f32.mrf.mxu0
    %v1654 = vadd.f32 %v1451, %v1653
    %1655 = vmatmul.f32.gmra.mxu0 %v321
    %v1656 = vpop.f32.mrf.mxu0
    %v1657 = vadd.f32 %v1454, %v1656
    %1658 = vmatmul.f32.gmra.mxu0 %v328
    %v1659 = vpop.f32.mrf.mxu0
    %v1660 = vadd.f32 %v1457, %v1659
    %1661 = vmatmul.f32.gmra.mxu0 %v335
    %v1662 = vpop.f32.mrf.mxu0
    %v1663 = vadd.f32 %v1460, %v1662
    %1664 = vmatmul.f32.gmra.mxu0 %v342
    %v1665 = vpop.f32.mrf.mxu0
    %v1666 = vadd.f32 %v1463, %v1665
    %1667 = vmatmul.f32.gmra.mxu0 %v349
    %v1668 = vpop.f32.mrf.mxu0
    %v1669 = vadd.f32 %v1466, %v1668
    %1670 = vmatmul.f32.gmra.mxu0 %v356
    %v1671 = vpop.f32.mrf.mxu0
    %v1672 = vadd.f32 %v1469, %v1671
    %1673 = vmatmul.f32.gmra.mxu0 %v363
    %v1674 = vpop.f32.mrf.mxu0
    %v1675 = vadd.f32 %v1472, %v1674
    %1676 = vmatmul.f32.gmra.mxu0 %v370
    %v1677 = vpop.f32.mrf.mxu0
    %v1678 = vadd.f32 %v1475, %v1677
    %1679 = vmatmul.f32.gmra.mxu0 %v377
    %v1680 = vpop.f32.mrf.mxu0
    %v1681 = vadd.f32 %v1478, %v1680
    %1682 = vmatmul.f32.gmra.mxu0 %v384
    %v1683 = vpop.f32.mrf.mxu0
    %v1684 = vadd.f32 %v1481, %v1683
    %1685 = vmatmul.f32.gmra.mxu0 %v391
    %v1686 = vpop.f32.mrf.mxu0
    %v1687 = vadd.f32 %v1484, %v1686
    %1688 = vmatmul.f32.gmra.mxu0 %v398
    %v1689 = vpop.f32.mrf.mxu0
    %v1690 = vadd.f32 %v1487, %v1689
    %1691 = vmatmul.f32.gmra.mxu0 %v405
    %v1692 = vpop.f32.mrf.mxu0
    %v1693 = vadd.f32 %v1490, %v1692
    %1694 = vmatmul.f32.gmra.mxu0 %v412
    %v1695 = vpop.f32.mrf.mxu0
    %v1696 = vadd.f32 %v1493, %v1695
    %1697 = vmatmul.f32.gmra.mxu0 %v419
    %v1698 = vpop.f32.mrf.mxu0
    %v1699 = vadd.f32 %v1496, %v1698
    %1700 = vmatmul.f32.gmra.mxu0 %v426
    %v1701 = vpop.f32.mrf.mxu0
    %v1702 = vadd.f32 %v1499, %v1701
    %1703 = vmatmul.f32.gmra.mxu0 %v433
    %v1704 = vpop.f32.mrf.mxu0
    %v1705 = vadd.f32 %v1502, %v1704
    %1706 = vmatmul.f32.gmra.mxu0 %v440
    %v1707 = vpop.f32.mrf.mxu0
    %v1708 = vadd.f32 %v1505, %v1707
    %1709 = vmatmul.f32.gmra.mxu0 %v447
    %v1710 = vpop.f32.mrf.mxu0
    %v1711 = vadd.f32 %v1508, %v1710
    %1712 = vmatmul.f32.gmra.mxu0 %v454
    %v1713 = vpop.f32.mrf.mxu0
    %v1714 = vadd.f32 %v1511, %v1713
    %1715 = vmatmul.f32.gmra.mxu0 %v461
    %v1716 = vpop.f32.mrf.mxu0
    %v1717 = vadd.f32 %v1514, %v1716
    %1718 = vmatmul.f32.gmra.mxu0 %v468
    %v1719 = vpop.f32.mrf.mxu0
    %v1720 = vadd.f32 %v1517, %v1719
    %1721 = vmatmul.f32.gmra.mxu0 %v475
    %v1722 = vpop.f32.mrf.mxu0
    %v1723 = vadd.f32 %v1520, %v1722
    %1724 = vmatmul.f32.gmra.mxu0 %v482
    %v1725 = vpop.f32.mrf.mxu0
    %v1726 = vadd.f32 %v1523, %v1725
    %1727 = vmatmul.f32.gmra.mxu0 %v489
    %v1728 = vpop.f32.mrf.mxu0
    %v1729 = vadd.f32 %v1526, %v1728
    %1730 = vmatmul.f32.gmra.mxu0 %v496
    %v1731 = vpop.f32.mrf.mxu0
    %v1732 = vadd.f32 %v1529, %v1731
    %1733 = vmatmul.f32.gmra.mxu0 %v503
    %v1734 = vpop.f32.mrf.mxu0
    %v1735 = vadd.f32 %v1532, %v1734
    %1736 = vmatmul.f32.gmra.mxu0 %v510
    %v1737 = vpop.f32.mrf.mxu0
    %v1738 = vadd.f32 %v1535, %v1737
    %1739 = vmatmul.f32.gmra.mxu0 %v517
    %v1740 = vpop.f32.mrf.mxu0
    %v1741 = vadd.f32 %v1538, %v1740
    %1742 = vmatmul.f32.gmra.mxu0 %v524
    %v1743 = vpop.f32.mrf.mxu0
    %v1744 = vadd.f32 %v1541, %v1743
    %1745 = vmatmul.f32.gmra.mxu0 %v531
    %v1746 = vpop.f32.mrf.mxu0
    %v1747 = vadd.f32 %v1544, %v1746
    %1748 = vmatmul.f32.gmra.mxu0 %v538
    %v1749 = vpop.f32.mrf.mxu0
    %v1750 = vadd.f32 %v1547, %v1749
    %1751 = vmatmul.f32.gmra.mxu0 %v545
    %v1752 = vpop.f32.mrf.mxu0
    %v1753 = vadd.f32 %v1550, %v1752
    %1754 = vmatmul.f32.gmra.mxu0 %v552
    %v1755 = vpop.f32.mrf.mxu0
    %v1756 = vadd.f32 %v1553, %v1755
    %1757 = vdwg.mxu0
    %1758 = vmatpush.msra.mxu0 %v115
    %1759 = vmatpush.msra.mxu0 %v114
    %1760 = vmatpush.msra.mxu0 %v113
    %1761 = vmatpush.msra.mxu0 %v112
    %1762 = vmatpush.msra.mxu0 %v111
    %1763 = vmatpush.msra.mxu0 %v110
    %1764 = vmatpush.msra.mxu0 %v109
    %1765 = vmatpush.msra.mxu0 %v108
    %1766 = vmatpush.msra.mxu0 %v107
    %1767 = vmatpush.msra.mxu0 %v106
    %1768 = vmatpush.msra.mxu0 %v105
    %1769 = vmatpush.msra.mxu0 %v104
    %1770 = vmatpush.msra.mxu0 %v103
    %1771 = vmatpush.msra.mxu0 %v102
    %1772 = vmatpush.msra.mxu0 %v101
    %1773 = vmatpush.msra.mxu0 %v100
    %1774 = vmatmul.f32.gmra.mxu0 %v126
    %v1775 = vpop.f32.mrf.mxu0
    %v1776 = vadd.f32 %v1573, %v1775
    %1777 = vmatmul.f32.gmra.mxu0 %v133
    %v1778 = vpop.f32.mrf.mxu0
    %v1779 = vadd.f32 %v1576, %v1778
    %1780 = vmatmul.f32.gmra.mxu0 %v140
    %v1781 = vpop.f32.mrf.mxu0
    %v1782 = vadd.f32 %v1579, %v1781
    %1783 = vmatmul.f32.gmra.mxu0 %v147
    %v1784 = vpop.f32.mrf.mxu0
    %v1785 = vadd.f32 %v1582, %v1784
    %1786 = vmatmul.f32.gmra.mxu0 %v154
    %v1787 = vpop.f32.mrf.mxu0
    %v1788 = vadd.f32 %v1585, %v1787
    %1789 = vmatmul.f32.gmra.mxu0 %v161
    %v1790 = vpop.f32.mrf.mxu0
    %v1791 = vadd.f32 %v1588, %v1790
    %1792 = vmatmul.f32.gmra.mxu0 %v168
    %v1793 = vpop.f32.mrf.mxu0
    %v1794 = vadd.f32 %v1591, %v1793
    %1795 = vmatmul.f32.gmra.mxu0 %v175
    %v1796 = vpop.f32.mrf.mxu0
    %v1797 = vadd.f32 %v1594, %v1796
    %1798 = vmatmul.f32.gmra.mxu0 %v182
    %v1799 = vpop.f32.mrf.mxu0
    %v1800 = vadd.f32 %v1597, %v1799
    %1801 = vmatmul.f32.gmra.mxu0 %v189
    %v1802 = vpop.f32.mrf.mxu0
    %v1803 = vadd.f32 %v1600, %v1802
    %1804 = vmatmul.f32.gmra.mxu0 %v196
    %v1805 = vpop.f32.mrf.mxu0
    %v1806 = vadd.f32 %v1603, %v1805
    %1807 = vmatmul.f32.gmra.mxu0 %v203
    %v1808 = vpop.f32.mrf.mxu0
    %v1809 = vadd.f32 %v1606, %v1808
    %1810 = vmatmul.f32.gmra.mxu0 %v210
    %v1811 = vpop.f32.mrf.mxu0
    %v1812 = vadd.f32 %v1609, %v1811
    %1813 = vmatmul.f32.gmra.mxu0 %v217
    %v1814 = vpop.f32.mrf.mxu0
    %v1815 = vadd.f32 %v1612, %v1814
    %1816 = vmatmul.f32.gmra.mxu0 %v224
    %v1817 = vpop.f32.mrf.mxu0
    %v1818 = vadd.f32 %v1615, %v1817
    %1819 = vmatmul.f32.gmra.mxu0 %v231
    %v1820 = vpop.f32.mrf.mxu0
    %v1821 = vadd.f32 %v1618, %v1820
    %1822 = vmatmul.f32.gmra.mxu0 %v238
    %v1823 = vpop.f32.mrf.mxu0
    %v1824 = vadd.f32 %v1621, %v1823
    %1825 = vmatmul.f32.gmra.mxu0 %v245
    %v1826 = vpop.f32.mrf.mxu0
    %v1827 = vadd.f32 %v1624, %v1826
    %1828 = vmatmul.f32.gmra.mxu0 %v252
    %v1829 = vpop.f32.mrf.mxu0
    %v1830 = vadd.f32 %v1627, %v1829
    %1831 = vmatmul.f32.gmra.mxu0 %v259
    %v1832 = vpop.f32.mrf.mxu0
    %v1833 = vadd.f32 %v1630, %v1832
    %1834 = vmatmul.f32.gmra.mxu0 %v266
    %v1835 = vpop.f32.mrf.mxu0
    %v1836 = vadd.f32 %v1633, %v1835
    %1837 = vmatmul.f32.gmra.mxu0 %v273
    %v1838 = vpop.f32.mrf.mxu0
    %v1839 = vadd.f32 %v1636, %v1838
    %1840 = vmatmul.f32.gmra.mxu0 %v280
    %v1841 = vpop.f32.mrf.mxu0
    %v1842 = vadd.f32 %v1639, %v1841
    %1843 = vmatmul.f32.gmra.mxu0 %v287
    %v1844 = vpop.f32.mrf.mxu0
    %v1845 = vadd.f32 %v1642, %v1844
    %1846 = vmatmul.f32.gmra.mxu0 %v294
    %v1847 = vpop.f32.mrf.mxu0
    %v1848 = vadd.f32 %v1645, %v1847
    %1849 = vmatmul.f32.gmra.mxu0 %v301
    %v1850 = vpop.f32.mrf.mxu0
    %v1851 = vadd.f32 %v1648, %v1850
    %1852 = vmatmul.f32.gmra.mxu0 %v308
    %v1853 = vpop.f32.mrf.mxu0
    %v1854 = vadd.f32 %v1651, %v1853
    %1855 = vmatmul.f32.gmra.mxu0 %v315
    %v1856 = vpop.f32.mrf.mxu0
    %v1857 = vadd.f32 %v1654, %v1856
    %1858 = vmatmul.f32.gmra.mxu0 %v322
    %v1859 = vpop.f32.mrf.mxu0
    %v1860 = vadd.f32 %v1657, %v1859
    %1861 = vmatmul.f32.gmra.mxu0 %v329
    %v1862 = vpop.f32.mrf.mxu0
    %v1863 = vadd.f32 %v1660, %v1862
    %1864 = vmatmul.f32.gmra.mxu0 %v336
    %v1865 = vpop.f32.mrf.mxu0
    %v1866 = vadd.f32 %v1663, %v1865
    %1867 = vmatmul.f32.gmra.mxu0 %v343
    %v1868 = vpop.f32.mrf.mxu0
    %v1869 = vadd.f32 %v1666, %v1868
    %1870 = vmatmul.f32.gmra.mxu0 %v350
    %v1871 = vpop.f32.mrf.mxu0
    %v1872 = vadd.f32 %v1669, %v1871
    %1873 = vmatmul.f32.gmra.mxu0 %v357
    %v1874 = vpop.f32.mrf.mxu0
    %v1875 = vadd.f32 %v1672, %v1874
    %1876 = vmatmul.f32.gmra.mxu0 %v364
    %v1877 = vpop.f32.mrf.mxu0
    %v1878 = vadd.f32 %v1675, %v1877
    %1879 = vmatmul.f32.gmra.mxu0 %v371
    %v1880 = vpop.f32.mrf.mxu0
    %v1881 = vadd.f32 %v1678, %v1880
    %1882 = vmatmul.f32.gmra.mxu0 %v378
    %v1883 = vpop.f32.mrf.mxu0
    %v1884 = vadd.f32 %v1681, %v1883
    %1885 = vmatmul.f32.gmra.mxu0 %v385
    %v1886 = vpop.f32.mrf.mxu0
    %v1887 = vadd.f32 %v1684, %v1886
    %1888 = vmatmul.f32.gmra.mxu0 %v392
    %v1889 = vpop.f32.mrf.mxu0
    %v1890 = vadd.f32 %v1687, %v1889
    %1891 = vmatmul.f32.gmra.mxu0 %v399
    %v1892 = vpop.f32.mrf.mxu0
    %v1893 = vadd.f32 %v1690, %v1892
    %1894 = vmatmul.f32.gmra.mxu0 %v406
    %v1895 = vpop.f32.mrf.mxu0
    %v1896 = vadd.f32 %v1693, %v1895
    %1897 = vmatmul.f32.gmra.mxu0 %v413
    %v1898 = vpop.f32.mrf.mxu0
    %v1899 = vadd.f32 %v1696, %v1898
    %1900 = vmatmul.f32.gmra.mxu0 %v420
    %v1901 = vpop.f32.mrf.mxu0
    %v1902 = vadd.f32 %v1699, %v1901
    %1903 = vmatmul.f32.gmra.mxu0 %v427
    %v1904 = vpop.f32.mrf.mxu0
    %v1905 = vadd.f32 %v1702, %v1904
    %1906 = vmatmul.f32.gmra.mxu0 %v434
    %v1907 = vpop.f32.mrf.mxu0
    %v1908 = vadd.f32 %v1705, %v1907
    %1909 = vmatmul.f32.gmra.mxu0 %v441
    %v1910 = vpop.f32.mrf.mxu0
    %v1911 = vadd.f32 %v1708, %v1910
    %1912 = vmatmul.f32.gmra.mxu0 %v448
    %v1913 = vpop.f32.mrf.mxu0
    %v1914 = vadd.f32 %v1711, %v1913
    %1915 = vmatmul.f32.gmra.mxu0 %v455
    %v1916 = vpop.f32.mrf.mxu0
    %v1917 = vadd.f32 %v1714, %v1916
    %1918 = vmatmul.f32.gmra.mxu0 %v462
    %v1919 = vpop.f32.mrf.mxu0
    %v1920 = vadd.f32 %v1717, %v1919
    %1921 = vmatmul.f32.gmra.mxu0 %v469
    %v1922 = vpop.f32.mrf.mxu0
    %v1923 = vadd.f32 %v1720, %v1922
    %1924 = vmatmul.f32.gmra.mxu0 %v476
    %v1925 = vpop.f32.mrf.mxu0
    %v1926 = vadd.f32 %v1723, %v1925
    %1927 = vmatmul.f32.gmra.mxu0 %v483
    %v1928 = vpop.f32.mrf.mxu0
    %v1929 = vadd.f32 %v1726, %v1928
    %1930 = vmatmul.f32.gmra.mxu0 %v490
    %v1931 = vpop.f32.mrf.mxu0
    %v1932 = vadd.f32 %v1729, %v1931
    %1933 = vmatmul.f32.gmra.mxu0 %v497
    %v1934 = vpop.f32.mrf.mxu0
    %v1935 = vadd.f32 %v1732, %v1934
    %1936 = vmatmul.f32.gmra.mxu0 %v504
    %v1937 = vpop.f32.mrf.mxu0
    %v1938 = vadd.f32 %v1735, %v1937
    %1939 = vmatmul.f32.gmra.mxu0 %v511
    %v1940 = vpop.f32.mrf.mxu0
    %v1941 = vadd.f32 %v1738, %v1940
    %1942 = vmatmul.f32.gmra.mxu0 %v518
    %v1943 = vpop.f32.mrf.mxu0
    %v1944 = vadd.f32 %v1741, %v1943
    %1945 = vmatmul.f32.gmra.mxu0 %v525
    %v1946 = vpop.f32.mrf.mxu0
    %v1947 = vadd.f32 %v1744, %v1946
    %1948 = vmatmul.f32.gmra.mxu0 %v532
    %v1949 = vpop.f32.mrf.mxu0
    %v1950 = vadd.f32 %v1747, %v1949
    %1951 = vmatmul.f32.gmra.mxu0 %v539
    %v1952 = vpop.f32.mrf.mxu0
    %v1953 = vadd.f32 %v1750, %v1952
    %1954 = vmatmul.f32.gmra.mxu0 %v546
    %v1955 = vpop.f32.mrf.mxu0
    %v1956 = vadd.f32 %v1753, %v1955
    %1957 = vmatmul.f32.gmra.mxu0 %v553
    %v1958 = vpop.f32.mrf.mxu0
    %v1959 = vadd.f32 %v1756, %v1958
    %1960 = vdwg.mxu0
    %1961 = vmatpush.msra.mxu0 0.0
    %1962 = vmatpush.msra.mxu0 0.0
    %1963 = vmatpush.msra.mxu0 0.0
    %1964 = vmatpush.msra.mxu0 0.0
    %1965 = vmatpush.msra.mxu0 0.0
    %1966 = vmatpush.msra.mxu0 0.0
    %1967 = vmatpush.msra.mxu0 0.0
    %1968 = vmatpush.msra.mxu0 0.0
    %1969 = vmatpush.msra.mxu0 0.0
    %1970 = vmatpush.msra.mxu0 0.0
    %1971 = vmatpush.msra.mxu0 0.0
    %1972 = vmatpush.msra.mxu0 0.0
    %1973 = vmatpush.msra.mxu0 %v119
    %1974 = vmatpush.msra.mxu0 %v118
    %1975 = vmatpush.msra.mxu0 %v117
    %1976 = vmatpush.msra.mxu0 %v116
    %1977 = vmatmul.f32.gmra.mxu0 %v558
    %v1978 = vpop.f32.mrf.mxu0
    %v1979 = vadd.f32 %v1776, %v1978
    %1980 = vmatmul.f32.gmra.mxu0 %v561
    %v1981 = vpop.f32.mrf.mxu0
    %v1982 = vadd.f32 %v1779, %v1981
    %1983 = vmatmul.f32.gmra.mxu0 %v564
    %v1984 = vpop.f32.mrf.mxu0
    %v1985 = vadd.f32 %v1782, %v1984
    %1986 = vmatmul.f32.gmra.mxu0 %v567
    %v1987 = vpop.f32.mrf.mxu0
    %v1988 = vadd.f32 %v1785, %v1987
    %1989 = vmatmul.f32.gmra.mxu0 %v570
    %v1990 = vpop.f32.mrf.mxu0
    %v1991 = vadd.f32 %v1788, %v1990
    %1992 = vmatmul.f32.gmra.mxu0 %v573
    %v1993 = vpop.f32.mrf.mxu0
    %v1994 = vadd.f32 %v1791, %v1993
    %1995 = vmatmul.f32.gmra.mxu0 %v576
    %v1996 = vpop.f32.mrf.mxu0
    %v1997 = vadd.f32 %v1794, %v1996
    %1998 = vmatmul.f32.gmra.mxu0 %v579
    %v1999 = vpop.f32.mrf.mxu0
    %v2000 = vadd.f32 %v1797, %v1999
    %2001 = vmatmul.f32.gmra.mxu0 %v582
    %v2002 = vpop.f32.mrf.mxu0
    %v2003 = vadd.f32 %v1800, %v2002
    %2004 = vmatmul.f32.gmra.mxu0 %v585
    %v2005 = vpop.f32.mrf.mxu0
    %v2006 = vadd.f32 %v1803, %v2005
    %2007 = vmatmul.f32.gmra.mxu0 %v588
    %v2008 = vpop.f32.mrf.mxu0
    %v2009 = vadd.f32 %v1806, %v2008
    %2010 = vmatmul.f32.gmra.mxu0 %v591
    %v2011 = vpop.f32.mrf.mxu0
    %v2012 = vadd.f32 %v1809, %v2011
    %2013 = vmatmul.f32.gmra.mxu0 %v594
    %v2014 = vpop.f32.mrf.mxu0
    %v2015 = vadd.f32 %v1812, %v2014
    %2016 = vmatmul.f32.gmra.mxu0 %v597
    %v2017 = vpop.f32.mrf.mxu0
    %v2018 = vadd.f32 %v1815, %v2017
    %2019 = vmatmul.f32.gmra.mxu0 %v600
    %v2020 = vpop.f32.mrf.mxu0
    %v2021 = vadd.f32 %v1818, %v2020
    %2022 = vmatmul.f32.gmra.mxu0 %v603
    %v2023 = vpop.f32.mrf.mxu0
    %v2024 = vadd.f32 %v1821, %v2023
    %2025 = vmatmul.f32.gmra.mxu0 %v606
    %v2026 = vpop.f32.mrf.mxu0
    %v2027 = vadd.f32 %v1824, %v2026
    %2028 = vmatmul.f32.gmra.mxu0 %v609
    %v2029 = vpop.f32.mrf.mxu0
    %v2030 = vadd.f32 %v1827, %v2029
    %2031 = vmatmul.f32.gmra.mxu0 %v612
    %v2032 = vpop.f32.mrf.mxu0
    %v2033 = vadd.f32 %v1830, %v2032
    %2034 = vmatmul.f32.gmra.mxu0 %v615
    %v2035 = vpop.f32.mrf.mxu0
    %v2036 = vadd.f32 %v1833, %v2035
    %2037 = vmatmul.f32.gmra.mxu0 %v618
    %v2038 = vpop.f32.mrf.mxu0
    %v2039 = vadd.f32 %v1836, %v2038
    %2040 = vmatmul.f32.gmra.mxu0 %v621
    %v2041 = vpop.f32.mrf.mxu0
    %v2042 = vadd.f32 %v1839, %v2041
    %2043 = vmatmul.f32.gmra.mxu0 %v624
    %v2044 = vpop.f32.mrf.mxu0
    %v2045 = vadd.f32 %v1842, %v2044
    %2046 = vmatmul.f32.gmra.mxu0 %v627
    %v2047 = vpop.f32.mrf.mxu0
    %v2048 = vadd.f32 %v1845, %v2047
    %2049 = vmatmul.f32.gmra.mxu0 %v630
    %v2050 = vpop.f32.mrf.mxu0
    %v2051 = vadd.f32 %v1848, %v2050
    %2052 = vmatmul.f32.gmra.mxu0 %v633
    %v2053 = vpop.f32.mrf.mxu0
    %v2054 = vadd.f32 %v1851, %v2053
    %2055 = vmatmul.f32.gmra.mxu0 %v636
    %v2056 = vpop.f32.mrf.mxu0
    %v2057 = vadd.f32 %v1854, %v2056
    %2058 = vmatmul.f32.gmra.mxu0 %v639
    %v2059 = vpop.f32.mrf.mxu0
    %v2060 = vadd.f32 %v1857, %v2059
    %2061 = vmatmul.f32.gmra.mxu0 %v642
    %v2062 = vpop.f32.mrf.mxu0
    %v2063 = vadd.f32 %v1860, %v2062
    %2064 = vmatmul.f32.gmra.mxu0 %v645
    %v2065 = vpop.f32.mrf.mxu0
    %v2066 = vadd.f32 %v1863, %v2065
    %2067 = vmatmul.f32.gmra.mxu0 %v648
    %v2068 = vpop.f32.mrf.mxu0
    %v2069 = vadd.f32 %v1866, %v2068
    %2070 = vmatmul.f32.gmra.mxu0 %v651
    %v2071 = vpop.f32.mrf.mxu0
    %v2072 = vadd.f32 %v1869, %v2071
    %2073 = vmatmul.f32.gmra.mxu0 %v654
    %v2074 = vpop.f32.mrf.mxu0
    %v2075 = vadd.f32 %v1872, %v2074
    %2076 = vmatmul.f32.gmra.mxu0 %v657
    %v2077 = vpop.f32.mrf.mxu0
    %v2078 = vadd.f32 %v1875, %v2077
    %2079 = vmatmul.f32.gmra.mxu0 %v660
    %v2080 = vpop.f32.mrf.mxu0
    %v2081 = vadd.f32 %v1878, %v2080
    %2082 = vmatmul.f32.gmra.mxu0 %v663
    %v2083 = vpop.f32.mrf.mxu0
    %v2084 = vadd.f32 %v1881, %v2083
    %2085 = vmatmul.f32.gmra.mxu0 %v666
    %v2086 = vpop.f32.mrf.mxu0
    %v2087 = vadd.f32 %v1884, %v2086
    %2088 = vmatmul.f32.gmra.mxu0 %v669
    %v2089 = vpop.f32.mrf.mxu0
    %v2090 = vadd.f32 %v1887, %v2089
    %2091 = vmatmul.f32.gmra.mxu0 %v672
    %v2092 = vpop.f32.mrf.mxu0
    %v2093 = vadd.f32 %v1890, %v2092
    %2094 = vmatmul.f32.gmra.mxu0 %v675
    %v2095 = vpop.f32.mrf.mxu0
    %v2096 = vadd.f32 %v1893, %v2095
    %2097 = vmatmul.f32.gmra.mxu0 %v678
    %v2098 = vpop.f32.mrf.mxu0
    %v2099 = vadd.f32 %v1896, %v2098
    %2100 = vmatmul.f32.gmra.mxu0 %v681
    %v2101 = vpop.f32.mrf.mxu0
    %v2102 = vadd.f32 %v1899, %v2101
    %2103 = vmatmul.f32.gmra.mxu0 %v684
    %v2104 = vpop.f32.mrf.mxu0
    %v2105 = vadd.f32 %v1902, %v2104
    %2106 = vmatmul.f32.gmra.mxu0 %v687
    %v2107 = vpop.f32.mrf.mxu0
    %v2108 = vadd.f32 %v1905, %v2107
    %2109 = vmatmul.f32.gmra.mxu0 %v690
    %v2110 = vpop.f32.mrf.mxu0
    %v2111 = vadd.f32 %v1908, %v2110
    %2112 = vmatmul.f32.gmra.mxu0 %v693
    %v2113 = vpop.f32.mrf.mxu0
    %v2114 = vadd.f32 %v1911, %v2113
    %2115 = vmatmul.f32.gmra.mxu0 %v696
    %v2116 = vpop.f32.mrf.mxu0
    %v2117 = vadd.f32 %v1914, %v2116
    %2118 = vmatmul.f32.gmra.mxu0 %v699
    %v2119 = vpop.f32.mrf.mxu0
    %v2120 = vadd.f32 %v1917, %v2119
    %2121 = vmatmul.f32.gmra.mxu0 %v702
    %v2122 = vpop.f32.mrf.mxu0
    %v2123 = vadd.f32 %v1920, %v2122
    %2124 = vmatmul.f32.gmra.mxu0 %v705
    %v2125 = vpop.f32.mrf.mxu0
    %v2126 = vadd.f32 %v1923, %v2125
    %2127 = vmatmul.f32.gmra.mxu0 %v708
    %v2128 = vpop.f32.mrf.mxu0
    %v2129 = vadd.f32 %v1926, %v2128
    %2130 = vmatmul.f32.gmra.mxu0 %v711
    %v2131 = vpop.f32.mrf.mxu0
    %v2132 = vadd.f32 %v1929, %v2131
    %2133 = vmatmul.f32.gmra.mxu0 %v714
    %v2134 = vpop.f32.mrf.mxu0
    %v2135 = vadd.f32 %v1932, %v2134
    %2136 = vmatmul.f32.gmra.mxu0 %v717
    %v2137 = vpop.f32.mrf.mxu0
    %v2138 = vadd.f32 %v1935, %v2137
    %2139 = vmatmul.f32.gmra.mxu0 %v720
    %v2140 = vpop.f32.mrf.mxu0
    %v2141 = vadd.f32 %v1938, %v2140
    %2142 = vmatmul.f32.gmra.mxu0 %v723
    %v2143 = vpop.f32.mrf.mxu0
    %v2144 = vadd.f32 %v1941, %v2143
    %2145 = vmatmul.f32.gmra.mxu0 %v726
    %v2146 = vpop.f32.mrf.mxu0
    %v2147 = vadd.f32 %v1944, %v2146
    %2148 = vmatmul.f32.gmra.mxu0 %v729
    %v2149 = vpop.f32.mrf.mxu0
    %v2150 = vadd.f32 %v1947, %v2149
    %2151 = vmatmul.f32.gmra.mxu0 %v732
    %v2152 = vpop.f32.mrf.mxu0
    %v2153 = vadd.f32 %v1950, %v2152
    %2154 = vmatmul.f32.gmra.mxu0 %v735
    %v2155 = vpop.f32.mrf.mxu0
    %v2156 = vadd.f32 %v1953, %v2155
    %2157 = vmatmul.f32.gmra.mxu0 %v738
    %v2158 = vpop.f32.mrf.mxu0
    %v2159 = vadd.f32 %v1956, %v2158
    %2160 = vmatmul.f32.gmra.mxu0 %v741
    %v2161 = vpop.f32.mrf.mxu0
    %v2162 = vadd.f32 %v1959, %v2161
    %2163 = vdwg.mxu0
    %vm2164 = vcmp.gt.f32.partialorder %v1979, 0.0
    %vm2165 = vcmp.gt.f32.partialorder %v1982, 0.0
    %vm2166 = vcmp.gt.f32.partialorder %v1985, 0.0
    %vm2167 = vcmp.gt.f32.partialorder %v1988, 0.0
    %vm2168 = vcmp.gt.f32.partialorder %v1991, 0.0
    %vm2169 = vcmp.gt.f32.partialorder %v1994, 0.0
    %vm2170 = vcmp.gt.f32.partialorder %v1997, 0.0
    %vm2171 = vcmp.gt.f32.partialorder %v2000, 0.0
    %vm2172 = vcmp.gt.f32.partialorder %v2003, 0.0
    %vm2173 = vcmp.gt.f32.partialorder %v2006, 0.0
    %vm2174 = vcmp.gt.f32.partialorder %v2009, 0.0
    %vm2175 = vcmp.gt.f32.partialorder %v2012, 0.0
    %vm2176 = vcmp.gt.f32.partialorder %v2015, 0.0
    %vm2177 = vcmp.gt.f32.partialorder %v2018, 0.0
    %vm2178 = vcmp.gt.f32.partialorder %v2021, 0.0
    %vm2179 = vcmp.gt.f32.partialorder %v2024, 0.0
    %vm2180 = vcmp.gt.f32.partialorder %v2027, 0.0
    %vm2181 = vcmp.gt.f32.partialorder %v2030, 0.0
    %vm2182 = vcmp.gt.f32.partialorder %v2033, 0.0
    %vm2183 = vcmp.gt.f32.partialorder %v2036, 0.0
    %vm2184 = vcmp.gt.f32.partialorder %v2039, 0.0
    %vm2185 = vcmp.gt.f32.partialorder %v2042, 0.0
    %vm2186 = vcmp.gt.f32.partialorder %v2045, 0.0
    %vm2187 = vcmp.gt.f32.partialorder %v2048, 0.0
    %vm2188 = vcmp.gt.f32.partialorder %v2051, 0.0
    %vm2189 = vcmp.gt.f32.partialorder %v2054, 0.0
    %vm2190 = vcmp.gt.f32.partialorder %v2057, 0.0
    %vm2191 = vcmp.gt.f32.partialorder %v2060, 0.0
    %vm2192 = vcmp.gt.f32.partialorder %v2063, 0.0
    %vm2193 = vcmp.gt.f32.partialorder %v2066, 0.0
    %vm2194 = vcmp.gt.f32.partialorder %v2069, 0.0
    %vm2195 = vcmp.gt.f32.partialorder %v2072, 0.0
    %vm2196 = vcmp.gt.f32.partialorder %v2075, 0.0
    %vm2197 = vcmp.gt.f32.partialorder %v2078, 0.0
    %vm2198 = vcmp.gt.f32.partialorder %v2081, 0.0
    %vm2199 = vcmp.gt.f32.partialorder %v2084, 0.0
    %vm2200 = vcmp.gt.f32.partialorder %v2087, 0.0
    %vm2201 = vcmp.gt.f32.partialorder %v2090, 0.0
    %vm2202 = vcmp.gt.f32.partialorder %v2093, 0.0
    %vm2203 = vcmp.gt.f32.partialorder %v2096, 0.0
    %vm2204 = vcmp.gt.f32.partialorder %v2099, 0.0
    %vm2205 = vcmp.gt.f32.partialorder %v2102, 0.0
    %vm2206 = vcmp.gt.f32.partialorder %v2105, 0.0
    %vm2207 = vcmp.gt.f32.partialorder %v2108, 0.0
    %vm2208 = vcmp.gt.f32.partialorder %v2111, 0.0
    %vm2209 = vcmp.gt.f32.partialorder %v2114, 0.0
    %vm2210 = vcmp.gt.f32.partialorder %v2117, 0.0
    %vm2211 = vcmp.gt.f32.partialorder %v2120, 0.0
    %vm2212 = vcmp.gt.f32.partialorder %v2123, 0.0
    %vm2213 = vcmp.gt.f32.partialorder %v2126, 0.0
    %vm2214 = vcmp.gt.f32.partialorder %v2129, 0.0
    %vm2215 = vcmp.gt.f32.partialorder %v2132, 0.0
    %vm2216 = vcmp.gt.f32.partialorder %v2135, 0.0
    %vm2217 = vcmp.gt.f32.partialorder %v2138, 0.0
    %vm2218 = vcmp.gt.f32.partialorder %v2141, 0.0
    %vm2219 = vcmp.gt.f32.partialorder %v2144, 0.0
    %vm2220 = vcmp.gt.f32.partialorder %v2147, 0.0
    %vm2221 = vcmp.gt.f32.partialorder %v2150, 0.0
    %vm2222 = vcmp.gt.f32.partialorder %v2153, 0.0
    %vm2223 = vcmp.gt.f32.partialorder %v2156, 0.0
    %vm2224 = vcmp.gt.f32.partialorder %v2159, 0.0
    %vm2225 = vcmp.gt.f32.partialorder %v2162, 0.0
    %v2226 = vmul.f32 %v1979, 0.01
    %v2227 = vmul.f32 %v1982, 0.01
    %v2228 = vmul.f32 %v1985, 0.01
    %v2229 = vmul.f32 %v1988, 0.01
    %v2230 = vmul.f32 %v1991, 0.01
    %v2231 = vmul.f32 %v1994, 0.01
    %v2232 = vmul.f32 %v1997, 0.01
    %v2233 = vmul.f32 %v2000, 0.01
    %v2234 = vmul.f32 %v2003, 0.01
    %v2235 = vmul.f32 %v2006, 0.01
    %v2236 = vmul.f32 %v2009, 0.01
    %v2237 = vmul.f32 %v2012, 0.01
    %v2238 = vmul.f32 %v2015, 0.01
    %v2239 = vmul.f32 %v2018, 0.01
    %v2240 = vmul.f32 %v2021, 0.01
    %v2241 = vmul.f32 %v2024, 0.01
    %v2242 = vmul.f32 %v2027, 0.01
    %v2243 = vmul.f32 %v2030, 0.01
    %v2244 = vmul.f32 %v2033, 0.01
    %v2245 = vmul.f32 %v2036, 0.01
    %v2246 = vmul.f32 %v2039, 0.01
    %v2247 = vmul.f32 %v2042, 0.01
    %v2248 = vmul.f32 %v2045, 0.01
    %v2249 = vmul.f32 %v2048, 0.01
    %v2250 = vmul.f32 %v2051, 0.01
    %v2251 = vmul.f32 %v2054, 0.01
    %v2252 = vmul.f32 %v2057, 0.01
    %v2253 = vmul.f32 %v2060, 0.01
    %v2254 = vmul.f32 %v2063, 0.01
    %v2255 = vmul.f32 %v2066, 0.01
    %v2256 = vmul.f32 %v2069, 0.01
    %v2257 = vmul.f32 %v2072, 0.01
    %v2258 = vmul.f32 %v2075, 0.01
    %v2259 = vmul.f32 %v2078, 0.01
    %v2260 = vmul.f32 %v2081, 0.01
    %v2261 = vmul.f32 %v2084, 0.01
    %v2262 = vmul.f32 %v2087, 0.01
    %v2263 = vmul.f32 %v2090, 0.01
    %v2264 = vmul.f32 %v2093, 0.01
    %v2265 = vmul.f32 %v2096, 0.01
    %v2266 = vmul.f32 %v2099, 0.01
    %v2267 = vmul.f32 %v2102, 0.01
    %v2268 = vmul.f32 %v2105, 0.01
    %v2269 = vmul.f32 %v2108, 0.01
    %v2270 = vmul.f32 %v2111, 0.01
    %v2271 = vmul.f32 %v2114, 0.01
    %v2272 = vmul.f32 %v2117, 0.01
    %v2273 = vmul.f32 %v2120, 0.01
    %v2274 = vmul.f32 %v2123, 0.01
    %v2275 = vmul.f32 %v2126, 0.01
    %v2276 = vmul.f32 %v2129, 0.01
    %v2277 = vmul.f32 %v2132, 0.01
    %v2278 = vmul.f32 %v2135, 0.01
    %v2279 = vmul.f32 %v2138, 0.01
    %v2280 = vmul.f32 %v2141, 0.01
    %v2281 = vmul.f32 %v2144, 0.01
    %v2282 = vmul.f32 %v2147, 0.01
    %v2283 = vmul.f32 %v2150, 0.01
    %v2284 = vmul.f32 %v2153, 0.01
    %v2285 = vmul.f32 %v2156, 0.01
    %v2286 = vmul.f32 %v2159, 0.01
    %v2287 = vmul.f32 %v2162, 0.01
    %v2288 = vsel %vm2164, %v1979, %v2226
    %v2289 = vsel %vm2165, %v1982, %v2227
    %v2290 = vsel %vm2166, %v1985, %v2228
    %v2291 = vsel %vm2167, %v1988, %v2229
    %v2292 = vsel %vm2168, %v1991, %v2230
    %v2293 = vsel %vm2169, %v1994, %v2231
    %v2294 = vsel %vm2170, %v1997, %v2232
    %v2295 = vsel %vm2171, %v2000, %v2233
    %v2296 = vsel %vm2172, %v2003, %v2234
    %v2297 = vsel %vm2173, %v2006, %v2235
    %v2298 = vsel %vm2174, %v2009, %v2236
    %v2299 = vsel %vm2175, %v2012, %v2237
    %v2300 = vsel %vm2176, %v2015, %v2238
    %v2301 = vsel %vm2177, %v2018, %v2239
    %v2302 = vsel %vm2178, %v2021, %v2240
    %v2303 = vsel %vm2179, %v2024, %v2241
    %v2304 = vsel %vm2180, %v2027, %v2242
    %v2305 = vsel %vm2181, %v2030, %v2243
    %v2306 = vsel %vm2182, %v2033, %v2244
    %v2307 = vsel %vm2183, %v2036, %v2245
    %v2308 = vsel %vm2184, %v2039, %v2246
    %v2309 = vsel %vm2185, %v2042, %v2247
    %v2310 = vsel %vm2186, %v2045, %v2248
    %v2311 = vsel %vm2187, %v2048, %v2249
    %v2312 = vsel %vm2188, %v2051, %v2250
    %v2313 = vsel %vm2189, %v2054, %v2251
    %v2314 = vsel %vm2190, %v2057, %v2252
    %v2315 = vsel %vm2191, %v2060, %v2253
    %v2316 = vsel %vm2192, %v2063, %v2254
    %v2317 = vsel %vm2193, %v2066, %v2255
    %v2318 = vsel %vm2194, %v2069, %v2256
    %v2319 = vsel %vm2195, %v2072, %v2257
    %v2320 = vsel %vm2196, %v2075, %v2258
    %v2321 = vsel %vm2197, %v2078, %v2259
    %v2322 = vsel %vm2198, %v2081, %v2260
    %v2323 = vsel %vm2199, %v2084, %v2261
    %v2324 = vsel %vm2200, %v2087, %v2262
    %v2325 = vsel %vm2201, %v2090, %v2263
    %v2326 = vsel %vm2202, %v2093, %v2264
    %v2327 = vsel %vm2203, %v2096, %v2265
    %v2328 = vsel %vm2204, %v2099, %v2266
    %v2329 = vsel %vm2205, %v2102, %v2267
    %v2330 = vsel %vm2206, %v2105, %v2268
    %v2331 = vsel %vm2207, %v2108, %v2269
    %v2332 = vsel %vm2208, %v2111, %v2270
    %v2333 = vsel %vm2209, %v2114, %v2271
    %v2334 = vsel %vm2210, %v2117, %v2272
    %v2335 = vsel %vm2211, %v2120, %v2273
    %v2336 = vsel %vm2212, %v2123, %v2274
    %v2337 = vsel %vm2213, %v2126, %v2275
    %v2338 = vsel %vm2214, %v2129, %v2276
    %v2339 = vsel %vm2215, %v2132, %v2277
    %v2340 = vsel %vm2216, %v2135, %v2278
    %v2341 = vsel %vm2217, %v2138, %v2279
    %v2342 = vsel %vm2218, %v2141, %v2280
    %v2343 = vsel %vm2219, %v2144, %v2281
    %v2344 = vsel %vm2220, %v2147, %v2282
    %v2345 = vsel %vm2221, %v2150, %v2283
    %v2346 = vsel %vm2222, %v2153, %v2284
    %v2347 = vsel %vm2223, %v2156, %v2285
    %v2348 = vsel %vm2224, %v2159, %v2286
    %v2349 = vsel %vm2225, %v2162, %v2287
    %v2350 = vld [vmem:[%s1 + $0x320] sm:$0xff]
    %v2351 = vld [vmem:[%s1 + $0x328] sm:$0xff]
    %v2352 = vld [vmem:[%s1 + $0x330] sm:$0xff]
    %v2353 = vld [vmem:[%s1 + $0x338] sm:$0xff]
    %v2354 = vld [vmem:[%s1 + $0x340] sm:$0xff]
    %v2355 = vld [vmem:[%s1 + $0x348] sm:$0xff]
    %v2356 = vld [vmem:[%s1 + $0x350] sm:$0xff]
    %v2357 = vld [vmem:[%s1 + $0x358] sm:$0xff]
    %v2358 = vld [vmem:[%s1 + $0x360] sm:$0xff]
    %v2359 = vld [vmem:[%s1 + $0x368] sm:$0xff]
    %v2360 = vld [vmem:[%s1 + $0x370] sm:$0xff]
    %v2361 = vld [vmem:[%s1 + $0x378] sm:$0xff]
    %v2362 = vld [vmem:[%s1 + $0x380] sm:$0xff]
    %v2363 = vld [vmem:[%s1 + $0x388] sm:$0xff]
    %v2364 = vld [vmem:[%s1 + $0x390] sm:$0xff]
    %v2365 = vld [vmem:[%s1 + $0x398] sm:$0xff]
    %v2366 = vld [vmem:[%s1 + $0x3a0] sm:$0xff]
    %v2367 = vld [vmem:[%s1 + $0x3a8] sm:$0xff]
    %v2368 = vld [vmem:[%s1 + $0x3b0] sm:$0xff]
    %v2369 = vld [vmem:[%s1 + $0x3b8] sm:$0xff]
    %v2370 = vld [vmem:[%s1 + $0x468] sm:$0x1]
    %v2371 = vld [vmem:[%s1 + $0x3c0] sm:$0xff]
    %v2372 = vld [vmem:[%s1 + $0x3c8] sm:$0xff]
    %v2373 = vld [vmem:[%s1 + $0x3d0] sm:$0xff]
    %v2374 = vld [vmem:[%s1 + $0x3d8] sm:$0xff]
    %v2375 = vld [vmem:[%s1 + $0x3e0] sm:$0xff]
    %v2376 = vld [vmem:[%s1 + $0x3e8] sm:$0xff]
    %v2377 = vld [vmem:[%s1 + $0x3f0] sm:$0xff]
    %v2378 = vld [vmem:[%s1 + $0x3f8] sm:$0xff]
    %v2379 = vld [vmem:[%s1 + $0x400] sm:$0xff]
    %v2380 = vld [vmem:[%s1 + $0x408] sm:$0xff]
    %v2381 = vld [vmem:[%s1 + $0x410] sm:$0xff]
    %v2382 = vld [vmem:[%s1 + $0x418] sm:$0xff]
    %v2383 = vld [vmem:[%s1 + $0x420] sm:$0xff]
    %v2384 = vld [vmem:[%s1 + $0x428] sm:$0xff]
    %v2385 = vld [vmem:[%s1 + $0x430] sm:$0xff]
    %v2386 = vld [vmem:[%s1 + $0x438] sm:$0xff]
    %v2387 = vld [vmem:[%s1 + $0x440] sm:$0xff]
    %v2388 = vld [vmem:[%s1 + $0x448] sm:$0xff]
    %v2389 = vld [vmem:[%s1 + $0x450] sm:$0xff]
    %v2390 = vld [vmem:[%s1 + $0x458] sm:$0xff]
    %v2391 = vld [vmem:[%s1 + $0x470] sm:$0x1]
    %vm2392 = vcmask 130048
    %2393 = vst.msk [vmem:[#allocation2 + $0x1] sm:$0xff] %vm2392, %v2288
    %2394 = vst.msk [vmem:[#allocation2 + $0x9] sm:$0xff] %vm2392, %v2289
    %2395 = vst.msk [vmem:[#allocation2 + $0x11] sm:$0xff] %vm2392, %v2290
    %2396 = vst.msk [vmem:[#allocation2 + $0x19] sm:$0xff] %vm2392, %v2291
    %2397 = vst.msk [vmem:[#allocation2 + $0x21] sm:$0xff] %vm2392, %v2292
    %2398 = vst.msk [vmem:[#allocation2 + $0x29] sm:$0xff] %vm2392, %v2293
    %2399 = vst.msk [vmem:[#allocation2 + $0x31] sm:$0xff] %vm2392, %v2294
    %2400 = vst.msk [vmem:[#allocation2 + $0x39] sm:$0xff] %vm2392, %v2295
    %2401 = vst.msk [vmem:[#allocation2 + $0x41] sm:$0xff] %vm2392, %v2296
    %2402 = vst.msk [vmem:[#allocation2 + $0x49] sm:$0xff] %vm2392, %v2297
    %2403 = vst.msk [vmem:[#allocation2 + $0x51] sm:$0xff] %vm2392, %v2298
    %2404 = vst.msk [vmem:[#allocation2 + $0x59] sm:$0xff] %vm2392, %v2299
    %2405 = vst.msk [vmem:[#allocation2 + $0x61] sm:$0xff] %vm2392, %v2300
    %2406 = vst.msk [vmem:[#allocation2 + $0x69] sm:$0xff] %vm2392, %v2301
    %2407 = vst.msk [vmem:[#allocation2 + $0x71] sm:$0xff] %vm2392, %v2302
    %2408 = vst.msk [vmem:[#allocation2 + $0x79] sm:$0xff] %vm2392, %v2303
    %2409 = vst.msk [vmem:[#allocation2 + $0x81] sm:$0xff] %vm2392, %v2304
    %2410 = vst.msk [vmem:[#allocation2 + $0x89] sm:$0xff] %vm2392, %v2305
    %2411 = vst.msk [vmem:[#allocation2 + $0x91] sm:$0xff] %vm2392, %v2306
    %2412 = vst.msk [vmem:[#allocation2 + $0x99] sm:$0xff] %vm2392, %v2307
    %2413 = vst.msk [vmem:[#allocation2 + $0xa1] sm:$0xff] %vm2392, %v2308
    %2414 = vst.msk [vmem:[#allocation2 + $0xa9] sm:$0xff] %vm2392, %v2309
    %2415 = vst.msk [vmem:[#allocation2 + $0xb1] sm:$0xff] %vm2392, %v2310
    %2416 = vst.msk [vmem:[#allocation2 + $0xb9] sm:$0xff] %vm2392, %v2311
    %2417 = vst.msk [vmem:[#allocation2 + $0xc1] sm:$0xff] %vm2392, %v2312
    %2418 = vst.msk [vmem:[#allocation2 + $0xc9] sm:$0xff] %vm2392, %v2313
    %2419 = vst.msk [vmem:[#allocation2 + $0xd1] sm:$0xff] %vm2392, %v2314
    %2420 = vst.msk [vmem:[#allocation2 + $0xd9] sm:$0xff] %vm2392, %v2315
    %2421 = vst.msk [vmem:[#allocation2 + $0xe1] sm:$0xff] %vm2392, %v2316
    %2422 = vst.msk [vmem:[#allocation2 + $0xe9] sm:$0xff] %vm2392, %v2317
    %vm2423 = vcmask 129024
    %2424 = vst.msk [vmem:[#allocation2 + $0xf1] sm:$0x7f] %vm2423, %v2318
    %v2425 = vld [vmem:[#allocation2] ss:$2 sm:$0xff]
    %s2426 = scalar_lea.vmem [#allocation2], 16
    %v2427 = vld [vmem:[%s2426] ss:$2 sm:$0xff]
    %s2428 = scalar_lea.vmem [#allocation2], 32
    %v2429 = vld [vmem:[%s2428] ss:$2 sm:$0xff]
    %s2430 = scalar_lea.vmem [#allocation2], 48
    %v2431 = vld [vmem:[%s2430] ss:$2 sm:$0xff]
    %s2432 = scalar_lea.vmem [#allocation2], 64
    %v2433 = vld [vmem:[%s2432] ss:$2 sm:$0xff]
    %s2434 = scalar_lea.vmem [#allocation2], 80
    %v2435 = vld [vmem:[%s2434] ss:$2 sm:$0xff]
    %s2436 = scalar_lea.vmem [#allocation2], 96
    %v2437 = vld [vmem:[%s2436] ss:$2 sm:$0xff]
    %s2438 = scalar_lea.vmem [#allocation2], 112
    %v2439 = vld [vmem:[%s2438] ss:$2 sm:$0xff]
    %s2440 = scalar_lea.vmem [#allocation2], 128
    %v2441 = vld [vmem:[%s2440] ss:$2 sm:$0xff]
    %s2442 = scalar_lea.vmem [#allocation2], 144
    %v2443 = vld [vmem:[%s2442] ss:$2 sm:$0xff]
    %s2444 = scalar_lea.vmem [#allocation2], 160
    %v2445 = vld [vmem:[%s2444] ss:$2 sm:$0xff]
    %s2446 = scalar_lea.vmem [#allocation2], 176
    %v2447 = vld [vmem:[%s2446] ss:$2 sm:$0xff]
    %s2448 = scalar_lea.vmem [#allocation2], 192
    %v2449 = vld [vmem:[%s2448] ss:$2 sm:$0xff]
    %s2450 = scalar_lea.vmem [#allocation2], 208
    %v2451 = vld [vmem:[%s2450] ss:$2 sm:$0xff]
    %s2452 = scalar_lea.vmem [#allocation2], 224
    %v2453 = vld [vmem:[%s2452] ss:$2 sm:$0xff]
    %s2454 = scalar_lea.vmem [#allocation2], 1
    %v2455 = vld [vmem:[%s2454] ss:$2 sm:$0xff]
    %s2456 = scalar_lea.vmem [#allocation2], 17
    %v2457 = vld [vmem:[%s2456] ss:$2 sm:$0xff]
    %s2458 = scalar_lea.vmem [#allocation2], 33
    %v2459 = vld [vmem:[%s2458] ss:$2 sm:$0xff]
    %s2460 = scalar_lea.vmem [#allocation2], 49
    %v2461 = vld [vmem:[%s2460] ss:$2 sm:$0xff]
    %s2462 = scalar_lea.vmem [#allocation2], 65
    %v2463 = vld [vmem:[%s2462] ss:$2 sm:$0xff]
    %s2464 = scalar_lea.vmem [#allocation2], 81
    %v2465 = vld [vmem:[%s2464] ss:$2 sm:$0xff]
    %s2466 = scalar_lea.vmem [#allocation2], 97
    %v2467 = vld [vmem:[%s2466] ss:$2 sm:$0xff]
    %s2468 = scalar_lea.vmem [#allocation2], 113
    %v2469 = vld [vmem:[%s2468] ss:$2 sm:$0xff]
    %s2470 = scalar_lea.vmem [#allocation2], 129
    %v2471 = vld [vmem:[%s2470] ss:$2 sm:$0xff]
    %s2472 = scalar_lea.vmem [#allocation2], 145
    %v2473 = vld [vmem:[%s2472] ss:$2 sm:$0xff]
    %s2474 = scalar_lea.vmem [#allocation2], 161
    %v2475 = vld [vmem:[%s2474] ss:$2 sm:$0xff]
    %s2476 = scalar_lea.vmem [#allocation2], 177
    %v2477 = vld [vmem:[%s2476] ss:$2 sm:$0xff]
    %s2478 = scalar_lea.vmem [#allocation2], 193
    %v2479 = vld [vmem:[%s2478] ss:$2 sm:$0xff]
    %s2480 = scalar_lea.vmem [#allocation2], 209
    %v2481 = vld [vmem:[%s2480] ss:$2 sm:$0xff]
    %s2482 = scalar_lea.vmem [#allocation2], 225
    %v2483 = vld [vmem:[%s2482] ss:$2 sm:$0xff]
    %s2484 = scalar_lea.vmem [#allocation2], 2
    %v2485 = vld [vmem:[%s2484] ss:$2 sm:$0xff]
    %s2486 = scalar_lea.vmem [#allocation2], 18
    %v2487 = vld [vmem:[%s2486] ss:$2 sm:$0xff]
    %s2488 = scalar_lea.vmem [#allocation2], 34
    %v2489 = vld [vmem:[%s2488] ss:$2 sm:$0xff]
    %s2490 = scalar_lea.vmem [#allocation2], 50
    %v2491 = vld [vmem:[%s2490] ss:$2 sm:$0xff]
    %s2492 = scalar_lea.vmem [#allocation2], 66
    %v2493 = vld [vmem:[%s2492] ss:$2 sm:$0xff]
    %s2494 = scalar_lea.vmem [#allocation2], 82
    %v2495 = vld [vmem:[%s2494] ss:$2 sm:$0xff]
    %s2496 = scalar_lea.vmem [#allocation2], 98
    %v2497 = vld [vmem:[%s2496] ss:$2 sm:$0xff]
    %s2498 = scalar_lea.vmem [#allocation2], 114
    %v2499 = vld [vmem:[%s2498] ss:$2 sm:$0xff]
    %s2500 = scalar_lea.vmem [#allocation2], 130
    %v2501 = vld [vmem:[%s2500] ss:$2 sm:$0xff]
    %s2502 = scalar_lea.vmem [#allocation2], 146
    %v2503 = vld [vmem:[%s2502] ss:$2 sm:$0xff]
    %s2504 = scalar_lea.vmem [#allocation2], 162
    %v2505 = vld [vmem:[%s2504] ss:$2 sm:$0xff]
    %s2506 = scalar_lea.vmem [#allocation2], 178
    %v2507 = vld [vmem:[%s2506] ss:$2 sm:$0xff]
    %s2508 = scalar_lea.vmem [#allocation2], 194
    %v2509 = vld [vmem:[%s2508] ss:$2 sm:$0xff]
    %s2510 = scalar_lea.vmem [#allocation2], 210
    %v2511 = vld [vmem:[%s2510] ss:$2 sm:$0xff]
    %s2512 = scalar_lea.vmem [#allocation2], 226
    %v2513 = vld [vmem:[%s2512] ss:$2 sm:$0xff]
    %s2514 = scalar_lea.vmem [#allocation2], 3
    %v2515 = vld [vmem:[%s2514] ss:$2 sm:$0xff]
    %s2516 = scalar_lea.vmem [#allocation2], 19
    %v2517 = vld [vmem:[%s2516] ss:$2 sm:$0xff]
    %s2518 = scalar_lea.vmem [#allocation2], 35
    %v2519 = vld [vmem:[%s2518] ss:$2 sm:$0xff]
    %s2520 = scalar_lea.vmem [#allocation2], 51
    %v2521 = vld [vmem:[%s2520] ss:$2 sm:$0xff]
    %s2522 = scalar_lea.vmem [#allocation2], 67
    %v2523 = vld [vmem:[%s2522] ss:$2 sm:$0xff]
    %s2524 = scalar_lea.vmem [#allocation2], 83
    %v2525 = vld [vmem:[%s2524] ss:$2 sm:$0xff]
    %s2526 = scalar_lea.vmem [#allocation2], 99
    %v2527 = vld [vmem:[%s2526] ss:$2 sm:$0xff]
    %s2528 = scalar_lea.vmem [#allocation2], 115
    %v2529 = vld [vmem:[%s2528] ss:$2 sm:$0xff]
    %s2530 = scalar_lea.vmem [#allocation2], 131
    %v2531 = vld [vmem:[%s2530] ss:$2 sm:$0xff]
    %s2532 = scalar_lea.vmem [#allocation2], 147
    %v2533 = vld [vmem:[%s2532] ss:$2 sm:$0xff]
    %s2534 = scalar_lea.vmem [#allocation2], 163
    %v2535 = vld [vmem:[%s2534] ss:$2 sm:$0xff]
    %s2536 = scalar_lea.vmem [#allocation2], 179
    %v2537 = vld [vmem:[%s2536] ss:$2 sm:$0xff]
    %s2538 = scalar_lea.vmem [#allocation2], 195
    %v2539 = vld [vmem:[%s2538] ss:$2 sm:$0xff]
    %s2540 = scalar_lea.vmem [#allocation2], 211
    %v2541 = vld [vmem:[%s2540] ss:$2 sm:$0xff]
    %s2542 = scalar_lea.vmem [#allocation2], 227
    %v2543 = vld [vmem:[%s2542] ss:$2 sm:$0xff]
    %s2544 = scalar_lea.vmem [#allocation2], 4
    %v2545 = vld [vmem:[%s2544] ss:$2 sm:$0xff]
    %s2546 = scalar_lea.vmem [#allocation2], 20
    %v2547 = vld [vmem:[%s2546] ss:$2 sm:$0xff]
    %s2548 = scalar_lea.vmem [#allocation2], 36
    %v2549 = vld [vmem:[%s2548] ss:$2 sm:$0xff]
    %s2550 = scalar_lea.vmem [#allocation2], 52
    %v2551 = vld [vmem:[%s2550] ss:$2 sm:$0xff]
    %s2552 = scalar_lea.vmem [#allocation2], 68
    %v2553 = vld [vmem:[%s2552] ss:$2 sm:$0xff]
    %s2554 = scalar_lea.vmem [#allocation2], 84
    %v2555 = vld [vmem:[%s2554] ss:$2 sm:$0xff]
    %s2556 = scalar_lea.vmem [#allocation2], 100
    %v2557 = vld [vmem:[%s2556] ss:$2 sm:$0xff]
    %s2558 = scalar_lea.vmem [#allocation2], 116
    %v2559 = vld [vmem:[%s2558] ss:$2 sm:$0xff]
    %s2560 = scalar_lea.vmem [#allocation2], 132
    %v2561 = vld [vmem:[%s2560] ss:$2 sm:$0xff]
    %s2562 = scalar_lea.vmem [#allocation2], 148
    %v2563 = vld [vmem:[%s2562] ss:$2 sm:$0xff]
    %s2564 = scalar_lea.vmem [#allocation2], 164
    %v2565 = vld [vmem:[%s2564] ss:$2 sm:$0xff]
    %s2566 = scalar_lea.vmem [#allocation2], 180
    %v2567 = vld [vmem:[%s2566] ss:$2 sm:$0xff]
    %s2568 = scalar_lea.vmem [#allocation2], 196
    %v2569 = vld [vmem:[%s2568] ss:$2 sm:$0xff]
    %s2570 = scalar_lea.vmem [#allocation2], 212
    %v2571 = vld [vmem:[%s2570] ss:$2 sm:$0xff]
    %s2572 = scalar_lea.vmem [#allocation2], 228
    %v2573 = vld [vmem:[%s2572] ss:$2 sm:$0xff]
    %s2574 = scalar_lea.vmem [#allocation2], 5
    %v2575 = vld [vmem:[%s2574] ss:$2 sm:$0xff]
    %s2576 = scalar_lea.vmem [#allocation2], 21
    %v2577 = vld [vmem:[%s2576] ss:$2 sm:$0xff]
    %s2578 = scalar_lea.vmem [#allocation2], 37
    %v2579 = vld [vmem:[%s2578] ss:$2 sm:$0xff]
    %s2580 = scalar_lea.vmem [#allocation2], 53
    %v2581 = vld [vmem:[%s2580] ss:$2 sm:$0xff]
    %s2582 = scalar_lea.vmem [#allocation2], 69
    %v2583 = vld [vmem:[%s2582] ss:$2 sm:$0xff]
    %s2584 = scalar_lea.vmem [#allocation2], 85
    %v2585 = vld [vmem:[%s2584] ss:$2 sm:$0xff]
    %s2586 = scalar_lea.vmem [#allocation2], 101
    %v2587 = vld [vmem:[%s2586] ss:$2 sm:$0xff]
    %s2588 = scalar_lea.vmem [#allocation2], 117
    %v2589 = vld [vmem:[%s2588] ss:$2 sm:$0xff]
    %s2590 = scalar_lea.vmem [#allocation2], 133
    %v2591 = vld [vmem:[%s2590] ss:$2 sm:$0xff]
    %s2592 = scalar_lea.vmem [#allocation2], 149
    %v2593 = vld [vmem:[%s2592] ss:$2 sm:$0xff]
    %s2594 = scalar_lea.vmem [#allocation2], 165
    %v2595 = vld [vmem:[%s2594] ss:$2 sm:$0xff]
    %s2596 = scalar_lea.vmem [#allocation2], 181
    %v2597 = vld [vmem:[%s2596] ss:$2 sm:$0xff]
    %s2598 = scalar_lea.vmem [#allocation2], 197
    %v2599 = vld [vmem:[%s2598] ss:$2 sm:$0xff]
    %s2600 = scalar_lea.vmem [#allocation2], 213
    %v2601 = vld [vmem:[%s2600] ss:$2 sm:$0xff]
    %s2602 = scalar_lea.vmem [#allocation2], 229
    %v2603 = vld [vmem:[%s2602] ss:$2 sm:$0xff]
    %s2604 = scalar_lea.vmem [#allocation2], 6
    %v2605 = vld [vmem:[%s2604] ss:$2 sm:$0xff]
    %s2606 = scalar_lea.vmem [#allocation2], 22
    %v2607 = vld [vmem:[%s2606] ss:$2 sm:$0xff]
    %s2608 = scalar_lea.vmem [#allocation2], 38
    %v2609 = vld [vmem:[%s2608] ss:$2 sm:$0xff]
    %s2610 = scalar_lea.vmem [#allocation2], 54
    %v2611 = vld [vmem:[%s2610] ss:$2 sm:$0xff]
    %s2612 = scalar_lea.vmem [#allocation2], 70
    %v2613 = vld [vmem:[%s2612] ss:$2 sm:$0xff]
    %s2614 = scalar_lea.vmem [#allocation2], 86
    %v2615 = vld [vmem:[%s2614] ss:$2 sm:$0xff]
    %s2616 = scalar_lea.vmem [#allocation2], 102
    %v2617 = vld [vmem:[%s2616] ss:$2 sm:$0xff]
    %s2618 = scalar_lea.vmem [#allocation2], 118
    %v2619 = vld [vmem:[%s2618] ss:$2 sm:$0xff]
    %s2620 = scalar_lea.vmem [#allocation2], 134
    %v2621 = vld [vmem:[%s2620] ss:$2 sm:$0xff]
    %s2622 = scalar_lea.vmem [#allocation2], 150
    %v2623 = vld [vmem:[%s2622] ss:$2 sm:$0xff]
    %s2624 = scalar_lea.vmem [#allocation2], 166
    %v2625 = vld [vmem:[%s2624] ss:$2 sm:$0xff]
    %s2626 = scalar_lea.vmem [#allocation2], 182
    %v2627 = vld [vmem:[%s2626] ss:$2 sm:$0xff]
    %s2628 = scalar_lea.vmem [#allocation2], 198
    %v2629 = vld [vmem:[%s2628] ss:$2 sm:$0xff]
    %s2630 = scalar_lea.vmem [#allocation2], 214
    %v2631 = vld [vmem:[%s2630] ss:$2 sm:$0xff]
    %s2632 = scalar_lea.vmem [#allocation2], 230
    %v2633 = vld [vmem:[%s2632] ss:$2 sm:$0xff]
    %s2634 = scalar_lea.vmem [#allocation2], 7
    %v2635 = vld [vmem:[%s2634] ss:$2 sm:$0xff]
    %s2636 = scalar_lea.vmem [#allocation2], 23
    %v2637 = vld [vmem:[%s2636] ss:$2 sm:$0xff]
    %s2638 = scalar_lea.vmem [#allocation2], 39
    %v2639 = vld [vmem:[%s2638] ss:$2 sm:$0xff]
    %s2640 = scalar_lea.vmem [#allocation2], 55
    %v2641 = vld [vmem:[%s2640] ss:$2 sm:$0xff]
    %s2642 = scalar_lea.vmem [#allocation2], 71
    %v2643 = vld [vmem:[%s2642] ss:$2 sm:$0xff]
    %s2644 = scalar_lea.vmem [#allocation2], 87
    %v2645 = vld [vmem:[%s2644] ss:$2 sm:$0xff]
    %s2646 = scalar_lea.vmem [#allocation2], 103
    %v2647 = vld [vmem:[%s2646] ss:$2 sm:$0xff]
    %s2648 = scalar_lea.vmem [#allocation2], 119
    %v2649 = vld [vmem:[%s2648] ss:$2 sm:$0xff]
    %s2650 = scalar_lea.vmem [#allocation2], 135
    %v2651 = vld [vmem:[%s2650] ss:$2 sm:$0xff]
    %s2652 = scalar_lea.vmem [#allocation2], 151
    %v2653 = vld [vmem:[%s2652] ss:$2 sm:$0xff]
    %s2654 = scalar_lea.vmem [#allocation2], 167
    %v2655 = vld [vmem:[%s2654] ss:$2 sm:$0xff]
    %s2656 = scalar_lea.vmem [#allocation2], 183
    %v2657 = vld [vmem:[%s2656] ss:$2 sm:$0xff]
    %s2658 = scalar_lea.vmem [#allocation2], 199
    %v2659 = vld [vmem:[%s2658] ss:$2 sm:$0xff]
    %s2660 = scalar_lea.vmem [#allocation2], 215
    %v2661 = vld [vmem:[%s2660] ss:$2 sm:$0xff]
    %s2662 = scalar_lea.vmem [#allocation2], 231
    %v2663 = vld [vmem:[%s2662] ss:$2 sm:$0xff]
    %s2664 = scalar_lea.vmem [#allocation2], 8
    %v2665 = vld [vmem:[%s2664] ss:$2 sm:$0xff]
    %s2666 = scalar_lea.vmem [#allocation2], 24
    %v2667 = vld [vmem:[%s2666] ss:$2 sm:$0xff]
    %s2668 = scalar_lea.vmem [#allocation2], 40
    %v2669 = vld [vmem:[%s2668] ss:$2 sm:$0xff]
    %s2670 = scalar_lea.vmem [#allocation2], 56
    %v2671 = vld [vmem:[%s2670] ss:$2 sm:$0xff]
    %s2672 = scalar_lea.vmem [#allocation2], 72
    %v2673 = vld [vmem:[%s2672] ss:$2 sm:$0xff]
    %s2674 = scalar_lea.vmem [#allocation2], 88
    %v2675 = vld [vmem:[%s2674] ss:$2 sm:$0xff]
    %s2676 = scalar_lea.vmem [#allocation2], 104
    %v2677 = vld [vmem:[%s2676] ss:$2 sm:$0xff]
    %s2678 = scalar_lea.vmem [#allocation2], 120
    %v2679 = vld [vmem:[%s2678] ss:$2 sm:$0xff]
    %s2680 = scalar_lea.vmem [#allocation2], 136
    %v2681 = vld [vmem:[%s2680] ss:$2 sm:$0xff]
    %s2682 = scalar_lea.vmem [#allocation2], 152
    %v2683 = vld [vmem:[%s2682] ss:$2 sm:$0xff]
    %s2684 = scalar_lea.vmem [#allocation2], 168
    %v2685 = vld [vmem:[%s2684] ss:$2 sm:$0xff]
    %s2686 = scalar_lea.vmem [#allocation2], 184
    %v2687 = vld [vmem:[%s2686] ss:$2 sm:$0xff]
    %s2688 = scalar_lea.vmem [#allocation2], 200
    %v2689 = vld [vmem:[%s2688] ss:$2 sm:$0xff]
    %s2690 = scalar_lea.vmem [#allocation2], 216
    %v2691 = vld [vmem:[%s2690] ss:$2 sm:$0xff]
    %s2692 = scalar_lea.vmem [#allocation2], 232
    %v2693 = vld [vmem:[%s2692] ss:$2 sm:$0xff]
    %s2694 = scalar_lea.vmem [#allocation2], 9
    %v2695 = vld [vmem:[%s2694] ss:$2 sm:$0xff]
    %s2696 = scalar_lea.vmem [#allocation2], 25
    %v2697 = vld [vmem:[%s2696] ss:$2 sm:$0xff]
    %s2698 = scalar_lea.vmem [#allocation2], 41
    %v2699 = vld [vmem:[%s2698] ss:$2 sm:$0xff]
    %s2700 = scalar_lea.vmem [#allocation2], 57
    %v2701 = vld [vmem:[%s2700] ss:$2 sm:$0xff]
    %s2702 = scalar_lea.vmem [#allocation2], 73
    %v2703 = vld [vmem:[%s2702] ss:$2 sm:$0xff]
    %s2704 = scalar_lea.vmem [#allocation2], 89
    %v2705 = vld [vmem:[%s2704] ss:$2 sm:$0xff]
    %s2706 = scalar_lea.vmem [#allocation2], 105
    %v2707 = vld [vmem:[%s2706] ss:$2 sm:$0xff]
    %s2708 = scalar_lea.vmem [#allocation2], 121
    %v2709 = vld [vmem:[%s2708] ss:$2 sm:$0xff]
    %s2710 = scalar_lea.vmem [#allocation2], 137
    %v2711 = vld [vmem:[%s2710] ss:$2 sm:$0xff]
    %s2712 = scalar_lea.vmem [#allocation2], 153
    %v2713 = vld [vmem:[%s2712] ss:$2 sm:$0xff]
    %s2714 = scalar_lea.vmem [#allocation2], 169
    %v2715 = vld [vmem:[%s2714] ss:$2 sm:$0xff]
    %s2716 = scalar_lea.vmem [#allocation2], 185
    %v2717 = vld [vmem:[%s2716] ss:$2 sm:$0xff]
    %s2718 = scalar_lea.vmem [#allocation2], 201
    %v2719 = vld [vmem:[%s2718] ss:$2 sm:$0xff]
    %s2720 = scalar_lea.vmem [#allocation2], 217
    %v2721 = vld [vmem:[%s2720] ss:$2 sm:$0xff]
    %s2722 = scalar_lea.vmem [#allocation2], 233
    %v2723 = vld [vmem:[%s2722] ss:$2 sm:$0xff]
    %2739 = vrot.lane.b32.xlu0 %v2455, 16
    %v2740 = vpop.permute.xlu0 %2739
    %2741 = vrot.lane.b32.xlu0 %v2457, 16
    %v2742 = vpop.permute.xlu0 %2741
    %2743 = vrot.lane.b32.xlu0 %v2459, 16
    %v2744 = vpop.permute.xlu0 %2743
    %2745 = vrot.lane.b32.xlu0 %v2461, 16
    %v2746 = vpop.permute.xlu0 %2745
    %2747 = vrot.lane.b32.xlu0 %v2463, 16
    %v2748 = vpop.permute.xlu0 %2747
    %2749 = vrot.lane.b32.xlu0 %v2465, 16
    %v2750 = vpop.permute.xlu0 %2749
    %2751 = vrot.lane.b32.xlu0 %v2467, 16
    %v2752 = vpop.permute.xlu0 %2751
    %2753 = vrot.lane.b32.xlu0 %v2469, 16
    %v2754 = vpop.permute.xlu0 %2753
    %2755 = vrot.lane.b32.xlu0 %v2471, 16
    %v2756 = vpop.permute.xlu0 %2755
    %2757 = vrot.lane.b32.xlu0 %v2473, 16
    %v2758 = vpop.permute.xlu0 %2757
    %2759 = vrot.lane.b32.xlu0 %v2475, 16
    %v2760 = vpop.permute.xlu0 %2759
    %2761 = vrot.lane.b32.xlu0 %v2477, 16
    %v2762 = vpop.permute.xlu0 %2761
    %2763 = vrot.lane.b32.xlu0 %v2479, 16
    %v2764 = vpop.permute.xlu0 %2763
    %2765 = vrot.lane.b32.xlu0 %v2481, 16
    %v2766 = vpop.permute.xlu0 %2765
    %2767 = vrot.lane.b32.xlu0 %v2483, 16
    %v2768 = vpop.permute.xlu0 %2767
    %2799 = vrot.lane.b32.xlu0 %v2485, 32
    %v2800 = vpop.permute.xlu0 %2799
    %2801 = vrot.lane.b32.xlu0 %v2487, 32
    %v2802 = vpop.permute.xlu0 %2801
    %2803 = vrot.lane.b32.xlu0 %v2489, 32
    %v2804 = vpop.permute.xlu0 %2803
    %2805 = vrot.lane.b32.xlu0 %v2491, 32
    %v2806 = vpop.permute.xlu0 %2805
    %2807 = vrot.lane.b32.xlu0 %v2493, 32
    %v2808 = vpop.permute.xlu0 %2807
    %2809 = vrot.lane.b32.xlu0 %v2495, 32
    %v2810 = vpop.permute.xlu0 %2809
    %2811 = vrot.lane.b32.xlu0 %v2497, 32
    %v2812 = vpop.permute.xlu0 %2811
    %2813 = vrot.lane.b32.xlu0 %v2499, 32
    %v2814 = vpop.permute.xlu0 %2813
    %2815 = vrot.lane.b32.xlu0 %v2501, 32
    %v2816 = vpop.permute.xlu0 %2815
    %2817 = vrot.lane.b32.xlu0 %v2503, 32
    %v2818 = vpop.permute.xlu0 %2817
    %2819 = vrot.lane.b32.xlu0 %v2505, 32
    %v2820 = vpop.permute.xlu0 %2819
    %2821 = vrot.lane.b32.xlu0 %v2507, 32
    %v2822 = vpop.permute.xlu0 %2821
    %2823 = vrot.lane.b32.xlu0 %v2509, 32
    %v2824 = vpop.permute.xlu0 %2823
    %2825 = vrot.lane.b32.xlu0 %v2511, 32
    %v2826 = vpop.permute.xlu0 %2825
    %2827 = vrot.lane.b32.xlu0 %v2513, 32
    %v2828 = vpop.permute.xlu0 %2827
    %2859 = vrot.lane.b32.xlu0 %v2515, 48
    %v2860 = vpop.permute.xlu0 %2859
    %2861 = vrot.lane.b32.xlu0 %v2517, 48
    %v2862 = vpop.permute.xlu0 %2861
    %2863 = vrot.lane.b32.xlu0 %v2519, 48
    %v2864 = vpop.permute.xlu0 %2863
    %2865 = vrot.lane.b32.xlu0 %v2521, 48
    %v2866 = vpop.permute.xlu0 %2865
    %2867 = vrot.lane.b32.xlu0 %v2523, 48
    %v2868 = vpop.permute.xlu0 %2867
    %2869 = vrot.lane.b32.xlu0 %v2525, 48
    %v2870 = vpop.permute.xlu0 %2869
    %2871 = vrot.lane.b32.xlu0 %v2527, 48
    %v2872 = vpop.permute.xlu0 %2871
    %2873 = vrot.lane.b32.xlu0 %v2529, 48
    %v2874 = vpop.permute.xlu0 %2873
    %2875 = vrot.lane.b32.xlu0 %v2531, 48
    %v2876 = vpop.permute.xlu0 %2875
    %2877 = vrot.lane.b32.xlu0 %v2533, 48
    %v2878 = vpop.permute.xlu0 %2877
    %2879 = vrot.lane.b32.xlu0 %v2535, 48
    %v2880 = vpop.permute.xlu0 %2879
    %2881 = vrot.lane.b32.xlu0 %v2537, 48
    %v2882 = vpop.permute.xlu0 %2881
    %2883 = vrot.lane.b32.xlu0 %v2539, 48
    %v2884 = vpop.permute.xlu0 %2883
    %2885 = vrot.lane.b32.xlu0 %v2541, 48
    %v2886 = vpop.permute.xlu0 %2885
    %2887 = vrot.lane.b32.xlu0 %v2543, 48
    %v2888 = vpop.permute.xlu0 %2887
    %2919 = vrot.lane.b32.xlu0 %v2545, 64
    %v2920 = vpop.permute.xlu0 %2919
    %2921 = vrot.lane.b32.xlu0 %v2547, 64
    %v2922 = vpop.permute.xlu0 %2921
    %2923 = vrot.lane.b32.xlu0 %v2549, 64
    %v2924 = vpop.permute.xlu0 %2923
    %2925 = vrot.lane.b32.xlu0 %v2551, 64
    %v2926 = vpop.permute.xlu0 %2925
    %2927 = vrot.lane.b32.xlu0 %v2553, 64
    %v2928 = vpop.permute.xlu0 %2927
    %2929 = vrot.lane.b32.xlu0 %v2555, 64
    %v2930 = vpop.permute.xlu0 %2929
    %2931 = vrot.lane.b32.xlu0 %v2557, 64
    %v2932 = vpop.permute.xlu0 %2931
    %2933 = vrot.lane.b32.xlu0 %v2559, 64
    %v2934 = vpop.permute.xlu0 %2933
    %2935 = vrot.lane.b32.xlu0 %v2561, 64
    %v2936 = vpop.permute.xlu0 %2935
    %2937 = vrot.lane.b32.xlu0 %v2563, 64
    %v2938 = vpop.permute.xlu0 %2937
    %2939 = vrot.lane.b32.xlu0 %v2565, 64
    %v2940 = vpop.permute.xlu0 %2939
    %2941 = vrot.lane.b32.xlu0 %v2567, 64
    %v2942 = vpop.permute.xlu0 %2941
    %2943 = vrot.lane.b32.xlu0 %v2569, 64
    %v2944 = vpop.permute.xlu0 %2943
    %2945 = vrot.lane.b32.xlu0 %v2571, 64
    %v2946 = vpop.permute.xlu0 %2945
    %2947 = vrot.lane.b32.xlu0 %v2573, 64
    %v2948 = vpop.permute.xlu0 %2947
    %2979 = vrot.lane.b32.xlu0 %v2575, 80
    %v2980 = vpop.permute.xlu0 %2979
    %2981 = vrot.lane.b32.xlu0 %v2577, 80
    %v2982 = vpop.permute.xlu0 %2981
    %2983 = vrot.lane.b32.xlu0 %v2579, 80
    %v2984 = vpop.permute.xlu0 %2983
    %2985 = vrot.lane.b32.xlu0 %v2581, 80
    %v2986 = vpop.permute.xlu0 %2985
    %2987 = vrot.lane.b32.xlu0 %v2583, 80
    %v2988 = vpop.permute.xlu0 %2987
    %2989 = vrot.lane.b32.xlu0 %v2585, 80
    %v2990 = vpop.permute.xlu0 %2989
    %2991 = vrot.lane.b32.xlu0 %v2587, 80
    %v2992 = vpop.permute.xlu0 %2991
    %2993 = vrot.lane.b32.xlu0 %v2589, 80
    %v2994 = vpop.permute.xlu0 %2993
    %2995 = vrot.lane.b32.xlu0 %v2591, 80
    %v2996 = vpop.permute.xlu0 %2995
    %2997 = vrot.lane.b32.xlu0 %v2593, 80
    %v2998 = vpop.permute.xlu0 %2997
    %2999 = vrot.lane.b32.xlu0 %v2595, 80
    %v3000 = vpop.permute.xlu0 %2999
    %3001 = vrot.lane.b32.xlu0 %v2597, 80
    %v3002 = vpop.permute.xlu0 %3001
    %3003 = vrot.lane.b32.xlu0 %v2599, 80
    %v3004 = vpop.permute.xlu0 %3003
    %3005 = vrot.lane.b32.xlu0 %v2601, 80
    %v3006 = vpop.permute.xlu0 %3005
    %3007 = vrot.lane.b32.xlu0 %v2603, 80
    %v3008 = vpop.permute.xlu0 %3007
    %3039 = vrot.lane.b32.xlu0 %v2605, 96
    %v3040 = vpop.permute.xlu0 %3039
    %3041 = vrot.lane.b32.xlu0 %v2607, 96
    %v3042 = vpop.permute.xlu0 %3041
    %3043 = vrot.lane.b32.xlu0 %v2609, 96
    %v3044 = vpop.permute.xlu0 %3043
    %3045 = vrot.lane.b32.xlu0 %v2611, 96
    %v3046 = vpop.permute.xlu0 %3045
    %3047 = vrot.lane.b32.xlu0 %v2613, 96
    %v3048 = vpop.permute.xlu0 %3047
    %3049 = vrot.lane.b32.xlu0 %v2615, 96
    %v3050 = vpop.permute.xlu0 %3049
    %3051 = vrot.lane.b32.xlu0 %v2617, 96
    %v3052 = vpop.permute.xlu0 %3051
    %3053 = vrot.lane.b32.xlu0 %v2619, 96
    %v3054 = vpop.permute.xlu0 %3053
    %3055 = vrot.lane.b32.xlu0 %v2621, 96
    %v3056 = vpop.permute.xlu0 %3055
    %3057 = vrot.lane.b32.xlu0 %v2623, 96
    %v3058 = vpop.permute.xlu0 %3057
    %3059 = vrot.lane.b32.xlu0 %v2625, 96
    %v3060 = vpop.permute.xlu0 %3059
    %3061 = vrot.lane.b32.xlu0 %v2627, 96
    %v3062 = vpop.permute.xlu0 %3061
    %3063 = vrot.lane.b32.xlu0 %v2629, 96
    %v3064 = vpop.permute.xlu0 %3063
    %3065 = vrot.lane.b32.xlu0 %v2631, 96
    %v3066 = vpop.permute.xlu0 %3065
    %3067 = vrot.lane.b32.xlu0 %v2633, 96
    %v3068 = vpop.permute.xlu0 %3067
    %3099 = vrot.lane.b32.xlu0 %v2635, 112
    %v3100 = vpop.permute.xlu0 %3099
    %3101 = vrot.lane.b32.xlu0 %v2637, 112
    %v3102 = vpop.permute.xlu0 %3101
    %3103 = vrot.lane.b32.xlu0 %v2639, 112
    %v3104 = vpop.permute.xlu0 %3103
    %3105 = vrot.lane.b32.xlu0 %v2641, 112
    %v3106 = vpop.permute.xlu0 %3105
    %3107 = vrot.lane.b32.xlu0 %v2643, 112
    %v3108 = vpop.permute.xlu0 %3107
    %3109 = vrot.lane.b32.xlu0 %v2645, 112
    %v3110 = vpop.permute.xlu0 %3109
    %3111 = vrot.lane.b32.xlu0 %v2647, 112
    %v3112 = vpop.permute.xlu0 %3111
    %3113 = vrot.lane.b32.xlu0 %v2649, 112
    %v3114 = vpop.permute.xlu0 %3113
    %3115 = vrot.lane.b32.xlu0 %v2651, 112
    %v3116 = vpop.permute.xlu0 %3115
    %3117 = vrot.lane.b32.xlu0 %v2653, 112
    %v3118 = vpop.permute.xlu0 %3117
    %3119 = vrot.lane.b32.xlu0 %v2655, 112
    %v3120 = vpop.permute.xlu0 %3119
    %3121 = vrot.lane.b32.xlu0 %v2657, 112
    %v3122 = vpop.permute.xlu0 %3121
    %3123 = vrot.lane.b32.xlu0 %v2659, 112
    %v3124 = vpop.permute.xlu0 %3123
    %3125 = vrot.lane.b32.xlu0 %v2661, 112
    %v3126 = vpop.permute.xlu0 %3125
    %3127 = vrot.lane.b32.xlu0 %v2663, 112
    %v3128 = vpop.permute.xlu0 %3127
    %3159 = vrot.lane.b32.xlu0 %v2695, 16
    %v3160 = vpop.permute.xlu0 %3159
    %3161 = vrot.lane.b32.xlu0 %v2697, 16
    %v3162 = vpop.permute.xlu0 %3161
    %3163 = vrot.lane.b32.xlu0 %v2699, 16
    %v3164 = vpop.permute.xlu0 %3163
    %3165 = vrot.lane.b32.xlu0 %v2701, 16
    %v3166 = vpop.permute.xlu0 %3165
    %3167 = vrot.lane.b32.xlu0 %v2703, 16
    %v3168 = vpop.permute.xlu0 %3167
    %3169 = vrot.lane.b32.xlu0 %v2705, 16
    %v3170 = vpop.permute.xlu0 %3169
    %3171 = vrot.lane.b32.xlu0 %v2707, 16
    %v3172 = vpop.permute.xlu0 %3171
    %3173 = vrot.lane.b32.xlu0 %v2709, 16
    %v3174 = vpop.permute.xlu0 %3173
    %3175 = vrot.lane.b32.xlu0 %v2711, 16
    %v3176 = vpop.permute.xlu0 %3175
    %3177 = vrot.lane.b32.xlu0 %v2713, 16
    %v3178 = vpop.permute.xlu0 %3177
    %3179 = vrot.lane.b32.xlu0 %v2715, 16
    %v3180 = vpop.permute.xlu0 %3179
    %3181 = vrot.lane.b32.xlu0 %v2717, 16
    %v3182 = vpop.permute.xlu0 %3181
    %3183 = vrot.lane.b32.xlu0 %v2719, 16
    %v3184 = vpop.permute.xlu0 %3183
    %3185 = vrot.lane.b32.xlu0 %v2721, 16
    %v3186 = vpop.permute.xlu0 %3185
    %3187 = vrot.lane.b32.xlu0 %v2723, 16
    %v3188 = vpop.permute.xlu0 %3187
    %v3204 = vsel %vm2392, %v2425, %v2740
    %v3205 = vsel %vm2392, %v2427, %v2742
    %v3206 = vsel %vm2392, %v2429, %v2744
    %v3207 = vsel %vm2392, %v2431, %v2746
    %v3208 = vsel %vm2392, %v2433, %v2748
    %v3209 = vsel %vm2392, %v2435, %v2750
    %v3210 = vsel %vm2392, %v2437, %v2752
    %v3211 = vsel %vm2392, %v2439, %v2754
    %v3212 = vsel %vm2392, %v2441, %v2756
    %v3213 = vsel %vm2392, %v2443, %v2758
    %v3214 = vsel %vm2392, %v2445, %v2760
    %v3215 = vsel %vm2392, %v2447, %v2762
    %v3216 = vsel %vm2392, %v2449, %v2764
    %v3217 = vsel %vm2392, %v2451, %v2766
    %v3218 = vsel %vm2392, %v2453, %v2768
    %v3219 = vsel %vm556, %v3204, %v2800
    %v3220 = vsel %vm556, %v3205, %v2802
    %v3221 = vsel %vm556, %v3206, %v2804
    %v3222 = vsel %vm556, %v3207, %v2806
    %v3223 = vsel %vm556, %v3208, %v2808
    %v3224 = vsel %vm556, %v3209, %v2810
    %v3225 = vsel %vm556, %v3210, %v2812
    %v3226 = vsel %vm556, %v3211, %v2814
    %v3227 = vsel %vm556, %v3212, %v2816
    %v3228 = vsel %vm556, %v3213, %v2818
    %v3229 = vsel %vm556, %v3214, %v2820
    %v3230 = vsel %vm556, %v3215, %v2822
    %v3231 = vsel %vm556, %v3216, %v2824
    %v3232 = vsel %vm556, %v3217, %v2826
    %v3233 = vsel %vm556, %v3218, %v2828
    %vm3234 = vcmask 392192
    %v3235 = vsel %vm3234, %v3219, %v2860
    %v3236 = vsel %vm3234, %v3220, %v2862
    %v3237 = vsel %vm3234, %v3221, %v2864
    %v3238 = vsel %vm3234, %v3222, %v2866
    %v3239 = vsel %vm3234, %v3223, %v2868
    %v3240 = vsel %vm3234, %v3224, %v2870
    %v3241 = vsel %vm3234, %v3225, %v2872
    %v3242 = vsel %vm3234, %v3226, %v2874
    %v3243 = vsel %vm3234, %v3227, %v2876
    %v3244 = vsel %vm3234, %v3228, %v2878
    %v3245 = vsel %vm3234, %v3229, %v2880
    %v3246 = vsel %vm3234, %v3230, %v2882
    %v3247 = vsel %vm3234, %v3231, %v2884
    %v3248 = vsel %vm3234, %v3232, %v2886
    %v3249 = vsel %vm3234, %v3233, %v2888
    %vm3250 = vcmask 523264
    %v3251 = vsel %vm3250, %v3235, %v2920
    %v3252 = vsel %vm3250, %v3236, %v2922
    %v3253 = vsel %vm3250, %v3237, %v2924
    %v3254 = vsel %vm3250, %v3238, %v2926
    %v3255 = vsel %vm3250, %v3239, %v2928
    %v3256 = vsel %vm3250, %v3240, %v2930
    %v3257 = vsel %vm3250, %v3241, %v2932
    %v3258 = vsel %vm3250, %v3242, %v2934
    %v3259 = vsel %vm3250, %v3243, %v2936
    %v3260 = vsel %vm3250, %v3244, %v2938
    %v3261 = vsel %vm3250, %v3245, %v2940
    %v3262 = vsel %vm3250, %v3246, %v2942
    %v3263 = vsel %vm3250, %v3247, %v2944
    %v3264 = vsel %vm3250, %v3248, %v2946
    %v3265 = vsel %vm3250, %v3249, %v2948
    %vm3266 = vcmask 654336
    %v3267 = vsel %vm3266, %v3251, %v2980
    %v3268 = vsel %vm3266, %v3252, %v2982
    %v3269 = vsel %vm3266, %v3253, %v2984
    %v3270 = vsel %vm3266, %v3254, %v2986
    %v3271 = vsel %vm3266, %v3255, %v2988
    %v3272 = vsel %vm3266, %v3256, %v2990
    %v3273 = vsel %vm3266, %v3257, %v2992
    %v3274 = vsel %vm3266, %v3258, %v2994
    %v3275 = vsel %vm3266, %v3259, %v2996
    %v3276 = vsel %vm3266, %v3260, %v2998
    %v3277 = vsel %vm3266, %v3261, %v3000
    %v3278 = vsel %vm3266, %v3262, %v3002
    %v3279 = vsel %vm3266, %v3263, %v3004
    %v3280 = vsel %vm3266, %v3264, %v3006
    %v3281 = vsel %vm3266, %v3265, %v3008
    %vm3282 = vcmask 785408
    %v3283 = vsel %vm3282, %v3267, %v3040
    %v3284 = vsel %vm3282, %v3268, %v3042
    %v3285 = vsel %vm3282, %v3269, %v3044
    %v3286 = vsel %vm3282, %v3270, %v3046
    %v3287 = vsel %vm3282, %v3271, %v3048
    %v3288 = vsel %vm3282, %v3272, %v3050
    %v3289 = vsel %vm3282, %v3273, %v3052
    %v3290 = vsel %vm3282, %v3274, %v3054
    %v3291 = vsel %vm3282, %v3275, %v3056
    %v3292 = vsel %vm3282, %v3276, %v3058
    %v3293 = vsel %vm3282, %v3277, %v3060
    %v3294 = vsel %vm3282, %v3278, %v3062
    %v3295 = vsel %vm3282, %v3279, %v3064
    %v3296 = vsel %vm3282, %v3280, %v3066
    %v3297 = vsel %vm3282, %v3281, %v3068
    %vm3298 = vcmask 916480
    %v3299 = vsel %vm3298, %v3283, %v3100
    %v3300 = vsel %vm3298, %v3284, %v3102
    %v3301 = vsel %vm3298, %v3285, %v3104
    %v3302 = vsel %vm3298, %v3286, %v3106
    %v3303 = vsel %vm3298, %v3287, %v3108
    %v3304 = vsel %vm3298, %v3288, %v3110
    %v3305 = vsel %vm3298, %v3289, %v3112
    %v3306 = vsel %vm3298, %v3290, %v3114
    %v3307 = vsel %vm3298, %v3291, %v3116
    %v3308 = vsel %vm3298, %v3292, %v3118
    %v3309 = vsel %vm3298, %v3293, %v3120
    %v3310 = vsel %vm3298, %v3294, %v3122
    %v3311 = vsel %vm3298, %v3295, %v3124
    %v3312 = vsel %vm3298, %v3296, %v3126
    %v3313 = vsel %vm3298, %v3297, %v3128
    %v3314 = vsel %vm2392, %v2665, %v3160
    %v3315 = vsel %vm2392, %v2667, %v3162
    %v3316 = vsel %vm2392, %v2669, %v3164
    %v3317 = vsel %vm2392, %v2671, %v3166
    %v3318 = vsel %vm2392, %v2673, %v3168
    %v3319 = vsel %vm2392, %v2675, %v3170
    %v3320 = vsel %vm2392, %v2677, %v3172
    %v3321 = vsel %vm2392, %v2679, %v3174
    %v3322 = vsel %vm2392, %v2681, %v3176
    %v3323 = vsel %vm2392, %v2683, %v3178
    %v3324 = vsel %vm2392, %v2685, %v3180
    %v3325 = vsel %vm2392, %v2687, %v3182
    %v3326 = vsel %vm2392, %v2689, %v3184
    %v3327 = vsel %vm2392, %v2691, %v3186
    %v3328 = vsel %vm2392, %v2693, %v3188
    %v3329 = vperm.slane %v2370, 0
    %v3331 = vsel %vm556, %v3314, 0
    %v3334 = vsel %vm556, %v3315, 0
    %v3337 = vsel %vm556, %v3316, 0
    %v3340 = vsel %vm556, %v3317, 0
    %v3343 = vsel %vm556, %v3318, 0
    %v3346 = vsel %vm556, %v3319, 0
    %v3349 = vsel %vm556, %v3320, 0
    %v3352 = vsel %vm556, %v3321, 0
    %v3355 = vsel %vm556, %v3322, 0
    %v3358 = vsel %vm556, %v3323, 0
    %v3361 = vsel %vm556, %v3324, 0
    %v3364 = vsel %vm556, %v3325, 0
    %v3367 = vsel %vm556, %v3326, 0
    %v3370 = vsel %vm556, %v3327, 0
    %v3373 = vsel %vm556, %v3328, 0
    %3375 = vmatpush.msra.mxu0 %v2365
    %3376 = vmatpush.msra.mxu0 %v2364
    %3377 = vmatpush.msra.mxu0 %v2363
    %3378 = vmatpush.msra.mxu0 %v2362
    %3379 = vmatpush.msra.mxu0 %v2361
    %3380 = vmatpush.msra.mxu0 %v2360
    %3381 = vmatpush.msra.mxu0 %v2359
    %3382 = vmatpush.msra.mxu0 %v2358
    %3383 = vmatpush.msra.mxu0 %v2357
    %3384 = vmatpush.msra.mxu0 %v2356
    %3385 = vmatpush.msra.mxu0 %v2355
    %3386 = vmatpush.msra.mxu0 %v2354
    %3387 = vmatpush.msra.mxu0 %v2353
    %3388 = vmatpush.msra.mxu0 %v2352
    %3389 = vmatpush.msra.mxu0 %v2351
    %3390 = vmatpush.msra.mxu0 %v2350
    %3391 = vmatmul.f32.gmra.mxu0 %v3299
    %v3392 = vpop.f32.mrf.mxu0
    %v3393 = vadd.f32 %v3329, %v3392
    %3394 = vmatmul.f32.gmra.mxu0 %v3300
    %v3395 = vpop.f32.mrf.mxu0
    %v3396 = vadd.f32 %v3329, %v3395
    %3397 = vmatmul.f32.gmra.mxu0 %v3301
    %v3398 = vpop.f32.mrf.mxu0
    %v3399 = vadd.f32 %v3329, %v3398
    %3400 = vmatmul.f32.gmra.mxu0 %v3302
    %v3401 = vpop.f32.mrf.mxu0
    %v3402 = vadd.f32 %v3329, %v3401
    %3403 = vmatmul.f32.gmra.mxu0 %v3303
    %v3404 = vpop.f32.mrf.mxu0
    %v3405 = vadd.f32 %v3329, %v3404
    %3406 = vmatmul.f32.gmra.mxu0 %v3304
    %v3407 = vpop.f32.mrf.mxu0
    %v3408 = vadd.f32 %v3329, %v3407
    %3409 = vmatmul.f32.gmra.mxu0 %v3305
    %v3410 = vpop.f32.mrf.mxu0
    %v3411 = vadd.f32 %v3329, %v3410
    %3412 = vmatmul.f32.gmra.mxu0 %v3306
    %v3413 = vpop.f32.mrf.mxu0
    %v3414 = vadd.f32 %v3329, %v3413
    %3415 = vmatmul.f32.gmra.mxu0 %v3307
    %v3416 = vpop.f32.mrf.mxu0
    %v3417 = vadd.f32 %v3329, %v3416
    %3418 = vmatmul.f32.gmra.mxu0 %v3308
    %v3419 = vpop.f32.mrf.mxu0
    %v3420 = vadd.f32 %v3329, %v3419
    %3421 = vmatmul.f32.gmra.mxu0 %v3309
    %v3422 = vpop.f32.mrf.mxu0
    %v3423 = vadd.f32 %v3329, %v3422
    %3424 = vmatmul.f32.gmra.mxu0 %v3310
    %v3425 = vpop.f32.mrf.mxu0
    %v3426 = vadd.f32 %v3329, %v3425
    %3427 = vmatmul.f32.gmra.mxu0 %v3311
    %v3428 = vpop.f32.mrf.mxu0
    %v3429 = vadd.f32 %v3329, %v3428
    %3430 = vmatmul.f32.gmra.mxu0 %v3312
    %v3431 = vpop.f32.mrf.mxu0
    %v3432 = vadd.f32 %v3329, %v3431
    %3433 = vmatmul.f32.gmra.mxu0 %v3313
    %v3434 = vpop.f32.mrf.mxu0
    %v3435 = vadd.f32 %v3329, %v3434
    %3436 = vdwg.mxu0
    %3437 = vmatpush.msra.mxu0 0.0
    %3438 = vmatpush.msra.mxu0 0.0
    %3439 = vmatpush.msra.mxu0 0.0
    %3440 = vmatpush.msra.mxu0 0.0
    %3441 = vmatpush.msra.mxu0 0.0
    %3442 = vmatpush.msra.mxu0 0.0
    %3443 = vmatpush.msra.mxu0 0.0
    %3444 = vmatpush.msra.mxu0 0.0
    %3445 = vmatpush.msra.mxu0 0.0
    %3446 = vmatpush.msra.mxu0 0.0
    %3447 = vmatpush.msra.mxu0 0.0
    %3448 = vmatpush.msra.mxu0 0.0
    %3449 = vmatpush.msra.mxu0 %v2369
    %3450 = vmatpush.msra.mxu0 %v2368
    %3451 = vmatpush.msra.mxu0 %v2367
    %3452 = vmatpush.msra.mxu0 %v2366
    %3453 = vmatmul.f32.gmra.mxu0 %v3331
    %v3454 = vpop.f32.mrf.mxu0
    %v3455 = vadd.f32 %v3393, %v3454
    %3456 = vmatmul.f32.gmra.mxu0 %v3334
    %v3457 = vpop.f32.mrf.mxu0
    %v3458 = vadd.f32 %v3396, %v3457
    %3459 = vmatmul.f32.gmra.mxu0 %v3337
    %v3460 = vpop.f32.mrf.mxu0
    %v3461 = vadd.f32 %v3399, %v3460
    %3462 = vmatmul.f32.gmra.mxu0 %v3340
    %v3463 = vpop.f32.mrf.mxu0
    %v3464 = vadd.f32 %v3402, %v3463
    %3465 = vmatmul.f32.gmra.mxu0 %v3343
    %v3466 = vpop.f32.mrf.mxu0
    %v3467 = vadd.f32 %v3405, %v3466
    %3468 = vmatmul.f32.gmra.mxu0 %v3346
    %v3469 = vpop.f32.mrf.mxu0
    %v3470 = vadd.f32 %v3408, %v3469
    %3471 = vmatmul.f32.gmra.mxu0 %v3349
    %v3472 = vpop.f32.mrf.mxu0
    %v3473 = vadd.f32 %v3411, %v3472
    %3474 = vmatmul.f32.gmra.mxu0 %v3352
    %v3475 = vpop.f32.mrf.mxu0
    %v3476 = vadd.f32 %v3414, %v3475
    %3477 = vmatmul.f32.gmra.mxu0 %v3355
    %v3478 = vpop.f32.mrf.mxu0
    %v3479 = vadd.f32 %v3417, %v3478
    %3480 = vmatmul.f32.gmra.mxu0 %v3358
    %v3481 = vpop.f32.mrf.mxu0
    %v3482 = vadd.f32 %v3420, %v3481
    %3483 = vmatmul.f32.gmra.mxu0 %v3361
    %v3484 = vpop.f32.mrf.mxu0
    %v3485 = vadd.f32 %v3423, %v3484
    %3486 = vmatmul.f32.gmra.mxu0 %v3364
    %v3487 = vpop.f32.mrf.mxu0
    %v3488 = vadd.f32 %v3426, %v3487
    %3489 = vmatmul.f32.gmra.mxu0 %v3367
    %v3490 = vpop.f32.mrf.mxu0
    %v3491 = vadd.f32 %v3429, %v3490
    %3492 = vmatmul.f32.gmra.mxu0 %v3370
    %v3493 = vpop.f32.mrf.mxu0
    %v3494 = vadd.f32 %v3432, %v3493
    %3495 = vmatmul.f32.gmra.mxu0 %v3373
    %v3496 = vpop.f32.mrf.mxu0
    %v3497 = vadd.f32 %v3435, %v3496
    %3498 = vdwg.mxu0
    %vm3499 = vcmp.gt.f32.partialorder %v3455, 0.0
    %vm3500 = vcmp.gt.f32.partialorder %v3458, 0.0
    %vm3501 = vcmp.gt.f32.partialorder %v3461, 0.0
    %vm3502 = vcmp.gt.f32.partialorder %v3464, 0.0
    %vm3503 = vcmp.gt.f32.partialorder %v3467, 0.0
    %vm3504 = vcmp.gt.f32.partialorder %v3470, 0.0
    %vm3505 = vcmp.gt.f32.partialorder %v3473, 0.0
    %vm3506 = vcmp.gt.f32.partialorder %v3476, 0.0
    %vm3507 = vcmp.gt.f32.partialorder %v3479, 0.0
    %vm3508 = vcmp.gt.f32.partialorder %v3482, 0.0
    %vm3509 = vcmp.gt.f32.partialorder %v3485, 0.0
    %vm3510 = vcmp.gt.f32.partialorder %v3488, 0.0
    %vm3511 = vcmp.gt.f32.partialorder %v3491, 0.0
    %vm3512 = vcmp.gt.f32.partialorder %v3494, 0.0
    %vm3513 = vcmp.gt.f32.partialorder %v3497, 0.0
    %v3514 = vmul.f32 %v3455, 0.01
    %v3515 = vmul.f32 %v3458, 0.01
    %v3516 = vmul.f32 %v3461, 0.01
    %v3517 = vmul.f32 %v3464, 0.01
    %v3518 = vmul.f32 %v3467, 0.01
    %v3519 = vmul.f32 %v3470, 0.01
    %v3520 = vmul.f32 %v3473, 0.01
    %v3521 = vmul.f32 %v3476, 0.01
    %v3522 = vmul.f32 %v3479, 0.01
    %v3523 = vmul.f32 %v3482, 0.01
    %v3524 = vmul.f32 %v3485, 0.01
    %v3525 = vmul.f32 %v3488, 0.01
    %v3526 = vmul.f32 %v3491, 0.01
    %v3527 = vmul.f32 %v3494, 0.01
    %v3528 = vmul.f32 %v3497, 0.01
    %v3529 = vsel %vm3499, %v3455, %v3514
    %v3530 = vsel %vm3500, %v3458, %v3515
    %v3531 = vsel %vm3501, %v3461, %v3516
    %v3532 = vsel %vm3502, %v3464, %v3517
    %v3533 = vsel %vm3503, %v3467, %v3518
    %v3534 = vsel %vm3504, %v3470, %v3519
    %v3535 = vsel %vm3505, %v3473, %v3520
    %v3536 = vsel %vm3506, %v3476, %v3521
    %v3537 = vsel %vm3507, %v3479, %v3522
    %v3538 = vsel %vm3508, %v3482, %v3523
    %v3539 = vsel %vm3509, %v3485, %v3524
    %v3540 = vsel %vm3510, %v3488, %v3525
    %v3541 = vsel %vm3511, %v3491, %v3526
    %v3542 = vsel %vm3512, %v3494, %v3527
    %v3543 = vsel %vm3513, %v3497, %v3528
    %3544 = vst.msk [vmem:[#allocation3 + $0x1] sm:$0xff] %vm2392, %v3529
    %3545 = vst.msk [vmem:[#allocation3 + $0x9] sm:$0xff] %vm2392, %v3530
    %3546 = vst.msk [vmem:[#allocation3 + $0x11] sm:$0xff] %vm2392, %v3531
    %3547 = vst.msk [vmem:[#allocation3 + $0x19] sm:$0xff] %vm2392, %v3532
    %3548 = vst.msk [vmem:[#allocation3 + $0x21] sm:$0xff] %vm2392, %v3533
    %3549 = vst.msk [vmem:[#allocation3 + $0x29] sm:$0xff] %vm2392, %v3534
    %3550 = vst.msk [vmem:[#allocation3 + $0x31] sm:$0xff] %vm2392, %v3535
    %3551 = vst.msk [vmem:[#allocation3 + $0x39] sm:$0xff] %vm2392, %v3536
    %3552 = vst.msk [vmem:[#allocation3 + $0x41] sm:$0xff] %vm2392, %v3537
    %3553 = vst.msk [vmem:[#allocation3 + $0x49] sm:$0xff] %vm2392, %v3538
    %3554 = vst.msk [vmem:[#allocation3 + $0x51] sm:$0xff] %vm2392, %v3539
    %3555 = vst.msk [vmem:[#allocation3 + $0x59] sm:$0xff] %vm2392, %v3540
    %3556 = vst.msk [vmem:[#allocation3 + $0x61] sm:$0xff] %vm2392, %v3541
    %3557 = vst.msk [vmem:[#allocation3 + $0x69] sm:$0xff] %vm2392, %v3542
    %3558 = vst.msk [vmem:[#allocation3 + $0x71] sm:$0xff] %vm2392, %v3543
    %v3559 = vld [vmem:[#allocation3] ss:$2 sm:$0xff]
    %s3560 = scalar_lea.vmem [#allocation3], 16
    %v3561 = vld [vmem:[%s3560] ss:$2 sm:$0xff]
    %s3562 = scalar_lea.vmem [#allocation3], 32
    %v3563 = vld [vmem:[%s3562] ss:$2 sm:$0xff]
    %s3564 = scalar_lea.vmem [#allocation3], 48
    %v3565 = vld [vmem:[%s3564] ss:$2 sm:$0xff]
    %s3566 = scalar_lea.vmem [#allocation3], 64
    %v3567 = vld [vmem:[%s3566] ss:$2 sm:$0xff]
    %s3568 = scalar_lea.vmem [#allocation3], 80
    %v3569 = vld [vmem:[%s3568] ss:$2 sm:$0xff]
    %s3570 = scalar_lea.vmem [#allocation3], 96
    %v3571 = vld [vmem:[%s3570] ss:$2 sm:$0xff]
    %s3572 = scalar_lea.vmem [#allocation3], 112
    %v3573 = vld [vmem:[%s3572] ss:$2 sm:$0x1]
    %s3574 = scalar_lea.vmem [#allocation3], 1
    %v3575 = vld [vmem:[%s3574] ss:$2 sm:$0xff]
    %s3576 = scalar_lea.vmem [#allocation3], 17
    %v3577 = vld [vmem:[%s3576] ss:$2 sm:$0xff]
    %s3578 = scalar_lea.vmem [#allocation3], 33
    %v3579 = vld [vmem:[%s3578] ss:$2 sm:$0xff]
    %s3580 = scalar_lea.vmem [#allocation3], 49
    %v3581 = vld [vmem:[%s3580] ss:$2 sm:$0xff]
    %s3582 = scalar_lea.vmem [#allocation3], 65
    %v3583 = vld [vmem:[%s3582] ss:$2 sm:$0xff]
    %s3584 = scalar_lea.vmem [#allocation3], 81
    %v3585 = vld [vmem:[%s3584] ss:$2 sm:$0xff]
    %s3586 = scalar_lea.vmem [#allocation3], 97
    %v3587 = vld [vmem:[%s3586] ss:$2 sm:$0xff]
    %s3588 = scalar_lea.vmem [#allocation3], 113
    %v3589 = vld [vmem:[%s3588] ss:$2 sm:$0x1]
    %s3590 = scalar_lea.vmem [#allocation3], 2
    %v3591 = vld [vmem:[%s3590] ss:$2 sm:$0xff]
    %s3592 = scalar_lea.vmem [#allocation3], 18
    %v3593 = vld [vmem:[%s3592] ss:$2 sm:$0xff]
    %s3594 = scalar_lea.vmem [#allocation3], 34
    %v3595 = vld [vmem:[%s3594] ss:$2 sm:$0xff]
    %s3596 = scalar_lea.vmem [#allocation3], 50
    %v3597 = vld [vmem:[%s3596] ss:$2 sm:$0xff]
    %s3598 = scalar_lea.vmem [#allocation3], 66
    %v3599 = vld [vmem:[%s3598] ss:$2 sm:$0xff]
    %s3600 = scalar_lea.vmem [#allocation3], 82
    %v3601 = vld [vmem:[%s3600] ss:$2 sm:$0xff]
    %s3602 = scalar_lea.vmem [#allocation3], 98
    %v3603 = vld [vmem:[%s3602] ss:$2 sm:$0xff]
    %s3604 = scalar_lea.vmem [#allocation3], 114
    %v3605 = vld [vmem:[%s3604] ss:$2 sm:$0x1]
    %s3606 = scalar_lea.vmem [#allocation3], 3
    %v3607 = vld [vmem:[%s3606] ss:$2 sm:$0xff]
    %s3608 = scalar_lea.vmem [#allocation3], 19
    %v3609 = vld [vmem:[%s3608] ss:$2 sm:$0xff]
    %s3610 = scalar_lea.vmem [#allocation3], 35
    %v3611 = vld [vmem:[%s3610] ss:$2 sm:$0xff]
    %s3612 = scalar_lea.vmem [#allocation3], 51
    %v3613 = vld [vmem:[%s3612] ss:$2 sm:$0xff]
    %s3614 = scalar_lea.vmem [#allocation3], 67
    %v3615 = vld [vmem:[%s3614] ss:$2 sm:$0xff]
    %s3616 = scalar_lea.vmem [#allocation3], 83
    %v3617 = vld [vmem:[%s3616] ss:$2 sm:$0xff]
    %s3618 = scalar_lea.vmem [#allocation3], 99
    %v3619 = vld [vmem:[%s3618] ss:$2 sm:$0xff]
    %s3620 = scalar_lea.vmem [#allocation3], 115
    %v3621 = vld [vmem:[%s3620] ss:$2 sm:$0x1]
    %s3622 = scalar_lea.vmem [#allocation3], 4
    %v3623 = vld [vmem:[%s3622] ss:$2 sm:$0xff]
    %s3624 = scalar_lea.vmem [#allocation3], 20
    %v3625 = vld [vmem:[%s3624] ss:$2 sm:$0xff]
    %s3626 = scalar_lea.vmem [#allocation3], 36
    %v3627 = vld [vmem:[%s3626] ss:$2 sm:$0xff]
    %s3628 = scalar_lea.vmem [#allocation3], 52
    %v3629 = vld [vmem:[%s3628] ss:$2 sm:$0xff]
    %s3630 = scalar_lea.vmem [#allocation3], 68
    %v3631 = vld [vmem:[%s3630] ss:$2 sm:$0xff]
    %s3632 = scalar_lea.vmem [#allocation3], 84
    %v3633 = vld [vmem:[%s3632] ss:$2 sm:$0xff]
    %s3634 = scalar_lea.vmem [#allocation3], 100
    %v3635 = vld [vmem:[%s3634] ss:$2 sm:$0xff]
    %s3636 = scalar_lea.vmem [#allocation3], 116
    %v3637 = vld [vmem:[%s3636] ss:$2 sm:$0x1]
    %s3638 = scalar_lea.vmem [#allocation3], 5
    %v3639 = vld [vmem:[%s3638] ss:$2 sm:$0xff]
    %s3640 = scalar_lea.vmem [#allocation3], 21
    %v3641 = vld [vmem:[%s3640] ss:$2 sm:$0xff]
    %s3642 = scalar_lea.vmem [#allocation3], 37
    %v3643 = vld [vmem:[%s3642] ss:$2 sm:$0xff]
    %s3644 = scalar_lea.vmem [#allocation3], 53
    %v3645 = vld [vmem:[%s3644] ss:$2 sm:$0xff]
    %s3646 = scalar_lea.vmem [#allocation3], 69
    %v3647 = vld [vmem:[%s3646] ss:$2 sm:$0xff]
    %s3648 = scalar_lea.vmem [#allocation3], 85
    %v3649 = vld [vmem:[%s3648] ss:$2 sm:$0xff]
    %s3650 = scalar_lea.vmem [#allocation3], 101
    %v3651 = vld [vmem:[%s3650] ss:$2 sm:$0xff]
    %s3652 = scalar_lea.vmem [#allocation3], 117
    %v3653 = vld [vmem:[%s3652] ss:$2 sm:$0x1]
    %s3654 = scalar_lea.vmem [#allocation3], 6
    %v3655 = vld [vmem:[%s3654] ss:$2 sm:$0xff]
    %s3656 = scalar_lea.vmem [#allocation3], 22
    %v3657 = vld [vmem:[%s3656] ss:$2 sm:$0xff]
    %s3658 = scalar_lea.vmem [#allocation3], 38
    %v3659 = vld [vmem:[%s3658] ss:$2 sm:$0xff]
    %s3660 = scalar_lea.vmem [#allocation3], 54
    %v3661 = vld [vmem:[%s3660] ss:$2 sm:$0xff]
    %s3662 = scalar_lea.vmem [#allocation3], 70
    %v3663 = vld [vmem:[%s3662] ss:$2 sm:$0xff]
    %s3664 = scalar_lea.vmem [#allocation3], 86
    %v3665 = vld [vmem:[%s3664] ss:$2 sm:$0xff]
    %s3666 = scalar_lea.vmem [#allocation3], 102
    %v3667 = vld [vmem:[%s3666] ss:$2 sm:$0xff]
    %s3668 = scalar_lea.vmem [#allocation3], 118
    %v3669 = vld [vmem:[%s3668] ss:$2 sm:$0x1]
    %s3670 = scalar_lea.vmem [#allocation3], 7
    %v3671 = vld [vmem:[%s3670] ss:$2 sm:$0xff]
    %s3672 = scalar_lea.vmem [#allocation3], 23
    %v3673 = vld [vmem:[%s3672] ss:$2 sm:$0xff]
    %s3674 = scalar_lea.vmem [#allocation3], 39
    %v3675 = vld [vmem:[%s3674] ss:$2 sm:$0xff]
    %s3676 = scalar_lea.vmem [#allocation3], 55
    %v3677 = vld [vmem:[%s3676] ss:$2 sm:$0xff]
    %s3678 = scalar_lea.vmem [#allocation3], 71
    %v3679 = vld [vmem:[%s3678] ss:$2 sm:$0xff]
    %s3680 = scalar_lea.vmem [#allocation3], 87
    %v3681 = vld [vmem:[%s3680] ss:$2 sm:$0xff]
    %s3682 = scalar_lea.vmem [#allocation3], 103
    %v3683 = vld [vmem:[%s3682] ss:$2 sm:$0xff]
    %s3684 = scalar_lea.vmem [#allocation3], 119
    %v3685 = vld [vmem:[%s3684] ss:$2 sm:$0x1]
    %s3686 = scalar_lea.vmem [#allocation3], 8
    %v3687 = vld [vmem:[%s3686] ss:$2 sm:$0xff]
    %s3688 = scalar_lea.vmem [#allocation3], 24
    %v3689 = vld [vmem:[%s3688] ss:$2 sm:$0xff]
    %s3690 = scalar_lea.vmem [#allocation3], 40
    %v3691 = vld [vmem:[%s3690] ss:$2 sm:$0xff]
    %s3692 = scalar_lea.vmem [#allocation3], 56
    %v3693 = vld [vmem:[%s3692] ss:$2 sm:$0xff]
    %s3694 = scalar_lea.vmem [#allocation3], 72
    %v3695 = vld [vmem:[%s3694] ss:$2 sm:$0xff]
    %s3696 = scalar_lea.vmem [#allocation3], 88
    %v3697 = vld [vmem:[%s3696] ss:$2 sm:$0xff]
    %s3698 = scalar_lea.vmem [#allocation3], 104
    %v3699 = vld [vmem:[%s3698] ss:$2 sm:$0xff]
    %s3700 = scalar_lea.vmem [#allocation3], 120
    %v3701 = vld [vmem:[%s3700] ss:$2 sm:$0x1]
    %s3702 = scalar_lea.vmem [#allocation3], 9
    %v3703 = vld [vmem:[%s3702] ss:$2 sm:$0xff]
    %s3704 = scalar_lea.vmem [#allocation3], 25
    %v3705 = vld [vmem:[%s3704] ss:$2 sm:$0xff]
    %s3706 = scalar_lea.vmem [#allocation3], 41
    %v3707 = vld [vmem:[%s3706] ss:$2 sm:$0xff]
    %s3708 = scalar_lea.vmem [#allocation3], 57
    %v3709 = vld [vmem:[%s3708] ss:$2 sm:$0xff]
    %s3710 = scalar_lea.vmem [#allocation3], 73
    %v3711 = vld [vmem:[%s3710] ss:$2 sm:$0xff]
    %s3712 = scalar_lea.vmem [#allocation3], 89
    %v3713 = vld [vmem:[%s3712] ss:$2 sm:$0xff]
    %s3714 = scalar_lea.vmem [#allocation3], 105
    %v3715 = vld [vmem:[%s3714] ss:$2 sm:$0xff]
    %s3716 = scalar_lea.vmem [#allocation3], 121
    %v3717 = vld [vmem:[%s3716] ss:$2 sm:$0x1]
    %3726 = vrot.lane.b32.xlu0 %v3575, 16
    %v3727 = vpop.permute.xlu0 %3726
    %3728 = vrot.lane.b32.xlu0 %v3577, 16
    %v3729 = vpop.permute.xlu0 %3728
    %3730 = vrot.lane.b32.xlu0 %v3579, 16
    %v3731 = vpop.permute.xlu0 %3730
    %3732 = vrot.lane.b32.xlu0 %v3581, 16
    %v3733 = vpop.permute.xlu0 %3732
    %3734 = vrot.lane.b32.xlu0 %v3583, 16
    %v3735 = vpop.permute.xlu0 %3734
    %3736 = vrot.lane.b32.xlu0 %v3585, 16
    %v3737 = vpop.permute.xlu0 %3736
    %3738 = vrot.lane.b32.xlu0 %v3587, 16
    %v3739 = vpop.permute.xlu0 %3738
    %3740 = vrot.lane.b32.xlu0 %v3589, 16
    %v3741 = vpop.permute.xlu0 %3740
    %3758 = vrot.lane.b32.xlu0 %v3591, 32
    %v3759 = vpop.permute.xlu0 %3758
    %3760 = vrot.lane.b32.xlu0 %v3593, 32
    %v3761 = vpop.permute.xlu0 %3760
    %3762 = vrot.lane.b32.xlu0 %v3595, 32
    %v3763 = vpop.permute.xlu0 %3762
    %3764 = vrot.lane.b32.xlu0 %v3597, 32
    %v3765 = vpop.permute.xlu0 %3764
    %3766 = vrot.lane.b32.xlu0 %v3599, 32
    %v3767 = vpop.permute.xlu0 %3766
    %3768 = vrot.lane.b32.xlu0 %v3601, 32
    %v3769 = vpop.permute.xlu0 %3768
    %3770 = vrot.lane.b32.xlu0 %v3603, 32
    %v3771 = vpop.permute.xlu0 %3770
    %3772 = vrot.lane.b32.xlu0 %v3605, 32
    %v3773 = vpop.permute.xlu0 %3772
    %3790 = vrot.lane.b32.xlu0 %v3607, 48
    %v3791 = vpop.permute.xlu0 %3790
    %3792 = vrot.lane.b32.xlu0 %v3609, 48
    %v3793 = vpop.permute.xlu0 %3792
    %3794 = vrot.lane.b32.xlu0 %v3611, 48
    %v3795 = vpop.permute.xlu0 %3794
    %3796 = vrot.lane.b32.xlu0 %v3613, 48
    %v3797 = vpop.permute.xlu0 %3796
    %3798 = vrot.lane.b32.xlu0 %v3615, 48
    %v3799 = vpop.permute.xlu0 %3798
    %3800 = vrot.lane.b32.xlu0 %v3617, 48
    %v3801 = vpop.permute.xlu0 %3800
    %3802 = vrot.lane.b32.xlu0 %v3619, 48
    %v3803 = vpop.permute.xlu0 %3802
    %3804 = vrot.lane.b32.xlu0 %v3621, 48
    %v3805 = vpop.permute.xlu0 %3804
    %3822 = vrot.lane.b32.xlu0 %v3623, 64
    %v3823 = vpop.permute.xlu0 %3822
    %3824 = vrot.lane.b32.xlu0 %v3625, 64
    %v3825 = vpop.permute.xlu0 %3824
    %3826 = vrot.lane.b32.xlu0 %v3627, 64
    %v3827 = vpop.permute.xlu0 %3826
    %3828 = vrot.lane.b32.xlu0 %v3629, 64
    %v3829 = vpop.permute.xlu0 %3828
    %3830 = vrot.lane.b32.xlu0 %v3631, 64
    %v3831 = vpop.permute.xlu0 %3830
    %3832 = vrot.lane.b32.xlu0 %v3633, 64
    %v3833 = vpop.permute.xlu0 %3832
    %3834 = vrot.lane.b32.xlu0 %v3635, 64
    %v3835 = vpop.permute.xlu0 %3834
    %3836 = vrot.lane.b32.xlu0 %v3637, 64
    %v3837 = vpop.permute.xlu0 %3836
    %3854 = vrot.lane.b32.xlu0 %v3639, 80
    %v3855 = vpop.permute.xlu0 %3854
    %3856 = vrot.lane.b32.xlu0 %v3641, 80
    %v3857 = vpop.permute.xlu0 %3856
    %3858 = vrot.lane.b32.xlu0 %v3643, 80
    %v3859 = vpop.permute.xlu0 %3858
    %3860 = vrot.lane.b32.xlu0 %v3645, 80
    %v3861 = vpop.permute.xlu0 %3860
    %3862 = vrot.lane.b32.xlu0 %v3647, 80
    %v3863 = vpop.permute.xlu0 %3862
    %3864 = vrot.lane.b32.xlu0 %v3649, 80
    %v3865 = vpop.permute.xlu0 %3864
    %3866 = vrot.lane.b32.xlu0 %v3651, 80
    %v3867 = vpop.permute.xlu0 %3866
    %3868 = vrot.lane.b32.xlu0 %v3653, 80
    %v3869 = vpop.permute.xlu0 %3868
    %3886 = vrot.lane.b32.xlu0 %v3655, 96
    %v3887 = vpop.permute.xlu0 %3886
    %3888 = vrot.lane.b32.xlu0 %v3657, 96
    %v3889 = vpop.permute.xlu0 %3888
    %3890 = vrot.lane.b32.xlu0 %v3659, 96
    %v3891 = vpop.permute.xlu0 %3890
    %3892 = vrot.lane.b32.xlu0 %v3661, 96
    %v3893 = vpop.permute.xlu0 %3892
    %3894 = vrot.lane.b32.xlu0 %v3663, 96
    %v3895 = vpop.permute.xlu0 %3894
    %3896 = vrot.lane.b32.xlu0 %v3665, 96
    %v3897 = vpop.permute.xlu0 %3896
    %3898 = vrot.lane.b32.xlu0 %v3667, 96
    %v3899 = vpop.permute.xlu0 %3898
    %3900 = vrot.lane.b32.xlu0 %v3669, 96
    %v3901 = vpop.permute.xlu0 %3900
    %3918 = vrot.lane.b32.xlu0 %v3671, 112
    %v3919 = vpop.permute.xlu0 %3918
    %3920 = vrot.lane.b32.xlu0 %v3673, 112
    %v3921 = vpop.permute.xlu0 %3920
    %3922 = vrot.lane.b32.xlu0 %v3675, 112
    %v3923 = vpop.permute.xlu0 %3922
    %3924 = vrot.lane.b32.xlu0 %v3677, 112
    %v3925 = vpop.permute.xlu0 %3924
    %3926 = vrot.lane.b32.xlu0 %v3679, 112
    %v3927 = vpop.permute.xlu0 %3926
    %3928 = vrot.lane.b32.xlu0 %v3681, 112
    %v3929 = vpop.permute.xlu0 %3928
    %3930 = vrot.lane.b32.xlu0 %v3683, 112
    %v3931 = vpop.permute.xlu0 %3930
    %3932 = vrot.lane.b32.xlu0 %v3685, 112
    %v3933 = vpop.permute.xlu0 %3932
    %3950 = vrot.lane.b32.xlu0 %v3703, 16
    %v3951 = vpop.permute.xlu0 %3950
    %3952 = vrot.lane.b32.xlu0 %v3705, 16
    %v3953 = vpop.permute.xlu0 %3952
    %3954 = vrot.lane.b32.xlu0 %v3707, 16
    %v3955 = vpop.permute.xlu0 %3954
    %3956 = vrot.lane.b32.xlu0 %v3709, 16
    %v3957 = vpop.permute.xlu0 %3956
    %3958 = vrot.lane.b32.xlu0 %v3711, 16
    %v3959 = vpop.permute.xlu0 %3958
    %3960 = vrot.lane.b32.xlu0 %v3713, 16
    %v3961 = vpop.permute.xlu0 %3960
    %3962 = vrot.lane.b32.xlu0 %v3715, 16
    %v3963 = vpop.permute.xlu0 %3962
    %3964 = vrot.lane.b32.xlu0 %v3717, 16
    %v3965 = vpop.permute.xlu0 %3964
    %v3974 = vsel %vm2392, %v3559, %v3727
    %v3975 = vsel %vm2392, %v3561, %v3729
    %v3976 = vsel %vm2392, %v3563, %v3731
    %v3977 = vsel %vm2392, %v3565, %v3733
    %v3978 = vsel %vm2392, %v3567, %v3735
    %v3979 = vsel %vm2392, %v3569, %v3737
    %v3980 = vsel %vm2392, %v3571, %v3739
    %v3981 = vsel %vm2392, %v3573, %v3741
    %v3982 = vsel %vm556, %v3974, %v3759
    %v3983 = vsel %vm556, %v3975, %v3761
    %v3984 = vsel %vm556, %v3976, %v3763
    %v3985 = vsel %vm556, %v3977, %v3765
    %v3986 = vsel %vm556, %v3978, %v3767
    %v3987 = vsel %vm556, %v3979, %v3769
    %v3988 = vsel %vm556, %v3980, %v3771
    %v3989 = vsel %vm556, %v3981, %v3773
    %v3990 = vsel %vm3234, %v3982, %v3791
    %v3991 = vsel %vm3234, %v3983, %v3793
    %v3992 = vsel %vm3234, %v3984, %v3795
    %v3993 = vsel %vm3234, %v3985, %v3797
    %v3994 = vsel %vm3234, %v3986, %v3799
    %v3995 = vsel %vm3234, %v3987, %v3801
    %v3996 = vsel %vm3234, %v3988, %v3803
    %v3997 = vsel %vm3234, %v3989, %v3805
    %v3998 = vsel %vm3250, %v3990, %v3823
    %v3999 = vsel %vm3250, %v3991, %v3825
    %v4000 = vsel %vm3250, %v3992, %v3827
    %v4001 = vsel %vm3250, %v3993, %v3829
    %v4002 = vsel %vm3250, %v3994, %v3831
    %v4003 = vsel %vm3250, %v3995, %v3833
    %v4004 = vsel %vm3250, %v3996, %v3835
    %v4005 = vsel %vm3250, %v3997, %v3837
    %v4006 = vsel %vm3266, %v3998, %v3855
    %v4007 = vsel %vm3266, %v3999, %v3857
    %v4008 = vsel %vm3266, %v4000, %v3859
    %v4009 = vsel %vm3266, %v4001, %v3861
    %v4010 = vsel %vm3266, %v4002, %v3863
    %v4011 = vsel %vm3266, %v4003, %v3865
    %v4012 = vsel %vm3266, %v4004, %v3867
    %v4013 = vsel %vm3266, %v4005, %v3869
    %v4014 = vsel %vm3282, %v4006, %v3887
    %v4015 = vsel %vm3282, %v4007, %v3889
    %v4016 = vsel %vm3282, %v4008, %v3891
    %v4017 = vsel %vm3282, %v4009, %v3893
    %v4018 = vsel %vm3282, %v4010, %v3895
    %v4019 = vsel %vm3282, %v4011, %v3897
    %v4020 = vsel %vm3282, %v4012, %v3899
    %v4021 = vsel %vm3282, %v4013, %v3901
    %v4022 = vsel %vm3298, %v4014, %v3919
    %v4023 = vsel %vm3298, %v4015, %v3921
    %v4024 = vsel %vm3298, %v4016, %v3923
    %v4025 = vsel %vm3298, %v4017, %v3925
    %v4026 = vsel %vm3298, %v4018, %v3927
    %v4027 = vsel %vm3298, %v4019, %v3929
    %v4028 = vsel %vm3298, %v4020, %v3931
    %v4029 = vsel %vm3298, %v4021, %v3933
    %v4030 = vsel %vm2392, %v3687, %v3951
    %v4031 = vsel %vm2392, %v3689, %v3953
    %v4032 = vsel %vm2392, %v3691, %v3955
    %v4033 = vsel %vm2392, %v3693, %v3957
    %v4034 = vsel %vm2392, %v3695, %v3959
    %v4035 = vsel %vm2392, %v3697, %v3961
    %v4036 = vsel %vm2392, %v3699, %v3963
    %v4037 = vsel %vm2392, %v3701, %v3965
    %v4038 = vperm.slane %v2391, 0
    %v4040 = vsel %vm556, %v4030, 0
    %v4043 = vsel %vm556, %v4031, 0
    %v4046 = vsel %vm556, %v4032, 0
    %v4049 = vsel %vm556, %v4033, 0
    %v4052 = vsel %vm556, %v4034, 0
    %v4055 = vsel %vm556, %v4035, 0
    %v4058 = vsel %vm556, %v4036, 0
    %v4061 = vsel %vm556, %v4037, 0
    %4063 = vmatpush.msra.mxu0 %v2386
    %4064 = vmatpush.msra.mxu0 %v2385
    %4065 = vmatpush.msra.mxu0 %v2384
    %4066 = vmatpush.msra.mxu0 %v2383
    %4067 = vmatpush.msra.mxu0 %v2382
    %4068 = vmatpush.msra.mxu0 %v2381
    %4069 = vmatpush.msra.mxu0 %v2380
    %4070 = vmatpush.msra.mxu0 %v2379
    %4071 = vmatpush.msra.mxu0 %v2378
    %4072 = vmatpush.msra.mxu0 %v2377
    %4073 = vmatpush.msra.mxu0 %v2376
    %4074 = vmatpush.msra.mxu0 %v2375
    %4075 = vmatpush.msra.mxu0 %v2374
    %4076 = vmatpush.msra.mxu0 %v2373
    %4077 = vmatpush.msra.mxu0 %v2372
    %4078 = vmatpush.msra.mxu0 %v2371
    %4079 = vmatmul.f32.gmra.mxu0 %v4022
    %v4080 = vpop.f32.mrf.mxu0
    %v4081 = vadd.f32 %v4038, %v4080
    %4082 = vmatmul.f32.gmra.mxu0 %v4023
    %v4083 = vpop.f32.mrf.mxu0
    %v4084 = vadd.f32 %v4038, %v4083
    %4085 = vmatmul.f32.gmra.mxu0 %v4024
    %v4086 = vpop.f32.mrf.mxu0
    %v4087 = vadd.f32 %v4038, %v4086
    %4088 = vmatmul.f32.gmra.mxu0 %v4025
    %v4089 = vpop.f32.mrf.mxu0
    %v4090 = vadd.f32 %v4038, %v4089
    %4091 = vmatmul.f32.gmra.mxu0 %v4026
    %v4092 = vpop.f32.mrf.mxu0
    %v4093 = vadd.f32 %v4038, %v4092
    %4094 = vmatmul.f32.gmra.mxu0 %v4027
    %v4095 = vpop.f32.mrf.mxu0
    %v4096 = vadd.f32 %v4038, %v4095
    %4097 = vmatmul.f32.gmra.mxu0 %v4028
    %v4098 = vpop.f32.mrf.mxu0
    %v4099 = vadd.f32 %v4038, %v4098
    %4100 = vmatmul.f32.gmra.mxu0 %v4029
    %v4101 = vpop.f32.mrf.mxu0
    %4102 = vdwg.mxu0
    %4103 = vmatpush.msra.mxu0 0.0
    %4104 = vmatpush.msra.mxu0 0.0
    %4105 = vmatpush.msra.mxu0 0.0
    %4106 = vmatpush.msra.mxu0 0.0
    %4107 = vmatpush.msra.mxu0 0.0
    %4108 = vmatpush.msra.mxu0 0.0
    %4109 = vmatpush.msra.mxu0 0.0
    %4110 = vmatpush.msra.mxu0 0.0
    %4111 = vmatpush.msra.mxu0 0.0
    %4112 = vmatpush.msra.mxu0 0.0
    %4113 = vmatpush.msra.mxu0 0.0
    %4114 = vmatpush.msra.mxu0 0.0
    %4115 = vmatpush.msra.mxu0 %v2390
    %4116 = vmatpush.msra.mxu0 %v2389
    %4117 = vmatpush.msra.mxu0 %v2388
    %4118 = vmatpush.msra.mxu0 %v2387
    %4119 = vmatmul.f32.gmra.mxu0 %v4040
    %v4120 = vpop.f32.mrf.mxu0
    %v4121 = vadd.f32 %v4081, %v4120
    %4122 = vmatmul.f32.gmra.mxu0 %v4043
    %v4123 = vpop.f32.mrf.mxu0
    %v4124 = vadd.f32 %v4084, %v4123
    %4125 = vmatmul.f32.gmra.mxu0 %v4046
    %v4126 = vpop.f32.mrf.mxu0
    %v4127 = vadd.f32 %v4087, %v4126
    %4128 = vmatmul.f32.gmra.mxu0 %v4049
    %v4129 = vpop.f32.mrf.mxu0
    %v4130 = vadd.f32 %v4090, %v4129
    %4131 = vmatmul.f32.gmra.mxu0 %v4052
    %v4132 = vpop.f32.mrf.mxu0
    %v4133 = vadd.f32 %v4093, %v4132
    %4134 = vmatmul.f32.gmra.mxu0 %v4055
    %v4135 = vpop.f32.mrf.mxu0
    %v4136 = vadd.f32 %v4096, %v4135
    %4137 = vmatmul.f32.gmra.mxu0 %v4058
    %v4138 = vpop.f32.mrf.mxu0
    %v4139 = vadd.f32 %v4099, %v4138
    %4140 = vmatmul.f32.gmra.mxu0 %v4061
    %v4141 = vpop.f32.mrf.mxu0
    %4142 = vdwg.mxu0
    %vm4143 = vcmp.gt.f32.partialorder %v4121, 0.0
    %vm4144 = vcmp.gt.f32.partialorder %v4124, 0.0
    %vm4145 = vcmp.gt.f32.partialorder %v4127, 0.0
    %vm4146 = vcmp.gt.f32.partialorder %v4130, 0.0
    %vm4147 = vcmp.gt.f32.partialorder %v4133, 0.0
    %vm4148 = vcmp.gt.f32.partialorder %v4136, 0.0
    %vm4149 = vcmp.gt.f32.partialorder %v4139, 0.0
    %v4150 = vmul.f32 %v4121, 0.01
    %v4151 = vmul.f32 %v4124, 0.01
    %v4152 = vmul.f32 %v4127, 0.01
    %v4153 = vmul.f32 %v4130, 0.01
    %v4154 = vmul.f32 %v4133, 0.01
    %v4155 = vmul.f32 %v4136, 0.01
    %v4156 = vmul.f32 %v4139, 0.01
    %v4157 = vsel %vm4143, %v4121, %v4150
    %v4158 = vsel %vm4144, %v4124, %v4151
    %v4159 = vsel %vm4145, %v4127, %v4152
    %v4160 = vsel %vm4146, %v4130, %v4153
    %v4161 = vsel %vm4147, %v4133, %v4154
    %v4162 = vsel %vm4148, %v4136, %v4155
    %v4163 = vsel %vm4149, %v4139, %v4156
    %v4164 = vsel %vm2392, %v4157, -inf
    %vm4165 = vcmask 123904
    %v4166 = vsel %vm4165, %v4158, -inf
    %v4167 = vmax.f32 %v4164, %v4166
    %v4168 = vrot.slane %v4167, 4
    %v4169 = vmax.f32 %v4167, %v4168
    %v4170 = vrot.slane %v4169, 2
    %v4171 = vmax.f32 %v4169, %v4170
    %v4172 = vrot.slane %v4171, 1
    %v4173 = vmax.f32 %v4171, %v4172
    %vm4174 = vcmask 130050
    %v4175 = vsel %vm4174, %v4158, -inf
    %vm4176 = vcmask 125952
    %v4177 = vsel %vm4176, %v4159, -inf
    %v4178 = vmax.f32 %v4175, %v4177
    %v4179 = vrot.slane %v4178, 4
    %v4180 = vmax.f32 %v4178, %v4179
    %v4181 = vrot.slane %v4180, 2
    %v4182 = vmax.f32 %v4180, %v4181
    %v4183 = vrot.slane %v4182, 1
    %v4184 = vmax.f32 %v4182, %v4183
    %vm4185 = vcmask 130052
    %v4186 = vsel %vm4185, %v4159, -inf
    %vm4187 = vcmask 128000
    %v4188 = vsel %vm4187, %v4160, -inf
    %v4189 = vmax.f32 %v4186, %v4188
    %v4190 = vrot.slane %v4189, 4
    %v4191 = vmax.f32 %v4189, %v4190
    %v4192 = vrot.slane %v4191, 2
    %v4193 = vmax.f32 %v4191, %v4192
    %v4194 = vrot.slane %v4193, 1
    %v4195 = vmax.f32 %v4193, %v4194
    %vm4196 = vcmask 130054
    %v4197 = vsel %vm4196, %v4160, -inf
    %v4198 = vsel %vm2392, %v4161, -inf
    %v4199 = vmax.f32 %v4197, %v4198
    %v4200 = vrot.slane %v4199, 4
    %v4201 = vmax.f32 %v4199, %v4200
    %v4202 = vrot.slane %v4201, 2
    %v4203 = vmax.f32 %v4201, %v4202
    %v4204 = vrot.slane %v4203, 1
    %v4205 = vmax.f32 %v4203, %v4204
    %v4206 = vsel %vm2392, %v4162, -inf
    %v4207 = vsel %vm4165, %v4163, -inf
    %v4208 = vmax.f32 %v4206, %v4207
    %v4209 = vrot.slane %v4208, 4
    %v4210 = vmax.f32 %v4208, %v4209
    %v4211 = vrot.slane %v4210, 2
    %v4212 = vmax.f32 %v4210, %v4211
    %v4213 = vrot.slane %v4212, 1
    %v4214 = vmax.f32 %v4212, %v4213
    %4216 = vrot.lane.b32.xlu0 %v4184, 16
    %v4217 = vpop.permute.xlu0 %4216
    %4220 = vrot.lane.b32.xlu0 %v4195, 32
    %v4221 = vpop.permute.xlu0 %4220
    %4224 = vrot.lane.b32.xlu0 %v4205, 48
    %v4225 = vpop.permute.xlu0 %4224
    %4228 = vrot.lane.b32.xlu0 %v4214, 64
    %v4229 = vpop.permute.xlu0 %4228
    %v4231 = vsel %vm2392, %v4173, %v4217
    %v4232 = vsel %vm556, %v4231, %v4221
    %v4233 = vsel %vm3234, %v4232, %v4225
    %v4234 = vsel %vm3250, %v4233, %v4229
    %4235 = vst.msk [vmem:[#allocation2 + $0x1] sm:$0xff] %vm2392, %v2319
    %4236 = vst.msk [vmem:[#allocation2 + $0x9] sm:$0xff] %vm2392, %v2320
    %4237 = vst.msk [vmem:[#allocation2 + $0x11] sm:$0xff] %vm2392, %v2321
    %4238 = vst.msk [vmem:[#allocation2 + $0x19] sm:$0xff] %vm2392, %v2322
    %4239 = vst.msk [vmem:[#allocation2 + $0x21] sm:$0xff] %vm2392, %v2323
    %4240 = vst.msk [vmem:[#allocation2 + $0x29] sm:$0xff] %vm2392, %v2324
    %4241 = vst.msk [vmem:[#allocation2 + $0x31] sm:$0xff] %vm2392, %v2325
    %4242 = vst.msk [vmem:[#allocation2 + $0x39] sm:$0xff] %vm2392, %v2326
    %4243 = vst.msk [vmem:[#allocation2 + $0x41] sm:$0xff] %vm2392, %v2327
    %4244 = vst.msk [vmem:[#allocation2 + $0x49] sm:$0xff] %vm2392, %v2328
    %4245 = vst.msk [vmem:[#allocation2 + $0x51] sm:$0xff] %vm2392, %v2329
    %4246 = vst.msk [vmem:[#allocation2 + $0x59] sm:$0xff] %vm2392, %v2330
    %4247 = vst.msk [vmem:[#allocation2 + $0x61] sm:$0xff] %vm2392, %v2331
    %4248 = vst.msk [vmem:[#allocation2 + $0x69] sm:$0xff] %vm2392, %v2332
    %4249 = vst.msk [vmem:[#allocation2 + $0x71] sm:$0xff] %vm2392, %v2333
    %4250 = vst.msk [vmem:[#allocation2 + $0x79] sm:$0xff] %vm2392, %v2334
    %4251 = vst.msk [vmem:[#allocation2 + $0x81] sm:$0xff] %vm2392, %v2335
    %4252 = vst.msk [vmem:[#allocation2 + $0x89] sm:$0xff] %vm2392, %v2336
    %4253 = vst.msk [vmem:[#allocation2 + $0x91] sm:$0xff] %vm2392, %v2337
    %4254 = vst.msk [vmem:[#allocation2 + $0x99] sm:$0xff] %vm2392, %v2338
    %4255 = vst.msk [vmem:[#allocation2 + $0xa1] sm:$0xff] %vm2392, %v2339
    %4256 = vst.msk [vmem:[#allocation2 + $0xa9] sm:$0xff] %vm2392, %v2340
    %4257 = vst.msk [vmem:[#allocation2 + $0xb1] sm:$0xff] %vm2392, %v2341
    %4258 = vst.msk [vmem:[#allocation2 + $0xb9] sm:$0xff] %vm2392, %v2342
    %4259 = vst.msk [vmem:[#allocation2 + $0xc1] sm:$0xff] %vm2392, %v2343
    %4260 = vst.msk [vmem:[#allocation2 + $0xc9] sm:$0xff] %vm2392, %v2344
    %4261 = vst.msk [vmem:[#allocation2 + $0xd1] sm:$0xff] %vm2392, %v2345
    %4262 = vst.msk [vmem:[#allocation2 + $0xd9] sm:$0xff] %vm2392, %v2346
    %4263 = vst.msk [vmem:[#allocation2 + $0xe1] sm:$0xff] %vm2392, %v2347
    %4264 = vst.msk [vmem:[#allocation2 + $0xe9] sm:$0xff] %vm2392, %v2348
    %4265 = vst.msk [vmem:[#allocation2 + $0xf1] sm:$0x7f] %vm2423, %v2349
    %v4266 = vld [vmem:[#allocation2] ss:$2 sm:$0xff]
    %v4267 = vld [vmem:[%s2426] ss:$2 sm:$0xff]
    %v4268 = vld [vmem:[%s2428] ss:$2 sm:$0xff]
    %v4269 = vld [vmem:[%s2430] ss:$2 sm:$0xff]
    %v4270 = vld [vmem:[%s2432] ss:$2 sm:$0xff]
    %v4271 = vld [vmem:[%s2434] ss:$2 sm:$0xff]
    %v4272 = vld [vmem:[%s2436] ss:$2 sm:$0xff]
    %v4273 = vld [vmem:[%s2438] ss:$2 sm:$0xff]
    %v4274 = vld [vmem:[%s2440] ss:$2 sm:$0xff]
    %v4275 = vld [vmem:[%s2442] ss:$2 sm:$0xff]
    %v4276 = vld [vmem:[%s2444] ss:$2 sm:$0xff]
    %v4277 = vld [vmem:[%s2446] ss:$2 sm:$0xff]
    %v4278 = vld [vmem:[%s2448] ss:$2 sm:$0xff]
    %v4279 = vld [vmem:[%s2450] ss:$2 sm:$0xff]
    %v4280 = vld [vmem:[%s2452] ss:$2 sm:$0xff]
    %v4281 = vld [vmem:[%s2454] ss:$2 sm:$0xff]
    %v4282 = vld [vmem:[%s2456] ss:$2 sm:$0xff]
    %v4283 = vld [vmem:[%s2458] ss:$2 sm:$0xff]
    %v4284 = vld [vmem:[%s2460] ss:$2 sm:$0xff]
    %v4285 = vld [vmem:[%s2462] ss:$2 sm:$0xff]
    %v4286 = vld [vmem:[%s2464] ss:$2 sm:$0xff]
    %v4287 = vld [vmem:[%s2466] ss:$2 sm:$0xff]
    %v4288 = vld [vmem:[%s2468] ss:$2 sm:$0xff]
    %v4289 = vld [vmem:[%s2470] ss:$2 sm:$0xff]
    %v4290 = vld [vmem:[%s2472] ss:$2 sm:$0xff]
    %v4291 = vld [vmem:[%s2474] ss:$2 sm:$0xff]
    %v4292 = vld [vmem:[%s2476] ss:$2 sm:$0xff]
    %v4293 = vld [vmem:[%s2478] ss:$2 sm:$0xff]
    %v4294 = vld [vmem:[%s2480] ss:$2 sm:$0xff]
    %v4295 = vld [vmem:[%s2482] ss:$2 sm:$0xff]
    %v4296 = vld [vmem:[%s2484] ss:$2 sm:$0xff]
    %v4297 = vld [vmem:[%s2486] ss:$2 sm:$0xff]
    %v4298 = vld [vmem:[%s2488] ss:$2 sm:$0xff]
    %v4299 = vld [vmem:[%s2490] ss:$2 sm:$0xff]
    %v4300 = vld [vmem:[%s2492] ss:$2 sm:$0xff]
    %v4301 = vld [vmem:[%s2494] ss:$2 sm:$0xff]
    %v4302 = vld [vmem:[%s2496] ss:$2 sm:$0xff]
    %v4303 = vld [vmem:[%s2498] ss:$2 sm:$0xff]
    %v4304 = vld [vmem:[%s2500] ss:$2 sm:$0xff]
    %v4305 = vld [vmem:[%s2502] ss:$2 sm:$0xff]
    %v4306 = vld [vmem:[%s2504] ss:$2 sm:$0xff]
    %v4307 = vld [vmem:[%s2506] ss:$2 sm:$0xff]
    %v4308 = vld [vmem:[%s2508] ss:$2 sm:$0xff]
    %v4309 = vld [vmem:[%s2510] ss:$2 sm:$0xff]
    %v4310 = vld [vmem:[%s2512] ss:$2 sm:$0xff]
    %v4311 = vld [vmem:[%s2514] ss:$2 sm:$0xff]
    %v4312 = vld [vmem:[%s2516] ss:$2 sm:$0xff]
    %v4313 = vld [vmem:[%s2518] ss:$2 sm:$0xff]
    %v4314 = vld [vmem:[%s2520] ss:$2 sm:$0xff]
    %v4315 = vld [vmem:[%s2522] ss:$2 sm:$0xff]
    %v4316 = vld [vmem:[%s2524] ss:$2 sm:$0xff]
    %v4317 = vld [vmem:[%s2526] ss:$2 sm:$0xff]
    %v4318 = vld [vmem:[%s2528] ss:$2 sm:$0xff]
    %v4319 = vld [vmem:[%s2530] ss:$2 sm:$0xff]
    %v4320 = vld [vmem:[%s2532] ss:$2 sm:$0xff]
    %v4321 = vld [vmem:[%s2534] ss:$2 sm:$0xff]
    %v4322 = vld [vmem:[%s2536] ss:$2 sm:$0xff]
    %v4323 = vld [vmem:[%s2538] ss:$2 sm:$0xff]
    %v4324 = vld [vmem:[%s2540] ss:$2 sm:$0xff]
    %v4325 = vld [vmem:[%s2542] ss:$2 sm:$0xff]
    %v4326 = vld [vmem:[%s2544] ss:$2 sm:$0xff]
    %v4327 = vld [vmem:[%s2546] ss:$2 sm:$0xff]
    %v4328 = vld [vmem:[%s2548] ss:$2 sm:$0xff]
    %v4329 = vld [vmem:[%s2550] ss:$2 sm:$0xff]
    %v4330 = vld [vmem:[%s2552] ss:$2 sm:$0xff]
    %v4331 = vld [vmem:[%s2554] ss:$2 sm:$0xff]
    %v4332 = vld [vmem:[%s2556] ss:$2 sm:$0xff]
    %v4333 = vld [vmem:[%s2558] ss:$2 sm:$0xff]
    %v4334 = vld [vmem:[%s2560] ss:$2 sm:$0xff]
    %v4335 = vld [vmem:[%s2562] ss:$2 sm:$0xff]
    %v4336 = vld [vmem:[%s2564] ss:$2 sm:$0xff]
    %v4337 = vld [vmem:[%s2566] ss:$2 sm:$0xff]
    %v4338 = vld [vmem:[%s2568] ss:$2 sm:$0xff]
    %v4339 = vld [vmem:[%s2570] ss:$2 sm:$0xff]
    %v4340 = vld [vmem:[%s2572] ss:$2 sm:$0xff]
    %v4341 = vld [vmem:[%s2574] ss:$2 sm:$0xff]
    %v4342 = vld [vmem:[%s2576] ss:$2 sm:$0xff]
    %v4343 = vld [vmem:[%s2578] ss:$2 sm:$0xff]
    %v4344 = vld [vmem:[%s2580] ss:$2 sm:$0xff]
    %v4345 = vld [vmem:[%s2582] ss:$2 sm:$0xff]
    %v4346 = vld [vmem:[%s2584] ss:$2 sm:$0xff]
    %v4347 = vld [vmem:[%s2586] ss:$2 sm:$0xff]
    %v4348 = vld [vmem:[%s2588] ss:$2 sm:$0xff]
    %v4349 = vld [vmem:[%s2590] ss:$2 sm:$0xff]
    %v4350 = vld [vmem:[%s2592] ss:$2 sm:$0xff]
    %v4351 = vld [vmem:[%s2594] ss:$2 sm:$0xff]
    %v4352 = vld [vmem:[%s2596] ss:$2 sm:$0xff]
    %v4353 = vld [vmem:[%s2598] ss:$2 sm:$0xff]
    %v4354 = vld [vmem:[%s2600] ss:$2 sm:$0xff]
    %v4355 = vld [vmem:[%s2602] ss:$2 sm:$0xff]
    %v4356 = vld [vmem:[%s2604] ss:$2 sm:$0xff]
    %v4357 = vld [vmem:[%s2606] ss:$2 sm:$0xff]
    %v4358 = vld [vmem:[%s2608] ss:$2 sm:$0xff]
    %v4359 = vld [vmem:[%s2610] ss:$2 sm:$0xff]
    %v4360 = vld [vmem:[%s2612] ss:$2 sm:$0xff]
    %v4361 = vld [vmem:[%s2614] ss:$2 sm:$0xff]
    %v4362 = vld [vmem:[%s2616] ss:$2 sm:$0xff]
    %v4363 = vld [vmem:[%s2618] ss:$2 sm:$0xff]
    %v4364 = vld [vmem:[%s2620] ss:$2 sm:$0xff]
    %v4365 = vld [vmem:[%s2622] ss:$2 sm:$0xff]
    %v4366 = vld [vmem:[%s2624] ss:$2 sm:$0xff]
    %v4367 = vld [vmem:[%s2626] ss:$2 sm:$0xff]
    %v4368 = vld [vmem:[%s2628] ss:$2 sm:$0xff]
    %v4369 = vld [vmem:[%s2630] ss:$2 sm:$0xff]
    %v4370 = vld [vmem:[%s2632] ss:$2 sm:$0xff]
    %v4371 = vld [vmem:[%s2634] ss:$2 sm:$0xff]
    %v4372 = vld [vmem:[%s2636] ss:$2 sm:$0xff]
    %v4373 = vld [vmem:[%s2638] ss:$2 sm:$0xff]
    %v4374 = vld [vmem:[%s2640] ss:$2 sm:$0xff]
    %v4375 = vld [vmem:[%s2642] ss:$2 sm:$0xff]
    %v4376 = vld [vmem:[%s2644] ss:$2 sm:$0xff]
    %v4377 = vld [vmem:[%s2646] ss:$2 sm:$0xff]
    %v4378 = vld [vmem:[%s2648] ss:$2 sm:$0xff]
    %v4379 = vld [vmem:[%s2650] ss:$2 sm:$0xff]
    %v4380 = vld [vmem:[%s2652] ss:$2 sm:$0xff]
    %v4381 = vld [vmem:[%s2654] ss:$2 sm:$0xff]
    %v4382 = vld [vmem:[%s2656] ss:$2 sm:$0xff]
    %v4383 = vld [vmem:[%s2658] ss:$2 sm:$0xff]
    %v4384 = vld [vmem:[%s2660] ss:$2 sm:$0xff]
    %v4385 = vld [vmem:[%s2662] ss:$2 sm:$0xff]
    %v4386 = vld [vmem:[%s2664] ss:$2 sm:$0xff]
    %v4387 = vld [vmem:[%s2666] ss:$2 sm:$0xff]
    %v4388 = vld [vmem:[%s2668] ss:$2 sm:$0xff]
    %v4389 = vld [vmem:[%s2670] ss:$2 sm:$0xff]
    %v4390 = vld [vmem:[%s2672] ss:$2 sm:$0xff]
    %v4391 = vld [vmem:[%s2674] ss:$2 sm:$0xff]
    %v4392 = vld [vmem:[%s2676] ss:$2 sm:$0xff]
    %v4393 = vld [vmem:[%s2678] ss:$2 sm:$0xff]
    %v4394 = vld [vmem:[%s2680] ss:$2 sm:$0xff]
    %v4395 = vld [vmem:[%s2682] ss:$2 sm:$0xff]
    %v4396 = vld [vmem:[%s2684] ss:$2 sm:$0xff]
    %v4397 = vld [vmem:[%s2686] ss:$2 sm:$0xff]
    %v4398 = vld [vmem:[%s2688] ss:$2 sm:$0xff]
    %v4399 = vld [vmem:[%s2690] ss:$2 sm:$0xff]
    %v4400 = vld [vmem:[%s2692] ss:$2 sm:$0xff]
    %v4401 = vld [vmem:[%s2694] ss:$2 sm:$0xff]
    %v4402 = vld [vmem:[%s2696] ss:$2 sm:$0xff]
    %v4403 = vld [vmem:[%s2698] ss:$2 sm:$0xff]
    %v4404 = vld [vmem:[%s2700] ss:$2 sm:$0xff]
    %v4405 = vld [vmem:[%s2702] ss:$2 sm:$0xff]
    %v4406 = vld [vmem:[%s2704] ss:$2 sm:$0xff]
    %v4407 = vld [vmem:[%s2706] ss:$2 sm:$0xff]
    %v4408 = vld [vmem:[%s2708] ss:$2 sm:$0xff]
    %v4409 = vld [vmem:[%s2710] ss:$2 sm:$0xff]
    %v4410 = vld [vmem:[%s2712] ss:$2 sm:$0xff]
    %v4411 = vld [vmem:[%s2714] ss:$2 sm:$0xff]
    %v4412 = vld [vmem:[%s2716] ss:$2 sm:$0xff]
    %v4413 = vld [vmem:[%s2718] ss:$2 sm:$0xff]
    %v4414 = vld [vmem:[%s2720] ss:$2 sm:$0xff]
    %v4415 = vld [vmem:[%s2722] ss:$2 sm:$0xff]
    %4431 = vrot.lane.b32.xlu0 %v4281, 16
    %v4432 = vpop.permute.xlu0 %4431
    %4433 = vrot.lane.b32.xlu0 %v4282, 16
    %v4434 = vpop.permute.xlu0 %4433
    %4435 = vrot.lane.b32.xlu0 %v4283, 16
    %v4436 = vpop.permute.xlu0 %4435
    %4437 = vrot.lane.b32.xlu0 %v4284, 16
    %v4438 = vpop.permute.xlu0 %4437
    %4439 = vrot.lane.b32.xlu0 %v4285, 16
    %v4440 = vpop.permute.xlu0 %4439
    %4441 = vrot.lane.b32.xlu0 %v4286, 16
    %v4442 = vpop.permute.xlu0 %4441
    %4443 = vrot.lane.b32.xlu0 %v4287, 16
    %v4444 = vpop.permute.xlu0 %4443
    %4445 = vrot.lane.b32.xlu0 %v4288, 16
    %v4446 = vpop.permute.xlu0 %4445
    %4447 = vrot.lane.b32.xlu0 %v4289, 16
    %v4448 = vpop.permute.xlu0 %4447
    %4449 = vrot.lane.b32.xlu0 %v4290, 16
    %v4450 = vpop.permute.xlu0 %4449
    %4451 = vrot.lane.b32.xlu0 %v4291, 16
    %v4452 = vpop.permute.xlu0 %4451
    %4453 = vrot.lane.b32.xlu0 %v4292, 16
    %v4454 = vpop.permute.xlu0 %4453
    %4455 = vrot.lane.b32.xlu0 %v4293, 16
    %v4456 = vpop.permute.xlu0 %4455
    %4457 = vrot.lane.b32.xlu0 %v4294, 16
    %v4458 = vpop.permute.xlu0 %4457
    %4459 = vrot.lane.b32.xlu0 %v4295, 16
    %v4460 = vpop.permute.xlu0 %4459
    %4491 = vrot.lane.b32.xlu0 %v4296, 32
    %v4492 = vpop.permute.xlu0 %4491
    %4493 = vrot.lane.b32.xlu0 %v4297, 32
    %v4494 = vpop.permute.xlu0 %4493
    %4495 = vrot.lane.b32.xlu0 %v4298, 32
    %v4496 = vpop.permute.xlu0 %4495
    %4497 = vrot.lane.b32.xlu0 %v4299, 32
    %v4498 = vpop.permute.xlu0 %4497
    %4499 = vrot.lane.b32.xlu0 %v4300, 32
    %v4500 = vpop.permute.xlu0 %4499
    %4501 = vrot.lane.b32.xlu0 %v4301, 32
    %v4502 = vpop.permute.xlu0 %4501
    %4503 = vrot.lane.b32.xlu0 %v4302, 32
    %v4504 = vpop.permute.xlu0 %4503
    %4505 = vrot.lane.b32.xlu0 %v4303, 32
    %v4506 = vpop.permute.xlu0 %4505
    %4507 = vrot.lane.b32.xlu0 %v4304, 32
    %v4508 = vpop.permute.xlu0 %4507
    %4509 = vrot.lane.b32.xlu0 %v4305, 32
    %v4510 = vpop.permute.xlu0 %4509
    %4511 = vrot.lane.b32.xlu0 %v4306, 32
    %v4512 = vpop.permute.xlu0 %4511
    %4513 = vrot.lane.b32.xlu0 %v4307, 32
    %v4514 = vpop.permute.xlu0 %4513
    %4515 = vrot.lane.b32.xlu0 %v4308, 32
    %v4516 = vpop.permute.xlu0 %4515
    %4517 = vrot.lane.b32.xlu0 %v4309, 32
    %v4518 = vpop.permute.xlu0 %4517
    %4519 = vrot.lane.b32.xlu0 %v4310, 32
    %v4520 = vpop.permute.xlu0 %4519
    %4551 = vrot.lane.b32.xlu0 %v4311, 48
    %v4552 = vpop.permute.xlu0 %4551
    %4553 = vrot.lane.b32.xlu0 %v4312, 48
    %v4554 = vpop.permute.xlu0 %4553
    %4555 = vrot.lane.b32.xlu0 %v4313, 48
    %v4556 = vpop.permute.xlu0 %4555
    %4557 = vrot.lane.b32.xlu0 %v4314, 48
    %v4558 = vpop.permute.xlu0 %4557
    %4559 = vrot.lane.b32.xlu0 %v4315, 48
    %v4560 = vpop.permute.xlu0 %4559
    %4561 = vrot.lane.b32.xlu0 %v4316, 48
    %v4562 = vpop.permute.xlu0 %4561
    %4563 = vrot.lane.b32.xlu0 %v4317, 48
    %v4564 = vpop.permute.xlu0 %4563
    %4565 = vrot.lane.b32.xlu0 %v4318, 48
    %v4566 = vpop.permute.xlu0 %4565
    %4567 = vrot.lane.b32.xlu0 %v4319, 48
    %v4568 = vpop.permute.xlu0 %4567
    %4569 = vrot.lane.b32.xlu0 %v4320, 48
    %v4570 = vpop.permute.xlu0 %4569
    %4571 = vrot.lane.b32.xlu0 %v4321, 48
    %v4572 = vpop.permute.xlu0 %4571
    %4573 = vrot.lane.b32.xlu0 %v4322, 48
    %v4574 = vpop.permute.xlu0 %4573
    %4575 = vrot.lane.b32.xlu0 %v4323, 48
    %v4576 = vpop.permute.xlu0 %4575
    %4577 = vrot.lane.b32.xlu0 %v4324, 48
    %v4578 = vpop.permute.xlu0 %4577
    %4579 = vrot.lane.b32.xlu0 %v4325, 48
    %v4580 = vpop.permute.xlu0 %4579
    %4611 = vrot.lane.b32.xlu0 %v4326, 64
    %v4612 = vpop.permute.xlu0 %4611
    %4613 = vrot.lane.b32.xlu0 %v4327, 64
    %v4614 = vpop.permute.xlu0 %4613
    %4615 = vrot.lane.b32.xlu0 %v4328, 64
    %v4616 = vpop.permute.xlu0 %4615
    %4617 = vrot.lane.b32.xlu0 %v4329, 64
    %v4618 = vpop.permute.xlu0 %4617
    %4619 = vrot.lane.b32.xlu0 %v4330, 64
    %v4620 = vpop.permute.xlu0 %4619
    %4621 = vrot.lane.b32.xlu0 %v4331, 64
    %v4622 = vpop.permute.xlu0 %4621
    %4623 = vrot.lane.b32.xlu0 %v4332, 64
    %v4624 = vpop.permute.xlu0 %4623
    %4625 = vrot.lane.b32.xlu0 %v4333, 64
    %v4626 = vpop.permute.xlu0 %4625
    %4627 = vrot.lane.b32.xlu0 %v4334, 64
    %v4628 = vpop.permute.xlu0 %4627
    %4629 = vrot.lane.b32.xlu0 %v4335, 64
    %v4630 = vpop.permute.xlu0 %4629
    %4631 = vrot.lane.b32.xlu0 %v4336, 64
    %v4632 = vpop.permute.xlu0 %4631
    %4633 = vrot.lane.b32.xlu0 %v4337, 64
    %v4634 = vpop.permute.xlu0 %4633
    %4635 = vrot.lane.b32.xlu0 %v4338, 64
    %v4636 = vpop.permute.xlu0 %4635
    %4637 = vrot.lane.b32.xlu0 %v4339, 64
    %v4638 = vpop.permute.xlu0 %4637
    %4639 = vrot.lane.b32.xlu0 %v4340, 64
    %v4640 = vpop.permute.xlu0 %4639
    %4671 = vrot.lane.b32.xlu0 %v4341, 80
    %v4672 = vpop.permute.xlu0 %4671
    %4673 = vrot.lane.b32.xlu0 %v4342, 80
    %v4674 = vpop.permute.xlu0 %4673
    %4675 = vrot.lane.b32.xlu0 %v4343, 80
    %v4676 = vpop.permute.xlu0 %4675
    %4677 = vrot.lane.b32.xlu0 %v4344, 80
    %v4678 = vpop.permute.xlu0 %4677
    %4679 = vrot.lane.b32.xlu0 %v4345, 80
    %v4680 = vpop.permute.xlu0 %4679
    %4681 = vrot.lane.b32.xlu0 %v4346, 80
    %v4682 = vpop.permute.xlu0 %4681
    %4683 = vrot.lane.b32.xlu0 %v4347, 80
    %v4684 = vpop.permute.xlu0 %4683
    %4685 = vrot.lane.b32.xlu0 %v4348, 80
    %v4686 = vpop.permute.xlu0 %4685
    %4687 = vrot.lane.b32.xlu0 %v4349, 80
    %v4688 = vpop.permute.xlu0 %4687
    %4689 = vrot.lane.b32.xlu0 %v4350, 80
    %v4690 = vpop.permute.xlu0 %4689
    %4691 = vrot.lane.b32.xlu0 %v4351, 80
    %v4692 = vpop.permute.xlu0 %4691
    %4693 = vrot.lane.b32.xlu0 %v4352, 80
    %v4694 = vpop.permute.xlu0 %4693
    %4695 = vrot.lane.b32.xlu0 %v4353, 80
    %v4696 = vpop.permute.xlu0 %4695
    %4697 = vrot.lane.b32.xlu0 %v4354, 80
    %v4698 = vpop.permute.xlu0 %4697
    %4699 = vrot.lane.b32.xlu0 %v4355, 80
    %v4700 = vpop.permute.xlu0 %4699
    %4731 = vrot.lane.b32.xlu0 %v4356, 96
    %v4732 = vpop.permute.xlu0 %4731
    %4733 = vrot.lane.b32.xlu0 %v4357, 96
    %v4734 = vpop.permute.xlu0 %4733
    %4735 = vrot.lane.b32.xlu0 %v4358, 96
    %v4736 = vpop.permute.xlu0 %4735
    %4737 = vrot.lane.b32.xlu0 %v4359, 96
    %v4738 = vpop.permute.xlu0 %4737
    %4739 = vrot.lane.b32.xlu0 %v4360, 96
    %v4740 = vpop.permute.xlu0 %4739
    %4741 = vrot.lane.b32.xlu0 %v4361, 96
    %v4742 = vpop.permute.xlu0 %4741
    %4743 = vrot.lane.b32.xlu0 %v4362, 96
    %v4744 = vpop.permute.xlu0 %4743
    %4745 = vrot.lane.b32.xlu0 %v4363, 96
    %v4746 = vpop.permute.xlu0 %4745
    %4747 = vrot.lane.b32.xlu0 %v4364, 96
    %v4748 = vpop.permute.xlu0 %4747
    %4749 = vrot.lane.b32.xlu0 %v4365, 96
    %v4750 = vpop.permute.xlu0 %4749
    %4751 = vrot.lane.b32.xlu0 %v4366, 96
    %v4752 = vpop.permute.xlu0 %4751
    %4753 = vrot.lane.b32.xlu0 %v4367, 96
    %v4754 = vpop.permute.xlu0 %4753
    %4755 = vrot.lane.b32.xlu0 %v4368, 96
    %v4756 = vpop.permute.xlu0 %4755
    %4757 = vrot.lane.b32.xlu0 %v4369, 96
    %v4758 = vpop.permute.xlu0 %4757
    %4759 = vrot.lane.b32.xlu0 %v4370, 96
    %v4760 = vpop.permute.xlu0 %4759
    %4791 = vrot.lane.b32.xlu0 %v4371, 112
    %v4792 = vpop.permute.xlu0 %4791
    %4793 = vrot.lane.b32.xlu0 %v4372, 112
    %v4794 = vpop.permute.xlu0 %4793
    %4795 = vrot.lane.b32.xlu0 %v4373, 112
    %v4796 = vpop.permute.xlu0 %4795
    %4797 = vrot.lane.b32.xlu0 %v4374, 112
    %v4798 = vpop.permute.xlu0 %4797
    %4799 = vrot.lane.b32.xlu0 %v4375, 112
    %v4800 = vpop.permute.xlu0 %4799
    %4801 = vrot.lane.b32.xlu0 %v4376, 112
    %v4802 = vpop.permute.xlu0 %4801
    %4803 = vrot.lane.b32.xlu0 %v4377, 112
    %v4804 = vpop.permute.xlu0 %4803
    %4805 = vrot.lane.b32.xlu0 %v4378, 112
    %v4806 = vpop.permute.xlu0 %4805
    %4807 = vrot.lane.b32.xlu0 %v4379, 112
    %v4808 = vpop.permute.xlu0 %4807
    %4809 = vrot.lane.b32.xlu0 %v4380, 112
    %v4810 = vpop.permute.xlu0 %4809
    %4811 = vrot.lane.b32.xlu0 %v4381, 112
    %v4812 = vpop.permute.xlu0 %4811
    %4813 = vrot.lane.b32.xlu0 %v4382, 112
    %v4814 = vpop.permute.xlu0 %4813
    %4815 = vrot.lane.b32.xlu0 %v4383, 112
    %v4816 = vpop.permute.xlu0 %4815
    %4817 = vrot.lane.b32.xlu0 %v4384, 112
    %v4818 = vpop.permute.xlu0 %4817
    %4819 = vrot.lane.b32.xlu0 %v4385, 112
    %v4820 = vpop.permute.xlu0 %4819
    %4851 = vrot.lane.b32.xlu0 %v4401, 16
    %v4852 = vpop.permute.xlu0 %4851
    %4853 = vrot.lane.b32.xlu0 %v4402, 16
    %v4854 = vpop.permute.xlu0 %4853
    %4855 = vrot.lane.b32.xlu0 %v4403, 16
    %v4856 = vpop.permute.xlu0 %4855
    %4857 = vrot.lane.b32.xlu0 %v4404, 16
    %v4858 = vpop.permute.xlu0 %4857
    %4859 = vrot.lane.b32.xlu0 %v4405, 16
    %v4860 = vpop.permute.xlu0 %4859
    %4861 = vrot.lane.b32.xlu0 %v4406, 16
    %v4862 = vpop.permute.xlu0 %4861
    %4863 = vrot.lane.b32.xlu0 %v4407, 16
    %v4864 = vpop.permute.xlu0 %4863
    %4865 = vrot.lane.b32.xlu0 %v4408, 16
    %v4866 = vpop.permute.xlu0 %4865
    %4867 = vrot.lane.b32.xlu0 %v4409, 16
    %v4868 = vpop.permute.xlu0 %4867
    %4869 = vrot.lane.b32.xlu0 %v4410, 16
    %v4870 = vpop.permute.xlu0 %4869
    %4871 = vrot.lane.b32.xlu0 %v4411, 16
    %v4872 = vpop.permute.xlu0 %4871
    %4873 = vrot.lane.b32.xlu0 %v4412, 16
    %v4874 = vpop.permute.xlu0 %4873
    %4875 = vrot.lane.b32.xlu0 %v4413, 16
    %v4876 = vpop.permute.xlu0 %4875
    %4877 = vrot.lane.b32.xlu0 %v4414, 16
    %v4878 = vpop.permute.xlu0 %4877
    %4879 = vrot.lane.b32.xlu0 %v4415, 16
    %v4880 = vpop.permute.xlu0 %4879
    %v4896 = vsel %vm2392, %v4266, %v4432
    %v4897 = vsel %vm2392, %v4267, %v4434
    %v4898 = vsel %vm2392, %v4268, %v4436
    %v4899 = vsel %vm2392, %v4269, %v4438
    %v4900 = vsel %vm2392, %v4270, %v4440
    %v4901 = vsel %vm2392, %v4271, %v4442
    %v4902 = vsel %vm2392, %v4272, %v4444
    %v4903 = vsel %vm2392, %v4273, %v4446
    %v4904 = vsel %vm2392, %v4274, %v4448
    %v4905 = vsel %vm2392, %v4275, %v4450
    %v4906 = vsel %vm2392, %v4276, %v4452
    %v4907 = vsel %vm2392, %v4277, %v4454
    %v4908 = vsel %vm2392, %v4278, %v4456
    %v4909 = vsel %vm2392, %v4279, %v4458
    %v4910 = vsel %vm2392, %v4280, %v4460
    %v4911 = vsel %vm556, %v4896, %v4492
    %v4912 = vsel %vm556, %v4897, %v4494
    %v4913 = vsel %vm556, %v4898, %v4496
    %v4914 = vsel %vm556, %v4899, %v4498
    %v4915 = vsel %vm556, %v4900, %v4500
    %v4916 = vsel %vm556, %v4901, %v4502
    %v4917 = vsel %vm556, %v4902, %v4504
    %v4918 = vsel %vm556, %v4903, %v4506
    %v4919 = vsel %vm556, %v4904, %v4508
    %v4920 = vsel %vm556, %v4905, %v4510
    %v4921 = vsel %vm556, %v4906, %v4512
    %v4922 = vsel %vm556, %v4907, %v4514
    %v4923 = vsel %vm556, %v4908, %v4516
    %v4924 = vsel %vm556, %v4909, %v4518
    %v4925 = vsel %vm556, %v4910, %v4520
    %v4926 = vsel %vm3234, %v4911, %v4552
    %v4927 = vsel %vm3234, %v4912, %v4554
    %v4928 = vsel %vm3234, %v4913, %v4556
    %v4929 = vsel %vm3234, %v4914, %v4558
    %v4930 = vsel %vm3234, %v4915, %v4560
    %v4931 = vsel %vm3234, %v4916, %v4562
    %v4932 = vsel %vm3234, %v4917, %v4564
    %v4933 = vsel %vm3234, %v4918, %v4566
    %v4934 = vsel %vm3234, %v4919, %v4568
    %v4935 = vsel %vm3234, %v4920, %v4570
    %v4936 = vsel %vm3234, %v4921, %v4572
    %v4937 = vsel %vm3234, %v4922, %v4574
    %v4938 = vsel %vm3234, %v4923, %v4576
    %v4939 = vsel %vm3234, %v4924, %v4578
    %v4940 = vsel %vm3234, %v4925, %v4580
    %v4941 = vsel %vm3250, %v4926, %v4612
    %v4942 = vsel %vm3250, %v4927, %v4614
    %v4943 = vsel %vm3250, %v4928, %v4616
    %v4944 = vsel %vm3250, %v4929, %v4618
    %v4945 = vsel %vm3250, %v4930, %v4620
    %v4946 = vsel %vm3250, %v4931, %v4622
    %v4947 = vsel %vm3250, %v4932, %v4624
    %v4948 = vsel %vm3250, %v4933, %v4626
    %v4949 = vsel %vm3250, %v4934, %v4628
    %v4950 = vsel %vm3250, %v4935, %v4630
    %v4951 = vsel %vm3250, %v4936, %v4632
    %v4952 = vsel %vm3250, %v4937, %v4634
    %v4953 = vsel %vm3250, %v4938, %v4636
    %v4954 = vsel %vm3250, %v4939, %v4638
    %v4955 = vsel %vm3250, %v4940, %v4640
    %v4956 = vsel %vm3266, %v4941, %v4672
    %v4957 = vsel %vm3266, %v4942, %v4674
    %v4958 = vsel %vm3266, %v4943, %v4676
    %v4959 = vsel %vm3266, %v4944, %v4678
    %v4960 = vsel %vm3266, %v4945, %v4680
    %v4961 = vsel %vm3266, %v4946, %v4682
    %v4962 = vsel %vm3266, %v4947, %v4684
    %v4963 = vsel %vm3266, %v4948, %v4686
    %v4964 = vsel %vm3266, %v4949, %v4688
    %v4965 = vsel %vm3266, %v4950, %v4690
    %v4966 = vsel %vm3266, %v4951, %v4692
    %v4967 = vsel %vm3266, %v4952, %v4694
    %v4968 = vsel %vm3266, %v4953, %v4696
    %v4969 = vsel %vm3266, %v4954, %v4698
    %v4970 = vsel %vm3266, %v4955, %v4700
    %v4971 = vsel %vm3282, %v4956, %v4732
    %v4972 = vsel %vm3282, %v4957, %v4734
    %v4973 = vsel %vm3282, %v4958, %v4736
    %v4974 = vsel %vm3282, %v4959, %v4738
    %v4975 = vsel %vm3282, %v4960, %v4740
    %v4976 = vsel %vm3282, %v4961, %v4742
    %v4977 = vsel %vm3282, %v4962, %v4744
    %v4978 = vsel %vm3282, %v4963, %v4746
    %v4979 = vsel %vm3282, %v4964, %v4748
    %v4980 = vsel %vm3282, %v4965, %v4750
    %v4981 = vsel %vm3282, %v4966, %v4752
    %v4982 = vsel %vm3282, %v4967, %v4754
    %v4983 = vsel %vm3282, %v4968, %v4756
    %v4984 = vsel %vm3282, %v4969, %v4758
    %v4985 = vsel %vm3282, %v4970, %v4760
    %v4986 = vsel %vm3298, %v4971, %v4792
    %v4987 = vsel %vm3298, %v4972, %v4794
    %v4988 = vsel %vm3298, %v4973, %v4796
    %v4989 = vsel %vm3298, %v4974, %v4798
    %v4990 = vsel %vm3298, %v4975, %v4800
    %v4991 = vsel %vm3298, %v4976, %v4802
    %v4992 = vsel %vm3298, %v4977, %v4804
    %v4993 = vsel %vm3298, %v4978, %v4806
    %v4994 = vsel %vm3298, %v4979, %v4808
    %v4995 = vsel %vm3298, %v4980, %v4810
    %v4996 = vsel %vm3298, %v4981, %v4812
    %v4997 = vsel %vm3298, %v4982, %v4814
    %v4998 = vsel %vm3298, %v4983, %v4816
    %v4999 = vsel %vm3298, %v4984, %v4818
    %v5000 = vsel %vm3298, %v4985, %v4820
    %v5001 = vsel %vm2392, %v4386, %v4852
    %v5002 = vsel %vm2392, %v4387, %v4854
    %v5003 = vsel %vm2392, %v4388, %v4856
    %v5004 = vsel %vm2392, %v4389, %v4858
    %v5005 = vsel %vm2392, %v4390, %v4860
    %v5006 = vsel %vm2392, %v4391, %v4862
    %v5007 = vsel %vm2392, %v4392, %v4864
    %v5008 = vsel %vm2392, %v4393, %v4866
    %v5009 = vsel %vm2392, %v4394, %v4868
    %v5010 = vsel %vm2392, %v4395, %v4870
    %v5011 = vsel %vm2392, %v4396, %v4872
    %v5012 = vsel %vm2392, %v4397, %v4874
    %v5013 = vsel %vm2392, %v4398, %v4876
    %v5014 = vsel %vm2392, %v4399, %v4878
    %v5015 = vsel %vm2392, %v4400, %v4880
    %v5017 = vsel %vm556, %v5001, 0
    %v5020 = vsel %vm556, %v5002, 0
    %v5023 = vsel %vm556, %v5003, 0
    %v5026 = vsel %vm556, %v5004, 0
    %v5029 = vsel %vm556, %v5005, 0
    %v5032 = vsel %vm556, %v5006, 0
    %v5035 = vsel %vm556, %v5007, 0
    %v5038 = vsel %vm556, %v5008, 0
    %v5041 = vsel %vm556, %v5009, 0
    %v5044 = vsel %vm556, %v5010, 0
    %v5047 = vsel %vm556, %v5011, 0
    %v5050 = vsel %vm556, %v5012, 0
    %v5053 = vsel %vm556, %v5013, 0
    %v5056 = vsel %vm556, %v5014, 0
    %v5059 = vsel %vm556, %v5015, 0
    %5061 = vmatpush.msra.mxu0 %v2365
    %5062 = vmatpush.msra.mxu0 %v2364
    %5063 = vmatpush.msra.mxu0 %v2363
    %5064 = vmatpush.msra.mxu0 %v2362
    %5065 = vmatpush.msra.mxu0 %v2361
    %5066 = vmatpush.msra.mxu0 %v2360
    %5067 = vmatpush.msra.mxu0 %v2359
    %5068 = vmatpush.msra.mxu0 %v2358
    %5069 = vmatpush.msra.mxu0 %v2357
    %5070 = vmatpush.msra.mxu0 %v2356
    %5071 = vmatpush.msra.mxu0 %v2355
    %5072 = vmatpush.msra.mxu0 %v2354
    %5073 = vmatpush.msra.mxu0 %v2353
    %5074 = vmatpush.msra.mxu0 %v2352
    %5075 = vmatpush.msra.mxu0 %v2351
    %5076 = vmatpush.msra.mxu0 %v2350
    %5077 = vmatmul.f32.gmra.mxu0 %v4986
    %v5078 = vpop.f32.mrf.mxu0
    %v5079 = vadd.f32 %v3329, %v5078
    %5080 = vmatmul.f32.gmra.mxu0 %v4987
    %v5081 = vpop.f32.mrf.mxu0
    %v5082 = vadd.f32 %v3329, %v5081
    %5083 = vmatmul.f32.gmra.mxu0 %v4988
    %v5084 = vpop.f32.mrf.mxu0
    %v5085 = vadd.f32 %v3329, %v5084
    %5086 = vmatmul.f32.gmra.mxu0 %v4989
    %v5087 = vpop.f32.mrf.mxu0
    %v5088 = vadd.f32 %v3329, %v5087
    %5089 = vmatmul.f32.gmra.mxu0 %v4990
    %v5090 = vpop.f32.mrf.mxu0
    %v5091 = vadd.f32 %v3329, %v5090
    %5092 = vmatmul.f32.gmra.mxu0 %v4991
    %v5093 = vpop.f32.mrf.mxu0
    %v5094 = vadd.f32 %v3329, %v5093
    %5095 = vmatmul.f32.gmra.mxu0 %v4992
    %v5096 = vpop.f32.mrf.mxu0
    %v5097 = vadd.f32 %v3329, %v5096
    %5098 = vmatmul.f32.gmra.mxu0 %v4993
    %v5099 = vpop.f32.mrf.mxu0
    %v5100 = vadd.f32 %v3329, %v5099
    %5101 = vmatmul.f32.gmra.mxu0 %v4994
    %v5102 = vpop.f32.mrf.mxu0
    %v5103 = vadd.f32 %v3329, %v5102
    %5104 = vmatmul.f32.gmra.mxu0 %v4995
    %v5105 = vpop.f32.mrf.mxu0
    %v5106 = vadd.f32 %v3329, %v5105
    %5107 = vmatmul.f32.gmra.mxu0 %v4996
    %v5108 = vpop.f32.mrf.mxu0
    %v5109 = vadd.f32 %v3329, %v5108
    %5110 = vmatmul.f32.gmra.mxu0 %v4997
    %v5111 = vpop.f32.mrf.mxu0
    %v5112 = vadd.f32 %v3329, %v5111
    %5113 = vmatmul.f32.gmra.mxu0 %v4998
    %v5114 = vpop.f32.mrf.mxu0
    %v5115 = vadd.f32 %v3329, %v5114
    %5116 = vmatmul.f32.gmra.mxu0 %v4999
    %v5117 = vpop.f32.mrf.mxu0
    %v5118 = vadd.f32 %v3329, %v5117
    %5119 = vmatmul.f32.gmra.mxu0 %v5000
    %v5120 = vpop.f32.mrf.mxu0
    %v5121 = vadd.f32 %v3329, %v5120
    %5122 = vdwg.mxu0
    %5123 = vmatpush.msra.mxu0 0.0
    %5124 = vmatpush.msra.mxu0 0.0
    %5125 = vmatpush.msra.mxu0 0.0
    %5126 = vmatpush.msra.mxu0 0.0
    %5127 = vmatpush.msra.mxu0 0.0
    %5128 = vmatpush.msra.mxu0 0.0
    %5129 = vmatpush.msra.mxu0 0.0
    %5130 = vmatpush.msra.mxu0 0.0
    %5131 = vmatpush.msra.mxu0 0.0
    %5132 = vmatpush.msra.mxu0 0.0
    %5133 = vmatpush.msra.mxu0 0.0
    %5134 = vmatpush.msra.mxu0 0.0
    %5135 = vmatpush.msra.mxu0 %v2369
    %5136 = vmatpush.msra.mxu0 %v2368
    %5137 = vmatpush.msra.mxu0 %v2367
    %5138 = vmatpush.msra.mxu0 %v2366
    %5139 = vmatmul.f32.gmra.mxu0 %v5017
    %v5140 = vpop.f32.mrf.mxu0
    %v5141 = vadd.f32 %v5079, %v5140
    %5142 = vmatmul.f32.gmra.mxu0 %v5020
    %v5143 = vpop.f32.mrf.mxu0
    %v5144 = vadd.f32 %v5082, %v5143
    %5145 = vmatmul.f32.gmra.mxu0 %v5023
    %v5146 = vpop.f32.mrf.mxu0
    %v5147 = vadd.f32 %v5085, %v5146
    %5148 = vmatmul.f32.gmra.mxu0 %v5026
    %v5149 = vpop.f32.mrf.mxu0
    %v5150 = vadd.f32 %v5088, %v5149
    %5151 = vmatmul.f32.gmra.mxu0 %v5029
    %v5152 = vpop.f32.mrf.mxu0
    %v5153 = vadd.f32 %v5091, %v5152
    %5154 = vmatmul.f32.gmra.mxu0 %v5032
    %v5155 = vpop.f32.mrf.mxu0
    %v5156 = vadd.f32 %v5094, %v5155
    %5157 = vmatmul.f32.gmra.mxu0 %v5035
    %v5158 = vpop.f32.mrf.mxu0
    %v5159 = vadd.f32 %v5097, %v5158
    %5160 = vmatmul.f32.gmra.mxu0 %v5038
    %v5161 = vpop.f32.mrf.mxu0
    %v5162 = vadd.f32 %v5100, %v5161
    %5163 = vmatmul.f32.gmra.mxu0 %v5041
    %v5164 = vpop.f32.mrf.mxu0
    %v5165 = vadd.f32 %v5103, %v5164
    %5166 = vmatmul.f32.gmra.mxu0 %v5044
    %v5167 = vpop.f32.mrf.mxu0
    %v5168 = vadd.f32 %v5106, %v5167
    %5169 = vmatmul.f32.gmra.mxu0 %v5047
    %v5170 = vpop.f32.mrf.mxu0
    %v5171 = vadd.f32 %v5109, %v5170
    %5172 = vmatmul.f32.gmra.mxu0 %v5050
    %v5173 = vpop.f32.mrf.mxu0
    %v5174 = vadd.f32 %v5112, %v5173
    %5175 = vmatmul.f32.gmra.mxu0 %v5053
    %v5176 = vpop.f32.mrf.mxu0
    %v5177 = vadd.f32 %v5115, %v5176
    %5178 = vmatmul.f32.gmra.mxu0 %v5056
    %v5179 = vpop.f32.mrf.mxu0
    %v5180 = vadd.f32 %v5118, %v5179
    %5181 = vmatmul.f32.gmra.mxu0 %v5059
    %v5182 = vpop.f32.mrf.mxu0
    %v5183 = vadd.f32 %v5121, %v5182
    %5184 = vdwg.mxu0
    %vm5185 = vcmp.gt.f32.partialorder %v5141, 0.0
    %vm5186 = vcmp.gt.f32.partialorder %v5144, 0.0
    %vm5187 = vcmp.gt.f32.partialorder %v5147, 0.0
    %vm5188 = vcmp.gt.f32.partialorder %v5150, 0.0
    %vm5189 = vcmp.gt.f32.partialorder %v5153, 0.0
    %vm5190 = vcmp.gt.f32.partialorder %v5156, 0.0
    %vm5191 = vcmp.gt.f32.partialorder %v5159, 0.0
    %vm5192 = vcmp.gt.f32.partialorder %v5162, 0.0
    %vm5193 = vcmp.gt.f32.partialorder %v5165, 0.0
    %vm5194 = vcmp.gt.f32.partialorder %v5168, 0.0
    %vm5195 = vcmp.gt.f32.partialorder %v5171, 0.0
    %vm5196 = vcmp.gt.f32.partialorder %v5174, 0.0
    %vm5197 = vcmp.gt.f32.partialorder %v5177, 0.0
    %vm5198 = vcmp.gt.f32.partialorder %v5180, 0.0
    %vm5199 = vcmp.gt.f32.partialorder %v5183, 0.0
    %v5200 = vmul.f32 %v5141, 0.01
    %v5201 = vmul.f32 %v5144, 0.01
    %v5202 = vmul.f32 %v5147, 0.01
    %v5203 = vmul.f32 %v5150, 0.01
    %v5204 = vmul.f32 %v5153, 0.01
    %v5205 = vmul.f32 %v5156, 0.01
    %v5206 = vmul.f32 %v5159, 0.01
    %v5207 = vmul.f32 %v5162, 0.01
    %v5208 = vmul.f32 %v5165, 0.01
    %v5209 = vmul.f32 %v5168, 0.01
    %v5210 = vmul.f32 %v5171, 0.01
    %v5211 = vmul.f32 %v5174, 0.01
    %v5212 = vmul.f32 %v5177, 0.01
    %v5213 = vmul.f32 %v5180, 0.01
    %v5214 = vmul.f32 %v5183, 0.01
    %v5215 = vsel %vm5185, %v5141, %v5200
    %v5216 = vsel %vm5186, %v5144, %v5201
    %v5217 = vsel %vm5187, %v5147, %v5202
    %v5218 = vsel %vm5188, %v5150, %v5203
    %v5219 = vsel %vm5189, %v5153, %v5204
    %v5220 = vsel %vm5190, %v5156, %v5205
    %v5221 = vsel %vm5191, %v5159, %v5206
    %v5222 = vsel %vm5192, %v5162, %v5207
    %v5223 = vsel %vm5193, %v5165, %v5208
    %v5224 = vsel %vm5194, %v5168, %v5209
    %v5225 = vsel %vm5195, %v5171, %v5210
    %v5226 = vsel %vm5196, %v5174, %v5211
    %v5227 = vsel %vm5197, %v5177, %v5212
    %v5228 = vsel %vm5198, %v5180, %v5213
    %v5229 = vsel %vm5199, %v5183, %v5214
    %5230 = vst.msk [vmem:[#allocation3 + $0x1] sm:$0xff] %vm2392, %v5215
    %5231 = vst.msk [vmem:[#allocation3 + $0x9] sm:$0xff] %vm2392, %v5216
    %5232 = vst.msk [vmem:[#allocation3 + $0x11] sm:$0xff] %vm2392, %v5217
    %5233 = vst.msk [vmem:[#allocation3 + $0x19] sm:$0xff] %vm2392, %v5218
    %5234 = vst.msk [vmem:[#allocation3 + $0x21] sm:$0xff] %vm2392, %v5219
    %5235 = vst.msk [vmem:[#allocation3 + $0x29] sm:$0xff] %vm2392, %v5220
    %5236 = vst.msk [vmem:[#allocation3 + $0x31] sm:$0xff] %vm2392, %v5221
    %5237 = vst.msk [vmem:[#allocation3 + $0x39] sm:$0xff] %vm2392, %v5222
    %5238 = vst.msk [vmem:[#allocation3 + $0x41] sm:$0xff] %vm2392, %v5223
    %5239 = vst.msk [vmem:[#allocation3 + $0x49] sm:$0xff] %vm2392, %v5224
    %5240 = vst.msk [vmem:[#allocation3 + $0x51] sm:$0xff] %vm2392, %v5225
    %5241 = vst.msk [vmem:[#allocation3 + $0x59] sm:$0xff] %vm2392, %v5226
    %5242 = vst.msk [vmem:[#allocation3 + $0x61] sm:$0xff] %vm2392, %v5227
    %5243 = vst.msk [vmem:[#allocation3 + $0x69] sm:$0xff] %vm2392, %v5228
    %5244 = vst.msk [vmem:[#allocation3 + $0x71] sm:$0xff] %vm2392, %v5229
    %v5245 = vld [vmem:[#allocation3] ss:$2 sm:$0xff]
    %v5246 = vld [vmem:[%s3560] ss:$2 sm:$0xff]
    %v5247 = vld [vmem:[%s3562] ss:$2 sm:$0xff]
    %v5248 = vld [vmem:[%s3564] ss:$2 sm:$0xff]
    %v5249 = vld [vmem:[%s3566] ss:$2 sm:$0xff]
    %v5250 = vld [vmem:[%s3568] ss:$2 sm:$0xff]
    %v5251 = vld [vmem:[%s3570] ss:$2 sm:$0xff]
    %v5252 = vld [vmem:[%s3572] ss:$2 sm:$0x1]
    %v5253 = vld [vmem:[%s3574] ss:$2 sm:$0xff]
    %v5254 = vld [vmem:[%s3576] ss:$2 sm:$0xff]
    %v5255 = vld [vmem:[%s3578] ss:$2 sm:$0xff]
    %v5256 = vld [vmem:[%s3580] ss:$2 sm:$0xff]
    %v5257 = vld [vmem:[%s3582] ss:$2 sm:$0xff]
    %v5258 = vld [vmem:[%s3584] ss:$2 sm:$0xff]
    %v5259 = vld [vmem:[%s3586] ss:$2 sm:$0xff]
    %v5260 = vld [vmem:[%s3588] ss:$2 sm:$0x1]
    %v5261 = vld [vmem:[%s3590] ss:$2 sm:$0xff]
    %v5262 = vld [vmem:[%s3592] ss:$2 sm:$0xff]
    %v5263 = vld [vmem:[%s3594] ss:$2 sm:$0xff]
    %v5264 = vld [vmem:[%s3596] ss:$2 sm:$0xff]
    %v5265 = vld [vmem:[%s3598] ss:$2 sm:$0xff]
    %v5266 = vld [vmem:[%s3600] ss:$2 sm:$0xff]
    %v5267 = vld [vmem:[%s3602] ss:$2 sm:$0xff]
    %v5268 = vld [vmem:[%s3604] ss:$2 sm:$0x1]
    %v5269 = vld [vmem:[%s3606] ss:$2 sm:$0xff]
    %v5270 = vld [vmem:[%s3608] ss:$2 sm:$0xff]
    %v5271 = vld [vmem:[%s3610] ss:$2 sm:$0xff]
    %v5272 = vld [vmem:[%s3612] ss:$2 sm:$0xff]
    %v5273 = vld [vmem:[%s3614] ss:$2 sm:$0xff]
    %v5274 = vld [vmem:[%s3616] ss:$2 sm:$0xff]
    %v5275 = vld [vmem:[%s3618] ss:$2 sm:$0xff]
    %v5276 = vld [vmem:[%s3620] ss:$2 sm:$0x1]
    %v5277 = vld [vmem:[%s3622] ss:$2 sm:$0xff]
    %v5278 = vld [vmem:[%s3624] ss:$2 sm:$0xff]
    %v5279 = vld [vmem:[%s3626] ss:$2 sm:$0xff]
    %v5280 = vld [vmem:[%s3628] ss:$2 sm:$0xff]
    %v5281 = vld [vmem:[%s3630] ss:$2 sm:$0xff]
    %v5282 = vld [vmem:[%s3632] ss:$2 sm:$0xff]
    %v5283 = vld [vmem:[%s3634] ss:$2 sm:$0xff]
    %v5284 = vld [vmem:[%s3636] ss:$2 sm:$0x1]
    %v5285 = vld [vmem:[%s3638] ss:$2 sm:$0xff]
    %v5286 = vld [vmem:[%s3640] ss:$2 sm:$0xff]
    %v5287 = vld [vmem:[%s3642] ss:$2 sm:$0xff]
    %v5288 = vld [vmem:[%s3644] ss:$2 sm:$0xff]
    %v5289 = vld [vmem:[%s3646] ss:$2 sm:$0xff]
    %v5290 = vld [vmem:[%s3648] ss:$2 sm:$0xff]
    %v5291 = vld [vmem:[%s3650] ss:$2 sm:$0xff]
    %v5292 = vld [vmem:[%s3652] ss:$2 sm:$0x1]
    %v5293 = vld [vmem:[%s3654] ss:$2 sm:$0xff]
    %v5294 = vld [vmem:[%s3656] ss:$2 sm:$0xff]
    %v5295 = vld [vmem:[%s3658] ss:$2 sm:$0xff]
    %v5296 = vld [vmem:[%s3660] ss:$2 sm:$0xff]
    %v5297 = vld [vmem:[%s3662] ss:$2 sm:$0xff]
    %v5298 = vld [vmem:[%s3664] ss:$2 sm:$0xff]
    %v5299 = vld [vmem:[%s3666] ss:$2 sm:$0xff]
    %v5300 = vld [vmem:[%s3668] ss:$2 sm:$0x1]
    %v5301 = vld [vmem:[%s3670] ss:$2 sm:$0xff]
    %v5302 = vld [vmem:[%s3672] ss:$2 sm:$0xff]
    %v5303 = vld [vmem:[%s3674] ss:$2 sm:$0xff]
    %v5304 = vld [vmem:[%s3676] ss:$2 sm:$0xff]
    %v5305 = vld [vmem:[%s3678] ss:$2 sm:$0xff]
    %v5306 = vld [vmem:[%s3680] ss:$2 sm:$0xff]
    %v5307 = vld [vmem:[%s3682] ss:$2 sm:$0xff]
    %v5308 = vld [vmem:[%s3684] ss:$2 sm:$0x1]
    %v5309 = vld [vmem:[%s3686] ss:$2 sm:$0xff]
    %v5310 = vld [vmem:[%s3688] ss:$2 sm:$0xff]
    %v5311 = vld [vmem:[%s3690] ss:$2 sm:$0xff]
    %v5312 = vld [vmem:[%s3692] ss:$2 sm:$0xff]
    %v5313 = vld [vmem:[%s3694] ss:$2 sm:$0xff]
    %v5314 = vld [vmem:[%s3696] ss:$2 sm:$0xff]
    %v5315 = vld [vmem:[%s3698] ss:$2 sm:$0xff]
    %v5316 = vld [vmem:[%s3700] ss:$2 sm:$0x1]
    %v5317 = vld [vmem:[%s3702] ss:$2 sm:$0xff]
    %v5318 = vld [vmem:[%s3704] ss:$2 sm:$0xff]
    %v5319 = vld [vmem:[%s3706] ss:$2 sm:$0xff]
    %v5320 = vld [vmem:[%s3708] ss:$2 sm:$0xff]
    %v5321 = vld [vmem:[%s3710] ss:$2 sm:$0xff]
    %v5322 = vld [vmem:[%s3712] ss:$2 sm:$0xff]
    %v5323 = vld [vmem:[%s3714] ss:$2 sm:$0xff]
    %v5324 = vld [vmem:[%s3716] ss:$2 sm:$0x1]
    %5333 = vrot.lane.b32.xlu0 %v5253, 16
    %v5334 = vpop.permute.xlu0 %5333
    %5335 = vrot.lane.b32.xlu0 %v5254, 16
    %v5336 = vpop.permute.xlu0 %5335
    %5337 = vrot.lane.b32.xlu0 %v5255, 16
    %v5338 = vpop.permute.xlu0 %5337
    %5339 = vrot.lane.b32.xlu0 %v5256, 16
    %v5340 = vpop.permute.xlu0 %5339
    %5341 = vrot.lane.b32.xlu0 %v5257, 16
    %v5342 = vpop.permute.xlu0 %5341
    %5343 = vrot.lane.b32.xlu0 %v5258, 16
    %v5344 = vpop.permute.xlu0 %5343
    %5345 = vrot.lane.b32.xlu0 %v5259, 16
    %v5346 = vpop.permute.xlu0 %5345
    %5347 = vrot.lane.b32.xlu0 %v5260, 16
    %v5348 = vpop.permute.xlu0 %5347
    %5365 = vrot.lane.b32.xlu0 %v5261, 32
    %v5366 = vpop.permute.xlu0 %5365
    %5367 = vrot.lane.b32.xlu0 %v5262, 32
    %v5368 = vpop.permute.xlu0 %5367
    %5369 = vrot.lane.b32.xlu0 %v5263, 32
    %v5370 = vpop.permute.xlu0 %5369
    %5371 = vrot.lane.b32.xlu0 %v5264, 32
    %v5372 = vpop.permute.xlu0 %5371
    %5373 = vrot.lane.b32.xlu0 %v5265, 32
    %v5374 = vpop.permute.xlu0 %5373
    %5375 = vrot.lane.b32.xlu0 %v5266, 32
    %v5376 = vpop.permute.xlu0 %5375
    %5377 = vrot.lane.b32.xlu0 %v5267, 32
    %v5378 = vpop.permute.xlu0 %5377
    %5379 = vrot.lane.b32.xlu0 %v5268, 32
    %v5380 = vpop.permute.xlu0 %5379
    %5397 = vrot.lane.b32.xlu0 %v5269, 48
    %v5398 = vpop.permute.xlu0 %5397
    %5399 = vrot.lane.b32.xlu0 %v5270, 48
    %v5400 = vpop.permute.xlu0 %5399
    %5401 = vrot.lane.b32.xlu0 %v5271, 48
    %v5402 = vpop.permute.xlu0 %5401
    %5403 = vrot.lane.b32.xlu0 %v5272, 48
    %v5404 = vpop.permute.xlu0 %5403
    %5405 = vrot.lane.b32.xlu0 %v5273, 48
    %v5406 = vpop.permute.xlu0 %5405
    %5407 = vrot.lane.b32.xlu0 %v5274, 48
    %v5408 = vpop.permute.xlu0 %5407
    %5409 = vrot.lane.b32.xlu0 %v5275, 48
    %v5410 = vpop.permute.xlu0 %5409
    %5411 = vrot.lane.b32.xlu0 %v5276, 48
    %v5412 = vpop.permute.xlu0 %5411
    %5429 = vrot.lane.b32.xlu0 %v5277, 64
    %v5430 = vpop.permute.xlu0 %5429
    %5431 = vrot.lane.b32.xlu0 %v5278, 64
    %v5432 = vpop.permute.xlu0 %5431
    %5433 = vrot.lane.b32.xlu0 %v5279, 64
    %v5434 = vpop.permute.xlu0 %5433
    %5435 = vrot.lane.b32.xlu0 %v5280, 64
    %v5436 = vpop.permute.xlu0 %5435
    %5437 = vrot.lane.b32.xlu0 %v5281, 64
    %v5438 = vpop.permute.xlu0 %5437
    %5439 = vrot.lane.b32.xlu0 %v5282, 64
    %v5440 = vpop.permute.xlu0 %5439
    %5441 = vrot.lane.b32.xlu0 %v5283, 64
    %v5442 = vpop.permute.xlu0 %5441
    %5443 = vrot.lane.b32.xlu0 %v5284, 64
    %v5444 = vpop.permute.xlu0 %5443
    %5461 = vrot.lane.b32.xlu0 %v5285, 80
    %v5462 = vpop.permute.xlu0 %5461
    %5463 = vrot.lane.b32.xlu0 %v5286, 80
    %v5464 = vpop.permute.xlu0 %5463
    %5465 = vrot.lane.b32.xlu0 %v5287, 80
    %v5466 = vpop.permute.xlu0 %5465
    %5467 = vrot.lane.b32.xlu0 %v5288, 80
    %v5468 = vpop.permute.xlu0 %5467
    %5469 = vrot.lane.b32.xlu0 %v5289, 80
    %v5470 = vpop.permute.xlu0 %5469
    %5471 = vrot.lane.b32.xlu0 %v5290, 80
    %v5472 = vpop.permute.xlu0 %5471
    %5473 = vrot.lane.b32.xlu0 %v5291, 80
    %v5474 = vpop.permute.xlu0 %5473
    %5475 = vrot.lane.b32.xlu0 %v5292, 80
    %v5476 = vpop.permute.xlu0 %5475
    %5493 = vrot.lane.b32.xlu0 %v5293, 96
    %v5494 = vpop.permute.xlu0 %5493
    %5495 = vrot.lane.b32.xlu0 %v5294, 96
    %v5496 = vpop.permute.xlu0 %5495
    %5497 = vrot.lane.b32.xlu0 %v5295, 96
    %v5498 = vpop.permute.xlu0 %5497
    %5499 = vrot.lane.b32.xlu0 %v5296, 96
    %v5500 = vpop.permute.xlu0 %5499
    %5501 = vrot.lane.b32.xlu0 %v5297, 96
    %v5502 = vpop.permute.xlu0 %5501
    %5503 = vrot.lane.b32.xlu0 %v5298, 96
    %v5504 = vpop.permute.xlu0 %5503
    %5505 = vrot.lane.b32.xlu0 %v5299, 96
    %v5506 = vpop.permute.xlu0 %5505
    %5507 = vrot.lane.b32.xlu0 %v5300, 96
    %v5508 = vpop.permute.xlu0 %5507
    %5525 = vrot.lane.b32.xlu0 %v5301, 112
    %v5526 = vpop.permute.xlu0 %5525
    %5527 = vrot.lane.b32.xlu0 %v5302, 112
    %v5528 = vpop.permute.xlu0 %5527
    %5529 = vrot.lane.b32.xlu0 %v5303, 112
    %v5530 = vpop.permute.xlu0 %5529
    %5531 = vrot.lane.b32.xlu0 %v5304, 112
    %v5532 = vpop.permute.xlu0 %5531
    %5533 = vrot.lane.b32.xlu0 %v5305, 112
    %v5534 = vpop.permute.xlu0 %5533
    %5535 = vrot.lane.b32.xlu0 %v5306, 112
    %v5536 = vpop.permute.xlu0 %5535
    %5537 = vrot.lane.b32.xlu0 %v5307, 112
    %v5538 = vpop.permute.xlu0 %5537
    %5539 = vrot.lane.b32.xlu0 %v5308, 112
    %v5540 = vpop.permute.xlu0 %5539
    %5557 = vrot.lane.b32.xlu0 %v5317, 16
    %v5558 = vpop.permute.xlu0 %5557
    %5559 = vrot.lane.b32.xlu0 %v5318, 16
    %v5560 = vpop.permute.xlu0 %5559
    %5561 = vrot.lane.b32.xlu0 %v5319, 16
    %v5562 = vpop.permute.xlu0 %5561
    %5563 = vrot.lane.b32.xlu0 %v5320, 16
    %v5564 = vpop.permute.xlu0 %5563
    %5565 = vrot.lane.b32.xlu0 %v5321, 16
    %v5566 = vpop.permute.xlu0 %5565
    %5567 = vrot.lane.b32.xlu0 %v5322, 16
    %v5568 = vpop.permute.xlu0 %5567
    %5569 = vrot.lane.b32.xlu0 %v5323, 16
    %v5570 = vpop.permute.xlu0 %5569
    %5571 = vrot.lane.b32.xlu0 %v5324, 16
    %v5572 = vpop.permute.xlu0 %5571
    %v5581 = vsel %vm2392, %v5245, %v5334
    %v5582 = vsel %vm2392, %v5246, %v5336
    %v5583 = vsel %vm2392, %v5247, %v5338
    %v5584 = vsel %vm2392, %v5248, %v5340
    %v5585 = vsel %vm2392, %v5249, %v5342
    %v5586 = vsel %vm2392, %v5250, %v5344
    %v5587 = vsel %vm2392, %v5251, %v5346
    %v5588 = vsel %vm2392, %v5252, %v5348
    %v5589 = vsel %vm556, %v5581, %v5366
    %v5590 = vsel %vm556, %v5582, %v5368
    %v5591 = vsel %vm556, %v5583, %v5370
    %v5592 = vsel %vm556, %v5584, %v5372
    %v5593 = vsel %vm556, %v5585, %v5374
    %v5594 = vsel %vm556, %v5586, %v5376
    %v5595 = vsel %vm556, %v5587, %v5378
    %v5596 = vsel %vm556, %v5588, %v5380
    %v5597 = vsel %vm3234, %v5589, %v5398
    %v5598 = vsel %vm3234, %v5590, %v5400
    %v5599 = vsel %vm3234, %v5591, %v5402
    %v5600 = vsel %vm3234, %v5592, %v5404
    %v5601 = vsel %vm3234, %v5593, %v5406
    %v5602 = vsel %vm3234, %v5594, %v5408
    %v5603 = vsel %vm3234, %v5595, %v5410
    %v5604 = vsel %vm3234, %v5596, %v5412
    %v5605 = vsel %vm3250, %v5597, %v5430
    %v5606 = vsel %vm3250, %v5598, %v5432
    %v5607 = vsel %vm3250, %v5599, %v5434
    %v5608 = vsel %vm3250, %v5600, %v5436
    %v5609 = vsel %vm3250, %v5601, %v5438
    %v5610 = vsel %vm3250, %v5602, %v5440
    %v5611 = vsel %vm3250, %v5603, %v5442
    %v5612 = vsel %vm3250, %v5604, %v5444
    %v5613 = vsel %vm3266, %v5605, %v5462
    %v5614 = vsel %vm3266, %v5606, %v5464
    %v5615 = vsel %vm3266, %v5607, %v5466
    %v5616 = vsel %vm3266, %v5608, %v5468
    %v5617 = vsel %vm3266, %v5609, %v5470
    %v5618 = vsel %vm3266, %v5610, %v5472
    %v5619 = vsel %vm3266, %v5611, %v5474
    %v5620 = vsel %vm3266, %v5612, %v5476
    %v5621 = vsel %vm3282, %v5613, %v5494
    %v5622 = vsel %vm3282, %v5614, %v5496
    %v5623 = vsel %vm3282, %v5615, %v5498
    %v5624 = vsel %vm3282, %v5616, %v5500
    %v5625 = vsel %vm3282, %v5617, %v5502
    %v5626 = vsel %vm3282, %v5618, %v5504
    %v5627 = vsel %vm3282, %v5619, %v5506
    %v5628 = vsel %vm3282, %v5620, %v5508
    %v5629 = vsel %vm3298, %v5621, %v5526
    %v5630 = vsel %vm3298, %v5622, %v5528
    %v5631 = vsel %vm3298, %v5623, %v5530
    %v5632 = vsel %vm3298, %v5624, %v5532
    %v5633 = vsel %vm3298, %v5625, %v5534
    %v5634 = vsel %vm3298, %v5626, %v5536
    %v5635 = vsel %vm3298, %v5627, %v5538
    %v5636 = vsel %vm3298, %v5628, %v5540
    %v5637 = vsel %vm2392, %v5309, %v5558
    %v5638 = vsel %vm2392, %v5310, %v5560
    %v5639 = vsel %vm2392, %v5311, %v5562
    %v5640 = vsel %vm2392, %v5312, %v5564
    %v5641 = vsel %vm2392, %v5313, %v5566
    %v5642 = vsel %vm2392, %v5314, %v5568
    %v5643 = vsel %vm2392, %v5315, %v5570
    %v5644 = vsel %vm2392, %v5316, %v5572
    %v5646 = vsel %vm556, %v5637, 0
    %v5649 = vsel %vm556, %v5638, 0
    %v5652 = vsel %vm556, %v5639, 0
    %v5655 = vsel %vm556, %v5640, 0
    %v5658 = vsel %vm556, %v5641, 0
    %v5661 = vsel %vm556, %v5642, 0
    %v5664 = vsel %vm556, %v5643, 0
    %v5667 = vsel %vm556, %v5644, 0
    %5669 = vmatpush.msra.mxu0 %v2386
    %5670 = vmatpush.msra.mxu0 %v2385
    %5671 = vmatpush.msra.mxu0 %v2384
    %5672 = vmatpush.msra.mxu0 %v2383
    %5673 = vmatpush.msra.mxu0 %v2382
    %5674 = vmatpush.msra.mxu0 %v2381
    %5675 = vmatpush.msra.mxu0 %v2380
    %5676 = vmatpush.msra.mxu0 %v2379
    %5677 = vmatpush.msra.mxu0 %v2378
    %5678 = vmatpush.msra.mxu0 %v2377
    %5679 = vmatpush.msra.mxu0 %v2376
    %5680 = vmatpush.msra.mxu0 %v2375
    %5681 = vmatpush.msra.mxu0 %v2374
    %5682 = vmatpush.msra.mxu0 %v2373
    %5683 = vmatpush.msra.mxu0 %v2372
    %5684 = vmatpush.msra.mxu0 %v2371
    %5685 = vmatmul.f32.gmra.mxu0 %v5629
    %v5686 = vpop.f32.mrf.mxu0
    %v5687 = vadd.f32 %v4038, %v5686
    %5688 = vmatmul.f32.gmra.mxu0 %v5630
    %v5689 = vpop.f32.mrf.mxu0
    %v5690 = vadd.f32 %v4038, %v5689
    %5691 = vmatmul.f32.gmra.mxu0 %v5631
    %v5692 = vpop.f32.mrf.mxu0
    %v5693 = vadd.f32 %v4038, %v5692
    %5694 = vmatmul.f32.gmra.mxu0 %v5632
    %v5695 = vpop.f32.mrf.mxu0
    %v5696 = vadd.f32 %v4038, %v5695
    %5697 = vmatmul.f32.gmra.mxu0 %v5633
    %v5698 = vpop.f32.mrf.mxu0
    %v5699 = vadd.f32 %v4038, %v5698
    %5700 = vmatmul.f32.gmra.mxu0 %v5634
    %v5701 = vpop.f32.mrf.mxu0
    %v5702 = vadd.f32 %v4038, %v5701
    %5703 = vmatmul.f32.gmra.mxu0 %v5635
    %v5704 = vpop.f32.mrf.mxu0
    %v5705 = vadd.f32 %v4038, %v5704
    %5706 = vmatmul.f32.gmra.mxu0 %v5636
    %v5707 = vpop.f32.mrf.mxu0
    %5708 = vdwg.mxu0
    %5709 = vmatpush.msra.mxu0 0.0
    %5710 = vmatpush.msra.mxu0 0.0
    %5711 = vmatpush.msra.mxu0 0.0
    %5712 = vmatpush.msra.mxu0 0.0
    %5713 = vmatpush.msra.mxu0 0.0
    %5714 = vmatpush.msra.mxu0 0.0
    %5715 = vmatpush.msra.mxu0 0.0
    %5716 = vmatpush.msra.mxu0 0.0
    %5717 = vmatpush.msra.mxu0 0.0
    %5718 = vmatpush.msra.mxu0 0.0
    %5719 = vmatpush.msra.mxu0 0.0
    %5720 = vmatpush.msra.mxu0 0.0
    %5721 = vmatpush.msra.mxu0 %v2390
    %5722 = vmatpush.msra.mxu0 %v2389
    %5723 = vmatpush.msra.mxu0 %v2388
    %5724 = vmatpush.msra.mxu0 %v2387
    %5725 = vmatmul.f32.gmra.mxu0 %v5646
    %v5726 = vpop.f32.mrf.mxu0
    %v5727 = vadd.f32 %v5687, %v5726
    %5728 = vmatmul.f32.gmra.mxu0 %v5649
    %v5729 = vpop.f32.mrf.mxu0
    %v5730 = vadd.f32 %v5690, %v5729
    %5731 = vmatmul.f32.gmra.mxu0 %v5652
    %v5732 = vpop.f32.mrf.mxu0
    %v5733 = vadd.f32 %v5693, %v5732
    %5734 = vmatmul.f32.gmra.mxu0 %v5655
    %v5735 = vpop.f32.mrf.mxu0
    %v5736 = vadd.f32 %v5696, %v5735
    %5737 = vmatmul.f32.gmra.mxu0 %v5658
    %v5738 = vpop.f32.mrf.mxu0
    %v5739 = vadd.f32 %v5699, %v5738
    %5740 = vmatmul.f32.gmra.mxu0 %v5661
    %v5741 = vpop.f32.mrf.mxu0
    %v5742 = vadd.f32 %v5702, %v5741
    %5743 = vmatmul.f32.gmra.mxu0 %v5664
    %v5744 = vpop.f32.mrf.mxu0
    %v5745 = vadd.f32 %v5705, %v5744
    %5746 = vmatmul.f32.gmra.mxu0 %v5667
    %v5747 = vpop.f32.mrf.mxu0
    %5748 = vdwg.mxu0
    %vm5749 = vcmp.gt.f32.partialorder %v5727, 0.0
    %vm5750 = vcmp.gt.f32.partialorder %v5730, 0.0
    %vm5751 = vcmp.gt.f32.partialorder %v5733, 0.0
    %vm5752 = vcmp.gt.f32.partialorder %v5736, 0.0
    %vm5753 = vcmp.gt.f32.partialorder %v5739, 0.0
    %vm5754 = vcmp.gt.f32.partialorder %v5742, 0.0
    %vm5755 = vcmp.gt.f32.partialorder %v5745, 0.0
    %v5756 = vmul.f32 %v5727, 0.01
    %v5757 = vmul.f32 %v5730, 0.01
    %v5758 = vmul.f32 %v5733, 0.01
    %v5759 = vmul.f32 %v5736, 0.01
    %v5760 = vmul.f32 %v5739, 0.01
    %v5761 = vmul.f32 %v5742, 0.01
    %v5762 = vmul.f32 %v5745, 0.01
    %v5763 = vsel %vm5749, %v5727, %v5756
    %v5764 = vsel %vm5750, %v5730, %v5757
    %v5765 = vsel %vm5751, %v5733, %v5758
    %v5766 = vsel %vm5752, %v5736, %v5759
    %v5767 = vsel %vm5753, %v5739, %v5760
    %v5768 = vsel %vm5754, %v5742, %v5761
    %v5769 = vsel %vm5755, %v5745, %v5762
    %v5770 = vsel %vm2392, %v5763, -inf
    %v5771 = vsel %vm4165, %v5764, -inf
    %v5772 = vmax.f32 %v5770, %v5771
    %v5773 = vrot.slane %v5772, 4
    %v5774 = vmax.f32 %v5772, %v5773
    %v5775 = vrot.slane %v5774, 2
    %v5776 = vmax.f32 %v5774, %v5775
    %v5777 = vrot.slane %v5776, 1
    %v5778 = vmax.f32 %v5776, %v5777
    %v5779 = vsel %vm4174, %v5764, -inf
    %v5780 = vsel %vm4176, %v5765, -inf
    %v5781 = vmax.f32 %v5779, %v5780
    %v5782 = vrot.slane %v5781, 4
    %v5783 = vmax.f32 %v5781, %v5782
    %v5784 = vrot.slane %v5783, 2
    %v5785 = vmax.f32 %v5783, %v5784
    %v5786 = vrot.slane %v5785, 1
    %v5787 = vmax.f32 %v5785, %v5786
    %v5788 = vsel %vm4185, %v5765, -inf
    %v5789 = vsel %vm4187, %v5766, -inf
    %v5790 = vmax.f32 %v5788, %v5789
    %v5791 = vrot.slane %v5790, 4
    %v5792 = vmax.f32 %v5790, %v5791
    %v5793 = vrot.slane %v5792, 2
    %v5794 = vmax.f32 %v5792, %v5793
    %v5795 = vrot.slane %v5794, 1
    %v5796 = vmax.f32 %v5794, %v5795
    %v5797 = vsel %vm4196, %v5766, -inf
    %v5798 = vsel %vm2392, %v5767, -inf
    %v5799 = vmax.f32 %v5797, %v5798
    %v5800 = vrot.slane %v5799, 4
    %v5801 = vmax.f32 %v5799, %v5800
    %v5802 = vrot.slane %v5801, 2
    %v5803 = vmax.f32 %v5801, %v5802
    %v5804 = vrot.slane %v5803, 1
    %v5805 = vmax.f32 %v5803, %v5804
    %v5806 = vsel %vm2392, %v5768, -inf
    %v5807 = vsel %vm4165, %v5769, -inf
    %v5808 = vmax.f32 %v5806, %v5807
    %v5809 = vrot.slane %v5808, 4
    %v5810 = vmax.f32 %v5808, %v5809
    %v5811 = vrot.slane %v5810, 2
    %v5812 = vmax.f32 %v5810, %v5811
    %v5813 = vrot.slane %v5812, 1
    %v5814 = vmax.f32 %v5812, %v5813
    %5816 = vrot.lane.b32.xlu0 %v5787, 16
    %v5817 = vpop.permute.xlu0 %5816
    %5820 = vrot.lane.b32.xlu0 %v5796, 32
    %v5821 = vpop.permute.xlu0 %5820
    %5824 = vrot.lane.b32.xlu0 %v5805, 48
    %v5825 = vpop.permute.xlu0 %5824
    %5828 = vrot.lane.b32.xlu0 %v5814, 64
    %v5829 = vpop.permute.xlu0 %5828
    %v5831 = vsel %vm2392, %v5778, %v5817
    %v5832 = vsel %vm556, %v5831, %v5821
    %v5833 = vsel %vm3234, %v5832, %v5825
    %v5834 = vsel %vm3250, %v5833, %v5829
    %v5836 = vrot.slane %v5834, 7
    %vm5838 = vcmask 1040384
    %v5839 = vsel %vm5838, %v4234, %v5836
    %v5840 = vld [vmem:[%s2] sm:$0xff]
    %v5841 = vld [vmem:[%s2 + $0x8] sm:$0xff]
    %v5842 = vld [vmem:[%s2 + $0x10] sm:$0xff]
    %v5843 = vld [vmem:[%s2 + $0x18] sm:$0xff]
    %v5844 = vld [vmem:[%s2 + $0x20] sm:$0xff]
    %v5845 = vld [vmem:[%s2 + $0x28] sm:$0xff]
    %v5846 = vld [vmem:[%s2 + $0x30] sm:$0xff]
    %v5847 = vld [vmem:[%s2 + $0x38] sm:$0xff]
    %v5848 = vld [vmem:[%s2 + $0x40] sm:$0xff]
    %v5849 = vld [vmem:[%s2 + $0x48] sm:$0xff]
    %v5850 = vld [vmem:[%s2 + $0x50] sm:$0xff]
    %v5851 = vld [vmem:[%s2 + $0x58] sm:$0xff]
    %v5852 = vld [vmem:[%s2 + $0x60] sm:$0xff]
    %v5853 = vld [vmem:[%s2 + $0x68] sm:$0xff]
    %v5854 = vld [vmem:[%s2 + $0x70] sm:$0xff]
    %v5855 = vld [vmem:[%s2 + $0x78] sm:$0xff]
    %v5856 = vld [vmem:[%s2 + $0x80] sm:$0xff]
    %v5857 = vld [vmem:[%s2 + $0x88] sm:$0xff]
    %v5858 = vld [vmem:[%s2 + $0x90] sm:$0xff]
    %v5859 = vld [vmem:[%s2 + $0x98] sm:$0xff]
    %v5860 = vld [vmem:[%s2 + $0xa0] sm:$0xff]
    %v5861 = vld [vmem:[%s2 + $0xa8] sm:$0xff]
    %v5862 = vld [vmem:[%s2 + $0xb0] sm:$0xff]
    %v5863 = vld [vmem:[%s2 + $0xb8] sm:$0xff]
    %v5864 = vld [vmem:[%s2 + $0xc0] sm:$0xff]
    %v5865 = vld [vmem:[%s2 + $0xc8] sm:$0xff]
    %v5866 = vld [vmem:[%s2 + $0xd0] sm:$0xff]
    %v5867 = vld [vmem:[%s2 + $0xd8] sm:$0xff]
    %v5868 = vld [vmem:[%s2 + $0xe0] sm:$0xff]
    %v5869 = vld [vmem:[%s2 + $0xe8] sm:$0xff]
    %s5870 = scalar_lea.vmem %s2, 1392
    %v5871 = vld [vmem:[%s5870] ss:$8 sm:$0x7]
    %v5873 = vperm.slane %v5871, 0
    %v5874 = vperm.slane %v5871, 1
    %v5875 = vperm.slane %v5871, 2
    %v5880 = vsel %vm3266, %v5839, 0
    %5882 = vmatpush.msra.mxu0 0.0
    %5883 = vmatpush.msra.mxu0 0.0
    %5884 = vmatpush.msra.mxu0 0.0
    %5885 = vmatpush.msra.mxu0 0.0
    %5886 = vmatpush.msra.mxu0 0.0
    %5887 = vmatpush.msra.mxu0 0.0
    %5888 = vmatpush.msra.mxu0 %v5867
    %5889 = vmatpush.msra.mxu0 %v5864
    %5890 = vmatpush.msra.mxu0 %v5861
    %5891 = vmatpush.msra.mxu0 %v5858
    %5892 = vmatpush.msra.mxu0 %v5855
    %5893 = vmatpush.msra.mxu0 %v5852
    %5894 = vmatpush.msra.mxu0 %v5849
    %5895 = vmatpush.msra.mxu0 %v5846
    %5896 = vmatpush.msra.mxu0 %v5843
    %5897 = vmatpush.msra.mxu0 %v5840
    %5898 = vmatmul.f32.gmra.mxu0 %v5880
    %v5899 = vpop.f32.mrf.mxu0
    %v5900 = vadd.f32 %v5873, %v5899
    %5901 = vdwg.mxu0
    %5902 = vmatpush.msra.mxu0 0.0
    %5903 = vmatpush.msra.mxu0 0.0
    %5904 = vmatpush.msra.mxu0 0.0
    %5905 = vmatpush.msra.mxu0 0.0
    %5906 = vmatpush.msra.mxu0 0.0
    %5907 = vmatpush.msra.mxu0 0.0
    %5908 = vmatpush.msra.mxu0 %v5868
    %5909 = vmatpush.msra.mxu0 %v5865
    %5910 = vmatpush.msra.mxu0 %v5862
    %5911 = vmatpush.msra.mxu0 %v5859
    %5912 = vmatpush.msra.mxu0 %v5856
    %5913 = vmatpush.msra.mxu0 %v5853
    %5914 = vmatpush.msra.mxu0 %v5850
    %5915 = vmatpush.msra.mxu0 %v5847
    %5916 = vmatpush.msra.mxu0 %v5844
    %5917 = vmatpush.msra.mxu0 %v5841
    %5918 = vmatmul.f32.gmra.mxu0 %v5880
    %v5919 = vpop.f32.mrf.mxu0
    %v5920 = vadd.f32 %v5874, %v5919
    %5921 = vdwg.mxu0
    %5922 = vmatpush.msra.mxu0 0.0
    %5923 = vmatpush.msra.mxu0 0.0
    %5924 = vmatpush.msra.mxu0 0.0
    %5925 = vmatpush.msra.mxu0 0.0
    %5926 = vmatpush.msra.mxu0 0.0
    %5927 = vmatpush.msra.mxu0 0.0
    %5928 = vmatpush.msra.mxu0 %v5869
    %5929 = vmatpush.msra.mxu0 %v5866
    %5930 = vmatpush.msra.mxu0 %v5863
    %5931 = vmatpush.msra.mxu0 %v5860
    %5932 = vmatpush.msra.mxu0 %v5857
    %5933 = vmatpush.msra.mxu0 %v5854
    %5934 = vmatpush.msra.mxu0 %v5851
    %5935 = vmatpush.msra.mxu0 %v5848
    %5936 = vmatpush.msra.mxu0 %v5845
    %5937 = vmatpush.msra.mxu0 %v5842
    %5938 = vmatmul.f32.gmra.mxu0 %v5880
    %v5939 = vpop.f32.mrf.mxu0
    %v5940 = vadd.f32 %v5875, %v5939
    %5941 = vdwg.mxu0
    %vm5942 = vcmp.gt.f32.partialorder %v5900, 0.0
    %vm5943 = vcmp.gt.f32.partialorder %v5920, 0.0
    %vm5944 = vcmp.gt.f32.partialorder %v5940, 0.0
    %v5945 = vmul.f32 %v5900, 0.01
    %v5946 = vmul.f32 %v5920, 0.01
    %v5947 = vmul.f32 %v5940, 0.01
    %v5948 = vsel %vm5942, %v5900, %v5945
    %v5949 = vsel %vm5943, %v5920, %v5946
    %v5950 = vsel %vm5944, %v5940, %v5947
    %v5951 = vld [vmem:[%s2 + $0xf0] sm:$0xff]
    %v5952 = vld [vmem:[%s2 + $0xf8] sm:$0xff]
    %v5953 = vld [vmem:[%s2 + $0x100] sm:$0xff]
    %v5954 = vld [vmem:[%s2 + $0x108] sm:$0xff]
    %v5955 = vld [vmem:[%s2 + $0x110] sm:$0xff]
    %v5956 = vld [vmem:[%s2 + $0x118] sm:$0xff]
    %v5957 = vld [vmem:[%s2 + $0x120] sm:$0xff]
    %v5958 = vld [vmem:[%s2 + $0x128] sm:$0xff]
    %v5959 = vld [vmem:[%s2 + $0x130] sm:$0xff]
    %v5960 = vld [vmem:[%s2 + $0x138] sm:$0xff]
    %v5961 = vld [vmem:[%s2 + $0x140] sm:$0xff]
    %v5962 = vld [vmem:[%s2 + $0x148] sm:$0xff]
    %v5963 = vld [vmem:[%s2 + $0x150] sm:$0xff]
    %v5964 = vld [vmem:[%s2 + $0x158] sm:$0xff]
    %v5965 = vld [vmem:[%s2 + $0x160] sm:$0xff]
    %v5966 = vld [vmem:[%s2 + $0x168] sm:$0xff]
    %v5967 = vld [vmem:[%s2 + $0x170] sm:$0xff]
    %v5968 = vld [vmem:[%s2 + $0x178] sm:$0xff]
    %v5969 = vld [vmem:[%s2 + $0x180] sm:$0xff]
    %v5970 = vld [vmem:[%s2 + $0x188] sm:$0xff]
    %v5971 = vld [vmem:[%s2 + $0x190] sm:$0xff]
    %v5972 = vld [vmem:[%s2 + $0x198] sm:$0xff]
    %v5973 = vld [vmem:[%s2 + $0x1a0] sm:$0xff]
    %v5974 = vld [vmem:[%s2 + $0x1a8] sm:$0xff]
    %v5975 = vld [vmem:[%s2 + $0x1b0] sm:$0xff]
    %v5976 = vld [vmem:[%s2 + $0x1b8] sm:$0xff]
    %v5977 = vld [vmem:[%s2 + $0x1c0] sm:$0xff]
    %v5978 = vld [vmem:[%s2 + $0x1c8] sm:$0xff]
    %v5979 = vld [vmem:[%s2 + $0x1d0] sm:$0xff]
    %v5980 = vld [vmem:[%s2 + $0x1d8] sm:$0xff]
    %v5981 = vld [vmem:[%s2 + $0x1e0] sm:$0xff]
    %v5982 = vld [vmem:[%s2 + $0x1e8] sm:$0xff]
    %v5983 = vld [vmem:[%s2 + $0x1f0] sm:$0xff]
    %v5984 = vld [vmem:[%s2 + $0x1f8] sm:$0xff]
    %v5985 = vld [vmem:[%s2 + $0x200] sm:$0xff]
    %v5986 = vld [vmem:[%s2 + $0x208] sm:$0xff]
    %v5987 = vld [vmem:[%s2 + $0x210] sm:$0xff]
    %v5988 = vld [vmem:[%s2 + $0x218] sm:$0xff]
    %v5989 = vld [vmem:[%s2 + $0x220] sm:$0xff]
    %v5990 = vld [vmem:[%s2 + $0x228] sm:$0xff]
    %v5991 = vld [vmem:[%s2 + $0x230] sm:$0xff]
    %v5992 = vld [vmem:[%s2 + $0x238] sm:$0xff]
    %v5993 = vld [vmem:[%s2 + $0x240] sm:$0xff]
    %v5994 = vld [vmem:[%s2 + $0x248] sm:$0xff]
    %v5995 = vld [vmem:[%s2 + $0x250] sm:$0xff]
    %v5996 = vld [vmem:[%s2 + $0x258] sm:$0xff]
    %v5997 = vld [vmem:[%s2 + $0x260] sm:$0xff]
    %v5998 = vld [vmem:[%s2 + $0x268] sm:$0xff]
    %v5999 = vld [vmem:[%s2 + $0x270] sm:$0xff]
    %v6000 = vld [vmem:[%s2 + $0x278] sm:$0xff]
    %v6001 = vld [vmem:[%s2 + $0x280] sm:$0xff]
    %v6002 = vld [vmem:[%s2 + $0x288] sm:$0xff]
    %v6003 = vld [vmem:[%s2 + $0x290] sm:$0xff]
    %v6004 = vld [vmem:[%s2 + $0x298] sm:$0xff]
    %v6005 = vld [vmem:[%s2 + $0x2a0] sm:$0xff]
    %v6006 = vld [vmem:[%s2 + $0x2a8] sm:$0xff]
    %v6007 = vld [vmem:[%s2 + $0x2b0] sm:$0xff]
    %v6008 = vld [vmem:[%s2 + $0x2b8] sm:$0xff]
    %v6009 = vld [vmem:[%s2 + $0x2c0] sm:$0xff]
    %v6010 = vld [vmem:[%s2 + $0x2c8] sm:$0xff]
    %v6011 = vld [vmem:[%s2 + $0x2d0] sm:$0xff]
    %v6012 = vld [vmem:[%s2 + $0x2d8] sm:$0xff]
    %v6013 = vld [vmem:[%s2 + $0x2e0] sm:$0xff]
    %v6014 = vld [vmem:[%s2 + $0x2e8] sm:$0xff]
    %v6015 = vld [vmem:[%s2 + $0x2f0] sm:$0xff]
    %v6016 = vld [vmem:[%s2 + $0x2f8] sm:$0xff]
    %v6017 = vld [vmem:[%s2 + $0x300] sm:$0xff]
    %v6018 = vld [vmem:[%s2 + $0x308] sm:$0xff]
    %v6019 = vld [vmem:[%s2 + $0x310] sm:$0xff]
    %v6020 = vld [vmem:[%s2 + $0x318] sm:$0xff]
    %v6021 = vld [vmem:[%s2 + $0x320] sm:$0xff]
    %v6022 = vld [vmem:[%s2 + $0x328] sm:$0xff]
    %v6023 = vld [vmem:[%s2 + $0x330] sm:$0xff]
    %v6024 = vld [vmem:[%s2 + $0x338] sm:$0xff]
    %v6025 = vld [vmem:[%s2 + $0x340] sm:$0xff]
    %v6026 = vld [vmem:[%s2 + $0x348] sm:$0xff]
    %v6027 = vld [vmem:[%s2 + $0x350] sm:$0xff]
    %v6028 = vld [vmem:[%s2 + $0x358] sm:$0xff]
    %v6029 = vld [vmem:[%s2 + $0x360] sm:$0xff]
    %v6030 = vld [vmem:[%s2 + $0x368] sm:$0xff]
    %v6031 = vld [vmem:[%s2 + $0x370] sm:$0xff]
    %v6032 = vld [vmem:[%s2 + $0x378] sm:$0xff]
    %v6033 = vld [vmem:[%s2 + $0x380] sm:$0xff]
    %v6034 = vld [vmem:[%s2 + $0x388] sm:$0xff]
    %v6035 = vld [vmem:[%s2 + $0x390] sm:$0xff]
    %v6036 = vld [vmem:[%s2 + $0x398] sm:$0xff]
    %v6037 = vld [vmem:[%s2 + $0x3a0] sm:$0xff]
    %v6038 = vld [vmem:[%s2 + $0x3a8] sm:$0xff]
    %v6039 = vld [vmem:[%s2 + $0x3b0] sm:$0xff]
    %v6040 = vld [vmem:[%s2 + $0x3b8] sm:$0xff]
    %v6041 = vld [vmem:[%s2 + $0x3c0] sm:$0xff]
    %v6042 = vld [vmem:[%s2 + $0x3c8] sm:$0xff]
    %v6043 = vld [vmem:[%s2 + $0x3d0] sm:$0xff]
    %v6044 = vld [vmem:[%s2 + $0x3d8] sm:$0xff]
    %v6045 = vld [vmem:[%s2 + $0x3e0] sm:$0xff]
    %v6046 = vld [vmem:[%s2 + $0x3e8] sm:$0xff]
    %v6047 = vld [vmem:[%s2 + $0x3f0] sm:$0xff]
    %v6048 = vld [vmem:[%s2 + $0x3f8] sm:$0xff]
    %v6049 = vld [vmem:[%s2 + $0x400] sm:$0xff]
    %v6050 = vld [vmem:[%s2 + $0x408] sm:$0xff]
    %v6051 = vld [vmem:[%s2 + $0x410] sm:$0xff]
    %v6052 = vld [vmem:[%s2 + $0x418] sm:$0xff]
    %v6053 = vld [vmem:[%s2 + $0x420] sm:$0xff]
    %v6054 = vld [vmem:[%s2 + $0x428] sm:$0xff]
    %v6055 = vld [vmem:[%s2 + $0x430] sm:$0xff]
    %v6056 = vld [vmem:[%s2 + $0x438] sm:$0xff]
    %v6057 = vld [vmem:[%s2 + $0x440] sm:$0xff]
    %v6058 = vld [vmem:[%s2 + $0x448] sm:$0xff]
    %v6059 = vld [vmem:[%s2 + $0x450] sm:$0xff]
    %v6060 = vld [vmem:[%s2 + $0x458] sm:$0xff]
    %v6061 = vld [vmem:[%s2 + $0x460] sm:$0xff]
    %v6062 = vld [vmem:[%s2 + $0x468] sm:$0xff]
    %v6063 = vld [vmem:[%s2 + $0x470] sm:$0xff]
    %v6064 = vld [vmem:[%s2 + $0x478] sm:$0xff]
    %v6065 = vld [vmem:[%s2 + $0x480] sm:$0xff]
    %v6066 = vld [vmem:[%s2 + $0x488] sm:$0xff]
    %v6067 = vld [vmem:[%s2 + $0x490] sm:$0xff]
    %v6068 = vld [vmem:[%s2 + $0x498] sm:$0xff]
    %v6069 = vld [vmem:[%s2 + $0x4a0] sm:$0xff]
    %v6070 = vld [vmem:[%s2 + $0x4a8] sm:$0xff]
    %v6071 = vld [vmem:[%s2 + $0x4b0] sm:$0xff]
    %v6072 = vld [vmem:[%s2 + $0x4b8] sm:$0xff]
    %v6073 = vld [vmem:[%s2 + $0x4c0] sm:$0xff]
    %v6074 = vld [vmem:[%s2 + $0x4c8] sm:$0xff]
    %v6075 = vld [vmem:[%s2 + $0x4d0] sm:$0xff]
    %v6076 = vld [vmem:[%s2 + $0x4d8] sm:$0xff]
    %v6077 = vld [vmem:[%s2 + $0x4e0] sm:$0xff]
    %v6078 = vld [vmem:[%s2 + $0x4e8] sm:$0xff]
    %v6079 = vld [vmem:[%s2 + $0x4f0] sm:$0xff]
    %v6080 = vld [vmem:[%s2 + $0x4f8] sm:$0xff]
    %v6081 = vld [vmem:[%s2 + $0x500] sm:$0xff]
    %v6082 = vld [vmem:[%s2 + $0x508] sm:$0xff]
    %v6083 = vld [vmem:[%s2 + $0x510] sm:$0xff]
    %v6084 = vld [vmem:[%s2 + $0x518] sm:$0xff]
    %v6085 = vld [vmem:[%s2 + $0x520] sm:$0xff]
    %v6086 = vld [vmem:[%s2 + $0x528] sm:$0xff]
    %v6087 = vld [vmem:[%s2 + $0x530] sm:$0xff]
    %v6088 = vld [vmem:[%s2 + $0x538] sm:$0xff]
    %v6089 = vld [vmem:[%s2 + $0x540] sm:$0xff]
    %v6090 = vld [vmem:[%s2 + $0x548] sm:$0xff]
    %v6091 = vld [vmem:[%s2 + $0x550] sm:$0xff]
    %v6092 = vld [vmem:[%s2 + $0x558] sm:$0xff]
    %v6093 = vld [vmem:[%s2 + $0x560] sm:$0xff]
    %v6094 = vld [vmem:[%s2 + $0x568] sm:$0xff]
    %s6095 = scalar_lea.vmem %s2, 1416
    %v6096 = vld [vmem:[%s6095] ss:$8 sm:$0x7]
    %v6098 = vperm.slane %v6096, 0
    %v6099 = vperm.slane %v6096, 1
    %v6100 = vperm.slane %v6096, 2
    %6104 = vmatpush.msra.mxu0 %v5996
    %6105 = vmatpush.msra.mxu0 %v5993
    %6106 = vmatpush.msra.mxu0 %v5990
    %6107 = vmatpush.msra.mxu0 %v5987
    %6108 = vmatpush.msra.mxu0 %v5984
    %6109 = vmatpush.msra.mxu0 %v5981
    %6110 = vmatpush.msra.mxu0 %v5978
    %6111 = vmatpush.msra.mxu0 %v5975
    %6112 = vmatpush.msra.mxu0 %v5972
    %6113 = vmatpush.msra.mxu0 %v5969
    %6114 = vmatpush.msra.mxu0 %v5966
    %6115 = vmatpush.msra.mxu0 %v5963
    %6116 = vmatpush.msra.mxu0 %v5960
    %6117 = vmatpush.msra.mxu0 %v5957
    %6118 = vmatpush.msra.mxu0 %v5954
    %6119 = vmatpush.msra.mxu0 %v5951
    %6120 = vmatmul.f32.gmra.mxu0 %v5948
    %v6121 = vpop.f32.mrf.mxu0
    %v6122 = vadd.f32 %v6098, %v6121
    %6123 = vdwg.mxu0
    %6124 = vmatpush.msra.mxu0 %v6044
    %6125 = vmatpush.msra.mxu0 %v6041
    %6126 = vmatpush.msra.mxu0 %v6038
    %6127 = vmatpush.msra.mxu0 %v6035
    %6128 = vmatpush.msra.mxu0 %v6032
    %6129 = vmatpush.msra.mxu0 %v6029
    %6130 = vmatpush.msra.mxu0 %v6026
    %6131 = vmatpush.msra.mxu0 %v6023
    %6132 = vmatpush.msra.mxu0 %v6020
    %6133 = vmatpush.msra.mxu0 %v6017
    %6134 = vmatpush.msra.mxu0 %v6014
    %6135 = vmatpush.msra.mxu0 %v6011
    %6136 = vmatpush.msra.mxu0 %v6008
    %6137 = vmatpush.msra.mxu0 %v6005
    %6138 = vmatpush.msra.mxu0 %v6002
    %6139 = vmatpush.msra.mxu0 %v5999
    %6140 = vmatmul.f32.gmra.mxu0 %v5949
    %v6141 = vpop.f32.mrf.mxu0
    %v6142 = vadd.f32 %v6122, %v6141
    %6143 = vdwg.mxu0
    %6144 = vmatpush.msra.mxu0 %v6092
    %6145 = vmatpush.msra.mxu0 %v6089
    %6146 = vmatpush.msra.mxu0 %v6086
    %6147 = vmatpush.msra.mxu0 %v6083
    %6148 = vmatpush.msra.mxu0 %v6080
    %6149 = vmatpush.msra.mxu0 %v6077
    %6150 = vmatpush.msra.mxu0 %v6074
    %6151 = vmatpush.msra.mxu0 %v6071
    %6152 = vmatpush.msra.mxu0 %v6068
    %6153 = vmatpush.msra.mxu0 %v6065
    %6154 = vmatpush.msra.mxu0 %v6062
    %6155 = vmatpush.msra.mxu0 %v6059
    %6156 = vmatpush.msra.mxu0 %v6056
    %6157 = vmatpush.msra.mxu0 %v6053
    %6158 = vmatpush.msra.mxu0 %v6050
    %6159 = vmatpush.msra.mxu0 %v6047
    %6160 = vmatmul.f32.gmra.mxu0 %v5950
    %v6161 = vpop.f32.mrf.mxu0
    %v6162 = vadd.f32 %v6142, %v6161
    %6163 = vdwg.mxu0
    %6164 = vmatpush.msra.mxu0 %v5997
    %6165 = vmatpush.msra.mxu0 %v5994
    %6166 = vmatpush.msra.mxu0 %v5991
    %6167 = vmatpush.msra.mxu0 %v5988
    %6168 = vmatpush.msra.mxu0 %v5985
    %6169 = vmatpush.msra.mxu0 %v5982
    %6170 = vmatpush.msra.mxu0 %v5979
    %6171 = vmatpush.msra.mxu0 %v5976
    %6172 = vmatpush.msra.mxu0 %v5973
    %6173 = vmatpush.msra.mxu0 %v5970
    %6174 = vmatpush.msra.mxu0 %v5967
    %6175 = vmatpush.msra.mxu0 %v5964
    %6176 = vmatpush.msra.mxu0 %v5961
    %6177 = vmatpush.msra.mxu0 %v5958
    %6178 = vmatpush.msra.mxu0 %v5955
    %6179 = vmatpush.msra.mxu0 %v5952
    %6180 = vmatmul.f32.gmra.mxu0 %v5948
    %v6181 = vpop.f32.mrf.mxu0
    %v6182 = vadd.f32 %v6099, %v6181
    %6183 = vdwg.mxu0
    %6184 = vmatpush.msra.mxu0 %v6045
    %6185 = vmatpush.msra.mxu0 %v6042
    %6186 = vmatpush.msra.mxu0 %v6039
    %6187 = vmatpush.msra.mxu0 %v6036
    %6188 = vmatpush.msra.mxu0 %v6033
    %6189 = vmatpush.msra.mxu0 %v6030
    %6190 = vmatpush.msra.mxu0 %v6027
    %6191 = vmatpush.msra.mxu0 %v6024
    %6192 = vmatpush.msra.mxu0 %v6021
    %6193 = vmatpush.msra.mxu0 %v6018
    %6194 = vmatpush.msra.mxu0 %v6015
    %6195 = vmatpush.msra.mxu0 %v6012
    %6196 = vmatpush.msra.mxu0 %v6009
    %6197 = vmatpush.msra.mxu0 %v6006
    %6198 = vmatpush.msra.mxu0 %v6003
    %6199 = vmatpush.msra.mxu0 %v6000
    %6200 = vmatmul.f32.gmra.mxu0 %v5949
    %v6201 = vpop.f32.mrf.mxu0
    %v6202 = vadd.f32 %v6182, %v6201
    %6203 = vdwg.mxu0
    %6204 = vmatpush.msra.mxu0 %v6093
    %6205 = vmatpush.msra.mxu0 %v6090
    %6206 = vmatpush.msra.mxu0 %v6087
    %6207 = vmatpush.msra.mxu0 %v6084
    %6208 = vmatpush.msra.mxu0 %v6081
    %6209 = vmatpush.msra.mxu0 %v6078
    %6210 = vmatpush.msra.mxu0 %v6075
    %6211 = vmatpush.msra.mxu0 %v6072
    %6212 = vmatpush.msra.mxu0 %v6069
    %6213 = vmatpush.msra.mxu0 %v6066
    %6214 = vmatpush.msra.mxu0 %v6063
    %6215 = vmatpush.msra.mxu0 %v6060
    %6216 = vmatpush.msra.mxu0 %v6057
    %6217 = vmatpush.msra.mxu0 %v6054
    %6218 = vmatpush.msra.mxu0 %v6051
    %6219 = vmatpush.msra.mxu0 %v6048
    %6220 = vmatmul.f32.gmra.mxu0 %v5950
    %v6221 = vpop.f32.mrf.mxu0
    %v6222 = vadd.f32 %v6202, %v6221
    %6223 = vdwg.mxu0
    %6224 = vmatpush.msra.mxu0 %v5998
    %6225 = vmatpush.msra.mxu0 %v5995
    %6226 = vmatpush.msra.mxu0 %v5992
    %6227 = vmatpush.msra.mxu0 %v5989
    %6228 = vmatpush.msra.mxu0 %v5986
    %6229 = vmatpush.msra.mxu0 %v5983
    %6230 = vmatpush.msra.mxu0 %v5980
    %6231 = vmatpush.msra.mxu0 %v5977
    %6232 = vmatpush.msra.mxu0 %v5974
    %6233 = vmatpush.msra.mxu0 %v5971
    %6234 = vmatpush.msra.mxu0 %v5968
    %6235 = vmatpush.msra.mxu0 %v5965
    %6236 = vmatpush.msra.mxu0 %v5962
    %6237 = vmatpush.msra.mxu0 %v5959
    %6238 = vmatpush.msra.mxu0 %v5956
    %6239 = vmatpush.msra.mxu0 %v5953
    %6240 = vmatmul.f32.gmra.mxu0 %v5948
    %v6241 = vpop.f32.mrf.mxu0
    %v6242 = vadd.f32 %v6100, %v6241
    %6243 = vdwg.mxu0
    %6244 = vmatpush.msra.mxu0 %v6046
    %6245 = vmatpush.msra.mxu0 %v6043
    %6246 = vmatpush.msra.mxu0 %v6040
    %6247 = vmatpush.msra.mxu0 %v6037
    %6248 = vmatpush.msra.mxu0 %v6034
    %6249 = vmatpush.msra.mxu0 %v6031
    %6250 = vmatpush.msra.mxu0 %v6028
    %6251 = vmatpush.msra.mxu0 %v6025
    %6252 = vmatpush.msra.mxu0 %v6022
    %6253 = vmatpush.msra.mxu0 %v6019
    %6254 = vmatpush.msra.mxu0 %v6016
    %6255 = vmatpush.msra.mxu0 %v6013
    %6256 = vmatpush.msra.mxu0 %v6010
    %6257 = vmatpush.msra.mxu0 %v6007
    %6258 = vmatpush.msra.mxu0 %v6004
    %6259 = vmatpush.msra.mxu0 %v6001
    %6260 = vmatmul.f32.gmra.mxu0 %v5949
    %v6261 = vpop.f32.mrf.mxu0
    %v6262 = vadd.f32 %v6242, %v6261
    %6263 = vdwg.mxu0
    %6264 = vmatpush.msra.mxu0 %v6094
    %6265 = vmatpush.msra.mxu0 %v6091
    %6266 = vmatpush.msra.mxu0 %v6088
    %6267 = vmatpush.msra.mxu0 %v6085
    %6268 = vmatpush.msra.mxu0 %v6082
    %6269 = vmatpush.msra.mxu0 %v6079
    %6270 = vmatpush.msra.mxu0 %v6076
    %6271 = vmatpush.msra.mxu0 %v6073
    %6272 = vmatpush.msra.mxu0 %v6070
    %6273 = vmatpush.msra.mxu0 %v6067
    %6274 = vmatpush.msra.mxu0 %v6064
    %6275 = vmatpush.msra.mxu0 %v6061
    %6276 = vmatpush.msra.mxu0 %v6058
    %6277 = vmatpush.msra.mxu0 %v6055
    %6278 = vmatpush.msra.mxu0 %v6052
    %6279 = vmatpush.msra.mxu0 %v6049
    %6280 = vmatmul.f32.gmra.mxu0 %v5950
    %v6281 = vpop.f32.mrf.mxu0
    %v6282 = vadd.f32 %v6262, %v6281
    %6283 = vdwg.mxu0
    %vm6284 = vcmp.gt.f32.partialorder %v6162, 0.0
    %vm6285 = vcmp.gt.f32.partialorder %v6222, 0.0
    %vm6286 = vcmp.gt.f32.partialorder %v6282, 0.0
    %v6287 = vmul.f32 %v6162, 0.01
    %v6288 = vmul.f32 %v6222, 0.01
    %v6289 = vmul.f32 %v6282, 0.01
    %v6290 = vsel %vm6284, %v6162, %v6287
    %v6291 = vsel %vm6285, %v6222, %v6288
    %v6292 = vsel %vm6286, %v6282, %v6289
    %v6293 = vld [vmem:[%s1 + $0x478] sm:$0xff]
    %v6294 = vld [vmem:[%s1 + $0x480] sm:$0xff]
    %v6295 = vld [vmem:[%s1 + $0x488] sm:$0xff]
    %v6296 = vld [vmem:[%s1 + $0x490] sm:$0xff]
    %v6297 = vld [vmem:[%s1 + $0x498] sm:$0xff]
    %v6298 = vld [vmem:[%s1 + $0x4a0] sm:$0xff]
    %v6299 = vld [vmem:[%s1 + $0x4a8] sm:$0xff]
    %v6300 = vld [vmem:[%s1 + $0x4b0] sm:$0xff]
    %v6301 = vld [vmem:[%s1 + $0x4b8] sm:$0xff]
    %v6302 = vld [vmem:[%s1 + $0x4c0] sm:$0xff]
    %v6303 = vld [vmem:[%s1 + $0x4c8] sm:$0xff]
    %v6304 = vld [vmem:[%s1 + $0x4d0] sm:$0xff]
    %v6305 = vld [vmem:[%s1 + $0x4d8] sm:$0xff]
    %v6306 = vld [vmem:[%s1 + $0x4e0] sm:$0xff]
    %v6307 = vld [vmem:[%s1 + $0x4e8] sm:$0xff]
    %v6308 = vld [vmem:[%s1 + $0x4f0] sm:$0xff]
    %v6309 = vld [vmem:[%s1 + $0x4f8] sm:$0xff]
    %v6310 = vld [vmem:[%s1 + $0x500] sm:$0xff]
    %v6311 = vld [vmem:[%s1 + $0x508] sm:$0xff]
    %v6312 = vld [vmem:[%s1 + $0x510] sm:$0xff]
    %v6313 = vld [vmem:[%s1 + $0x518] sm:$0xff]
    %v6314 = vld [vmem:[%s1 + $0x520] sm:$0xff]
    %v6315 = vld [vmem:[%s1 + $0x528] sm:$0xff]
    %v6316 = vld [vmem:[%s1 + $0x530] sm:$0xff]
    %v6317 = vld [vmem:[%s1 + $0x538] sm:$0xff]
    %v6318 = vld [vmem:[%s1 + $0x540] sm:$0xff]
    %v6319 = vld [vmem:[%s1 + $0x548] sm:$0xff]
    %v6320 = vld [vmem:[%s1 + $0x550] sm:$0xff]
    %v6321 = vld [vmem:[%s1 + $0x558] sm:$0xff]
    %v6322 = vld [vmem:[%s1 + $0x560] sm:$0xff]
    %v6323 = vld [vmem:[%s1 + $0x568] sm:$0xff]
    %v6324 = vld [vmem:[%s1 + $0x570] sm:$0xff]
    %v6325 = vld [vmem:[%s1 + $0x578] sm:$0xff]
    %v6326 = vld [vmem:[%s1 + $0x580] sm:$0xff]
    %v6327 = vld [vmem:[%s1 + $0x588] sm:$0xff]
    %v6328 = vld [vmem:[%s1 + $0x590] sm:$0xff]
    %v6329 = vld [vmem:[%s1 + $0x598] sm:$0xff]
    %v6330 = vld [vmem:[%s1 + $0x5a0] sm:$0xff]
    %v6331 = vld [vmem:[%s1 + $0x5a8] sm:$0xff]
    %v6332 = vld [vmem:[%s1 + $0x5b0] sm:$0xff]
    %v6333 = vld [vmem:[%s1 + $0x5b8] sm:$0xff]
    %v6334 = vld [vmem:[%s1 + $0x5c0] sm:$0xff]
    %v6335 = vld [vmem:[%s1 + $0x5c8] sm:$0xff]
    %v6336 = vld [vmem:[%s1 + $0x5d0] sm:$0xff]
    %v6337 = vld [vmem:[%s1 + $0x5d8] sm:$0xff]
    %v6338 = vld [vmem:[%s1 + $0x5e0] sm:$0xff]
    %v6339 = vld [vmem:[%s1 + $0x5e8] sm:$0xff]
    %v6340 = vld [vmem:[%s1 + $0x5f0] sm:$0xff]
    %v6341 = vld [vmem:[%s1 + $0x5f8] sm:$0x1]
    %v6342 = vperm.slane %v6341, 0
    %6343 = vmatpush.msra.mxu0 %v6308
    %6344 = vmatpush.msra.mxu0 %v6307
    %6345 = vmatpush.msra.mxu0 %v6306
    %6346 = vmatpush.msra.mxu0 %v6305
    %6347 = vmatpush.msra.mxu0 %v6304
    %6348 = vmatpush.msra.mxu0 %v6303
    %6349 = vmatpush.msra.mxu0 %v6302
    %6350 = vmatpush.msra.mxu0 %v6301
    %6351 = vmatpush.msra.mxu0 %v6300
    %6352 = vmatpush.msra.mxu0 %v6299
    %6353 = vmatpush.msra.mxu0 %v6298
    %6354 = vmatpush.msra.mxu0 %v6297
    %6355 = vmatpush.msra.mxu0 %v6296
    %6356 = vmatpush.msra.mxu0 %v6295
    %6357 = vmatpush.msra.mxu0 %v6294
    %6358 = vmatpush.msra.mxu0 %v6293
    %6359 = vmatmul.f32.gmra.mxu0 %v6290
    %v6360 = vpop.f32.mrf.mxu0
    %v6361 = vadd.f32 %v6342, %v6360
    %6362 = vdwg.mxu0
    %6363 = vmatpush.msra.mxu0 %v6324
    %6364 = vmatpush.msra.mxu0 %v6323
    %6365 = vmatpush.msra.mxu0 %v6322
    %6366 = vmatpush.msra.mxu0 %v6321
    %6367 = vmatpush.msra.mxu0 %v6320
    %6368 = vmatpush.msra.mxu0 %v6319
    %6369 = vmatpush.msra.mxu0 %v6318
    %6370 = vmatpush.msra.mxu0 %v6317
    %6371 = vmatpush.msra.mxu0 %v6316
    %6372 = vmatpush.msra.mxu0 %v6315
    %6373 = vmatpush.msra.mxu0 %v6314
    %6374 = vmatpush.msra.mxu0 %v6313
    %6375 = vmatpush.msra.mxu0 %v6312
    %6376 = vmatpush.msra.mxu0 %v6311
    %6377 = vmatpush.msra.mxu0 %v6310
    %6378 = vmatpush.msra.mxu0 %v6309
    %6379 = vmatmul.f32.gmra.mxu0 %v6291
    %v6380 = vpop.f32.mrf.mxu0
    %v6381 = vadd.f32 %v6361, %v6380
    %6382 = vdwg.mxu0
    %6383 = vmatpush.msra.mxu0 %v6340
    %6384 = vmatpush.msra.mxu0 %v6339
    %6385 = vmatpush.msra.mxu0 %v6338
    %6386 = vmatpush.msra.mxu0 %v6337
    %6387 = vmatpush.msra.mxu0 %v6336
    %6388 = vmatpush.msra.mxu0 %v6335
    %6389 = vmatpush.msra.mxu0 %v6334
    %6390 = vmatpush.msra.mxu0 %v6333
    %6391 = vmatpush.msra.mxu0 %v6332
    %6392 = vmatpush.msra.mxu0 %v6331
    %6393 = vmatpush.msra.mxu0 %v6330
    %6394 = vmatpush.msra.mxu0 %v6329
    %6395 = vmatpush.msra.mxu0 %v6328
    %6396 = vmatpush.msra.mxu0 %v6327
    %6397 = vmatpush.msra.mxu0 %v6326
    %6398 = vmatpush.msra.mxu0 %v6325
    %6399 = vmatmul.f32.gmra.mxu0 %v6292
    %v6400 = vpop.f32.mrf.mxu0
    %v6401 = vadd.f32 %v6381, %v6400
    %6402 = vdwg.mxu0
    %v6403 = vlaneseq
    %v6404 = vand.u32 %v6403, 127
    %vm6405 = vcmp.eq.s32.totalorder %v6404, 0
    %v6406 = vtanh.pop %v6401
    %v6407 = vsel %vm6405, %v6406, %v6401
    %vm6408 = vcmask 17408
    %6409 = vst.msk [vmem:[#allocation4] sm:$0x3] %vm6408, %v6407
    // Predicated region
    $region14: #{tpu_custom_call.1} parent=1 // pred_check
      _
    $region15: #{tpu_custom_call.1} parent=1 // pred_check_branch
      %6411 = sbr.rel (0) target = $region17
    $region16: #{tpu_custom_call.1} parent=1 // pred_region
      %6413 = vsyncadd [#allocation5], 0
      %s6415 = sshll.u32 [#allocation4], 4
      %s6416 = int_to_ptr.vmem [resolvable:$true] %s6415
      %s6417 = sshll.u32 %s3, 4
      %s6418 = int_to_ptr.hbm [resolvable:$true] %s6417
      %6420 = dma.vmem_to_hbm [thread:$0]  %s6416, 32, %s6418, [#allocation5]
    $region17: #{tpu_custom_call.1} parent=1 // pred_fallthru
      _
    // Predicated region
    $region18: #{tpu_custom_call.1} parent=1 // pred_check
      _
    $region19: #{tpu_custom_call.1} parent=1 // pred_check_branch
      %6422 = sbr.rel (0) target = $region21
    $region20: #{tpu_custom_call.1} parent=1 // pred_region
      %6424 = dma.done [#allocation5], 32
    $region21: #{tpu_custom_call.1} parent=1 // pred_fallthru
      _
    %6425 = vsyncpa [#allocation5], 1

</llo_original>
